<compile_context>
chip_gen: v7x
topology: tpu7x:2x2x1
jax: 0.10.0
libtpu: 0.0.40
codegen_flags: <defaults>
</compile_context>

<pallas_src>
import jax
import jax.numpy as jnp
from jax import lax
from jax.experimental import pallas as pl
from jax.experimental.pallas import tpu as pltpu

D = 512          # input_embedding_dimensions
H = 2            # num_heads
HD = D // H      # head_dim = 256
FF = 2048        # ff_dimension
EPS = 1e-5       # nn.LayerNorm default eps


# ------------------------------ fused kernel --------------------------------

def _layernorm(z, g, b):
    mean = jnp.mean(z, axis=-1, keepdims=True)
    var = jnp.mean(jnp.square(z - mean), axis=-1, keepdims=True)   # biased var
    return (z - mean) * lax.rsqrt(var + EPS) * g + b


def _make_decoder_kernel(B, S, S_ENC):
    """Build the fused decoder-block kernel for static (B, S, S_ENC)."""
    scale = 1.0 / (HD ** 0.5)
    # contract last dim of q against last dim of k -> q @ k^T with no transpose
    dn = (((1,), (1,)), ((), ()))

    def softmax_rows(s):
        m = jnp.max(s, axis=-1, keepdims=True)
        p = jnp.exp(s - m)
        # denominator >= 1 (row max subtracted); approx recip error ~2^-12
        return p * pl.reciprocal(jnp.sum(p, axis=-1, keepdims=True), approx=True)

    def kernel(pos_ref, q_ref, k_ref, v_ref, ek_ref, ev_ref,
               wo1_ref, bo1_ref, wq2_ref, bq2_ref, wo2_ref, bo2_ref,
               wf1_ref, bf1_ref, wf2_ref, bf2_ref,
               g1_ref, b1_ref, g2_ref, b2_ref, g3_ref, b3_ref,
               o_ref):
        f32 = jnp.float32
        pos = pos_ref[...]                                      # (B*S, D)

        # hoisted causal additive mask, shared by every (batch, head)
        row = lax.broadcasted_iota(jnp.int32, (S, S), 0)
        col = lax.broadcasted_iota(jnp.int32, (S, S), 1)
        causal_bias = jnp.where(col > row, -1e30, 0.0).astype(f32)

        # ---- causal self-attention: per-head partial W_o accumulation ------
        wo1 = wo1_ref[...].astype(f32)                          # bf16 -> f32
        rows = []
        for b in range(B):
            acc = jnp.zeros((S, D), f32)
            for h in range(H):
                idx = b * H + h
                s = lax.dot_general(q_ref[idx], k_ref[idx], dn,
                                    preferred_element_type=f32) * scale
                p = softmax_rows(s + causal_bias)
                oh = jnp.dot(p, v_ref[idx], preferred_element_type=f32)
                acc = acc + jnp.dot(oh, wo1[h * HD:(h + 1) * HD, :],
                                    preferred_element_type=f32)
            rows.append(acc)
        a1 = jnp.concatenate(rows, axis=0) + bo1_ref[...]       # (B*S, D)
        n1 = _layernorm(a1 + pos, g1_ref[...], b1_ref[...])

        # ---- q projection for cross-attention (q third of qkv linear),
        #      whole batch folded into the M dimension ------------------------
        q2 = jnp.dot(n1, wq2_ref[...].astype(f32),
                     preferred_element_type=f32) + bq2_ref[...]  # (B*S, D)

        # ---- cross-attention with encoder k/v --------------------------------
        wo2 = wo2_ref[...].astype(f32)
        rows = []
        for b in range(B):
            acc = jnp.zeros((S, D), f32)
            for h in range(H):
                idx = b * H + h
                qh = q2[b * S:(b + 1) * S, h * HD:(h + 1) * HD]
                s = lax.dot_general(qh, ek_ref[idx], dn,
                                    preferred_element_type=f32) * scale
                p = softmax_rows(s)
                oh = jnp.dot(p, ev_ref[idx], preferred_element_type=f32)
                acc = acc + jnp.dot(oh, wo2[h * HD:(h + 1) * HD, :],
                                    preferred_element_type=f32)
            rows.append(acc)
        a2 = jnp.concatenate(rows, axis=0) + bo2_ref[...]
        n2 = _layernorm(n1 + a2, g2_ref[...], b2_ref[...])

        # ---- feed-forward ----------------------------------------------------
        # TODO(synk): nn.Dropout(p=0.1) omitted -- eval-mode forward is identity.
        h1 = jnp.dot(n2, wf1_ref[...].astype(f32),
                     preferred_element_type=f32) + bf1_ref[...]
        h1 = jnp.maximum(h1, 0.0)                                # ReLU
        ff = jnp.dot(h1, wf2_ref[...].astype(f32),
                     preferred_element_type=f32) + bf2_ref[...]
        o_ref[...] = _layernorm(ff + n2, g3_ref[...], b3_ref[...])

    return kernel


# ----------------------------- decoder forward -------------------------------

def decoder_forward(params, pos_emb, dec_q, dec_k, dec_v, enc_k, enc_v):
    B, S, _ = pos_emb.shape
    S_ENC = enc_k.shape[2]
    kernel = _make_decoder_kernel(B, S, S_ENC)

    # Advisory cost model: kernel runtime ~= one weight load.
    attn_flops = 2 * B * H * (2 * S * S * HD + S * HD * D) \
               + 2 * B * H * (2 * S * S_ENC * HD + S * HD * D)
    proj_flops = 2 * B * S * D * D                      # q projection
    ffn_flops = 2 * B * S * D * FF * 2
    weight_bytes = sum(int(v.size) * v.dtype.itemsize for v in params.values())
    act_bytes = 4 * (pos_emb.size + dec_q.size + dec_k.size + dec_v.size
                     + enc_k.size + enc_v.size + B * S * D)
    cost = pl.CostEstimate(flops=int(attn_flops + proj_flops + ffn_flops),
                           transcendentals=int(B * H * S * (S + S_ENC)),
                           bytes_accessed=int(weight_bytes + act_bytes))

    # No grid: single invocation, every operand DMA'd to VMEM exactly once
    # (single-buffered by construction), batch folded into matmul rows.
    out = pl.pallas_call(
        kernel,
        out_shape=jax.ShapeDtypeStruct((B * S, D), jnp.float32),
        cost_estimate=cost,
        compiler_params=pltpu.CompilerParams(
            vmem_limit_bytes=32 * 1024 * 1024),
    )(
        pos_emb.reshape(B * S, D),
        dec_q.reshape(B * H, S, HD),
        dec_k.reshape(B * H, S, HD),
        dec_v.reshape(B * H, S, HD),
        enc_k.reshape(B * H, S_ENC, HD),
        enc_v.reshape(B * H, S_ENC, HD),
        params["attn1_wo"], params["attn1_bo"].reshape(1, D),
        params["qkv_wq"], params["qkv_bq"].reshape(1, D),
        params["attn2_wo"], params["attn2_bo"].reshape(1, D),
        params["ff_w1"], params["ff_b1"].reshape(1, FF),
        params["ff_w2"], params["ff_b2"].reshape(1, D),
        params["ln1_g"].reshape(1, D), params["ln1_b"].reshape(1, D),
        params["ln2_g"].reshape(1, D), params["ln2_b"].reshape(1, D),
        params["ln3_g"].reshape(1, D), params["ln3_b"].reshape(1, D),
    )
    return out.reshape(B, S, D)


# ----------------------------- pure-JAX reference ----------------------------

def _ref_attention(q, k, v, wo, bo, causal):
    s = jnp.einsum("bhqd,bhkd->bhqk", q, k) / (HD ** 0.5)
    if causal:
        sq, sk = s.shape[-2], s.shape[-1]
        mask = jnp.tril(jnp.ones((sq, sk))) == 0
        s = jnp.where(mask, -jnp.inf, s)
    p = jax.nn.softmax(s, axis=-1)
    o = jnp.einsum("bhqk,bhkd->bhqd", p, v)
    B_, Hn, Sq, hd = o.shape
    o = o.transpose(0, 2, 1, 3).reshape(B_, Sq, Hn * hd)
    return o @ wo + bo


def _ref_ln(x, g, b):
    m = x.mean(-1, keepdims=True)
    v = ((x - m) ** 2).mean(-1, keepdims=True)
    return (x - m) / jnp.sqrt(v + EPS) * g + b


def decoder_ref(params, pos, dq, dk, dv, ek, ev):
    f32 = jnp.float32
    wo1 = params["attn1_wo"].astype(f32)
    wq2 = params["qkv_wq"].astype(f32)
    wo2 = params["attn2_wo"].astype(f32)
    wf1 = params["ff_w1"].astype(f32)
    wf2 = params["ff_w2"].astype(f32)

    a1 = _ref_attention(dq, dk, dv, wo1, params["attn1_bo"], True)
    n1 = _ref_ln(a1 + pos, params["ln1_g"], params["ln1_b"])
    B, S, _ = pos.shape
    q2 = n1 @ wq2 + params["qkv_bq"]
    q2 = q2.reshape(B, S, H, HD).transpose(0, 2, 1, 3)
    a2 = _ref_attention(q2, ek, ev, wo2, params["attn2_bo"], False)
    n2 = _ref_ln(n1 + a2, params["ln2_g"], params["ln2_b"])
    h = jnp.maximum(n2 @ wf1 + params["ff_b1"], 0.0)
    ff = h @ wf2 + params["ff_b2"]
    return _ref_ln(ff + n2, params["ln3_g"], params["ln3_b"])


# --------------------------------- main ---------------------------------------

def init_params(key):
    ks = jax.random.split(key, 8)
    scale = 0.02
    bf16 = jnp.bfloat16
    return {
        # big matrices stored as bf16 (halves weight HBM traffic / VMEM)
        "attn1_wo": (scale * jax.random.normal(ks[0], (D, D), jnp.float32)).astype(bf16),
        "attn1_bo": scale * jax.random.normal(ks[1], (D,), jnp.float32),
        "attn2_wo": (scale * jax.random.normal(ks[2], (D, D), jnp.float32)).astype(bf16),
        "attn2_bo": scale * jax.random.normal(ks[3], (D,), jnp.float32),
        # only the q third of the qkv module's (512 -> 3*512) linear is used
        "qkv_wq": (scale * jax.random.normal(ks[4], (D, D), jnp.float32)).astype(bf16),
        "qkv_bq": scale * jax.random.normal(ks[5], (D,), jnp.float32),
        "ff_w1": (scale * jax.random.normal(ks[6], (D, FF), jnp.float32)).astype(bf16),
        "ff_b1": jnp.zeros((FF,), jnp.float32),
        "ff_w2": (scale * jax.random.normal(ks[7], (FF, D), jnp.float32)).astype(bf16),
        "ff_b2": jnp.zeros((D,), jnp.float32),
        "ln1_g": jnp.ones((D,), jnp.float32), "ln1_b": jnp.zeros((D,), jnp.float32),
        "ln2_g": jnp.ones((D,), jnp.float32), "ln2_b": jnp.zeros((D,), jnp.float32),
        "ln3_g": jnp.ones((D,), jnp.float32), "ln3_b": jnp.zeros((D,), jnp.float32),
    }


if __name__ == "__main__":
    B, S, S_ENC = 2, 8, 8

    key = jax.random.PRNGKey(0)
    kp, k1, k2, k3, k4, k5, k6 = jax.random.split(key, 7)
    params = init_params(kp)

    pos_emb = jax.random.normal(k1, (B, S, D), jnp.float32)
    dec_q = jax.random.normal(k2, (B, H, S, HD), jnp.float32)
    dec_k = jax.random.normal(k3, (B, H, S, HD), jnp.float32)
    dec_v = jax.random.normal(k4, (B, H, S, HD), jnp.float32)
    enc_k = jax.random.normal(k5, (B, H, S_ENC, HD), jnp.float32)
    enc_v = jax.random.normal(k6, (B, H, S_ENC, HD), jnp.float32)

    out = jax.jit(decoder_forward)(params, pos_emb, dec_q, dec_k, dec_v,
                                   enc_k, enc_v)
    out = jax.block_until_ready(out)

    ref = decoder_ref(params, pos_emb, dec_q, dec_k, dec_v, enc_k, enc_v)
    assert out.shape == (B, S, D)
    assert jnp.allclose(out, ref, atol=2e-3, rtol=2e-3), "mismatch vs reference"

    print("KERNEL_OK")
</pallas_src>

<mosaic_0001>
module attributes {stable_mosaic.version = 11 : i64} {
  func.func @kernel(%arg0: memref<16x512xf32, #tpu.memory_space<vmem>>, %arg1: memref<4x8x256xf32, #tpu.memory_space<vmem>>, %arg2: memref<4x8x256xf32, #tpu.memory_space<vmem>>, %arg3: memref<4x8x256xf32, #tpu.memory_space<vmem>>, %arg4: memref<4x8x256xf32, #tpu.memory_space<vmem>>, %arg5: memref<4x8x256xf32, #tpu.memory_space<vmem>>, %arg6: memref<512x512xbf16, #tpu.memory_space<vmem>>, %arg7: memref<1x512xf32, #tpu.memory_space<vmem>>, %arg8: memref<512x512xbf16, #tpu.memory_space<vmem>>, %arg9: memref<1x512xf32, #tpu.memory_space<vmem>>, %arg10: memref<512x512xbf16, #tpu.memory_space<vmem>>, %arg11: memref<1x512xf32, #tpu.memory_space<vmem>>, %arg12: memref<512x2048xbf16, #tpu.memory_space<vmem>>, %arg13: memref<1x2048xf32, #tpu.memory_space<vmem>>, %arg14: memref<2048x512xbf16, #tpu.memory_space<vmem>>, %arg15: memref<1x512xf32, #tpu.memory_space<vmem>>, %arg16: memref<1x512xf32, #tpu.memory_space<vmem>>, %arg17: memref<1x512xf32, #tpu.memory_space<vmem>>, %arg18: memref<1x512xf32, #tpu.memory_space<vmem>>, %arg19: memref<1x512xf32, #tpu.memory_space<vmem>>, %arg20: memref<1x512xf32, #tpu.memory_space<vmem>>, %arg21: memref<1x512xf32, #tpu.memory_space<vmem>>, %arg22: memref<16x512xf32, #tpu.memory_space<vmem>>) attributes {dimension_semantics = [], scalar_prefetch = 0 : i64, scratch_operands = 0 : i64, tpu.core_type = #tpu.core_type<tc>} {
    %c0 = arith.constant 0 : index
    %c0_0 = arith.constant 0 : index
    %0 = vector.load %arg0[%c0, %c0_0] : memref<16x512xf32, #tpu.memory_space<vmem>>, vector<16x512xf32>
    %1 = tpu.iota {dimensions = array<i32: 0>} : vector<8x8xi32>
    %2 = tpu.iota {dimensions = array<i32: 1>} : vector<8x8xi32>
    %3 = arith.cmpi sgt, %2, %1 : vector<8x8xi32>
    %cst = arith.constant -1.000000e+30 : f32
    %cst_1 = arith.constant 0.000000e+00 : f32
    %4 = vector.broadcast %cst : f32 to vector<8x8xf32>
    %5 = vector.broadcast %cst_1 : f32 to vector<8x8xf32>
    %6 = arith.select %3, %4, %5 : vector<8x8xi1>, vector<8x8xf32>
    %c0_2 = arith.constant 0 : index
    %c0_3 = arith.constant 0 : index
    %7 = vector.load %arg6[%c0_2, %c0_3] : memref<512x512xbf16, #tpu.memory_space<vmem>>, vector<512x512xbf16>
    %8 = arith.extf %7 : vector<512x512xbf16> to vector<512x512xf32>
    %cst_4 = arith.constant 0.000000e+00 : f32
    %9 = vector.broadcast %cst_4 : f32 to vector<8x512xf32>
    %c0_5 = arith.constant 0 : index
    %c0_6 = arith.constant 0 : index
    %c0_7 = arith.constant 0 : index
    %10 = vector.load %arg1[%c0_5, %c0_6, %c0_7] : memref<4x8x256xf32, #tpu.memory_space<vmem>>, vector<1x8x256xf32>
    %11 = vector.shape_cast %10 : vector<1x8x256xf32> to vector<8x256xf32>
    %c0_8 = arith.constant 0 : index
    %c0_9 = arith.constant 0 : index
    %c0_10 = arith.constant 0 : index
    %12 = vector.load %arg2[%c0_8, %c0_9, %c0_10] : memref<4x8x256xf32, #tpu.memory_space<vmem>>, vector<1x8x256xf32>
    %13 = vector.shape_cast %12 : vector<1x8x256xf32> to vector<8x256xf32>
    %cst_11 = arith.constant dense<0.000000e+00> : vector<8x8xf32>
    %14 = tpu.matmul %11, %13, %cst_11 {dimension_numbers = #tpu.dot_dimension_numbers<[1], [1], [0], [0], [0, 0, 1, 0], [], []>} : vector<8x256xf32>, vector<8x256xf32>, vector<8x8xf32> -> vector<8x8xf32>
    %cst_12 = arith.constant 6.250000e-02 : f32
    %15 = vector.broadcast %cst_12 : f32 to vector<8x8xf32>
    %16 = arith.mulf %14, %15 : vector<8x8xf32>
    %17 = arith.addf %16, %6 : vector<8x8xf32>
    %cst_13 = arith.constant dense<0xFF800000> : vector<8xf32>
    %18 = vector.multi_reduction <maximumf>, %17, %cst_13 [1] : vector<8x8xf32> to vector<8xf32>
    %19 = vector.shape_cast %18 : vector<8xf32> to vector<8x1xf32>
    %20 = vector.broadcast %19 : vector<8x1xf32> to vector<8x8xf32>
    %21 = arith.subf %17, %20 : vector<8x8xf32>
    %22 = math.exp %21 : vector<8x8xf32>
    %cst_14 = arith.constant dense<0.000000e+00> : vector<8xf32>
    %23 = vector.multi_reduction <add>, %22, %cst_14 [1] : vector<8x8xf32> to vector<8xf32>
    %24 = vector.shape_cast %23 : vector<8xf32> to vector<8x1xf32>
    %25 = tpu.reciprocal %24 {approx = true} : vector<8x1xf32> -> vector<8x1xf32>
    %26 = vector.broadcast %25 : vector<8x1xf32> to vector<8x8xf32>
    %27 = arith.mulf %22, %26 : vector<8x8xf32>
    %c0_15 = arith.constant 0 : index
    %c0_16 = arith.constant 0 : index
    %c0_17 = arith.constant 0 : index
    %28 = vector.load %arg3[%c0_15, %c0_16, %c0_17] : memref<4x8x256xf32, #tpu.memory_space<vmem>>, vector<1x8x256xf32>
    %29 = vector.shape_cast %28 : vector<1x8x256xf32> to vector<8x256xf32>
    %cst_18 = arith.constant dense<0.000000e+00> : vector<8x256xf32>
    %30 = tpu.matmul %27, %29, %cst_18 {dimension_numbers = #tpu.dot_dimension_numbers<[1], [0], [0], [1], [0, 0, 1, 1], [], []>} : vector<8x8xf32>, vector<8x256xf32>, vector<8x256xf32> -> vector<8x256xf32>
    %31 = vector.extract_strided_slice %8 {offsets = [0, 0], sizes = [256, 512], strides = [1, 1]} : vector<512x512xf32> to vector<256x512xf32>
    %cst_19 = arith.constant dense<0.000000e+00> : vector<8x512xf32>
    %32 = tpu.matmul %30, %31, %cst_19 {dimension_numbers = #tpu.dot_dimension_numbers<[1], [0], [0], [1], [0, 0, 1, 1], [], []>} : vector<8x256xf32>, vector<256x512xf32>, vector<8x512xf32> -> vector<8x512xf32>
    %33 = arith.addf %9, %32 : vector<8x512xf32>
    %c1 = arith.constant 1 : index
    %c0_20 = arith.constant 0 : index
    %c0_21 = arith.constant 0 : index
    %34 = vector.load %arg1[%c1, %c0_20, %c0_21] : memref<4x8x256xf32, #tpu.memory_space<vmem>>, vector<1x8x256xf32>
    %35 = vector.shape_cast %34 : vector<1x8x256xf32> to vector<8x256xf32>
    %c1_22 = arith.constant 1 : index
    %c0_23 = arith.constant 0 : index
    %c0_24 = arith.constant 0 : index
    %36 = vector.load %arg2[%c1_22, %c0_23, %c0_24] : memref<4x8x256xf32, #tpu.memory_space<vmem>>, vector<1x8x256xf32>
    %37 = vector.shape_cast %36 : vector<1x8x256xf32> to vector<8x256xf32>
    %cst_25 = arith.constant dense<0.000000e+00> : vector<8x8xf32>
    %38 = tpu.matmul %35, %37, %cst_25 {dimension_numbers = #tpu.dot_dimension_numbers<[1], [1], [0], [0], [0, 0, 1, 0], [], []>} : vector<8x256xf32>, vector<8x256xf32>, vector<8x8xf32> -> vector<8x8xf32>
    %cst_26 = arith.constant 6.250000e-02 : f32
    %39 = vector.broadcast %cst_26 : f32 to vector<8x8xf32>
    %40 = arith.mulf %38, %39 : vector<8x8xf32>
    %41 = arith.addf %40, %6 : vector<8x8xf32>
    %cst_27 = arith.constant dense<0xFF800000> : vector<8xf32>
    %42 = vector.multi_reduction <maximumf>, %41, %cst_27 [1] : vector<8x8xf32> to vector<8xf32>
    %43 = vector.shape_cast %42 : vector<8xf32> to vector<8x1xf32>
    %44 = vector.broadcast %43 : vector<8x1xf32> to vector<8x8xf32>
    %45 = arith.subf %41, %44 : vector<8x8xf32>
    %46 = math.exp %45 : vector<8x8xf32>
    %cst_28 = arith.constant dense<0.000000e+00> : vector<8xf32>
    %47 = vector.multi_reduction <add>, %46, %cst_28 [1] : vector<8x8xf32> to vector<8xf32>
    %48 = vector.shape_cast %47 : vector<8xf32> to vector<8x1xf32>
    %49 = tpu.reciprocal %48 {approx = true} : vector<8x1xf32> -> vector<8x1xf32>
    %50 = vector.broadcast %49 : vector<8x1xf32> to vector<8x8xf32>
    %51 = arith.mulf %46, %50 : vector<8x8xf32>
    %c1_29 = arith.constant 1 : index
    %c0_30 = arith.constant 0 : index
    %c0_31 = arith.constant 0 : index
    %52 = vector.load %arg3[%c1_29, %c0_30, %c0_31] : memref<4x8x256xf32, #tpu.memory_space<vmem>>, vector<1x8x256xf32>
    %53 = vector.shape_cast %52 : vector<1x8x256xf32> to vector<8x256xf32>
    %cst_32 = arith.constant dense<0.000000e+00> : vector<8x256xf32>
    %54 = tpu.matmul %51, %53, %cst_32 {dimension_numbers = #tpu.dot_dimension_numbers<[1], [0], [0], [1], [0, 0, 1, 1], [], []>} : vector<8x8xf32>, vector<8x256xf32>, vector<8x256xf32> -> vector<8x256xf32>
    %55 = vector.extract_strided_slice %8 {offsets = [256, 0], sizes = [256, 512], strides = [1, 1]} : vector<512x512xf32> to vector<256x512xf32>
    %cst_33 = arith.constant dense<0.000000e+00> : vector<8x512xf32>
    %56 = tpu.matmul %54, %55, %cst_33 {dimension_numbers = #tpu.dot_dimension_numbers<[1], [0], [0], [1], [0, 0, 1, 1], [], []>} : vector<8x256xf32>, vector<256x512xf32>, vector<8x512xf32> -> vector<8x512xf32>
    %57 = arith.addf %33, %56 : vector<8x512xf32>
    %cst_34 = arith.constant 0.000000e+00 : f32
    %58 = vector.broadcast %cst_34 : f32 to vector<8x512xf32>
    %c2 = arith.constant 2 : index
    %c0_35 = arith.constant 0 : index
    %c0_36 = arith.constant 0 : index
    %59 = vector.load %arg1[%c2, %c0_35, %c0_36] : memref<4x8x256xf32, #tpu.memory_space<vmem>>, vector<1x8x256xf32>
    %60 = vector.shape_cast %59 : vector<1x8x256xf32> to vector<8x256xf32>
    %c2_37 = arith.constant 2 : index
    %c0_38 = arith.constant 0 : index
    %c0_39 = arith.constant 0 : index
    %61 = vector.load %arg2[%c2_37, %c0_38, %c0_39] : memref<4x8x256xf32, #tpu.memory_space<vmem>>, vector<1x8x256xf32>
    %62 = vector.shape_cast %61 : vector<1x8x256xf32> to vector<8x256xf32>
    %cst_40 = arith.constant dense<0.000000e+00> : vector<8x8xf32>
    %63 = tpu.matmul %60, %62, %cst_40 {dimension_numbers = #tpu.dot_dimension_numbers<[1], [1], [0], [0], [0, 0, 1, 0], [], []>} : vector<8x256xf32>, vector<8x256xf32>, vector<8x8xf32> -> vector<8x8xf32>
    %cst_41 = arith.constant 6.250000e-02 : f32
    %64 = vector.broadcast %cst_41 : f32 to vector<8x8xf32>
    %65 = arith.mulf %63, %64 : vector<8x8xf32>
    %66 = arith.addf %65, %6 : vector<8x8xf32>
    %cst_42 = arith.constant dense<0xFF800000> : vector<8xf32>
    %67 = vector.multi_reduction <maximumf>, %66, %cst_42 [1] : vector<8x8xf32> to vector<8xf32>
    %68 = vector.shape_cast %67 : vector<8xf32> to vector<8x1xf32>
    %69 = vector.broadcast %68 : vector<8x1xf32> to vector<8x8xf32>
    %70 = arith.subf %66, %69 : vector<8x8xf32>
    %71 = math.exp %70 : vector<8x8xf32>
    %cst_43 = arith.constant dense<0.000000e+00> : vector<8xf32>
    %72 = vector.multi_reduction <add>, %71, %cst_43 [1] : vector<8x8xf32> to vector<8xf32>
    %73 = vector.shape_cast %72 : vector<8xf32> to vector<8x1xf32>
    %74 = tpu.reciprocal %73 {approx = true} : vector<8x1xf32> -> vector<8x1xf32>
    %75 = vector.broadcast %74 : vector<8x1xf32> to vector<8x8xf32>
    %76 = arith.mulf %71, %75 : vector<8x8xf32>
    %c2_44 = arith.constant 2 : index
    %c0_45 = arith.constant 0 : index
    %c0_46 = arith.constant 0 : index
    %77 = vector.load %arg3[%c2_44, %c0_45, %c0_46] : memref<4x8x256xf32, #tpu.memory_space<vmem>>, vector<1x8x256xf32>
    %78 = vector.shape_cast %77 : vector<1x8x256xf32> to vector<8x256xf32>
    %cst_47 = arith.constant dense<0.000000e+00> : vector<8x256xf32>
    %79 = tpu.matmul %76, %78, %cst_47 {dimension_numbers = #tpu.dot_dimension_numbers<[1], [0], [0], [1], [0, 0, 1, 1], [], []>} : vector<8x8xf32>, vector<8x256xf32>, vector<8x256xf32> -> vector<8x256xf32>
    %80 = vector.extract_strided_slice %8 {offsets = [0, 0], sizes = [256, 512], strides = [1, 1]} : vector<512x512xf32> to vector<256x512xf32>
    %cst_48 = arith.constant dense<0.000000e+00> : vector<8x512xf32>
    %81 = tpu.matmul %79, %80, %cst_48 {dimension_numbers = #tpu.dot_dimension_numbers<[1], [0], [0], [1], [0, 0, 1, 1], [], []>} : vector<8x256xf32>, vector<256x512xf32>, vector<8x512xf32> -> vector<8x512xf32>
    %82 = arith.addf %58, %81 : vector<8x512xf32>
    %c3 = arith.constant 3 : index
    %c0_49 = arith.constant 0 : index
    %c0_50 = arith.constant 0 : index
    %83 = vector.load %arg1[%c3, %c0_49, %c0_50] : memref<4x8x256xf32, #tpu.memory_space<vmem>>, vector<1x8x256xf32>
    %84 = vector.shape_cast %83 : vector<1x8x256xf32> to vector<8x256xf32>
    %c3_51 = arith.constant 3 : index
    %c0_52 = arith.constant 0 : index
    %c0_53 = arith.constant 0 : index
    %85 = vector.load %arg2[%c3_51, %c0_52, %c0_53] : memref<4x8x256xf32, #tpu.memory_space<vmem>>, vector<1x8x256xf32>
    %86 = vector.shape_cast %85 : vector<1x8x256xf32> to vector<8x256xf32>
    %cst_54 = arith.constant dense<0.000000e+00> : vector<8x8xf32>
    %87 = tpu.matmul %84, %86, %cst_54 {dimension_numbers = #tpu.dot_dimension_numbers<[1], [1], [0], [0], [0, 0, 1, 0], [], []>} : vector<8x256xf32>, vector<8x256xf32>, vector<8x8xf32> -> vector<8x8xf32>
    %cst_55 = arith.constant 6.250000e-02 : f32
    %88 = vector.broadcast %cst_55 : f32 to vector<8x8xf32>
    %89 = arith.mulf %87, %88 : vector<8x8xf32>
    %90 = arith.addf %89, %6 : vector<8x8xf32>
    %cst_56 = arith.constant dense<0xFF800000> : vector<8xf32>
    %91 = vector.multi_reduction <maximumf>, %90, %cst_56 [1] : vector<8x8xf32> to vector<8xf32>
    %92 = vector.shape_cast %91 : vector<8xf32> to vector<8x1xf32>
    %93 = vector.broadcast %92 : vector<8x1xf32> to vector<8x8xf32>
    %94 = arith.subf %90, %93 : vector<8x8xf32>
    %95 = math.exp %94 : vector<8x8xf32>
    %cst_57 = arith.constant dense<0.000000e+00> : vector<8xf32>
    %96 = vector.multi_reduction <add>, %95, %cst_57 [1] : vector<8x8xf32> to vector<8xf32>
    %97 = vector.shape_cast %96 : vector<8xf32> to vector<8x1xf32>
    %98 = tpu.reciprocal %97 {approx = true} : vector<8x1xf32> -> vector<8x1xf32>
    %99 = vector.broadcast %98 : vector<8x1xf32> to vector<8x8xf32>
    %100 = arith.mulf %95, %99 : vector<8x8xf32>
    %c3_58 = arith.constant 3 : index
    %c0_59 = arith.constant 0 : index
    %c0_60 = arith.constant 0 : index
    %101 = vector.load %arg3[%c3_58, %c0_59, %c0_60] : memref<4x8x256xf32, #tpu.memory_space<vmem>>, vector<1x8x256xf32>
    %102 = vector.shape_cast %101 : vector<1x8x256xf32> to vector<8x256xf32>
    %cst_61 = arith.constant dense<0.000000e+00> : vector<8x256xf32>
    %103 = tpu.matmul %100, %102, %cst_61 {dimension_numbers = #tpu.dot_dimension_numbers<[1], [0], [0], [1], [0, 0, 1, 1], [], []>} : vector<8x8xf32>, vector<8x256xf32>, vector<8x256xf32> -> vector<8x256xf32>
    %104 = vector.extract_strided_slice %8 {offsets = [256, 0], sizes = [256, 512], strides = [1, 1]} : vector<512x512xf32> to vector<256x512xf32>
    %cst_62 = arith.constant dense<0.000000e+00> : vector<8x512xf32>
    %105 = tpu.matmul %103, %104, %cst_62 {dimension_numbers = #tpu.dot_dimension_numbers<[1], [0], [0], [1], [0, 0, 1, 1], [], []>} : vector<8x256xf32>, vector<256x512xf32>, vector<8x512xf32> -> vector<8x512xf32>
    %106 = arith.addf %82, %105 : vector<8x512xf32>
    %107 = tpu.concatenate %57, %106 in 0 : vector<8x512xf32>, vector<8x512xf32> -> vector<16x512xf32>
    %c0_63 = arith.constant 0 : index
    %c0_64 = arith.constant 0 : index
    %108 = vector.load %arg7[%c0_63, %c0_64] : memref<1x512xf32, #tpu.memory_space<vmem>>, vector<1x512xf32>
    %109 = vector.broadcast %108 : vector<1x512xf32> to vector<16x512xf32>
    %110 = arith.addf %107, %109 : vector<16x512xf32>
    %111 = arith.addf %110, %0 : vector<16x512xf32>
    %c0_65 = arith.constant 0 : index
    %c0_66 = arith.constant 0 : index
    %112 = vector.load %arg16[%c0_65, %c0_66] : memref<1x512xf32, #tpu.memory_space<vmem>>, vector<1x512xf32>
    %c0_67 = arith.constant 0 : index
    %c0_68 = arith.constant 0 : index
    %113 = vector.load %arg17[%c0_67, %c0_68] : memref<1x512xf32, #tpu.memory_space<vmem>>, vector<1x512xf32>
    %cst_69 = arith.constant dense<0.000000e+00> : vector<16xf32>
    %114 = vector.multi_reduction <add>, %111, %cst_69 [1] : vector<16x512xf32> to vector<16xf32>
    %115 = vector.shape_cast %114 : vector<16xf32> to vector<16x1xf32>
    %cst_70 = arith.constant 5.120000e+02 : f32
    %116 = vector.broadcast %cst_70 : f32 to vector<16x1xf32>
    %117 = arith.divf %115, %116 : vector<16x1xf32>
    %118 = vector.broadcast %117 : vector<16x1xf32> to vector<16x512xf32>
    %119 = arith.subf %111, %118 : vector<16x512xf32>
    %120 = arith.mulf %119, %119 : vector<16x512xf32>
    %cst_71 = arith.constant dense<0.000000e+00> : vector<16xf32>
    %121 = vector.multi_reduction <add>, %120, %cst_71 [1] : vector<16x512xf32> to vector<16xf32>
    %122 = vector.shape_cast %121 : vector<16xf32> to vector<16x1xf32>
    %cst_72 = arith.constant 5.120000e+02 : f32
    %123 = vector.broadcast %cst_72 : f32 to vector<16x1xf32>
    %124 = arith.divf %122, %123 : vector<16x1xf32>
    %125 = vector.broadcast %117 : vector<16x1xf32> to vector<16x512xf32>
    %126 = arith.subf %111, %125 : vector<16x512xf32>
    %cst_73 = arith.constant 9.99999974E-6 : f32
    %127 = vector.broadcast %cst_73 : f32 to vector<16x1xf32>
    %128 = arith.addf %124, %127 : vector<16x1xf32>
    %129 = math.rsqrt %128 : vector<16x1xf32>
    %130 = vector.broadcast %129 : vector<16x1xf32> to vector<16x512xf32>
    %131 = arith.mulf %126, %130 : vector<16x512xf32>
    %132 = vector.broadcast %112 : vector<1x512xf32> to vector<16x512xf32>
    %133 = arith.mulf %131, %132 : vector<16x512xf32>
    %134 = vector.broadcast %113 : vector<1x512xf32> to vector<16x512xf32>
    %135 = arith.addf %133, %134 : vector<16x512xf32>
    %c0_74 = arith.constant 0 : index
    %c0_75 = arith.constant 0 : index
    %136 = vector.load %arg8[%c0_74, %c0_75] : memref<512x512xbf16, #tpu.memory_space<vmem>>, vector<512x512xbf16>
    %137 = arith.extf %136 : vector<512x512xbf16> to vector<512x512xf32>
    %cst_76 = arith.constant dense<0.000000e+00> : vector<16x512xf32>
    %138 = tpu.matmul %135, %137, %cst_76 {dimension_numbers = #tpu.dot_dimension_numbers<[1], [0], [0], [1], [0, 0, 1, 1], [], []>} : vector<16x512xf32>, vector<512x512xf32>, vector<16x512xf32> -> vector<16x512xf32>
    %c0_77 = arith.constant 0 : index
    %c0_78 = arith.constant 0 : index
    %139 = vector.load %arg9[%c0_77, %c0_78] : memref<1x512xf32, #tpu.memory_space<vmem>>, vector<1x512xf32>
    %140 = vector.broadcast %139 : vector<1x512xf32> to vector<16x512xf32>
    %141 = arith.addf %138, %140 : vector<16x512xf32>
    %c0_79 = arith.constant 0 : index
    %c0_80 = arith.constant 0 : index
    %142 = vector.load %arg10[%c0_79, %c0_80] : memref<512x512xbf16, #tpu.memory_space<vmem>>, vector<512x512xbf16>
    %143 = arith.extf %142 : vector<512x512xbf16> to vector<512x512xf32>
    %cst_81 = arith.constant 0.000000e+00 : f32
    %144 = vector.broadcast %cst_81 : f32 to vector<8x512xf32>
    %145 = vector.extract_strided_slice %141 {offsets = [0, 0], sizes = [8, 256], strides = [1, 1]} : vector<16x512xf32> to vector<8x256xf32>
    %c0_82 = arith.constant 0 : index
    %c0_83 = arith.constant 0 : index
    %c0_84 = arith.constant 0 : index
    %146 = vector.load %arg4[%c0_82, %c0_83, %c0_84] : memref<4x8x256xf32, #tpu.memory_space<vmem>>, vector<1x8x256xf32>
    %147 = vector.shape_cast %146 : vector<1x8x256xf32> to vector<8x256xf32>
    %cst_85 = arith.constant dense<0.000000e+00> : vector<8x8xf32>
    %148 = tpu.matmul %145, %147, %cst_85 {dimension_numbers = #tpu.dot_dimension_numbers<[1], [1], [0], [0], [0, 0, 1, 0], [], []>} : vector<8x256xf32>, vector<8x256xf32>, vector<8x8xf32> -> vector<8x8xf32>
    %cst_86 = arith.constant 6.250000e-02 : f32
    %149 = vector.broadcast %cst_86 : f32 to vector<8x8xf32>
    %150 = arith.mulf %148, %149 : vector<8x8xf32>
    %cst_87 = arith.constant dense<0xFF800000> : vector<8xf32>
    %151 = vector.multi_reduction <maximumf>, %150, %cst_87 [1] : vector<8x8xf32> to vector<8xf32>
    %152 = vector.shape_cast %151 : vector<8xf32> to vector<8x1xf32>
    %153 = vector.broadcast %152 : vector<8x1xf32> to vector<8x8xf32>
    %154 = arith.subf %150, %153 : vector<8x8xf32>
    %155 = math.exp %154 : vector<8x8xf32>
    %cst_88 = arith.constant dense<0.000000e+00> : vector<8xf32>
    %156 = vector.multi_reduction <add>, %155, %cst_88 [1] : vector<8x8xf32> to vector<8xf32>
    %157 = vector.shape_cast %156 : vector<8xf32> to vector<8x1xf32>
    %158 = tpu.reciprocal %157 {approx = true} : vector<8x1xf32> -> vector<8x1xf32>
    %159 = vector.broadcast %158 : vector<8x1xf32> to vector<8x8xf32>
    %160 = arith.mulf %155, %159 : vector<8x8xf32>
    %c0_89 = arith.constant 0 : index
    %c0_90 = arith.constant 0 : index
    %c0_91 = arith.constant 0 : index
    %161 = vector.load %arg5[%c0_89, %c0_90, %c0_91] : memref<4x8x256xf32, #tpu.memory_space<vmem>>, vector<1x8x256xf32>
    %162 = vector.shape_cast %161 : vector<1x8x256xf32> to vector<8x256xf32>
    %cst_92 = arith.constant dense<0.000000e+00> : vector<8x256xf32>
    %163 = tpu.matmul %160, %162, %cst_92 {dimension_numbers = #tpu.dot_dimension_numbers<[1], [0], [0], [1], [0, 0, 1, 1], [], []>} : vector<8x8xf32>, vector<8x256xf32>, vector<8x256xf32> -> vector<8x256xf32>
    %164 = vector.extract_strided_slice %143 {offsets = [0, 0], sizes = [256, 512], strides = [1, 1]} : vector<512x512xf32> to vector<256x512xf32>
    %cst_93 = arith.constant dense<0.000000e+00> : vector<8x512xf32>
    %165 = tpu.matmul %163, %164, %cst_93 {dimension_numbers = #tpu.dot_dimension_numbers<[1], [0], [0], [1], [0, 0, 1, 1], [], []>} : vector<8x256xf32>, vector<256x512xf32>, vector<8x512xf32> -> vector<8x512xf32>
    %166 = arith.addf %144, %165 : vector<8x512xf32>
    %167 = vector.extract_strided_slice %141 {offsets = [0, 256], sizes = [8, 256], strides = [1, 1]} : vector<16x512xf32> to vector<8x256xf32>
    %c1_94 = arith.constant 1 : index
    %c0_95 = arith.constant 0 : index
    %c0_96 = arith.constant 0 : index
    %168 = vector.load %arg4[%c1_94, %c0_95, %c0_96] : memref<4x8x256xf32, #tpu.memory_space<vmem>>, vector<1x8x256xf32>
    %169 = vector.shape_cast %168 : vector<1x8x256xf32> to vector<8x256xf32>
    %cst_97 = arith.constant dense<0.000000e+00> : vector<8x8xf32>
    %170 = tpu.matmul %167, %169, %cst_97 {dimension_numbers = #tpu.dot_dimension_numbers<[1], [1], [0], [0], [0, 0, 1, 0], [], []>} : vector<8x256xf32>, vector<8x256xf32>, vector<8x8xf32> -> vector<8x8xf32>
    %cst_98 = arith.constant 6.250000e-02 : f32
    %171 = vector.broadcast %cst_98 : f32 to vector<8x8xf32>
    %172 = arith.mulf %170, %171 : vector<8x8xf32>
    %cst_99 = arith.constant dense<0xFF800000> : vector<8xf32>
    %173 = vector.multi_reduction <maximumf>, %172, %cst_99 [1] : vector<8x8xf32> to vector<8xf32>
    %174 = vector.shape_cast %173 : vector<8xf32> to vector<8x1xf32>
    %175 = vector.broadcast %174 : vector<8x1xf32> to vector<8x8xf32>
    %176 = arith.subf %172, %175 : vector<8x8xf32>
    %177 = math.exp %176 : vector<8x8xf32>
    %cst_100 = arith.constant dense<0.000000e+00> : vector<8xf32>
    %178 = vector.multi_reduction <add>, %177, %cst_100 [1] : vector<8x8xf32> to vector<8xf32>
    %179 = vector.shape_cast %178 : vector<8xf32> to vector<8x1xf32>
    %180 = tpu.reciprocal %179 {approx = true} : vector<8x1xf32> -> vector<8x1xf32>
    %181 = vector.broadcast %180 : vector<8x1xf32> to vector<8x8xf32>
    %182 = arith.mulf %177, %181 : vector<8x8xf32>
    %c1_101 = arith.constant 1 : index
    %c0_102 = arith.constant 0 : index
    %c0_103 = arith.constant 0 : index
    %183 = vector.load %arg5[%c1_101, %c0_102, %c0_103] : memref<4x8x256xf32, #tpu.memory_space<vmem>>, vector<1x8x256xf32>
    %184 = vector.shape_cast %183 : vector<1x8x256xf32> to vector<8x256xf32>
    %cst_104 = arith.constant dense<0.000000e+00> : vector<8x256xf32>
    %185 = tpu.matmul %182, %184, %cst_104 {dimension_numbers = #tpu.dot_dimension_numbers<[1], [0], [0], [1], [0, 0, 1, 1], [], []>} : vector<8x8xf32>, vector<8x256xf32>, vector<8x256xf32> -> vector<8x256xf32>
    %186 = vector.extract_strided_slice %143 {offsets = [256, 0], sizes = [256, 512], strides = [1, 1]} : vector<512x512xf32> to vector<256x512xf32>
    %cst_105 = arith.constant dense<0.000000e+00> : vector<8x512xf32>
    %187 = tpu.matmul %185, %186, %cst_105 {dimension_numbers = #tpu.dot_dimension_numbers<[1], [0], [0], [1], [0, 0, 1, 1], [], []>} : vector<8x256xf32>, vector<256x512xf32>, vector<8x512xf32> -> vector<8x512xf32>
    %188 = arith.addf %166, %187 : vector<8x512xf32>
    %cst_106 = arith.constant 0.000000e+00 : f32
    %189 = vector.broadcast %cst_106 : f32 to vector<8x512xf32>
    %190 = vector.extract_strided_slice %141 {offsets = [8, 0], sizes = [8, 256], strides = [1, 1]} : vector<16x512xf32> to vector<8x256xf32>
    %c2_107 = arith.constant 2 : index
    %c0_108 = arith.constant 0 : index
    %c0_109 = arith.constant 0 : index
    %191 = vector.load %arg4[%c2_107, %c0_108, %c0_109] : memref<4x8x256xf32, #tpu.memory_space<vmem>>, vector<1x8x256xf32>
    %192 = vector.shape_cast %191 : vector<1x8x256xf32> to vector<8x256xf32>
    %cst_110 = arith.constant dense<0.000000e+00> : vector<8x8xf32>
    %193 = tpu.matmul %190, %192, %cst_110 {dimension_numbers = #tpu.dot_dimension_numbers<[1], [1], [0], [0], [0, 0, 1, 0], [], []>} : vector<8x256xf32>, vector<8x256xf32>, vector<8x8xf32> -> vector<8x8xf32>
    %cst_111 = arith.constant 6.250000e-02 : f32
    %194 = vector.broadcast %cst_111 : f32 to vector<8x8xf32>
    %195 = arith.mulf %193, %194 : vector<8x8xf32>
    %cst_112 = arith.constant dense<0xFF800000> : vector<8xf32>
    %196 = vector.multi_reduction <maximumf>, %195, %cst_112 [1] : vector<8x8xf32> to vector<8xf32>
    %197 = vector.shape_cast %196 : vector<8xf32> to vector<8x1xf32>
    %198 = vector.broadcast %197 : vector<8x1xf32> to vector<8x8xf32>
    %199 = arith.subf %195, %198 : vector<8x8xf32>
    %200 = math.exp %199 : vector<8x8xf32>
    %cst_113 = arith.constant dense<0.000000e+00> : vector<8xf32>
    %201 = vector.multi_reduction <add>, %200, %cst_113 [1] : vector<8x8xf32> to vector<8xf32>
    %202 = vector.shape_cast %201 : vector<8xf32> to vector<8x1xf32>
    %203 = tpu.reciprocal %202 {approx = true} : vector<8x1xf32> -> vector<8x1xf32>
    %204 = vector.broadcast %203 : vector<8x1xf32> to vector<8x8xf32>
    %205 = arith.mulf %200, %204 : vector<8x8xf32>
    %c2_114 = arith.constant 2 : index
    %c0_115 = arith.constant 0 : index
    %c0_116 = arith.constant 0 : index
    %206 = vector.load %arg5[%c2_114, %c0_115, %c0_116] : memref<4x8x256xf32, #tpu.memory_space<vmem>>, vector<1x8x256xf32>
    %207 = vector.shape_cast %206 : vector<1x8x256xf32> to vector<8x256xf32>
    %cst_117 = arith.constant dense<0.000000e+00> : vector<8x256xf32>
    %208 = tpu.matmul %205, %207, %cst_117 {dimension_numbers = #tpu.dot_dimension_numbers<[1], [0], [0], [1], [0, 0, 1, 1], [], []>} : vector<8x8xf32>, vector<8x256xf32>, vector<8x256xf32> -> vector<8x256xf32>
    %209 = vector.extract_strided_slice %143 {offsets = [0, 0], sizes = [256, 512], strides = [1, 1]} : vector<512x512xf32> to vector<256x512xf32>
    %cst_118 = arith.constant dense<0.000000e+00> : vector<8x512xf32>
    %210 = tpu.matmul %208, %209, %cst_118 {dimension_numbers = #tpu.dot_dimension_numbers<[1], [0], [0], [1], [0, 0, 1, 1], [], []>} : vector<8x256xf32>, vector<256x512xf32>, vector<8x512xf32> -> vector<8x512xf32>
    %211 = arith.addf %189, %210 : vector<8x512xf32>
    %212 = vector.extract_strided_slice %141 {offsets = [8, 256], sizes = [8, 256], strides = [1, 1]} : vector<16x512xf32> to vector<8x256xf32>
    %c3_119 = arith.constant 3 : index
    %c0_120 = arith.constant 0 : index
    %c0_121 = arith.constant 0 : index
    %213 = vector.load %arg4[%c3_119, %c0_120, %c0_121] : memref<4x8x256xf32, #tpu.memory_space<vmem>>, vector<1x8x256xf32>
    %214 = vector.shape_cast %213 : vector<1x8x256xf32> to vector<8x256xf32>
    %cst_122 = arith.constant dense<0.000000e+00> : vector<8x8xf32>
    %215 = tpu.matmul %212, %214, %cst_122 {dimension_numbers = #tpu.dot_dimension_numbers<[1], [1], [0], [0], [0, 0, 1, 0], [], []>} : vector<8x256xf32>, vector<8x256xf32>, vector<8x8xf32> -> vector<8x8xf32>
    %cst_123 = arith.constant 6.250000e-02 : f32
    %216 = vector.broadcast %cst_123 : f32 to vector<8x8xf32>
    %217 = arith.mulf %215, %216 : vector<8x8xf32>
    %cst_124 = arith.constant dense<0xFF800000> : vector<8xf32>
    %218 = vector.multi_reduction <maximumf>, %217, %cst_124 [1] : vector<8x8xf32> to vector<8xf32>
    %219 = vector.shape_cast %218 : vector<8xf32> to vector<8x1xf32>
    %220 = vector.broadcast %219 : vector<8x1xf32> to vector<8x8xf32>
    %221 = arith.subf %217, %220 : vector<8x8xf32>
    %222 = math.exp %221 : vector<8x8xf32>
    %cst_125 = arith.constant dense<0.000000e+00> : vector<8xf32>
    %223 = vector.multi_reduction <add>, %222, %cst_125 [1] : vector<8x8xf32> to vector<8xf32>
    %224 = vector.shape_cast %223 : vector<8xf32> to vector<8x1xf32>
    %225 = tpu.reciprocal %224 {approx = true} : vector<8x1xf32> -> vector<8x1xf32>
    %226 = vector.broadcast %225 : vector<8x1xf32> to vector<8x8xf32>
    %227 = arith.mulf %222, %226 : vector<8x8xf32>
    %c3_126 = arith.constant 3 : index
    %c0_127 = arith.constant 0 : index
    %c0_128 = arith.constant 0 : index
    %228 = vector.load %arg5[%c3_126, %c0_127, %c0_128] : memref<4x8x256xf32, #tpu.memory_space<vmem>>, vector<1x8x256xf32>
    %229 = vector.shape_cast %228 : vector<1x8x256xf32> to vector<8x256xf32>
    %cst_129 = arith.constant dense<0.000000e+00> : vector<8x256xf32>
    %230 = tpu.matmul %227, %229, %cst_129 {dimension_numbers = #tpu.dot_dimension_numbers<[1], [0], [0], [1], [0, 0, 1, 1], [], []>} : vector<8x8xf32>, vector<8x256xf32>, vector<8x256xf32> -> vector<8x256xf32>
    %231 = vector.extract_strided_slice %143 {offsets = [256, 0], sizes = [256, 512], strides = [1, 1]} : vector<512x512xf32> to vector<256x512xf32>
    %cst_130 = arith.constant dense<0.000000e+00> : vector<8x512xf32>
    %232 = tpu.matmul %230, %231, %cst_130 {dimension_numbers = #tpu.dot_dimension_numbers<[1], [0], [0], [1], [0, 0, 1, 1], [], []>} : vector<8x256xf32>, vector<256x512xf32>, vector<8x512xf32> -> vector<8x512xf32>
    %233 = arith.addf %211, %232 : vector<8x512xf32>
    %234 = tpu.concatenate %188, %233 in 0 : vector<8x512xf32>, vector<8x512xf32> -> vector<16x512xf32>
    %c0_131 = arith.constant 0 : index
    %c0_132 = arith.constant 0 : index
    %235 = vector.load %arg11[%c0_131, %c0_132] : memref<1x512xf32, #tpu.memory_space<vmem>>, vector<1x512xf32>
    %236 = vector.broadcast %235 : vector<1x512xf32> to vector<16x512xf32>
    %237 = arith.addf %234, %236 : vector<16x512xf32>
    %238 = arith.addf %135, %237 : vector<16x512xf32>
    %c0_133 = arith.constant 0 : index
    %c0_134 = arith.constant 0 : index
    %239 = vector.load %arg18[%c0_133, %c0_134] : memref<1x512xf32, #tpu.memory_space<vmem>>, vector<1x512xf32>
    %c0_135 = arith.constant 0 : index
    %c0_136 = arith.constant 0 : index
    %240 = vector.load %arg19[%c0_135, %c0_136] : memref<1x512xf32, #tpu.memory_space<vmem>>, vector<1x512xf32>
    %cst_137 = arith.constant dense<0.000000e+00> : vector<16xf32>
    %241 = vector.multi_reduction <add>, %238, %cst_137 [1] : vector<16x512xf32> to vector<16xf32>
    %242 = vector.shape_cast %241 : vector<16xf32> to vector<16x1xf32>
    %cst_138 = arith.constant 5.120000e+02 : f32
    %243 = vector.broadcast %cst_138 : f32 to vector<16x1xf32>
    %244 = arith.divf %242, %243 : vector<16x1xf32>
    %245 = vector.broadcast %244 : vector<16x1xf32> to vector<16x512xf32>
    %246 = arith.subf %238, %245 : vector<16x512xf32>
    %247 = arith.mulf %246, %246 : vector<16x512xf32>
    %cst_139 = arith.constant dense<0.000000e+00> : vector<16xf32>
    %248 = vector.multi_reduction <add>, %247, %cst_139 [1] : vector<16x512xf32> to vector<16xf32>
    %249 = vector.shape_cast %248 : vector<16xf32> to vector<16x1xf32>
    %cst_140 = arith.constant 5.120000e+02 : f32
    %250 = vector.broadcast %cst_140 : f32 to vector<16x1xf32>
    %251 = arith.divf %249, %250 : vector<16x1xf32>
    %252 = vector.broadcast %244 : vector<16x1xf32> to vector<16x512xf32>
    %253 = arith.subf %238, %252 : vector<16x512xf32>
    %cst_141 = arith.constant 9.99999974E-6 : f32
    %254 = vector.broadcast %cst_141 : f32 to vector<16x1xf32>
    %255 = arith.addf %251, %254 : vector<16x1xf32>
    %256 = math.rsqrt %255 : vector<16x1xf32>
    %257 = vector.broadcast %256 : vector<16x1xf32> to vector<16x512xf32>
    %258 = arith.mulf %253, %257 : vector<16x512xf32>
    %259 = vector.broadcast %239 : vector<1x512xf32> to vector<16x512xf32>
    %260 = arith.mulf %258, %259 : vector<16x512xf32>
    %261 = vector.broadcast %240 : vector<1x512xf32> to vector<16x512xf32>
    %262 = arith.addf %260, %261 : vector<16x512xf32>
    %c0_142 = arith.constant 0 : index
    %c0_143 = arith.constant 0 : index
    %263 = vector.load %arg12[%c0_142, %c0_143] : memref<512x2048xbf16, #tpu.memory_space<vmem>>, vector<512x2048xbf16>
    %264 = arith.extf %263 : vector<512x2048xbf16> to vector<512x2048xf32>
    %cst_144 = arith.constant dense<0.000000e+00> : vector<16x2048xf32>
    %265 = tpu.matmul %262, %264, %cst_144 {dimension_numbers = #tpu.dot_dimension_numbers<[1], [0], [0], [1], [0, 0, 1, 1], [], []>} : vector<16x512xf32>, vector<512x2048xf32>, vector<16x2048xf32> -> vector<16x2048xf32>
    %c0_145 = arith.constant 0 : index
    %c0_146 = arith.constant 0 : index
    %266 = vector.load %arg13[%c0_145, %c0_146] : memref<1x2048xf32, #tpu.memory_space<vmem>>, vector<1x2048xf32>
    %267 = vector.broadcast %266 : vector<1x2048xf32> to vector<16x2048xf32>
    %268 = arith.addf %265, %267 : vector<16x2048xf32>
    %cst_147 = arith.constant 0.000000e+00 : f32
    %269 = vector.broadcast %cst_147 : f32 to vector<16x2048xf32>
    %270 = arith.maximumf %268, %269 : vector<16x2048xf32>
    %c0_148 = arith.constant 0 : index
    %c0_149 = arith.constant 0 : index
    %271 = vector.load %arg14[%c0_148, %c0_149] : memref<2048x512xbf16, #tpu.memory_space<vmem>>, vector<2048x512xbf16>
    %272 = arith.extf %271 : vector<2048x512xbf16> to vector<2048x512xf32>
    %cst_150 = arith.constant dense<0.000000e+00> : vector<16x512xf32>
    %273 = tpu.matmul %270, %272, %cst_150 {dimension_numbers = #tpu.dot_dimension_numbers<[1], [0], [0], [1], [0, 0, 1, 1], [], []>} : vector<16x2048xf32>, vector<2048x512xf32>, vector<16x512xf32> -> vector<16x512xf32>
    %c0_151 = arith.constant 0 : index
    %c0_152 = arith.constant 0 : index
    %274 = vector.load %arg15[%c0_151, %c0_152] : memref<1x512xf32, #tpu.memory_space<vmem>>, vector<1x512xf32>
    %275 = vector.broadcast %274 : vector<1x512xf32> to vector<16x512xf32>
    %276 = arith.addf %273, %275 : vector<16x512xf32>
    %277 = arith.addf %276, %262 : vector<16x512xf32>
    %c0_153 = arith.constant 0 : index
    %c0_154 = arith.constant 0 : index
    %278 = vector.load %arg20[%c0_153, %c0_154] : memref<1x512xf32, #tpu.memory_space<vmem>>, vector<1x512xf32>
    %c0_155 = arith.constant 0 : index
    %c0_156 = arith.constant 0 : index
    %279 = vector.load %arg21[%c0_155, %c0_156] : memref<1x512xf32, #tpu.memory_space<vmem>>, vector<1x512xf32>
    %cst_157 = arith.constant dense<0.000000e+00> : vector<16xf32>
    %280 = vector.multi_reduction <add>, %277, %cst_157 [1] : vector<16x512xf32> to vector<16xf32>
    %281 = vector.shape_cast %280 : vector<16xf32> to vector<16x1xf32>
    %cst_158 = arith.constant 5.120000e+02 : f32
    %282 = vector.broadcast %cst_158 : f32 to vector<16x1xf32>
    %283 = arith.divf %281, %282 : vector<16x1xf32>
    %284 = vector.broadcast %283 : vector<16x1xf32> to vector<16x512xf32>
    %285 = arith.subf %277, %284 : vector<16x512xf32>
    %286 = arith.mulf %285, %285 : vector<16x512xf32>
    %cst_159 = arith.constant dense<0.000000e+00> : vector<16xf32>
    %287 = vector.multi_reduction <add>, %286, %cst_159 [1] : vector<16x512xf32> to vector<16xf32>
    %288 = vector.shape_cast %287 : vector<16xf32> to vector<16x1xf32>
    %cst_160 = arith.constant 5.120000e+02 : f32
    %289 = vector.broadcast %cst_160 : f32 to vector<16x1xf32>
    %290 = arith.divf %288, %289 : vector<16x1xf32>
    %291 = vector.broadcast %283 : vector<16x1xf32> to vector<16x512xf32>
    %292 = arith.subf %277, %291 : vector<16x512xf32>
    %cst_161 = arith.constant 9.99999974E-6 : f32
    %293 = vector.broadcast %cst_161 : f32 to vector<16x1xf32>
    %294 = arith.addf %290, %293 : vector<16x1xf32>
    %295 = math.rsqrt %294 : vector<16x1xf32>
    %296 = vector.broadcast %295 : vector<16x1xf32> to vector<16x512xf32>
    %297 = arith.mulf %292, %296 : vector<16x512xf32>
    %298 = vector.broadcast %278 : vector<1x512xf32> to vector<16x512xf32>
    %299 = arith.mulf %297, %298 : vector<16x512xf32>
    %300 = vector.broadcast %279 : vector<1x512xf32> to vector<16x512xf32>
    %301 = arith.addf %299, %300 : vector<16x512xf32>
    %c0_162 = arith.constant 0 : index
    %c0_163 = arith.constant 0 : index
    %302 = vector.load %arg22[%c0_162, %c0_163] : memref<16x512xf32, #tpu.memory_space<vmem>>, vector<16x512xf32>
    tpu.vector_store %arg22[%c0_162, %c0_163], %301 {strides = array<i32>} : memref<16x512xf32, #tpu.memory_space<vmem>>, vector<16x512xf32>,
    return
  }
}

</mosaic_0001>

<llo_original>
// kernel: decoder_forward.1
$region0: #{decoder_forward.1}
  #allocation0 [shape = 'u32[]', space=smem, size = 0x4, offset = 0x4, fixed_abs, tag = 'smem constant byte address 0x4 - core index']
  #allocation1 [shape = 'u32[144,128]{1,0:T(1,128)}', space=vmem, size = 0x12000, scoped, tag = 'internal scratch']
  %s0 = inlined_call_operand.hbm [shape: f32[16,512], index: 0, kind: input, shape index: {}]
  %s1 = inlined_call_operand.hbm [shape: f32[4,8,256], index: 1, kind: input, shape index: {}]
  %s2 = inlined_call_operand.hbm [shape: f32[4,8,256], index: 2, kind: input, shape index: {}]
  %s3 = inlined_call_operand.hbm [shape: f32[4,8,256], index: 3, kind: input, shape index: {}]
  %s4 = inlined_call_operand.hbm [shape: f32[4,8,256], index: 4, kind: input, shape index: {}]
  %s5 = inlined_call_operand.hbm [shape: f32[4,8,256], index: 5, kind: input, shape index: {}]
  %s6 = inlined_call_operand.hbm [shape: bf16[512,512], index: 6, kind: input, shape index: {}]
  %s7 = inlined_call_operand.hbm [shape: f32[1,512], index: 7, kind: input, shape index: {}]
  %s8 = inlined_call_operand.hbm [shape: bf16[512,512], index: 8, kind: input, shape index: {}]
  %s9 = inlined_call_operand.hbm [shape: f32[1,512], index: 9, kind: input, shape index: {}]
  %s10 = inlined_call_operand.hbm [shape: bf16[512,512], index: 10, kind: input, shape index: {}]
  %s11 = inlined_call_operand.hbm [shape: f32[1,512], index: 11, kind: input, shape index: {}]
  %s12 = inlined_call_operand.hbm [shape: bf16[512,2048], index: 12, kind: input, shape index: {}]
  %s13 = inlined_call_operand.hbm [shape: f32[1,2048], index: 13, kind: input, shape index: {}]
  %s14 = inlined_call_operand.hbm [shape: bf16[2048,512], index: 14, kind: input, shape index: {}]
  %s15 = inlined_call_operand.hbm [shape: f32[1,512], index: 15, kind: input, shape index: {}]
  %s16 = inlined_call_operand.hbm [shape: f32[1,512], index: 16, kind: input, shape index: {}]
  %s17 = inlined_call_operand.hbm [shape: f32[1,512], index: 17, kind: input, shape index: {}]
  %s18 = inlined_call_operand.hbm [shape: f32[1,512], index: 18, kind: input, shape index: {}]
  %s19 = inlined_call_operand.hbm [shape: f32[1,512], index: 19, kind: input, shape index: {}]
  %s20 = inlined_call_operand.hbm [shape: f32[1,512], index: 20, kind: input, shape index: {}]
  %s21 = inlined_call_operand.hbm [shape: f32[1,512], index: 21, kind: input, shape index: {}]
  %s22 = inlined_call_operand.hbm [shape: f32[16,512], index: 22, kind: output, shape index: {}]
  %s23 = sld [smem:[#allocation0]]
  $region186: #{decoder_forward.1} parent=0
    _
  %s25 = ssub.s32 1, %s23
  %s26 = scalar_select 0, %s25, %s23
  $region1: #{decoder_forward.1} parent=0
    #allocation2 [shape = 'u8[32768]{0}', space=vmem, size = 0x8000, scoped, tag = 'input window, operand 0, single buffered']
    #allocation3 [shape = 's32[1]{0}', space=sflag, size = 0x4, scoped, tag = 'scoped memory for decoder_forward.1']
    #allocation4 [shape = 's32[1]{0}', space=sflag, size = 0x4, scoped, tag = 'scoped memory for decoder_forward.1']
    #allocation5 [shape = 'u8[32768]{0}', space=vmem, size = 0x8000, scoped, tag = 'input window, operand 1, single buffered']
    #allocation6 [shape = 's32[1]{0}', space=sflag, size = 0x4, scoped, tag = 'scoped memory for decoder_forward.1']
    #allocation7 [shape = 'u8[32768]{0}', space=vmem, size = 0x8000, scoped, tag = 'input window, operand 2, single buffered']
    #allocation8 [shape = 'u8[32768]{0}', space=vmem, size = 0x8000, scoped, tag = 'input window, operand 3, single buffered']
    #allocation9 [shape = 's32[1]{0}', space=sflag, size = 0x4, scoped, tag = 'scoped memory for decoder_forward.1']
    #allocation10 [shape = 'u8[32768]{0}', space=vmem, size = 0x8000, scoped, tag = 'input window, operand 4, single buffered']
    #allocation11 [shape = 'u8[32768]{0}', space=vmem, size = 0x8000, scoped, tag = 'input window, operand 5, single buffered']
    #allocation12 [shape = 's32[1]{0}', space=sflag, size = 0x4, scoped, tag = 'scoped memory for decoder_forward.1']
    #allocation13 [shape = 'u8[524288]{0}', space=vmem, size = 0x80000, scoped, tag = 'input window, operand 6, single buffered']
    #allocation14 [shape = 'u8[2048]{0}', space=vmem, size = 0x800, scoped, tag = 'input window, operand 7, single buffered']
    #allocation15 [shape = 's32[1]{0}', space=sflag, size = 0x4, scoped, tag = 'scoped memory for decoder_forward.1']
    #allocation16 [shape = 'u8[524288]{0}', space=vmem, size = 0x80000, scoped, tag = 'input window, operand 8, single buffered']
    #allocation17 [shape = 'u8[2048]{0}', space=vmem, size = 0x800, scoped, tag = 'input window, operand 9, single buffered']
    #allocation18 [shape = 's32[1]{0}', space=sflag, size = 0x4, scoped, tag = 'scoped memory for decoder_forward.1']
    #allocation19 [shape = 'u8[524288]{0}', space=vmem, size = 0x80000, scoped, tag = 'input window, operand 10, single buffered']
    #allocation20 [shape = 'u8[2048]{0}', space=vmem, size = 0x800, scoped, tag = 'input window, operand 11, single buffered']
    #allocation21 [shape = 's32[1]{0}', space=sflag, size = 0x4, scoped, tag = 'scoped memory for decoder_forward.1']
    #allocation22 [shape = 'u8[2097152]{0}', space=vmem, size = 0x200000, scoped, tag = 'input window, operand 12, single buffered']
    #allocation23 [shape = 'u8[8192]{0}', space=vmem, size = 0x2000, scoped, tag = 'input window, operand 13, single buffered']
    #allocation24 [shape = 's32[1]{0}', space=sflag, size = 0x4, scoped, tag = 'scoped memory for decoder_forward.1']
    #allocation25 [shape = 'u8[2097152]{0}', space=vmem, size = 0x200000, scoped, tag = 'input window, operand 14, single buffered']
    #allocation26 [shape = 'u8[2048]{0}', space=vmem, size = 0x800, scoped, tag = 'input window, operand 15, single buffered']
    #allocation27 [shape = 's32[1]{0}', space=sflag, size = 0x4, scoped, tag = 'scoped memory for decoder_forward.1']
    #allocation28 [shape = 'u8[2048]{0}', space=vmem, size = 0x800, scoped, tag = 'input window, operand 16, single buffered']
    #allocation29 [shape = 'u8[2048]{0}', space=vmem, size = 0x800, scoped, tag = 'input window, operand 17, single buffered']
    #allocation30 [shape = 's32[1]{0}', space=sflag, size = 0x4, scoped, tag = 'scoped memory for decoder_forward.1']
    #allocation31 [shape = 'u8[2048]{0}', space=vmem, size = 0x800, scoped, tag = 'input window, operand 18, single buffered']
    #allocation32 [shape = 'u8[2048]{0}', space=vmem, size = 0x800, scoped, tag = 'input window, operand 19, single buffered']
    #allocation33 [shape = 's32[1]{0}', space=sflag, size = 0x4, scoped, tag = 'scoped memory for decoder_forward.1']
    #allocation34 [shape = 'u8[2048]{0}', space=vmem, size = 0x800, scoped, tag = 'input window, operand 20, single buffered']
    #allocation35 [shape = 'u8[2048]{0}', space=vmem, size = 0x800, scoped, tag = 'input window, operand 21, single buffered']
    #allocation36 [shape = 's32[1]{0}', space=sflag, size = 0x4, scoped, tag = 'scoped memory for decoder_forward.1']
    #allocation37 [shape = 'u8[32768]{0}', space=vmem, size = 0x8000, scoped, tag = 'output window, operand 0, single buffered']
    %27 = vsyncpa [#allocation3], 0
    %28 = vsyncpa [#allocation6], 0
    %29 = vsyncpa [#allocation9], 0
    %30 = vsyncpa [#allocation12], 0
    %31 = vsyncpa [#allocation15], 0
    %32 = vsyncpa [#allocation18], 0
    %33 = vsyncpa [#allocation21], 0
    %34 = vsyncpa [#allocation24], 0
    %35 = vsyncpa [#allocation27], 0
    %36 = vsyncpa [#allocation30], 0
    %37 = vsyncpa [#allocation33], 0
    %38 = vsyncpa [#allocation36], 0
    %39 = vsyncpa [#allocation4], 0
    // Predicated region
    $region2: #{decoder_forward.1} parent=1 // pred_check
      _
    $region3: #{decoder_forward.1} parent=1 // pred_check_branch
      %41 = sbr.rel (0) target = $region5
    $region4: #{decoder_forward.1} parent=1 // pred_region
      %s43 = ssub.s32 1024, 1024
      %44 = vsyncadd [#allocation3], %s43
      %s45 = sshll.u32 [#allocation2], 4
      %s46 = int_to_ptr.vmem [resolvable:$true] %s45
      %51 = dma.hbm_to_vmem [thread:$0]  %s0, 1024, %s46, [#allocation3], 512, 512, 32
    $region5: #{decoder_forward.1} parent=1 // pred_fallthru
      _
    // Predicated region
    $region6: #{decoder_forward.1} parent=1 // pred_check
      _
    $region7: #{decoder_forward.1} parent=1 // pred_check_branch
      %53 = sbr.rel (0) target = $region9
    $region8: #{decoder_forward.1} parent=1 // pred_region
      %s55 = ssub.s32 1024, 1024
      %56 = vsyncadd [#allocation6], %s55
      %s57 = sshll.u32 [#allocation5], 4
      %s58 = int_to_ptr.vmem [resolvable:$true] %s57
      %63 = dma.hbm_to_vmem [thread:$0]  %s1, 1024, %s58, [#allocation6], 256, 256, 16
    $region9: #{decoder_forward.1} parent=1 // pred_fallthru
      _
    // Predicated region
    $region10: #{decoder_forward.1} parent=1 // pred_check
      _
    $region11: #{decoder_forward.1} parent=1 // pred_check_branch
      %65 = sbr.rel (0) target = $region13
    $region12: #{decoder_forward.1} parent=1 // pred_region
      %s67 = ssub.s32 1024, 1024
      %68 = vsyncadd [#allocation6], %s67
      %s69 = sshll.u32 [#allocation7], 4
      %s70 = int_to_ptr.vmem [resolvable:$true] %s69
      %75 = dma.hbm_to_vmem [thread:$0]  %s2, 1024, %s70, [#allocation6], 256, 256, 16
    $region13: #{decoder_forward.1} parent=1 // pred_fallthru
      _
    // Predicated region
    $region14: #{decoder_forward.1} parent=1 // pred_check
      _
    $region15: #{decoder_forward.1} parent=1 // pred_check_branch
      %77 = sbr.rel (0) target = $region17
    $region16: #{decoder_forward.1} parent=1 // pred_region
      %s79 = ssub.s32 1024, 1024
      %80 = vsyncadd [#allocation9], %s79
      %s81 = sshll.u32 [#allocation8], 4
      %s82 = int_to_ptr.vmem [resolvable:$true] %s81
      %87 = dma.hbm_to_vmem [thread:$0]  %s3, 1024, %s82, [#allocation9], 256, 256, 16
    $region17: #{decoder_forward.1} parent=1 // pred_fallthru
      _
    // Predicated region
    $region18: #{decoder_forward.1} parent=1 // pred_check
      _
    $region19: #{decoder_forward.1} parent=1 // pred_check_branch
      %89 = sbr.rel (0) target = $region21
    $region20: #{decoder_forward.1} parent=1 // pred_region
      %s91 = ssub.s32 1024, 1024
      %92 = vsyncadd [#allocation9], %s91
      %s93 = sshll.u32 [#allocation10], 4
      %s94 = int_to_ptr.vmem [resolvable:$true] %s93
      %99 = dma.hbm_to_vmem [thread:$0]  %s4, 1024, %s94, [#allocation9], 256, 256, 16
    $region21: #{decoder_forward.1} parent=1 // pred_fallthru
      _
    // Predicated region
    $region22: #{decoder_forward.1} parent=1 // pred_check
      _
    $region23: #{decoder_forward.1} parent=1 // pred_check_branch
      %101 = sbr.rel (0) target = $region25
    $region24: #{decoder_forward.1} parent=1 // pred_region
      %s103 = ssub.s32 1024, 1024
      %104 = vsyncadd [#allocation12], %s103
      %s105 = sshll.u32 [#allocation11], 4
      %s106 = int_to_ptr.vmem [resolvable:$true] %s105
      %111 = dma.hbm_to_vmem [thread:$0]  %s5, 1024, %s106, [#allocation12], 256, 256, 16
    $region25: #{decoder_forward.1} parent=1 // pred_fallthru
      _
    // Predicated region
    $region26: #{decoder_forward.1} parent=1 // pred_check
      _
    $region27: #{decoder_forward.1} parent=1 // pred_check_branch
      %113 = sbr.rel (0) target = $region29
    $region28: #{decoder_forward.1} parent=1 // pred_region
      %s115 = ssub.s32 16384, 16384
      %116 = vsyncadd [#allocation12], %s115
      %s117 = sshll.u32 [#allocation13], 4
      %s118 = int_to_ptr.vmem [resolvable:$true] %s117
      %123 = dma.hbm_to_vmem [thread:$0]  %s6, 16384, %s118, [#allocation12], 256, 256, 16
    $region29: #{decoder_forward.1} parent=1 // pred_fallthru
      _
    // Predicated region
    $region30: #{decoder_forward.1} parent=1 // pred_check
      _
    $region31: #{decoder_forward.1} parent=1 // pred_check_branch
      %125 = sbr.rel (0) target = $region33
    $region32: #{decoder_forward.1} parent=1 // pred_region
      %s127 = ssub.s32 64, 64
      %128 = vsyncadd [#allocation15], %s127
      %s130 = sshll.u32 [#allocation14], 4
      %s131 = int_to_ptr.vmem [resolvable:$true] %s130
      %133 = dma.hbm_to_vmem [thread:$0]  %s7, 64, %s131, [#allocation15]
    $region33: #{decoder_forward.1} parent=1 // pred_fallthru
      _
    // Predicated region
    $region34: #{decoder_forward.1} parent=1 // pred_check
      _
    $region35: #{decoder_forward.1} parent=1 // pred_check_branch
      %135 = sbr.rel (0) target = $region37
    $region36: #{decoder_forward.1} parent=1 // pred_region
      %s137 = ssub.s32 16384, 16384
      %138 = vsyncadd [#allocation15], %s137
      %s139 = sshll.u32 [#allocation16], 4
      %s140 = int_to_ptr.vmem [resolvable:$true] %s139
      %145 = dma.hbm_to_vmem [thread:$0]  %s8, 16384, %s140, [#allocation15], 256, 256, 16
    $region37: #{decoder_forward.1} parent=1 // pred_fallthru
      _
    // Predicated region
    $region38: #{decoder_forward.1} parent=1 // pred_check
      _
    $region39: #{decoder_forward.1} parent=1 // pred_check_branch
      %147 = sbr.rel (0) target = $region41
    $region40: #{decoder_forward.1} parent=1 // pred_region
      %s149 = ssub.s32 64, 64
      %150 = vsyncadd [#allocation18], %s149
      %s152 = sshll.u32 [#allocation17], 4
      %s153 = int_to_ptr.vmem [resolvable:$true] %s152
      %155 = dma.hbm_to_vmem [thread:$0]  %s9, 64, %s153, [#allocation18]
    $region41: #{decoder_forward.1} parent=1 // pred_fallthru
      _
    // Predicated region
    $region42: #{decoder_forward.1} parent=1 // pred_check
      _
    $region43: #{decoder_forward.1} parent=1 // pred_check_branch
      %157 = sbr.rel (0) target = $region45
    $region44: #{decoder_forward.1} parent=1 // pred_region
      %s159 = ssub.s32 16384, 16384
      %160 = vsyncadd [#allocation18], %s159
      %s161 = sshll.u32 [#allocation19], 4
      %s162 = int_to_ptr.vmem [resolvable:$true] %s161
      %167 = dma.hbm_to_vmem [thread:$0]  %s10, 16384, %s162, [#allocation18], 256, 256, 16
    $region45: #{decoder_forward.1} parent=1 // pred_fallthru
      _
    // Predicated region
    $region46: #{decoder_forward.1} parent=1 // pred_check
      _
    $region47: #{decoder_forward.1} parent=1 // pred_check_branch
      %169 = sbr.rel (0) target = $region49
    $region48: #{decoder_forward.1} parent=1 // pred_region
      %s171 = ssub.s32 64, 64
      %172 = vsyncadd [#allocation21], %s171
      %s174 = sshll.u32 [#allocation20], 4
      %s175 = int_to_ptr.vmem [resolvable:$true] %s174
      %177 = dma.hbm_to_vmem [thread:$0]  %s11, 64, %s175, [#allocation21]
    $region49: #{decoder_forward.1} parent=1 // pred_fallthru
      _
    // Predicated region
    $region50: #{decoder_forward.1} parent=1 // pred_check
      _
    $region51: #{decoder_forward.1} parent=1 // pred_check_branch
      %179 = sbr.rel (0) target = $region53
    $region52: #{decoder_forward.1} parent=1 // pred_region
      %s181 = ssub.s32 65536, 65536
      %182 = vsyncadd [#allocation21], %s181
      %s183 = sshll.u32 [#allocation22], 4
      %s184 = int_to_ptr.vmem [resolvable:$true] %s183
      %189 = dma.hbm_to_vmem [thread:$0]  %s12, 65536, %s184, [#allocation21], 1024, 1024, 64
    $region53: #{decoder_forward.1} parent=1 // pred_fallthru
      _
    // Predicated region
    $region54: #{decoder_forward.1} parent=1 // pred_check
      _
    $region55: #{decoder_forward.1} parent=1 // pred_check_branch
      %191 = sbr.rel (0) target = $region57
    $region56: #{decoder_forward.1} parent=1 // pred_region
      %s193 = ssub.s32 256, 256
      %194 = vsyncadd [#allocation24], %s193
      %s196 = sshll.u32 [#allocation23], 4
      %s197 = int_to_ptr.vmem [resolvable:$true] %s196
      %199 = dma.hbm_to_vmem [thread:$0]  %s13, 256, %s197, [#allocation24]
    $region57: #{decoder_forward.1} parent=1 // pred_fallthru
      _
    // Predicated region
    $region58: #{decoder_forward.1} parent=1 // pred_check
      _
    $region59: #{decoder_forward.1} parent=1 // pred_check_branch
      %201 = sbr.rel (0) target = $region61
    $region60: #{decoder_forward.1} parent=1 // pred_region
      %s203 = ssub.s32 65536, 65536
      %204 = vsyncadd [#allocation24], %s203
      %s205 = sshll.u32 [#allocation25], 4
      %s206 = int_to_ptr.vmem [resolvable:$true] %s205
      %211 = dma.hbm_to_vmem [thread:$0]  %s14, 65536, %s206, [#allocation24], 256, 256, 16
    $region61: #{decoder_forward.1} parent=1 // pred_fallthru
      _
    // Predicated region
    $region62: #{decoder_forward.1} parent=1 // pred_check
      _
    $region63: #{decoder_forward.1} parent=1 // pred_check_branch
      %213 = sbr.rel (0) target = $region65
    $region64: #{decoder_forward.1} parent=1 // pred_region
      %s215 = ssub.s32 64, 64
      %216 = vsyncadd [#allocation27], %s215
      %s218 = sshll.u32 [#allocation26], 4
      %s219 = int_to_ptr.vmem [resolvable:$true] %s218
      %221 = dma.hbm_to_vmem [thread:$0]  %s15, 64, %s219, [#allocation27]
    $region65: #{decoder_forward.1} parent=1 // pred_fallthru
      _
    // Predicated region
    $region66: #{decoder_forward.1} parent=1 // pred_check
      _
    $region67: #{decoder_forward.1} parent=1 // pred_check_branch
      %223 = sbr.rel (0) target = $region69
    $region68: #{decoder_forward.1} parent=1 // pred_region
      %s225 = ssub.s32 64, 64
      %226 = vsyncadd [#allocation27], %s225
      %s228 = sshll.u32 [#allocation28], 4
      %s229 = int_to_ptr.vmem [resolvable:$true] %s228
      %231 = dma.hbm_to_vmem [thread:$0]  %s16, 64, %s229, [#allocation27]
    $region69: #{decoder_forward.1} parent=1 // pred_fallthru
      _
    // Predicated region
    $region70: #{decoder_forward.1} parent=1 // pred_check
      _
    $region71: #{decoder_forward.1} parent=1 // pred_check_branch
      %233 = sbr.rel (0) target = $region73
    $region72: #{decoder_forward.1} parent=1 // pred_region
      %s235 = ssub.s32 64, 64
      %236 = vsyncadd [#allocation30], %s235
      %s238 = sshll.u32 [#allocation29], 4
      %s239 = int_to_ptr.vmem [resolvable:$true] %s238
      %241 = dma.hbm_to_vmem [thread:$0]  %s17, 64, %s239, [#allocation30]
    $region73: #{decoder_forward.1} parent=1 // pred_fallthru
      _
    // Predicated region
    $region74: #{decoder_forward.1} parent=1 // pred_check
      _
    $region75: #{decoder_forward.1} parent=1 // pred_check_branch
      %243 = sbr.rel (0) target = $region77
    $region76: #{decoder_forward.1} parent=1 // pred_region
      %s245 = ssub.s32 64, 64
      %246 = vsyncadd [#allocation30], %s245
      %s248 = sshll.u32 [#allocation31], 4
      %s249 = int_to_ptr.vmem [resolvable:$true] %s248
      %251 = dma.hbm_to_vmem [thread:$0]  %s18, 64, %s249, [#allocation30]
    $region77: #{decoder_forward.1} parent=1 // pred_fallthru
      _
    // Predicated region
    $region78: #{decoder_forward.1} parent=1 // pred_check
      _
    $region79: #{decoder_forward.1} parent=1 // pred_check_branch
      %253 = sbr.rel (0) target = $region81
    $region80: #{decoder_forward.1} parent=1 // pred_region
      %s255 = ssub.s32 64, 64
      %256 = vsyncadd [#allocation33], %s255
      %s258 = sshll.u32 [#allocation32], 4
      %s259 = int_to_ptr.vmem [resolvable:$true] %s258
      %261 = dma.hbm_to_vmem [thread:$0]  %s19, 64, %s259, [#allocation33]
    $region81: #{decoder_forward.1} parent=1 // pred_fallthru
      _
    // Predicated region
    $region82: #{decoder_forward.1} parent=1 // pred_check
      _
    $region83: #{decoder_forward.1} parent=1 // pred_check_branch
      %263 = sbr.rel (0) target = $region85
    $region84: #{decoder_forward.1} parent=1 // pred_region
      %s265 = ssub.s32 64, 64
      %266 = vsyncadd [#allocation33], %s265
      %s268 = sshll.u32 [#allocation34], 4
      %s269 = int_to_ptr.vmem [resolvable:$true] %s268
      %271 = dma.hbm_to_vmem [thread:$0]  %s20, 64, %s269, [#allocation33]
    $region85: #{decoder_forward.1} parent=1 // pred_fallthru
      _
    // Predicated region
    $region86: #{decoder_forward.1} parent=1 // pred_check
      _
    $region87: #{decoder_forward.1} parent=1 // pred_check_branch
      %273 = sbr.rel (0) target = $region89
    $region88: #{decoder_forward.1} parent=1 // pred_region
      %s275 = ssub.s32 64, 64
      %276 = vsyncadd [#allocation36], %s275
      %s278 = sshll.u32 [#allocation35], 4
      %s279 = int_to_ptr.vmem [resolvable:$true] %s278
      %281 = dma.hbm_to_vmem [thread:$0]  %s21, 64, %s279, [#allocation36]
    $region89: #{decoder_forward.1} parent=1 // pred_fallthru
      _
    // Predicated region
    $region90: #{decoder_forward.1} parent=1 // pred_check
      _
    $region91: #{decoder_forward.1} parent=1 // pred_check_branch
      %283 = sbr.rel (0) target = $region93
    $region92: #{decoder_forward.1} parent=1 // pred_region
      %284 = dma.done [#allocation3], 1024
    $region93: #{decoder_forward.1} parent=1 // pred_fallthru
      _
    // Predicated region
    $region94: #{decoder_forward.1} parent=1 // pred_check
      _
    $region95: #{decoder_forward.1} parent=1 // pred_check_branch
      %286 = sbr.rel (0) target = $region97
    $region96: #{decoder_forward.1} parent=1 // pred_region
      %287 = dma.done [#allocation6], 1024
    $region97: #{decoder_forward.1} parent=1 // pred_fallthru
      _
    // Predicated region
    $region98: #{decoder_forward.1} parent=1 // pred_check
      _
    $region99: #{decoder_forward.1} parent=1 // pred_check_branch
      %289 = sbr.rel (0) target = $region101
    $region100: #{decoder_forward.1} parent=1 // pred_region
      %290 = dma.done [#allocation6], 1024
    $region101: #{decoder_forward.1} parent=1 // pred_fallthru
      _
    // Predicated region
    $region102: #{decoder_forward.1} parent=1 // pred_check
      _
    $region103: #{decoder_forward.1} parent=1 // pred_check_branch
      %292 = sbr.rel (0) target = $region105
    $region104: #{decoder_forward.1} parent=1 // pred_region
      %293 = dma.done [#allocation9], 1024
    $region105: #{decoder_forward.1} parent=1 // pred_fallthru
      _
    // Predicated region
    $region106: #{decoder_forward.1} parent=1 // pred_check
      _
    $region107: #{decoder_forward.1} parent=1 // pred_check_branch
      %295 = sbr.rel (0) target = $region109
    $region108: #{decoder_forward.1} parent=1 // pred_region
      %296 = dma.done [#allocation9], 1024
    $region109: #{decoder_forward.1} parent=1 // pred_fallthru
      _
    // Predicated region
    $region110: #{decoder_forward.1} parent=1 // pred_check
      _
    $region111: #{decoder_forward.1} parent=1 // pred_check_branch
      %298 = sbr.rel (0) target = $region113
    $region112: #{decoder_forward.1} parent=1 // pred_region
      %299 = dma.done [#allocation12], 1024
    $region113: #{decoder_forward.1} parent=1 // pred_fallthru
      _
    // Predicated region
    $region114: #{decoder_forward.1} parent=1 // pred_check
      _
    $region115: #{decoder_forward.1} parent=1 // pred_check_branch
      %301 = sbr.rel (0) target = $region117
    $region116: #{decoder_forward.1} parent=1 // pred_region
      %302 = dma.done [#allocation12], 16384
    $region117: #{decoder_forward.1} parent=1 // pred_fallthru
      _
    // Predicated region
    $region118: #{decoder_forward.1} parent=1 // pred_check
      _
    $region119: #{decoder_forward.1} parent=1 // pred_check_branch
      %304 = sbr.rel (0) target = $region121
    $region120: #{decoder_forward.1} parent=1 // pred_region
      %305 = dma.done [#allocation15], 64
    $region121: #{decoder_forward.1} parent=1 // pred_fallthru
      _
    // Predicated region
    $region122: #{decoder_forward.1} parent=1 // pred_check
      _
    $region123: #{decoder_forward.1} parent=1 // pred_check_branch
      %307 = sbr.rel (0) target = $region125
    $region124: #{decoder_forward.1} parent=1 // pred_region
      %308 = dma.done [#allocation15], 16384
    $region125: #{decoder_forward.1} parent=1 // pred_fallthru
      _
    // Predicated region
    $region126: #{decoder_forward.1} parent=1 // pred_check
      _
    $region127: #{decoder_forward.1} parent=1 // pred_check_branch
      %310 = sbr.rel (0) target = $region129
    $region128: #{decoder_forward.1} parent=1 // pred_region
      %311 = dma.done [#allocation18], 64
    $region129: #{decoder_forward.1} parent=1 // pred_fallthru
      _
    // Predicated region
    $region130: #{decoder_forward.1} parent=1 // pred_check
      _
    $region131: #{decoder_forward.1} parent=1 // pred_check_branch
      %313 = sbr.rel (0) target = $region133
    $region132: #{decoder_forward.1} parent=1 // pred_region
      %314 = dma.done [#allocation18], 16384
    $region133: #{decoder_forward.1} parent=1 // pred_fallthru
      _
    // Predicated region
    $region134: #{decoder_forward.1} parent=1 // pred_check
      _
    $region135: #{decoder_forward.1} parent=1 // pred_check_branch
      %316 = sbr.rel (0) target = $region137
    $region136: #{decoder_forward.1} parent=1 // pred_region
      %317 = dma.done [#allocation21], 64
    $region137: #{decoder_forward.1} parent=1 // pred_fallthru
      _
    // Predicated region
    $region138: #{decoder_forward.1} parent=1 // pred_check
      _
    $region139: #{decoder_forward.1} parent=1 // pred_check_branch
      %319 = sbr.rel (0) target = $region141
    $region140: #{decoder_forward.1} parent=1 // pred_region
      %320 = dma.done [#allocation21], 65536
    $region141: #{decoder_forward.1} parent=1 // pred_fallthru
      _
    // Predicated region
    $region142: #{decoder_forward.1} parent=1 // pred_check
      _
    $region143: #{decoder_forward.1} parent=1 // pred_check_branch
      %322 = sbr.rel (0) target = $region145
    $region144: #{decoder_forward.1} parent=1 // pred_region
      %323 = dma.done [#allocation24], 256
    $region145: #{decoder_forward.1} parent=1 // pred_fallthru
      _
    // Predicated region
    $region146: #{decoder_forward.1} parent=1 // pred_check
      _
    $region147: #{decoder_forward.1} parent=1 // pred_check_branch
      %325 = sbr.rel (0) target = $region149
    $region148: #{decoder_forward.1} parent=1 // pred_region
      %326 = dma.done [#allocation24], 65536
    $region149: #{decoder_forward.1} parent=1 // pred_fallthru
      _
    // Predicated region
    $region150: #{decoder_forward.1} parent=1 // pred_check
      _
    $region151: #{decoder_forward.1} parent=1 // pred_check_branch
      %328 = sbr.rel (0) target = $region153
    $region152: #{decoder_forward.1} parent=1 // pred_region
      %329 = dma.done [#allocation27], 64
    $region153: #{decoder_forward.1} parent=1 // pred_fallthru
      _
    // Predicated region
    $region154: #{decoder_forward.1} parent=1 // pred_check
      _
    $region155: #{decoder_forward.1} parent=1 // pred_check_branch
      %331 = sbr.rel (0) target = $region157
    $region156: #{decoder_forward.1} parent=1 // pred_region
      %332 = dma.done [#allocation27], 64
    $region157: #{decoder_forward.1} parent=1 // pred_fallthru
      _
    // Predicated region
    $region158: #{decoder_forward.1} parent=1 // pred_check
      _
    $region159: #{decoder_forward.1} parent=1 // pred_check_branch
      %334 = sbr.rel (0) target = $region161
    $region160: #{decoder_forward.1} parent=1 // pred_region
      %335 = dma.done [#allocation30], 64
    $region161: #{decoder_forward.1} parent=1 // pred_fallthru
      _
    // Predicated region
    $region162: #{decoder_forward.1} parent=1 // pred_check
      _
    $region163: #{decoder_forward.1} parent=1 // pred_check_branch
      %337 = sbr.rel (0) target = $region165
    $region164: #{decoder_forward.1} parent=1 // pred_region
      %338 = dma.done [#allocation30], 64
    $region165: #{decoder_forward.1} parent=1 // pred_fallthru
      _
    // Predicated region
    $region166: #{decoder_forward.1} parent=1 // pred_check
      _
    $region167: #{decoder_forward.1} parent=1 // pred_check_branch
      %340 = sbr.rel (0) target = $region169
    $region168: #{decoder_forward.1} parent=1 // pred_region
      %341 = dma.done [#allocation33], 64
    $region169: #{decoder_forward.1} parent=1 // pred_fallthru
      _
    // Predicated region
    $region170: #{decoder_forward.1} parent=1 // pred_check
      _
    $region171: #{decoder_forward.1} parent=1 // pred_check_branch
      %343 = sbr.rel (0) target = $region173
    $region172: #{decoder_forward.1} parent=1 // pred_region
      %344 = dma.done [#allocation33], 64
    $region173: #{decoder_forward.1} parent=1 // pred_fallthru
      _
    // Predicated region
    $region174: #{decoder_forward.1} parent=1 // pred_check
      _
    $region175: #{decoder_forward.1} parent=1 // pred_check_branch
      %346 = sbr.rel (0) target = $region177
    $region176: #{decoder_forward.1} parent=1 // pred_region
      %347 = dma.done [#allocation36], 64
    $region177: #{decoder_forward.1} parent=1 // pred_fallthru
      _
    %v348 = vld [vmem:[#allocation2] sm:$0xff]
    %v349 = vld [vmem:[#allocation2 + $0x8] sm:$0xff]
    %v350 = vld [vmem:[#allocation2 + $0x10] sm:$0xff]
    %v351 = vld [vmem:[#allocation2 + $0x18] sm:$0xff]
    %v352 = vld [vmem:[#allocation2 + $0x20] sm:$0xff]
    %v353 = vld [vmem:[#allocation2 + $0x28] sm:$0xff]
    %v354 = vld [vmem:[#allocation2 + $0x30] sm:$0xff]
    %v355 = vld [vmem:[#allocation2 + $0x38] sm:$0xff]
    %v356 = vlaneseq
    %v357 = vshrl.u32 %v356, 7
    %v358 = vlaneseq
    %v359 = vand.u32 %v358, 127
    %vm360 = vcmp.gt.s32.totalorder %v359, %v357
    %v361 = vsel %vm360, -1e+30, 0.0
    %v362 = vld [vmem:[#allocation13] sm:$0xff]
    %v363 = vld [vmem:[#allocation13 + $0x8] sm:$0xff]
    %v364 = vld [vmem:[#allocation13 + $0x10] sm:$0xff]
    %v365 = vld [vmem:[#allocation13 + $0x18] sm:$0xff]
    %v366 = vld [vmem:[#allocation13 + $0x20] sm:$0xff]
    %v367 = vld [vmem:[#allocation13 + $0x28] sm:$0xff]
    %v368 = vld [vmem:[#allocation13 + $0x30] sm:$0xff]
    %v369 = vld [vmem:[#allocation13 + $0x38] sm:$0xff]
    %v370 = vld [vmem:[#allocation13 + $0x40] sm:$0xff]
    %v371 = vld [vmem:[#allocation13 + $0x48] sm:$0xff]
    %v372 = vld [vmem:[#allocation13 + $0x50] sm:$0xff]
    %v373 = vld [vmem:[#allocation13 + $0x58] sm:$0xff]
    %v374 = vld [vmem:[#allocation13 + $0x60] sm:$0xff]
    %v375 = vld [vmem:[#allocation13 + $0x68] sm:$0xff]
    %v376 = vld [vmem:[#allocation13 + $0x70] sm:$0xff]
    %v377 = vld [vmem:[#allocation13 + $0x78] sm:$0xff]
    %v378 = vld [vmem:[#allocation13 + $0x80] sm:$0xff]
    %v379 = vld [vmem:[#allocation13 + $0x88] sm:$0xff]
    %v380 = vld [vmem:[#allocation13 + $0x90] sm:$0xff]
    %v381 = vld [vmem:[#allocation13 + $0x98] sm:$0xff]
    %v382 = vld [vmem:[#allocation13 + $0xa0] sm:$0xff]
    %v383 = vld [vmem:[#allocation13 + $0xa8] sm:$0xff]
    %v384 = vld [vmem:[#allocation13 + $0xb0] sm:$0xff]
    %v385 = vld [vmem:[#allocation13 + $0xb8] sm:$0xff]
    %v386 = vld [vmem:[#allocation13 + $0xc0] sm:$0xff]
    %v387 = vld [vmem:[#allocation13 + $0xc8] sm:$0xff]
    %v388 = vld [vmem:[#allocation13 + $0xd0] sm:$0xff]
    %v389 = vld [vmem:[#allocation13 + $0xd8] sm:$0xff]
    %v390 = vld [vmem:[#allocation13 + $0xe0] sm:$0xff]
    %v391 = vld [vmem:[#allocation13 + $0xe8] sm:$0xff]
    %v392 = vld [vmem:[#allocation13 + $0xf0] sm:$0xff]
    %v393 = vld [vmem:[#allocation13 + $0xf8] sm:$0xff]
    %v394 = vld [vmem:[#allocation13 + $0x100] sm:$0xff]
    %v395 = vld [vmem:[#allocation13 + $0x108] sm:$0xff]
    %v396 = vld [vmem:[#allocation13 + $0x110] sm:$0xff]
    %v397 = vld [vmem:[#allocation13 + $0x118] sm:$0xff]
    %v398 = vld [vmem:[#allocation13 + $0x120] sm:$0xff]
    %v399 = vld [vmem:[#allocation13 + $0x128] sm:$0xff]
    %v400 = vld [vmem:[#allocation13 + $0x130] sm:$0xff]
    %v401 = vld [vmem:[#allocation13 + $0x138] sm:$0xff]
    %v402 = vld [vmem:[#allocation13 + $0x140] sm:$0xff]
    %v403 = vld [vmem:[#allocation13 + $0x148] sm:$0xff]
    %v404 = vld [vmem:[#allocation13 + $0x150] sm:$0xff]
    %v405 = vld [vmem:[#allocation13 + $0x158] sm:$0xff]
    %v406 = vld [vmem:[#allocation13 + $0x160] sm:$0xff]
    %v407 = vld [vmem:[#allocation13 + $0x168] sm:$0xff]
    %v408 = vld [vmem:[#allocation13 + $0x170] sm:$0xff]
    %v409 = vld [vmem:[#allocation13 + $0x178] sm:$0xff]
    %v410 = vld [vmem:[#allocation13 + $0x180] sm:$0xff]
    %v411 = vld [vmem:[#allocation13 + $0x188] sm:$0xff]
    %v412 = vld [vmem:[#allocation13 + $0x190] sm:$0xff]
    %v413 = vld [vmem:[#allocation13 + $0x198] sm:$0xff]
    %v414 = vld [vmem:[#allocation13 + $0x1a0] sm:$0xff]
    %v415 = vld [vmem:[#allocation13 + $0x1a8] sm:$0xff]
    %v416 = vld [vmem:[#allocation13 + $0x1b0] sm:$0xff]
    %v417 = vld [vmem:[#allocation13 + $0x1b8] sm:$0xff]
    %v418 = vld [vmem:[#allocation13 + $0x1c0] sm:$0xff]
    %v419 = vld [vmem:[#allocation13 + $0x1c8] sm:$0xff]
    %v420 = vld [vmem:[#allocation13 + $0x1d0] sm:$0xff]
    %v421 = vld [vmem:[#allocation13 + $0x1d8] sm:$0xff]
    %v422 = vld [vmem:[#allocation13 + $0x1e0] sm:$0xff]
    %v423 = vld [vmem:[#allocation13 + $0x1e8] sm:$0xff]
    %v424 = vld [vmem:[#allocation13 + $0x1f0] sm:$0xff]
    %v425 = vld [vmem:[#allocation13 + $0x1f8] sm:$0xff]
    %v426 = vld [vmem:[#allocation13 + $0x200] sm:$0xff]
    %v427 = vld [vmem:[#allocation13 + $0x208] sm:$0xff]
    %v428 = vld [vmem:[#allocation13 + $0x210] sm:$0xff]
    %v429 = vld [vmem:[#allocation13 + $0x218] sm:$0xff]
    %v430 = vld [vmem:[#allocation13 + $0x220] sm:$0xff]
    %v431 = vld [vmem:[#allocation13 + $0x228] sm:$0xff]
    %v432 = vld [vmem:[#allocation13 + $0x230] sm:$0xff]
    %v433 = vld [vmem:[#allocation13 + $0x238] sm:$0xff]
    %v434 = vld [vmem:[#allocation13 + $0x240] sm:$0xff]
    %v435 = vld [vmem:[#allocation13 + $0x248] sm:$0xff]
    %v436 = vld [vmem:[#allocation13 + $0x250] sm:$0xff]
    %v437 = vld [vmem:[#allocation13 + $0x258] sm:$0xff]
    %v438 = vld [vmem:[#allocation13 + $0x260] sm:$0xff]
    %v439 = vld [vmem:[#allocation13 + $0x268] sm:$0xff]
    %v440 = vld [vmem:[#allocation13 + $0x270] sm:$0xff]
    %v441 = vld [vmem:[#allocation13 + $0x278] sm:$0xff]
    %v442 = vld [vmem:[#allocation13 + $0x280] sm:$0xff]
    %v443 = vld [vmem:[#allocation13 + $0x288] sm:$0xff]
    %v444 = vld [vmem:[#allocation13 + $0x290] sm:$0xff]
    %v445 = vld [vmem:[#allocation13 + $0x298] sm:$0xff]
    %v446 = vld [vmem:[#allocation13 + $0x2a0] sm:$0xff]
    %v447 = vld [vmem:[#allocation13 + $0x2a8] sm:$0xff]
    %v448 = vld [vmem:[#allocation13 + $0x2b0] sm:$0xff]
    %v449 = vld [vmem:[#allocation13 + $0x2b8] sm:$0xff]
    %v450 = vld [vmem:[#allocation13 + $0x2c0] sm:$0xff]
    %v451 = vld [vmem:[#allocation13 + $0x2c8] sm:$0xff]
    %v452 = vld [vmem:[#allocation13 + $0x2d0] sm:$0xff]
    %v453 = vld [vmem:[#allocation13 + $0x2d8] sm:$0xff]
    %v454 = vld [vmem:[#allocation13 + $0x2e0] sm:$0xff]
    %v455 = vld [vmem:[#allocation13 + $0x2e8] sm:$0xff]
    %v456 = vld [vmem:[#allocation13 + $0x2f0] sm:$0xff]
    %v457 = vld [vmem:[#allocation13 + $0x2f8] sm:$0xff]
    %v458 = vld [vmem:[#allocation13 + $0x300] sm:$0xff]
    %v459 = vld [vmem:[#allocation13 + $0x308] sm:$0xff]
    %v460 = vld [vmem:[#allocation13 + $0x310] sm:$0xff]
    %v461 = vld [vmem:[#allocation13 + $0x318] sm:$0xff]
    %v462 = vld [vmem:[#allocation13 + $0x320] sm:$0xff]
    %v463 = vld [vmem:[#allocation13 + $0x328] sm:$0xff]
    %v464 = vld [vmem:[#allocation13 + $0x330] sm:$0xff]
    %v465 = vld [vmem:[#allocation13 + $0x338] sm:$0xff]
    %v466 = vld [vmem:[#allocation13 + $0x340] sm:$0xff]
    %v467 = vld [vmem:[#allocation13 + $0x348] sm:$0xff]
    %v468 = vld [vmem:[#allocation13 + $0x350] sm:$0xff]
    %v469 = vld [vmem:[#allocation13 + $0x358] sm:$0xff]
    %v470 = vld [vmem:[#allocation13 + $0x360] sm:$0xff]
    %v471 = vld [vmem:[#allocation13 + $0x368] sm:$0xff]
    %v472 = vld [vmem:[#allocation13 + $0x370] sm:$0xff]
    %v473 = vld [vmem:[#allocation13 + $0x378] sm:$0xff]
    %v474 = vld [vmem:[#allocation13 + $0x380] sm:$0xff]
    %v475 = vld [vmem:[#allocation13 + $0x388] sm:$0xff]
    %v476 = vld [vmem:[#allocation13 + $0x390] sm:$0xff]
    %v477 = vld [vmem:[#allocation13 + $0x398] sm:$0xff]
    %v478 = vld [vmem:[#allocation13 + $0x3a0] sm:$0xff]
    %v479 = vld [vmem:[#allocation13 + $0x3a8] sm:$0xff]
    %v480 = vld [vmem:[#allocation13 + $0x3b0] sm:$0xff]
    %v481 = vld [vmem:[#allocation13 + $0x3b8] sm:$0xff]
    %v482 = vld [vmem:[#allocation13 + $0x3c0] sm:$0xff]
    %v483 = vld [vmem:[#allocation13 + $0x3c8] sm:$0xff]
    %v484 = vld [vmem:[#allocation13 + $0x3d0] sm:$0xff]
    %v485 = vld [vmem:[#allocation13 + $0x3d8] sm:$0xff]
    %v486 = vld [vmem:[#allocation13 + $0x3e0] sm:$0xff]
    %v487 = vld [vmem:[#allocation13 + $0x3e8] sm:$0xff]
    %v488 = vld [vmem:[#allocation13 + $0x3f0] sm:$0xff]
    %v489 = vld [vmem:[#allocation13 + $0x3f8] sm:$0xff]
    %v490 = vunpack.c.l.bf16 %v362
    %v491 = vunpack.c.h.bf16 %v362
    %v492 = vunpack.c.l.bf16 %v363
    %v493 = vunpack.c.h.bf16 %v363
    %v494 = vunpack.c.l.bf16 %v364
    %v495 = vunpack.c.h.bf16 %v364
    %v496 = vunpack.c.l.bf16 %v365
    %v497 = vunpack.c.h.bf16 %v365
    %v498 = vunpack.c.l.bf16 %v366
    %v499 = vunpack.c.h.bf16 %v366
    %v500 = vunpack.c.l.bf16 %v367
    %v501 = vunpack.c.h.bf16 %v367
    %v502 = vunpack.c.l.bf16 %v368
    %v503 = vunpack.c.h.bf16 %v368
    %v504 = vunpack.c.l.bf16 %v369
    %v505 = vunpack.c.h.bf16 %v369
    %v506 = vunpack.c.l.bf16 %v370
    %v507 = vunpack.c.h.bf16 %v370
    %v508 = vunpack.c.l.bf16 %v371
    %v509 = vunpack.c.h.bf16 %v371
    %v510 = vunpack.c.l.bf16 %v372
    %v511 = vunpack.c.h.bf16 %v372
    %v512 = vunpack.c.l.bf16 %v373
    %v513 = vunpack.c.h.bf16 %v373
    %v514 = vunpack.c.l.bf16 %v374
    %v515 = vunpack.c.h.bf16 %v374
    %v516 = vunpack.c.l.bf16 %v375
    %v517 = vunpack.c.h.bf16 %v375
    %v518 = vunpack.c.l.bf16 %v376
    %v519 = vunpack.c.h.bf16 %v376
    %v520 = vunpack.c.l.bf16 %v377
    %v521 = vunpack.c.h.bf16 %v377
    %v522 = vunpack.c.l.bf16 %v378
    %v523 = vunpack.c.h.bf16 %v378
    %v524 = vunpack.c.l.bf16 %v379
    %v525 = vunpack.c.h.bf16 %v379
    %v526 = vunpack.c.l.bf16 %v380
    %v527 = vunpack.c.h.bf16 %v380
    %v528 = vunpack.c.l.bf16 %v381
    %v529 = vunpack.c.h.bf16 %v381
    %v530 = vunpack.c.l.bf16 %v382
    %v531 = vunpack.c.h.bf16 %v382
    %v532 = vunpack.c.l.bf16 %v383
    %v533 = vunpack.c.h.bf16 %v383
    %v534 = vunpack.c.l.bf16 %v384
    %v535 = vunpack.c.h.bf16 %v384
    %v536 = vunpack.c.l.bf16 %v385
    %v537 = vunpack.c.h.bf16 %v385
    %v538 = vunpack.c.l.bf16 %v386
    %v539 = vunpack.c.h.bf16 %v386
    %v540 = vunpack.c.l.bf16 %v387
    %v541 = vunpack.c.h.bf16 %v387
    %v542 = vunpack.c.l.bf16 %v388
    %v543 = vunpack.c.h.bf16 %v388
    %v544 = vunpack.c.l.bf16 %v389
    %v545 = vunpack.c.h.bf16 %v389
    %v546 = vunpack.c.l.bf16 %v390
    %v547 = vunpack.c.h.bf16 %v390
    %v548 = vunpack.c.l.bf16 %v391
    %v549 = vunpack.c.h.bf16 %v391
    %v550 = vunpack.c.l.bf16 %v392
    %v551 = vunpack.c.h.bf16 %v392
    %v552 = vunpack.c.l.bf16 %v393
    %v553 = vunpack.c.h.bf16 %v393
    %v554 = vunpack.c.l.bf16 %v394
    %v555 = vunpack.c.h.bf16 %v394
    %v556 = vunpack.c.l.bf16 %v395
    %v557 = vunpack.c.h.bf16 %v395
    %v558 = vunpack.c.l.bf16 %v396
    %v559 = vunpack.c.h.bf16 %v396
    %v560 = vunpack.c.l.bf16 %v397
    %v561 = vunpack.c.h.bf16 %v397
    %v562 = vunpack.c.l.bf16 %v398
    %v563 = vunpack.c.h.bf16 %v398
    %v564 = vunpack.c.l.bf16 %v399
    %v565 = vunpack.c.h.bf16 %v399
    %v566 = vunpack.c.l.bf16 %v400
    %v567 = vunpack.c.h.bf16 %v400
    %v568 = vunpack.c.l.bf16 %v401
    %v569 = vunpack.c.h.bf16 %v401
    %v570 = vunpack.c.l.bf16 %v402
    %v571 = vunpack.c.h.bf16 %v402
    %v572 = vunpack.c.l.bf16 %v403
    %v573 = vunpack.c.h.bf16 %v403
    %v574 = vunpack.c.l.bf16 %v404
    %v575 = vunpack.c.h.bf16 %v404
    %v576 = vunpack.c.l.bf16 %v405
    %v577 = vunpack.c.h.bf16 %v405
    %v578 = vunpack.c.l.bf16 %v406
    %v579 = vunpack.c.h.bf16 %v406
    %v580 = vunpack.c.l.bf16 %v407
    %v581 = vunpack.c.h.bf16 %v407
    %v582 = vunpack.c.l.bf16 %v408
    %v583 = vunpack.c.h.bf16 %v408
    %v584 = vunpack.c.l.bf16 %v409
    %v585 = vunpack.c.h.bf16 %v409
    %v586 = vunpack.c.l.bf16 %v410
    %v587 = vunpack.c.h.bf16 %v410
    %v588 = vunpack.c.l.bf16 %v411
    %v589 = vunpack.c.h.bf16 %v411
    %v590 = vunpack.c.l.bf16 %v412
    %v591 = vunpack.c.h.bf16 %v412
    %v592 = vunpack.c.l.bf16 %v413
    %v593 = vunpack.c.h.bf16 %v413
    %v594 = vunpack.c.l.bf16 %v414
    %v595 = vunpack.c.h.bf16 %v414
    %v596 = vunpack.c.l.bf16 %v415
    %v597 = vunpack.c.h.bf16 %v415
    %v598 = vunpack.c.l.bf16 %v416
    %v599 = vunpack.c.h.bf16 %v416
    %v600 = vunpack.c.l.bf16 %v417
    %v601 = vunpack.c.h.bf16 %v417
    %v602 = vunpack.c.l.bf16 %v418
    %v603 = vunpack.c.h.bf16 %v418
    %v604 = vunpack.c.l.bf16 %v419
    %v605 = vunpack.c.h.bf16 %v419
    %v606 = vunpack.c.l.bf16 %v420
    %v607 = vunpack.c.h.bf16 %v420
    %v608 = vunpack.c.l.bf16 %v421
    %v609 = vunpack.c.h.bf16 %v421
    %v610 = vunpack.c.l.bf16 %v422
    %v611 = vunpack.c.h.bf16 %v422
    %v612 = vunpack.c.l.bf16 %v423
    %v613 = vunpack.c.h.bf16 %v423
    %v614 = vunpack.c.l.bf16 %v424
    %v615 = vunpack.c.h.bf16 %v424
    %v616 = vunpack.c.l.bf16 %v425
    %v617 = vunpack.c.h.bf16 %v425
    %v618 = vunpack.c.l.bf16 %v426
    %v619 = vunpack.c.h.bf16 %v426
    %v620 = vunpack.c.l.bf16 %v427
    %v621 = vunpack.c.h.bf16 %v427
    %v622 = vunpack.c.l.bf16 %v428
    %v623 = vunpack.c.h.bf16 %v428
    %v624 = vunpack.c.l.bf16 %v429
    %v625 = vunpack.c.h.bf16 %v429
    %v626 = vunpack.c.l.bf16 %v430
    %v627 = vunpack.c.h.bf16 %v430
    %v628 = vunpack.c.l.bf16 %v431
    %v629 = vunpack.c.h.bf16 %v431
    %v630 = vunpack.c.l.bf16 %v432
    %v631 = vunpack.c.h.bf16 %v432
    %v632 = vunpack.c.l.bf16 %v433
    %v633 = vunpack.c.h.bf16 %v433
    %v634 = vunpack.c.l.bf16 %v434
    %v635 = vunpack.c.h.bf16 %v434
    %v636 = vunpack.c.l.bf16 %v435
    %v637 = vunpack.c.h.bf16 %v435
    %v638 = vunpack.c.l.bf16 %v436
    %v639 = vunpack.c.h.bf16 %v436
    %v640 = vunpack.c.l.bf16 %v437
    %v641 = vunpack.c.h.bf16 %v437
    %v642 = vunpack.c.l.bf16 %v438
    %v643 = vunpack.c.h.bf16 %v438
    %v644 = vunpack.c.l.bf16 %v439
    %v645 = vunpack.c.h.bf16 %v439
    %v646 = vunpack.c.l.bf16 %v440
    %v647 = vunpack.c.h.bf16 %v440
    %v648 = vunpack.c.l.bf16 %v441
    %v649 = vunpack.c.h.bf16 %v441
    %v650 = vunpack.c.l.bf16 %v442
    %v651 = vunpack.c.h.bf16 %v442
    %v652 = vunpack.c.l.bf16 %v443
    %v653 = vunpack.c.h.bf16 %v443
    %v654 = vunpack.c.l.bf16 %v444
    %v655 = vunpack.c.h.bf16 %v444
    %v656 = vunpack.c.l.bf16 %v445
    %v657 = vunpack.c.h.bf16 %v445
    %v658 = vunpack.c.l.bf16 %v446
    %v659 = vunpack.c.h.bf16 %v446
    %v660 = vunpack.c.l.bf16 %v447
    %v661 = vunpack.c.h.bf16 %v447
    %v662 = vunpack.c.l.bf16 %v448
    %v663 = vunpack.c.h.bf16 %v448
    %v664 = vunpack.c.l.bf16 %v449
    %v665 = vunpack.c.h.bf16 %v449
    %v666 = vunpack.c.l.bf16 %v450
    %v667 = vunpack.c.h.bf16 %v450
    %v668 = vunpack.c.l.bf16 %v451
    %v669 = vunpack.c.h.bf16 %v451
    %v670 = vunpack.c.l.bf16 %v452
    %v671 = vunpack.c.h.bf16 %v452
    %v672 = vunpack.c.l.bf16 %v453
    %v673 = vunpack.c.h.bf16 %v453
    %v674 = vunpack.c.l.bf16 %v454
    %v675 = vunpack.c.h.bf16 %v454
    %v676 = vunpack.c.l.bf16 %v455
    %v677 = vunpack.c.h.bf16 %v455
    %v678 = vunpack.c.l.bf16 %v456
    %v679 = vunpack.c.h.bf16 %v456
    %v680 = vunpack.c.l.bf16 %v457
    %v681 = vunpack.c.h.bf16 %v457
    %v682 = vunpack.c.l.bf16 %v458
    %v683 = vunpack.c.h.bf16 %v458
    %v684 = vunpack.c.l.bf16 %v459
    %v685 = vunpack.c.h.bf16 %v459
    %v686 = vunpack.c.l.bf16 %v460
    %v687 = vunpack.c.h.bf16 %v460
    %v688 = vunpack.c.l.bf16 %v461
    %v689 = vunpack.c.h.bf16 %v461
    %v690 = vunpack.c.l.bf16 %v462
    %v691 = vunpack.c.h.bf16 %v462
    %v692 = vunpack.c.l.bf16 %v463
    %v693 = vunpack.c.h.bf16 %v463
    %v694 = vunpack.c.l.bf16 %v464
    %v695 = vunpack.c.h.bf16 %v464
    %v696 = vunpack.c.l.bf16 %v465
    %v697 = vunpack.c.h.bf16 %v465
    %v698 = vunpack.c.l.bf16 %v466
    %v699 = vunpack.c.h.bf16 %v466
    %v700 = vunpack.c.l.bf16 %v467
    %v701 = vunpack.c.h.bf16 %v467
    %v702 = vunpack.c.l.bf16 %v468
    %v703 = vunpack.c.h.bf16 %v468
    %v704 = vunpack.c.l.bf16 %v469
    %v705 = vunpack.c.h.bf16 %v469
    %v706 = vunpack.c.l.bf16 %v470
    %v707 = vunpack.c.h.bf16 %v470
    %v708 = vunpack.c.l.bf16 %v471
    %v709 = vunpack.c.h.bf16 %v471
    %v710 = vunpack.c.l.bf16 %v472
    %v711 = vunpack.c.h.bf16 %v472
    %v712 = vunpack.c.l.bf16 %v473
    %v713 = vunpack.c.h.bf16 %v473
    %v714 = vunpack.c.l.bf16 %v474
    %v715 = vunpack.c.h.bf16 %v474
    %v716 = vunpack.c.l.bf16 %v475
    %v717 = vunpack.c.h.bf16 %v475
    %v718 = vunpack.c.l.bf16 %v476
    %v719 = vunpack.c.h.bf16 %v476
    %v720 = vunpack.c.l.bf16 %v477
    %v721 = vunpack.c.h.bf16 %v477
    %v722 = vunpack.c.l.bf16 %v478
    %v723 = vunpack.c.h.bf16 %v478
    %v724 = vunpack.c.l.bf16 %v479
    %v725 = vunpack.c.h.bf16 %v479
    %v726 = vunpack.c.l.bf16 %v480
    %v727 = vunpack.c.h.bf16 %v480
    %v728 = vunpack.c.l.bf16 %v481
    %v729 = vunpack.c.h.bf16 %v481
    %v730 = vunpack.c.l.bf16 %v482
    %v731 = vunpack.c.h.bf16 %v482
    %v732 = vunpack.c.l.bf16 %v483
    %v733 = vunpack.c.h.bf16 %v483
    %v734 = vunpack.c.l.bf16 %v484
    %v735 = vunpack.c.h.bf16 %v484
    %v736 = vunpack.c.l.bf16 %v485
    %v737 = vunpack.c.h.bf16 %v485
    %v738 = vunpack.c.l.bf16 %v486
    %v739 = vunpack.c.h.bf16 %v486
    %v740 = vunpack.c.l.bf16 %v487
    %v741 = vunpack.c.h.bf16 %v487
    %v742 = vunpack.c.l.bf16 %v488
    %v743 = vunpack.c.h.bf16 %v488
    %v744 = vunpack.c.l.bf16 %v489
    %v745 = vunpack.c.h.bf16 %v489
    %v746 = vld [vmem:[#allocation5] sm:$0xff]
    %v747 = vld [vmem:[#allocation5 + $0x8] sm:$0xff]
    %v748 = vld [vmem:[#allocation7] sm:$0xff]
    %v749 = vld [vmem:[#allocation7 + $0x8] sm:$0xff]
    %750 = vmatprep.subr.mxu0 %v749
    %751 = vmatpush1.xpose.msra.mxu0 %v748
    %752 = vmatprep.subr.mxu0 0.0
    %753 = vmatpush1.xpose.msra.mxu0 0.0
    %754 = vmatprep.subr.mxu0 0.0
    %755 = vmatpush1.xpose.msra.mxu0 0.0
    %756 = vmatprep.subr.mxu0 0.0
    %757 = vmatpush1.xpose.msra.mxu0 0.0
    %758 = vmatprep.subr.mxu0 0.0
    %759 = vmatpush1.xpose.msra.mxu0 0.0
    %760 = vmatprep.subr.mxu0 0.0
    %761 = vmatpush1.xpose.msra.mxu0 0.0
    %762 = vmatprep.subr.mxu0 0.0
    %763 = vmatpush1.xpose.msra.mxu0 0.0
    %764 = vmatprep.subr.mxu0 0.0
    %765 = vmatpush1.xpose.msra.mxu0 0.0
    %766 = vmatprep.subr.mxu0 0.0
    %767 = vmatpush1.xpose.msra.mxu0 0.0
    %768 = vmatprep.subr.mxu0 0.0
    %769 = vmatpush1.xpose.msra.mxu0 0.0
    %770 = vmatprep.subr.mxu0 0.0
    %771 = vmatpush1.xpose.msra.mxu0 0.0
    %772 = vmatprep.subr.mxu0 0.0
    %773 = vmatpush1.xpose.msra.mxu0 0.0
    %774 = vmatprep.subr.mxu0 0.0
    %775 = vmatpush1.xpose.msra.mxu0 0.0
    %776 = vmatprep.subr.mxu0 0.0
    %777 = vmatpush1.xpose.msra.mxu0 0.0
    %778 = vmatprep.subr.mxu0 0.0
    %779 = vmatpush1.xpose.msra.mxu0 0.0
    %780 = vmatprep.subr.mxu0 0.0
    %781 = vmatpush1.xpose.msra.mxu0 0.0
    %782 = vmatprep.subr.mxu0 0.0
    %783 = vmatpush1.xpose.msra.mxu0 0.0
    %784 = vmatprep.subr.mxu0 0.0
    %785 = vmatpush1.xpose.msra.mxu0 0.0
    %786 = vmatprep.subr.mxu0 0.0
    %787 = vmatpush1.xpose.msra.mxu0 0.0
    %788 = vmatprep.subr.mxu0 0.0
    %789 = vmatpush1.xpose.msra.mxu0 0.0
    %790 = vmatprep.subr.mxu0 0.0
    %791 = vmatpush1.xpose.msra.mxu0 0.0
    %792 = vmatprep.subr.mxu0 0.0
    %793 = vmatpush1.xpose.msra.mxu0 0.0
    %794 = vmatprep.subr.mxu0 0.0
    %795 = vmatpush1.xpose.msra.mxu0 0.0
    %796 = vmatprep.subr.mxu0 0.0
    %797 = vmatpush1.xpose.msra.mxu0 0.0
    %798 = vmatprep.subr.mxu0 0.0
    %799 = vmatpush1.xpose.msra.mxu0 0.0
    %800 = vmatprep.subr.mxu0 0.0
    %801 = vmatpush1.xpose.msra.mxu0 0.0
    %802 = vmatprep.subr.mxu0 0.0
    %803 = vmatpush1.xpose.msra.mxu0 0.0
    %804 = vmatprep.subr.mxu0 0.0
    %805 = vmatpush1.xpose.msra.mxu0 0.0
    %806 = vmatprep.subr.mxu0 0.0
    %807 = vmatpush1.xpose.msra.mxu0 0.0
    %808 = vmatprep.subr.mxu0 0.0
    %809 = vmatpush1.xpose.msra.mxu0 0.0
    %810 = vmatprep.subr.mxu0 0.0
    %811 = vmatpush1.xpose.msra.mxu0 0.0
    %812 = vmatprep.subr.mxu0 0.0
    %813 = vmatpush1.xpose.msra.mxu0 0.0
    %814 = vmatprep.mubr.f32.mxu0 %v747
    %815 = vmatmul.mubr.f32.gmra.mrb[0].mxu0 %v746
    %v816 = vpop.f32.mrb[0].mxu0
    %v817 = vadd.f32 0.0, %v816
    %v818 = vpop.f32.mrb[0].mxu0
    %819 = vdwg.mxu0
    %v820 = vmul.f32 %v817, 0.0625
    %v821 = vadd.f32 %v820, %v361
    %vm822 = vcmask 64512
    %v823 = vsel %vm822, %v821, -inf
    %824 = vmax.xlane.f32.xlu0 %v823
    %v825 = vpop.xlane.xlu0 %824
    %v826 = vsub.f32 %v821, %v825
    %v827 = vmul.f32 %v826, 1.442695
    %v828 = vpow.pop %v827
    %v829 = vsel %vm822, %v828, 0.0
    %830 = vadd.xlane.f32.xlu0 %v829
    %v831 = vpop.xlane.xlu0 %830
    %v832 = vrcp.pop %v831
    %v833 = vmul.f32 %v828, %v832
    %v834 = vld [vmem:[#allocation8] sm:$0xff]
    %v835 = vld [vmem:[#allocation8 + $0x8] sm:$0xff]
    %v837 = vsel %vm822, %v833, 0
    %839 = vmatprep.subr.mxu0 %v835
    %840 = vmatpush1.msra.mxu0 %v834
    %841 = vmatprep.subr.mxu0 0.0
    %842 = vmatpush1.msra.mxu0 0.0
    %843 = vmatprep.subr.mxu0 0.0
    %844 = vmatpush1.msra.mxu0 0.0
    %845 = vmatprep.subr.mxu0 0.0
    %846 = vmatpush1.msra.mxu0 0.0
    %847 = vmatprep.subr.mxu0 0.0
    %848 = vmatpush1.msra.mxu0 0.0
    %849 = vmatprep.subr.mxu0 0.0
    %850 = vmatpush1.msra.mxu0 0.0
    %851 = vmatprep.subr.mxu0 0.0
    %852 = vmatpush1.msra.mxu0 0.0
    %853 = vmatprep.subr.mxu0 0.0
    %854 = vmatpush1.msra.mxu0 0.0
    %855 = vmatprep.subr.mxu0 0.0
    %856 = vmatpush1.msra.mxu0 0.0
    %857 = vmatprep.subr.mxu0 0.0
    %858 = vmatpush1.msra.mxu0 0.0
    %859 = vmatprep.subr.mxu0 0.0
    %860 = vmatpush1.msra.mxu0 0.0
    %861 = vmatprep.subr.mxu0 0.0
    %862 = vmatpush1.msra.mxu0 0.0
    %863 = vmatprep.subr.mxu0 0.0
    %864 = vmatpush1.msra.mxu0 0.0
    %865 = vmatprep.subr.mxu0 0.0
    %866 = vmatpush1.msra.mxu0 0.0
    %867 = vmatprep.subr.mxu0 0.0
    %868 = vmatpush1.msra.mxu0 0.0
    %869 = vmatprep.subr.mxu0 0.0
    %870 = vmatpush1.msra.mxu0 0.0
    %871 = vmatprep.subr.mxu0 0.0
    %872 = vmatpush1.msra.mxu0 0.0
    %873 = vmatprep.subr.mxu0 0.0
    %874 = vmatpush1.msra.mxu0 0.0
    %875 = vmatprep.subr.mxu0 0.0
    %876 = vmatpush1.msra.mxu0 0.0
    %877 = vmatprep.subr.mxu0 0.0
    %878 = vmatpush1.msra.mxu0 0.0
    %879 = vmatprep.subr.mxu0 0.0
    %880 = vmatpush1.msra.mxu0 0.0
    %881 = vmatprep.subr.mxu0 0.0
    %882 = vmatpush1.msra.mxu0 0.0
    %883 = vmatprep.subr.mxu0 0.0
    %884 = vmatpush1.msra.mxu0 0.0
    %885 = vmatprep.subr.mxu0 0.0
    %886 = vmatpush1.msra.mxu0 0.0
    %887 = vmatprep.subr.mxu0 0.0
    %888 = vmatpush1.msra.mxu0 0.0
    %889 = vmatprep.subr.mxu0 0.0
    %890 = vmatpush1.msra.mxu0 0.0
    %891 = vmatprep.subr.mxu0 0.0
    %892 = vmatpush1.msra.mxu0 0.0
    %893 = vmatprep.subr.mxu0 0.0
    %894 = vmatpush1.msra.mxu0 0.0
    %895 = vmatprep.subr.mxu0 0.0
    %896 = vmatpush1.msra.mxu0 0.0
    %897 = vmatprep.subr.mxu0 0.0
    %898 = vmatpush1.msra.mxu0 0.0
    %899 = vmatprep.subr.mxu0 0.0
    %900 = vmatpush1.msra.mxu0 0.0
    %901 = vmatprep.subr.mxu0 0.0
    %902 = vmatpush1.msra.mxu0 0.0
    %903 = vmatprep.mubr.f32.mxu0 0.0
    %904 = vmatmul.mubr.f32.gmra.mrb[0].mxu0 %v837
    %v905 = vpop.f32.mrb[0].mxu0
    %v906 = vadd.f32 0.0, %v905
    %v907 = vpop.f32.mrb[0].mxu0
    %v908 = vadd.f32 0.0, %v907
    %909 = vdwg.mxu0
    %s910 = scalar_lea.vmem [#allocation5], 16
    %v911 = vld [vmem:[%s910] sm:$0xff]
    %v912 = vld [vmem:[%s910 + $0x8] sm:$0xff]
    %s913 = scalar_lea.vmem [#allocation7], 16
    %v914 = vld [vmem:[%s913] sm:$0xff]
    %v915 = vld [vmem:[%s913 + $0x8] sm:$0xff]
    %916 = vmatprep.subr.mxu0 %v915
    %917 = vmatpush1.xpose.msra.mxu0 %v914
    %918 = vmatprep.subr.mxu0 0.0
    %919 = vmatpush1.xpose.msra.mxu0 0.0
    %920 = vmatprep.subr.mxu0 0.0
    %921 = vmatpush1.xpose.msra.mxu0 0.0
    %922 = vmatprep.subr.mxu0 0.0
    %923 = vmatpush1.xpose.msra.mxu0 0.0
    %924 = vmatprep.subr.mxu0 0.0
    %925 = vmatpush1.xpose.msra.mxu0 0.0
    %926 = vmatprep.subr.mxu0 0.0
    %927 = vmatpush1.xpose.msra.mxu0 0.0
    %928 = vmatprep.subr.mxu0 0.0
    %929 = vmatpush1.xpose.msra.mxu0 0.0
    %930 = vmatprep.subr.mxu0 0.0
    %931 = vmatpush1.xpose.msra.mxu0 0.0
    %932 = vmatprep.subr.mxu0 0.0
    %933 = vmatpush1.xpose.msra.mxu0 0.0
    %934 = vmatprep.subr.mxu0 0.0
    %935 = vmatpush1.xpose.msra.mxu0 0.0
    %936 = vmatprep.subr.mxu0 0.0
    %937 = vmatpush1.xpose.msra.mxu0 0.0
    %938 = vmatprep.subr.mxu0 0.0
    %939 = vmatpush1.xpose.msra.mxu0 0.0
    %940 = vmatprep.subr.mxu0 0.0
    %941 = vmatpush1.xpose.msra.mxu0 0.0
    %942 = vmatprep.subr.mxu0 0.0
    %943 = vmatpush1.xpose.msra.mxu0 0.0
    %944 = vmatprep.subr.mxu0 0.0
    %945 = vmatpush1.xpose.msra.mxu0 0.0
    %946 = vmatprep.subr.mxu0 0.0
    %947 = vmatpush1.xpose.msra.mxu0 0.0
    %948 = vmatprep.subr.mxu0 0.0
    %949 = vmatpush1.xpose.msra.mxu0 0.0
    %950 = vmatprep.subr.mxu0 0.0
    %951 = vmatpush1.xpose.msra.mxu0 0.0
    %952 = vmatprep.subr.mxu0 0.0
    %953 = vmatpush1.xpose.msra.mxu0 0.0
    %954 = vmatprep.subr.mxu0 0.0
    %955 = vmatpush1.xpose.msra.mxu0 0.0
    %956 = vmatprep.subr.mxu0 0.0
    %957 = vmatpush1.xpose.msra.mxu0 0.0
    %958 = vmatprep.subr.mxu0 0.0
    %959 = vmatpush1.xpose.msra.mxu0 0.0
    %960 = vmatprep.subr.mxu0 0.0
    %961 = vmatpush1.xpose.msra.mxu0 0.0
    %962 = vmatprep.subr.mxu0 0.0
    %963 = vmatpush1.xpose.msra.mxu0 0.0
    %964 = vmatprep.subr.mxu0 0.0
    %965 = vmatpush1.xpose.msra.mxu0 0.0
    %966 = vmatprep.subr.mxu0 0.0
    %967 = vmatpush1.xpose.msra.mxu0 0.0
    %968 = vmatprep.subr.mxu0 0.0
    %969 = vmatpush1.xpose.msra.mxu0 0.0
    %970 = vmatprep.subr.mxu0 0.0
    %971 = vmatpush1.xpose.msra.mxu0 0.0
    %972 = vmatprep.subr.mxu0 0.0
    %973 = vmatpush1.xpose.msra.mxu0 0.0
    %974 = vmatprep.subr.mxu0 0.0
    %975 = vmatpush1.xpose.msra.mxu0 0.0
    %976 = vmatprep.subr.mxu0 0.0
    %977 = vmatpush1.xpose.msra.mxu0 0.0
    %978 = vmatprep.subr.mxu0 0.0
    %979 = vmatpush1.xpose.msra.mxu0 0.0
    %980 = vmatprep.mubr.f32.mxu0 %v912
    %981 = vmatmul.mubr.f32.gmra.mrb[0].mxu0 %v911
    %v982 = vpop.f32.mrb[0].mxu0
    %v983 = vadd.f32 0.0, %v982
    %v984 = vpop.f32.mrb[0].mxu0
    %985 = vdwg.mxu0
    %v986 = vmul.f32 %v983, 0.0625
    %v987 = vadd.f32 %v986, %v361
    %v988 = vsel %vm822, %v987, -inf
    %989 = vmax.xlane.f32.xlu0 %v988
    %v990 = vpop.xlane.xlu0 %989
    %v991 = vsub.f32 %v987, %v990
    %v992 = vmul.f32 %v991, 1.442695
    %v993 = vpow.pop %v992
    %v994 = vsel %vm822, %v993, 0.0
    %995 = vadd.xlane.f32.xlu0 %v994
    %v996 = vpop.xlane.xlu0 %995
    %v997 = vrcp.pop %v996
    %v998 = vmul.f32 %v993, %v997
    %s999 = scalar_lea.vmem [#allocation8], 16
    %v1000 = vld [vmem:[%s999] sm:$0xff]
    %v1001 = vld [vmem:[%s999 + $0x8] sm:$0xff]
    %v1003 = vsel %vm822, %v998, 0
    %1005 = vmatprep.subr.mxu0 %v1001
    %1006 = vmatpush1.msra.mxu0 %v1000
    %1007 = vmatprep.subr.mxu0 0.0
    %1008 = vmatpush1.msra.mxu0 0.0
    %1009 = vmatprep.subr.mxu0 0.0
    %1010 = vmatpush1.msra.mxu0 0.0
    %1011 = vmatprep.subr.mxu0 0.0
    %1012 = vmatpush1.msra.mxu0 0.0
    %1013 = vmatprep.subr.mxu0 0.0
    %1014 = vmatpush1.msra.mxu0 0.0
    %1015 = vmatprep.subr.mxu0 0.0
    %1016 = vmatpush1.msra.mxu0 0.0
    %1017 = vmatprep.subr.mxu0 0.0
    %1018 = vmatpush1.msra.mxu0 0.0
    %1019 = vmatprep.subr.mxu0 0.0
    %1020 = vmatpush1.msra.mxu0 0.0
    %1021 = vmatprep.subr.mxu0 0.0
    %1022 = vmatpush1.msra.mxu0 0.0
    %1023 = vmatprep.subr.mxu0 0.0
    %1024 = vmatpush1.msra.mxu0 0.0
    %1025 = vmatprep.subr.mxu0 0.0
    %1026 = vmatpush1.msra.mxu0 0.0
    %1027 = vmatprep.subr.mxu0 0.0
    %1028 = vmatpush1.msra.mxu0 0.0
    %1029 = vmatprep.subr.mxu0 0.0
    %1030 = vmatpush1.msra.mxu0 0.0
    %1031 = vmatprep.subr.mxu0 0.0
    %1032 = vmatpush1.msra.mxu0 0.0
    %1033 = vmatprep.subr.mxu0 0.0
    %1034 = vmatpush1.msra.mxu0 0.0
    %1035 = vmatprep.subr.mxu0 0.0
    %1036 = vmatpush1.msra.mxu0 0.0
    %1037 = vmatprep.subr.mxu0 0.0
    %1038 = vmatpush1.msra.mxu0 0.0
    %1039 = vmatprep.subr.mxu0 0.0
    %1040 = vmatpush1.msra.mxu0 0.0
    %1041 = vmatprep.subr.mxu0 0.0
    %1042 = vmatpush1.msra.mxu0 0.0
    %1043 = vmatprep.subr.mxu0 0.0
    %1044 = vmatpush1.msra.mxu0 0.0
    %1045 = vmatprep.subr.mxu0 0.0
    %1046 = vmatpush1.msra.mxu0 0.0
    %1047 = vmatprep.subr.mxu0 0.0
    %1048 = vmatpush1.msra.mxu0 0.0
    %1049 = vmatprep.subr.mxu0 0.0
    %1050 = vmatpush1.msra.mxu0 0.0
    %1051 = vmatprep.subr.mxu0 0.0
    %1052 = vmatpush1.msra.mxu0 0.0
    %1053 = vmatprep.subr.mxu0 0.0
    %1054 = vmatpush1.msra.mxu0 0.0
    %1055 = vmatprep.subr.mxu0 0.0
    %1056 = vmatpush1.msra.mxu0 0.0
    %1057 = vmatprep.subr.mxu0 0.0
    %1058 = vmatpush1.msra.mxu0 0.0
    %1059 = vmatprep.subr.mxu0 0.0
    %1060 = vmatpush1.msra.mxu0 0.0
    %1061 = vmatprep.subr.mxu0 0.0
    %1062 = vmatpush1.msra.mxu0 0.0
    %1063 = vmatprep.subr.mxu0 0.0
    %1064 = vmatpush1.msra.mxu0 0.0
    %1065 = vmatprep.subr.mxu0 0.0
    %1066 = vmatpush1.msra.mxu0 0.0
    %1067 = vmatprep.subr.mxu0 0.0
    %1068 = vmatpush1.msra.mxu0 0.0
    %1069 = vmatprep.mubr.f32.mxu0 0.0
    %1070 = vmatmul.mubr.f32.gmra.mrb[0].mxu0 %v1003
    %v1071 = vpop.f32.mrb[0].mxu0
    %v1072 = vadd.f32 0.0, %v1071
    %v1073 = vpop.f32.mrb[0].mxu0
    %v1074 = vadd.f32 0.0, %v1073
    %1075 = vdwg.mxu0
    %1076 = vmatprep.subr.mxu0 %v619
    %1077 = vmatpush1.msra.mxu0 %v618
    %1078 = vmatprep.subr.mxu0 %v623
    %1079 = vmatpush1.msra.mxu0 %v622
    %1080 = vmatprep.subr.mxu0 %v627
    %1081 = vmatpush1.msra.mxu0 %v626
    %1082 = vmatprep.subr.mxu0 %v631
    %1083 = vmatpush1.msra.mxu0 %v630
    %1084 = vmatprep.subr.mxu0 %v635
    %1085 = vmatpush1.msra.mxu0 %v634
    %1086 = vmatprep.subr.mxu0 %v639
    %1087 = vmatpush1.msra.mxu0 %v638
    %1088 = vmatprep.subr.mxu0 %v643
    %1089 = vmatpush1.msra.mxu0 %v642
    %1090 = vmatprep.subr.mxu0 %v647
    %1091 = vmatpush1.msra.mxu0 %v646
    %1092 = vmatprep.subr.mxu0 %v651
    %1093 = vmatpush1.msra.mxu0 %v650
    %1094 = vmatprep.subr.mxu0 %v655
    %1095 = vmatpush1.msra.mxu0 %v654
    %1096 = vmatprep.subr.mxu0 %v659
    %1097 = vmatpush1.msra.mxu0 %v658
    %1098 = vmatprep.subr.mxu0 %v663
    %1099 = vmatpush1.msra.mxu0 %v662
    %1100 = vmatprep.subr.mxu0 %v667
    %1101 = vmatpush1.msra.mxu0 %v666
    %1102 = vmatprep.subr.mxu0 %v671
    %1103 = vmatpush1.msra.mxu0 %v670
    %1104 = vmatprep.subr.mxu0 %v675
    %1105 = vmatpush1.msra.mxu0 %v674
    %1106 = vmatprep.subr.mxu0 %v679
    %1107 = vmatpush1.msra.mxu0 %v678
    %1108 = vmatprep.subr.mxu0 %v683
    %1109 = vmatpush1.msra.mxu0 %v682
    %1110 = vmatprep.subr.mxu0 %v687
    %1111 = vmatpush1.msra.mxu0 %v686
    %1112 = vmatprep.subr.mxu0 %v691
    %1113 = vmatpush1.msra.mxu0 %v690
    %1114 = vmatprep.subr.mxu0 %v695
    %1115 = vmatpush1.msra.mxu0 %v694
    %1116 = vmatprep.subr.mxu0 %v699
    %1117 = vmatpush1.msra.mxu0 %v698
    %1118 = vmatprep.subr.mxu0 %v703
    %1119 = vmatpush1.msra.mxu0 %v702
    %1120 = vmatprep.subr.mxu0 %v707
    %1121 = vmatpush1.msra.mxu0 %v706
    %1122 = vmatprep.subr.mxu0 %v711
    %1123 = vmatpush1.msra.mxu0 %v710
    %1124 = vmatprep.subr.mxu0 %v715
    %1125 = vmatpush1.msra.mxu0 %v714
    %1126 = vmatprep.subr.mxu0 %v719
    %1127 = vmatpush1.msra.mxu0 %v718
    %1128 = vmatprep.subr.mxu0 %v723
    %1129 = vmatpush1.msra.mxu0 %v722
    %1130 = vmatprep.subr.mxu0 %v727
    %1131 = vmatpush1.msra.mxu0 %v726
    %1132 = vmatprep.subr.mxu0 %v731
    %1133 = vmatpush1.msra.mxu0 %v730
    %1134 = vmatprep.subr.mxu0 %v735
    %1135 = vmatpush1.msra.mxu0 %v734
    %1136 = vmatprep.subr.mxu0 %v739
    %1137 = vmatpush1.msra.mxu0 %v738
    %1138 = vmatprep.subr.mxu0 %v743
    %1139 = vmatpush1.msra.mxu0 %v742
    %1140 = vmatprep.mubr.f32.mxu0 %v1074
    %1141 = vmatmul.mubr.f32.gmra.mrb[0].mxu0 %v1072
    %v1142 = vpop.f32.mrb[0].mxu0
    %v1143 = vadd.f32 0.0, %v1142
    %v1144 = vpop.f32.mrb[0].mxu0
    %v1145 = vadd.f32 0.0, %v1144
    %1146 = vdwg.mxu0
    %1147 = vmatprep.subr.mxu0 %v621
    %1148 = vmatpush1.msra.mxu0 %v620
    %1149 = vmatprep.subr.mxu0 %v625
    %1150 = vmatpush1.msra.mxu0 %v624
    %1151 = vmatprep.subr.mxu0 %v629
    %1152 = vmatpush1.msra.mxu0 %v628
    %1153 = vmatprep.subr.mxu0 %v633
    %1154 = vmatpush1.msra.mxu0 %v632
    %1155 = vmatprep.subr.mxu0 %v637
    %1156 = vmatpush1.msra.mxu0 %v636
    %1157 = vmatprep.subr.mxu0 %v641
    %1158 = vmatpush1.msra.mxu0 %v640
    %1159 = vmatprep.subr.mxu0 %v645
    %1160 = vmatpush1.msra.mxu0 %v644
    %1161 = vmatprep.subr.mxu0 %v649
    %1162 = vmatpush1.msra.mxu0 %v648
    %1163 = vmatprep.subr.mxu0 %v653
    %1164 = vmatpush1.msra.mxu0 %v652
    %1165 = vmatprep.subr.mxu0 %v657
    %1166 = vmatpush1.msra.mxu0 %v656
    %1167 = vmatprep.subr.mxu0 %v661
    %1168 = vmatpush1.msra.mxu0 %v660
    %1169 = vmatprep.subr.mxu0 %v665
    %1170 = vmatpush1.msra.mxu0 %v664
    %1171 = vmatprep.subr.mxu0 %v669
    %1172 = vmatpush1.msra.mxu0 %v668
    %1173 = vmatprep.subr.mxu0 %v673
    %1174 = vmatpush1.msra.mxu0 %v672
    %1175 = vmatprep.subr.mxu0 %v677
    %1176 = vmatpush1.msra.mxu0 %v676
    %1177 = vmatprep.subr.mxu0 %v681
    %1178 = vmatpush1.msra.mxu0 %v680
    %1179 = vmatprep.subr.mxu0 %v685
    %1180 = vmatpush1.msra.mxu0 %v684
    %1181 = vmatprep.subr.mxu0 %v689
    %1182 = vmatpush1.msra.mxu0 %v688
    %1183 = vmatprep.subr.mxu0 %v693
    %1184 = vmatpush1.msra.mxu0 %v692
    %1185 = vmatprep.subr.mxu0 %v697
    %1186 = vmatpush1.msra.mxu0 %v696
    %1187 = vmatprep.subr.mxu0 %v701
    %1188 = vmatpush1.msra.mxu0 %v700
    %1189 = vmatprep.subr.mxu0 %v705
    %1190 = vmatpush1.msra.mxu0 %v704
    %1191 = vmatprep.subr.mxu0 %v709
    %1192 = vmatpush1.msra.mxu0 %v708
    %1193 = vmatprep.subr.mxu0 %v713
    %1194 = vmatpush1.msra.mxu0 %v712
    %1195 = vmatprep.subr.mxu0 %v717
    %1196 = vmatpush1.msra.mxu0 %v716
    %1197 = vmatprep.subr.mxu0 %v721
    %1198 = vmatpush1.msra.mxu0 %v720
    %1199 = vmatprep.subr.mxu0 %v725
    %1200 = vmatpush1.msra.mxu0 %v724
    %1201 = vmatprep.subr.mxu0 %v729
    %1202 = vmatpush1.msra.mxu0 %v728
    %1203 = vmatprep.subr.mxu0 %v733
    %1204 = vmatpush1.msra.mxu0 %v732
    %1205 = vmatprep.subr.mxu0 %v737
    %1206 = vmatpush1.msra.mxu0 %v736
    %1207 = vmatprep.subr.mxu0 %v741
    %1208 = vmatpush1.msra.mxu0 %v740
    %1209 = vmatprep.subr.mxu0 %v745
    %1210 = vmatpush1.msra.mxu0 %v744
    %1211 = vmatprep.mubr.f32.mxu0 %v1074
    %1212 = vmatmul.mubr.f32.gmra.mrb[0].mxu0 %v1072
    %v1213 = vpop.f32.mrb[0].mxu0
    %v1214 = vadd.f32 0.0, %v1213
    %v1215 = vpop.f32.mrb[0].mxu0
    %v1216 = vadd.f32 0.0, %v1215
    %1217 = vdwg.mxu0
    %1218 = vmatprep.subr.mxu0 %v491
    %1219 = vmatpush1.msra.mxu0 %v490
    %1220 = vmatprep.subr.mxu0 %v495
    %1221 = vmatpush1.msra.mxu0 %v494
    %1222 = vmatprep.subr.mxu0 %v499
    %1223 = vmatpush1.msra.mxu0 %v498
    %1224 = vmatprep.subr.mxu0 %v503
    %1225 = vmatpush1.msra.mxu0 %v502
    %1226 = vmatprep.subr.mxu0 %v507
    %1227 = vmatpush1.msra.mxu0 %v506
    %1228 = vmatprep.subr.mxu0 %v511
    %1229 = vmatpush1.msra.mxu0 %v510
    %1230 = vmatprep.subr.mxu0 %v515
    %1231 = vmatpush1.msra.mxu0 %v514
    %1232 = vmatprep.subr.mxu0 %v519
    %1233 = vmatpush1.msra.mxu0 %v518
    %1234 = vmatprep.subr.mxu0 %v523
    %1235 = vmatpush1.msra.mxu0 %v522
    %1236 = vmatprep.subr.mxu0 %v527
    %1237 = vmatpush1.msra.mxu0 %v526
    %1238 = vmatprep.subr.mxu0 %v531
    %1239 = vmatpush1.msra.mxu0 %v530
    %1240 = vmatprep.subr.mxu0 %v535
    %1241 = vmatpush1.msra.mxu0 %v534
    %1242 = vmatprep.subr.mxu0 %v539
    %1243 = vmatpush1.msra.mxu0 %v538
    %1244 = vmatprep.subr.mxu0 %v543
    %1245 = vmatpush1.msra.mxu0 %v542
    %1246 = vmatprep.subr.mxu0 %v547
    %1247 = vmatpush1.msra.mxu0 %v546
    %1248 = vmatprep.subr.mxu0 %v551
    %1249 = vmatpush1.msra.mxu0 %v550
    %1250 = vmatprep.subr.mxu0 %v555
    %1251 = vmatpush1.msra.mxu0 %v554
    %1252 = vmatprep.subr.mxu0 %v559
    %1253 = vmatpush1.msra.mxu0 %v558
    %1254 = vmatprep.subr.mxu0 %v563
    %1255 = vmatpush1.msra.mxu0 %v562
    %1256 = vmatprep.subr.mxu0 %v567
    %1257 = vmatpush1.msra.mxu0 %v566
    %1258 = vmatprep.subr.mxu0 %v571
    %1259 = vmatpush1.msra.mxu0 %v570
    %1260 = vmatprep.subr.mxu0 %v575
    %1261 = vmatpush1.msra.mxu0 %v574
    %1262 = vmatprep.subr.mxu0 %v579
    %1263 = vmatpush1.msra.mxu0 %v578
    %1264 = vmatprep.subr.mxu0 %v583
    %1265 = vmatpush1.msra.mxu0 %v582
    %1266 = vmatprep.subr.mxu0 %v587
    %1267 = vmatpush1.msra.mxu0 %v586
    %1268 = vmatprep.subr.mxu0 %v591
    %1269 = vmatpush1.msra.mxu0 %v590
    %1270 = vmatprep.subr.mxu0 %v595
    %1271 = vmatpush1.msra.mxu0 %v594
    %1272 = vmatprep.subr.mxu0 %v599
    %1273 = vmatpush1.msra.mxu0 %v598
    %1274 = vmatprep.subr.mxu0 %v603
    %1275 = vmatpush1.msra.mxu0 %v602
    %1276 = vmatprep.subr.mxu0 %v607
    %1277 = vmatpush1.msra.mxu0 %v606
    %1278 = vmatprep.subr.mxu0 %v611
    %1279 = vmatpush1.msra.mxu0 %v610
    %1280 = vmatprep.subr.mxu0 %v615
    %1281 = vmatpush1.msra.mxu0 %v614
    %1282 = vmatprep.mubr.f32.mxu0 %v908
    %1283 = vmatmul.mubr.f32.gmra.mrb[0].mxu0 %v906
    %v1284 = vpop.f32.mrb[0].mxu0
    %v1285 = vadd.f32 %v1143, %v1284
    %v1286 = vpop.f32.mrb[0].mxu0
    %v1287 = vadd.f32 %v1145, %v1286
    %1288 = vdwg.mxu0
    %1289 = vmatprep.subr.mxu0 %v493
    %1290 = vmatpush1.msra.mxu0 %v492
    %1291 = vmatprep.subr.mxu0 %v497
    %1292 = vmatpush1.msra.mxu0 %v496
    %1293 = vmatprep.subr.mxu0 %v501
    %1294 = vmatpush1.msra.mxu0 %v500
    %1295 = vmatprep.subr.mxu0 %v505
    %1296 = vmatpush1.msra.mxu0 %v504
    %1297 = vmatprep.subr.mxu0 %v509
    %1298 = vmatpush1.msra.mxu0 %v508
    %1299 = vmatprep.subr.mxu0 %v513
    %1300 = vmatpush1.msra.mxu0 %v512
    %1301 = vmatprep.subr.mxu0 %v517
    %1302 = vmatpush1.msra.mxu0 %v516
    %1303 = vmatprep.subr.mxu0 %v521
    %1304 = vmatpush1.msra.mxu0 %v520
    %1305 = vmatprep.subr.mxu0 %v525
    %1306 = vmatpush1.msra.mxu0 %v524
    %1307 = vmatprep.subr.mxu0 %v529
    %1308 = vmatpush1.msra.mxu0 %v528
    %1309 = vmatprep.subr.mxu0 %v533
    %1310 = vmatpush1.msra.mxu0 %v532
    %1311 = vmatprep.subr.mxu0 %v537
    %1312 = vmatpush1.msra.mxu0 %v536
    %1313 = vmatprep.subr.mxu0 %v541
    %1314 = vmatpush1.msra.mxu0 %v540
    %1315 = vmatprep.subr.mxu0 %v545
    %1316 = vmatpush1.msra.mxu0 %v544
    %1317 = vmatprep.subr.mxu0 %v549
    %1318 = vmatpush1.msra.mxu0 %v548
    %1319 = vmatprep.subr.mxu0 %v553
    %1320 = vmatpush1.msra.mxu0 %v552
    %1321 = vmatprep.subr.mxu0 %v557
    %1322 = vmatpush1.msra.mxu0 %v556
    %1323 = vmatprep.subr.mxu0 %v561
    %1324 = vmatpush1.msra.mxu0 %v560
    %1325 = vmatprep.subr.mxu0 %v565
    %1326 = vmatpush1.msra.mxu0 %v564
    %1327 = vmatprep.subr.mxu0 %v569
    %1328 = vmatpush1.msra.mxu0 %v568
    %1329 = vmatprep.subr.mxu0 %v573
    %1330 = vmatpush1.msra.mxu0 %v572
    %1331 = vmatprep.subr.mxu0 %v577
    %1332 = vmatpush1.msra.mxu0 %v576
    %1333 = vmatprep.subr.mxu0 %v581
    %1334 = vmatpush1.msra.mxu0 %v580
    %1335 = vmatprep.subr.mxu0 %v585
    %1336 = vmatpush1.msra.mxu0 %v584
    %1337 = vmatprep.subr.mxu0 %v589
    %1338 = vmatpush1.msra.mxu0 %v588
    %1339 = vmatprep.subr.mxu0 %v593
    %1340 = vmatpush1.msra.mxu0 %v592
    %1341 = vmatprep.subr.mxu0 %v597
    %1342 = vmatpush1.msra.mxu0 %v596
    %1343 = vmatprep.subr.mxu0 %v601
    %1344 = vmatpush1.msra.mxu0 %v600
    %1345 = vmatprep.subr.mxu0 %v605
    %1346 = vmatpush1.msra.mxu0 %v604
    %1347 = vmatprep.subr.mxu0 %v609
    %1348 = vmatpush1.msra.mxu0 %v608
    %1349 = vmatprep.subr.mxu0 %v613
    %1350 = vmatpush1.msra.mxu0 %v612
    %1351 = vmatprep.subr.mxu0 %v617
    %1352 = vmatpush1.msra.mxu0 %v616
    %1353 = vmatprep.mubr.f32.mxu0 %v908
    %1354 = vmatmul.mubr.f32.gmra.mrb[0].mxu0 %v906
    %v1355 = vpop.f32.mrb[0].mxu0
    %v1356 = vadd.f32 %v1214, %v1355
    %v1357 = vpop.f32.mrb[0].mxu0
    %v1358 = vadd.f32 %v1216, %v1357
    %1359 = vdwg.mxu0
    %s1360 = scalar_lea.vmem [#allocation5], 32
    %v1361 = vld [vmem:[%s1360] sm:$0xff]
    %v1362 = vld [vmem:[%s1360 + $0x8] sm:$0xff]
    %s1363 = scalar_lea.vmem [#allocation7], 32
    %v1364 = vld [vmem:[%s1363] sm:$0xff]
    %v1365 = vld [vmem:[%s1363 + $0x8] sm:$0xff]
    %1366 = vmatprep.subr.mxu0 %v1365
    %1367 = vmatpush1.xpose.msra.mxu0 %v1364
    %1368 = vmatprep.subr.mxu0 0.0
    %1369 = vmatpush1.xpose.msra.mxu0 0.0
    %1370 = vmatprep.subr.mxu0 0.0
    %1371 = vmatpush1.xpose.msra.mxu0 0.0
    %1372 = vmatprep.subr.mxu0 0.0
    %1373 = vmatpush1.xpose.msra.mxu0 0.0
    %1374 = vmatprep.subr.mxu0 0.0
    %1375 = vmatpush1.xpose.msra.mxu0 0.0
    %1376 = vmatprep.subr.mxu0 0.0
    %1377 = vmatpush1.xpose.msra.mxu0 0.0
    %1378 = vmatprep.subr.mxu0 0.0
    %1379 = vmatpush1.xpose.msra.mxu0 0.0
    %1380 = vmatprep.subr.mxu0 0.0
    %1381 = vmatpush1.xpose.msra.mxu0 0.0
    %1382 = vmatprep.subr.mxu0 0.0
    %1383 = vmatpush1.xpose.msra.mxu0 0.0
    %1384 = vmatprep.subr.mxu0 0.0
    %1385 = vmatpush1.xpose.msra.mxu0 0.0
    %1386 = vmatprep.subr.mxu0 0.0
    %1387 = vmatpush1.xpose.msra.mxu0 0.0
    %1388 = vmatprep.subr.mxu0 0.0
    %1389 = vmatpush1.xpose.msra.mxu0 0.0
    %1390 = vmatprep.subr.mxu0 0.0
    %1391 = vmatpush1.xpose.msra.mxu0 0.0
    %1392 = vmatprep.subr.mxu0 0.0
    %1393 = vmatpush1.xpose.msra.mxu0 0.0
    %1394 = vmatprep.subr.mxu0 0.0
    %1395 = vmatpush1.xpose.msra.mxu0 0.0
    %1396 = vmatprep.subr.mxu0 0.0
    %1397 = vmatpush1.xpose.msra.mxu0 0.0
    %1398 = vmatprep.subr.mxu0 0.0
    %1399 = vmatpush1.xpose.msra.mxu0 0.0
    %1400 = vmatprep.subr.mxu0 0.0
    %1401 = vmatpush1.xpose.msra.mxu0 0.0
    %1402 = vmatprep.subr.mxu0 0.0
    %1403 = vmatpush1.xpose.msra.mxu0 0.0
    %1404 = vmatprep.subr.mxu0 0.0
    %1405 = vmatpush1.xpose.msra.mxu0 0.0
    %1406 = vmatprep.subr.mxu0 0.0
    %1407 = vmatpush1.xpose.msra.mxu0 0.0
    %1408 = vmatprep.subr.mxu0 0.0
    %1409 = vmatpush1.xpose.msra.mxu0 0.0
    %1410 = vmatprep.subr.mxu0 0.0
    %1411 = vmatpush1.xpose.msra.mxu0 0.0
    %1412 = vmatprep.subr.mxu0 0.0
    %1413 = vmatpush1.xpose.msra.mxu0 0.0
    %1414 = vmatprep.subr.mxu0 0.0
    %1415 = vmatpush1.xpose.msra.mxu0 0.0
    %1416 = vmatprep.subr.mxu0 0.0
    %1417 = vmatpush1.xpose.msra.mxu0 0.0
    %1418 = vmatprep.subr.mxu0 0.0
    %1419 = vmatpush1.xpose.msra.mxu0 0.0
    %1420 = vmatprep.subr.mxu0 0.0
    %1421 = vmatpush1.xpose.msra.mxu0 0.0
    %1422 = vmatprep.subr.mxu0 0.0
    %1423 = vmatpush1.xpose.msra.mxu0 0.0
    %1424 = vmatprep.subr.mxu0 0.0
    %1425 = vmatpush1.xpose.msra.mxu0 0.0
    %1426 = vmatprep.subr.mxu0 0.0
    %1427 = vmatpush1.xpose.msra.mxu0 0.0
    %1428 = vmatprep.subr.mxu0 0.0
    %1429 = vmatpush1.xpose.msra.mxu0 0.0
    %1430 = vmatprep.mubr.f32.mxu0 %v1362
    %1431 = vmatmul.mubr.f32.gmra.mrb[0].mxu0 %v1361
    %v1432 = vpop.f32.mrb[0].mxu0
    %v1433 = vadd.f32 0.0, %v1432
    %v1434 = vpop.f32.mrb[0].mxu0
    %1435 = vdwg.mxu0
    %v1436 = vmul.f32 %v1433, 0.0625
    %v1437 = vadd.f32 %v1436, %v361
    %v1438 = vsel %vm822, %v1437, -inf
    %1439 = vmax.xlane.f32.xlu0 %v1438
    %v1440 = vpop.xlane.xlu0 %1439
    %v1441 = vsub.f32 %v1437, %v1440
    %v1442 = vmul.f32 %v1441, 1.442695
    %v1443 = vpow.pop %v1442
    %v1444 = vsel %vm822, %v1443, 0.0
    %1445 = vadd.xlane.f32.xlu0 %v1444
    %v1446 = vpop.xlane.xlu0 %1445
    %v1447 = vrcp.pop %v1446
    %v1448 = vmul.f32 %v1443, %v1447
    %s1449 = scalar_lea.vmem [#allocation8], 32
    %v1450 = vld [vmem:[%s1449] sm:$0xff]
    %v1451 = vld [vmem:[%s1449 + $0x8] sm:$0xff]
    %v1453 = vsel %vm822, %v1448, 0
    %1455 = vmatprep.subr.mxu0 %v1451
    %1456 = vmatpush1.msra.mxu0 %v1450
    %1457 = vmatprep.subr.mxu0 0.0
    %1458 = vmatpush1.msra.mxu0 0.0
    %1459 = vmatprep.subr.mxu0 0.0
    %1460 = vmatpush1.msra.mxu0 0.0
    %1461 = vmatprep.subr.mxu0 0.0
    %1462 = vmatpush1.msra.mxu0 0.0
    %1463 = vmatprep.subr.mxu0 0.0
    %1464 = vmatpush1.msra.mxu0 0.0
    %1465 = vmatprep.subr.mxu0 0.0
    %1466 = vmatpush1.msra.mxu0 0.0
    %1467 = vmatprep.subr.mxu0 0.0
    %1468 = vmatpush1.msra.mxu0 0.0
    %1469 = vmatprep.subr.mxu0 0.0
    %1470 = vmatpush1.msra.mxu0 0.0
    %1471 = vmatprep.subr.mxu0 0.0
    %1472 = vmatpush1.msra.mxu0 0.0
    %1473 = vmatprep.subr.mxu0 0.0
    %1474 = vmatpush1.msra.mxu0 0.0
    %1475 = vmatprep.subr.mxu0 0.0
    %1476 = vmatpush1.msra.mxu0 0.0
    %1477 = vmatprep.subr.mxu0 0.0
    %1478 = vmatpush1.msra.mxu0 0.0
    %1479 = vmatprep.subr.mxu0 0.0
    %1480 = vmatpush1.msra.mxu0 0.0
    %1481 = vmatprep.subr.mxu0 0.0
    %1482 = vmatpush1.msra.mxu0 0.0
    %1483 = vmatprep.subr.mxu0 0.0
    %1484 = vmatpush1.msra.mxu0 0.0
    %1485 = vmatprep.subr.mxu0 0.0
    %1486 = vmatpush1.msra.mxu0 0.0
    %1487 = vmatprep.subr.mxu0 0.0
    %1488 = vmatpush1.msra.mxu0 0.0
    %1489 = vmatprep.subr.mxu0 0.0
    %1490 = vmatpush1.msra.mxu0 0.0
    %1491 = vmatprep.subr.mxu0 0.0
    %1492 = vmatpush1.msra.mxu0 0.0
    %1493 = vmatprep.subr.mxu0 0.0
    %1494 = vmatpush1.msra.mxu0 0.0
    %1495 = vmatprep.subr.mxu0 0.0
    %1496 = vmatpush1.msra.mxu0 0.0
    %1497 = vmatprep.subr.mxu0 0.0
    %1498 = vmatpush1.msra.mxu0 0.0
    %1499 = vmatprep.subr.mxu0 0.0
    %1500 = vmatpush1.msra.mxu0 0.0
    %1501 = vmatprep.subr.mxu0 0.0
    %1502 = vmatpush1.msra.mxu0 0.0
    %1503 = vmatprep.subr.mxu0 0.0
    %1504 = vmatpush1.msra.mxu0 0.0
    %1505 = vmatprep.subr.mxu0 0.0
    %1506 = vmatpush1.msra.mxu0 0.0
    %1507 = vmatprep.subr.mxu0 0.0
    %1508 = vmatpush1.msra.mxu0 0.0
    %1509 = vmatprep.subr.mxu0 0.0
    %1510 = vmatpush1.msra.mxu0 0.0
    %1511 = vmatprep.subr.mxu0 0.0
    %1512 = vmatpush1.msra.mxu0 0.0
    %1513 = vmatprep.subr.mxu0 0.0
    %1514 = vmatpush1.msra.mxu0 0.0
    %1515 = vmatprep.subr.mxu0 0.0
    %1516 = vmatpush1.msra.mxu0 0.0
    %1517 = vmatprep.subr.mxu0 0.0
    %1518 = vmatpush1.msra.mxu0 0.0
    %1519 = vmatprep.mubr.f32.mxu0 0.0
    %1520 = vmatmul.mubr.f32.gmra.mrb[0].mxu0 %v1453
    %v1521 = vpop.f32.mrb[0].mxu0
    %v1522 = vadd.f32 0.0, %v1521
    %v1523 = vpop.f32.mrb[0].mxu0
    %v1524 = vadd.f32 0.0, %v1523
    %1525 = vdwg.mxu0
    %s1526 = scalar_lea.vmem [#allocation5], 48
    %v1527 = vld [vmem:[%s1526] sm:$0xff]
    %v1528 = vld [vmem:[%s1526 + $0x8] sm:$0xff]
    %s1529 = scalar_lea.vmem [#allocation7], 48
    %v1530 = vld [vmem:[%s1529] sm:$0xff]
    %v1531 = vld [vmem:[%s1529 + $0x8] sm:$0xff]
    %1532 = vmatprep.subr.mxu0 %v1531
    %1533 = vmatpush1.xpose.msra.mxu0 %v1530
    %1534 = vmatprep.subr.mxu0 0.0
    %1535 = vmatpush1.xpose.msra.mxu0 0.0
    %1536 = vmatprep.subr.mxu0 0.0
    %1537 = vmatpush1.xpose.msra.mxu0 0.0
    %1538 = vmatprep.subr.mxu0 0.0
    %1539 = vmatpush1.xpose.msra.mxu0 0.0
    %1540 = vmatprep.subr.mxu0 0.0
    %1541 = vmatpush1.xpose.msra.mxu0 0.0
    %1542 = vmatprep.subr.mxu0 0.0
    %1543 = vmatpush1.xpose.msra.mxu0 0.0
    %1544 = vmatprep.subr.mxu0 0.0
    %1545 = vmatpush1.xpose.msra.mxu0 0.0
    %1546 = vmatprep.subr.mxu0 0.0
    %1547 = vmatpush1.xpose.msra.mxu0 0.0
    %1548 = vmatprep.subr.mxu0 0.0
    %1549 = vmatpush1.xpose.msra.mxu0 0.0
    %1550 = vmatprep.subr.mxu0 0.0
    %1551 = vmatpush1.xpose.msra.mxu0 0.0
    %1552 = vmatprep.subr.mxu0 0.0
    %1553 = vmatpush1.xpose.msra.mxu0 0.0
    %1554 = vmatprep.subr.mxu0 0.0
    %1555 = vmatpush1.xpose.msra.mxu0 0.0
    %1556 = vmatprep.subr.mxu0 0.0
    %1557 = vmatpush1.xpose.msra.mxu0 0.0
    %1558 = vmatprep.subr.mxu0 0.0
    %1559 = vmatpush1.xpose.msra.mxu0 0.0
    %1560 = vmatprep.subr.mxu0 0.0
    %1561 = vmatpush1.xpose.msra.mxu0 0.0
    %1562 = vmatprep.subr.mxu0 0.0
    %1563 = vmatpush1.xpose.msra.mxu0 0.0
    %1564 = vmatprep.subr.mxu0 0.0
    %1565 = vmatpush1.xpose.msra.mxu0 0.0
    %1566 = vmatprep.subr.mxu0 0.0
    %1567 = vmatpush1.xpose.msra.mxu0 0.0
    %1568 = vmatprep.subr.mxu0 0.0
    %1569 = vmatpush1.xpose.msra.mxu0 0.0
    %1570 = vmatprep.subr.mxu0 0.0
    %1571 = vmatpush1.xpose.msra.mxu0 0.0
    %1572 = vmatprep.subr.mxu0 0.0
    %1573 = vmatpush1.xpose.msra.mxu0 0.0
    %1574 = vmatprep.subr.mxu0 0.0
    %1575 = vmatpush1.xpose.msra.mxu0 0.0
    %1576 = vmatprep.subr.mxu0 0.0
    %1577 = vmatpush1.xpose.msra.mxu0 0.0
    %1578 = vmatprep.subr.mxu0 0.0
    %1579 = vmatpush1.xpose.msra.mxu0 0.0
    %1580 = vmatprep.subr.mxu0 0.0
    %1581 = vmatpush1.xpose.msra.mxu0 0.0
    %1582 = vmatprep.subr.mxu0 0.0
    %1583 = vmatpush1.xpose.msra.mxu0 0.0
    %1584 = vmatprep.subr.mxu0 0.0
    %1585 = vmatpush1.xpose.msra.mxu0 0.0
    %1586 = vmatprep.subr.mxu0 0.0
    %1587 = vmatpush1.xpose.msra.mxu0 0.0
    %1588 = vmatprep.subr.mxu0 0.0
    %1589 = vmatpush1.xpose.msra.mxu0 0.0
    %1590 = vmatprep.subr.mxu0 0.0
    %1591 = vmatpush1.xpose.msra.mxu0 0.0
    %1592 = vmatprep.subr.mxu0 0.0
    %1593 = vmatpush1.xpose.msra.mxu0 0.0
    %1594 = vmatprep.subr.mxu0 0.0
    %1595 = vmatpush1.xpose.msra.mxu0 0.0
    %1596 = vmatprep.mubr.f32.mxu0 %v1528
    %1597 = vmatmul.mubr.f32.gmra.mrb[0].mxu0 %v1527
    %v1598 = vpop.f32.mrb[0].mxu0
    %v1599 = vadd.f32 0.0, %v1598
    %v1600 = vpop.f32.mrb[0].mxu0
    %1601 = vdwg.mxu0
    %v1602 = vmul.f32 %v1599, 0.0625
    %v1603 = vadd.f32 %v1602, %v361
    %v1604 = vsel %vm822, %v1603, -inf
    %1605 = vmax.xlane.f32.xlu0 %v1604
    %v1606 = vpop.xlane.xlu0 %1605
    %v1607 = vsub.f32 %v1603, %v1606
    %v1608 = vmul.f32 %v1607, 1.442695
    %v1609 = vpow.pop %v1608
    %v1610 = vsel %vm822, %v1609, 0.0
    %1611 = vadd.xlane.f32.xlu0 %v1610
    %v1612 = vpop.xlane.xlu0 %1611
    %v1613 = vrcp.pop %v1612
    %v1614 = vmul.f32 %v1609, %v1613
    %s1615 = scalar_lea.vmem [#allocation8], 48
    %v1616 = vld [vmem:[%s1615] sm:$0xff]
    %v1617 = vld [vmem:[%s1615 + $0x8] sm:$0xff]
    %v1619 = vsel %vm822, %v1614, 0
    %1621 = vmatprep.subr.mxu0 %v1617
    %1622 = vmatpush1.msra.mxu0 %v1616
    %1623 = vmatprep.subr.mxu0 0.0
    %1624 = vmatpush1.msra.mxu0 0.0
    %1625 = vmatprep.subr.mxu0 0.0
    %1626 = vmatpush1.msra.mxu0 0.0
    %1627 = vmatprep.subr.mxu0 0.0
    %1628 = vmatpush1.msra.mxu0 0.0
    %1629 = vmatprep.subr.mxu0 0.0
    %1630 = vmatpush1.msra.mxu0 0.0
    %1631 = vmatprep.subr.mxu0 0.0
    %1632 = vmatpush1.msra.mxu0 0.0
    %1633 = vmatprep.subr.mxu0 0.0
    %1634 = vmatpush1.msra.mxu0 0.0
    %1635 = vmatprep.subr.mxu0 0.0
    %1636 = vmatpush1.msra.mxu0 0.0
    %1637 = vmatprep.subr.mxu0 0.0
    %1638 = vmatpush1.msra.mxu0 0.0
    %1639 = vmatprep.subr.mxu0 0.0
    %1640 = vmatpush1.msra.mxu0 0.0
    %1641 = vmatprep.subr.mxu0 0.0
    %1642 = vmatpush1.msra.mxu0 0.0
    %1643 = vmatprep.subr.mxu0 0.0
    %1644 = vmatpush1.msra.mxu0 0.0
    %1645 = vmatprep.subr.mxu0 0.0
    %1646 = vmatpush1.msra.mxu0 0.0
    %1647 = vmatprep.subr.mxu0 0.0
    %1648 = vmatpush1.msra.mxu0 0.0
    %1649 = vmatprep.subr.mxu0 0.0
    %1650 = vmatpush1.msra.mxu0 0.0
    %1651 = vmatprep.subr.mxu0 0.0
    %1652 = vmatpush1.msra.mxu0 0.0
    %1653 = vmatprep.subr.mxu0 0.0
    %1654 = vmatpush1.msra.mxu0 0.0
    %1655 = vmatprep.subr.mxu0 0.0
    %1656 = vmatpush1.msra.mxu0 0.0
    %1657 = vmatprep.subr.mxu0 0.0
    %1658 = vmatpush1.msra.mxu0 0.0
    %1659 = vmatprep.subr.mxu0 0.0
    %1660 = vmatpush1.msra.mxu0 0.0
    %1661 = vmatprep.subr.mxu0 0.0
    %1662 = vmatpush1.msra.mxu0 0.0
    %1663 = vmatprep.subr.mxu0 0.0
    %1664 = vmatpush1.msra.mxu0 0.0
    %1665 = vmatprep.subr.mxu0 0.0
    %1666 = vmatpush1.msra.mxu0 0.0
    %1667 = vmatprep.subr.mxu0 0.0
    %1668 = vmatpush1.msra.mxu0 0.0
    %1669 = vmatprep.subr.mxu0 0.0
    %1670 = vmatpush1.msra.mxu0 0.0
    %1671 = vmatprep.subr.mxu0 0.0
    %1672 = vmatpush1.msra.mxu0 0.0
    %1673 = vmatprep.subr.mxu0 0.0
    %1674 = vmatpush1.msra.mxu0 0.0
    %1675 = vmatprep.subr.mxu0 0.0
    %1676 = vmatpush1.msra.mxu0 0.0
    %1677 = vmatprep.subr.mxu0 0.0
    %1678 = vmatpush1.msra.mxu0 0.0
    %1679 = vmatprep.subr.mxu0 0.0
    %1680 = vmatpush1.msra.mxu0 0.0
    %1681 = vmatprep.subr.mxu0 0.0
    %1682 = vmatpush1.msra.mxu0 0.0
    %1683 = vmatprep.subr.mxu0 0.0
    %1684 = vmatpush1.msra.mxu0 0.0
    %1685 = vmatprep.mubr.f32.mxu0 0.0
    %1686 = vmatmul.mubr.f32.gmra.mrb[0].mxu0 %v1619
    %v1687 = vpop.f32.mrb[0].mxu0
    %v1688 = vadd.f32 0.0, %v1687
    %v1689 = vpop.f32.mrb[0].mxu0
    %v1690 = vadd.f32 0.0, %v1689
    %1691 = vdwg.mxu0
    %1692 = vmatprep.subr.mxu0 %v619
    %1693 = vmatpush1.msra.mxu0 %v618
    %1694 = vmatprep.subr.mxu0 %v623
    %1695 = vmatpush1.msra.mxu0 %v622
    %1696 = vmatprep.subr.mxu0 %v627
    %1697 = vmatpush1.msra.mxu0 %v626
    %1698 = vmatprep.subr.mxu0 %v631
    %1699 = vmatpush1.msra.mxu0 %v630
    %1700 = vmatprep.subr.mxu0 %v635
    %1701 = vmatpush1.msra.mxu0 %v634
    %1702 = vmatprep.subr.mxu0 %v639
    %1703 = vmatpush1.msra.mxu0 %v638
    %1704 = vmatprep.subr.mxu0 %v643
    %1705 = vmatpush1.msra.mxu0 %v642
    %1706 = vmatprep.subr.mxu0 %v647
    %1707 = vmatpush1.msra.mxu0 %v646
    %1708 = vmatprep.subr.mxu0 %v651
    %1709 = vmatpush1.msra.mxu0 %v650
    %1710 = vmatprep.subr.mxu0 %v655
    %1711 = vmatpush1.msra.mxu0 %v654
    %1712 = vmatprep.subr.mxu0 %v659
    %1713 = vmatpush1.msra.mxu0 %v658
    %1714 = vmatprep.subr.mxu0 %v663
    %1715 = vmatpush1.msra.mxu0 %v662
    %1716 = vmatprep.subr.mxu0 %v667
    %1717 = vmatpush1.msra.mxu0 %v666
    %1718 = vmatprep.subr.mxu0 %v671
    %1719 = vmatpush1.msra.mxu0 %v670
    %1720 = vmatprep.subr.mxu0 %v675
    %1721 = vmatpush1.msra.mxu0 %v674
    %1722 = vmatprep.subr.mxu0 %v679
    %1723 = vmatpush1.msra.mxu0 %v678
    %1724 = vmatprep.subr.mxu0 %v683
    %1725 = vmatpush1.msra.mxu0 %v682
    %1726 = vmatprep.subr.mxu0 %v687
    %1727 = vmatpush1.msra.mxu0 %v686
    %1728 = vmatprep.subr.mxu0 %v691
    %1729 = vmatpush1.msra.mxu0 %v690
    %1730 = vmatprep.subr.mxu0 %v695
    %1731 = vmatpush1.msra.mxu0 %v694
    %1732 = vmatprep.subr.mxu0 %v699
    %1733 = vmatpush1.msra.mxu0 %v698
    %1734 = vmatprep.subr.mxu0 %v703
    %1735 = vmatpush1.msra.mxu0 %v702
    %1736 = vmatprep.subr.mxu0 %v707
    %1737 = vmatpush1.msra.mxu0 %v706
    %1738 = vmatprep.subr.mxu0 %v711
    %1739 = vmatpush1.msra.mxu0 %v710
    %1740 = vmatprep.subr.mxu0 %v715
    %1741 = vmatpush1.msra.mxu0 %v714
    %1742 = vmatprep.subr.mxu0 %v719
    %1743 = vmatpush1.msra.mxu0 %v718
    %1744 = vmatprep.subr.mxu0 %v723
    %1745 = vmatpush1.msra.mxu0 %v722
    %1746 = vmatprep.subr.mxu0 %v727
    %1747 = vmatpush1.msra.mxu0 %v726
    %1748 = vmatprep.subr.mxu0 %v731
    %1749 = vmatpush1.msra.mxu0 %v730
    %1750 = vmatprep.subr.mxu0 %v735
    %1751 = vmatpush1.msra.mxu0 %v734
    %1752 = vmatprep.subr.mxu0 %v739
    %1753 = vmatpush1.msra.mxu0 %v738
    %1754 = vmatprep.subr.mxu0 %v743
    %1755 = vmatpush1.msra.mxu0 %v742
    %1756 = vmatprep.mubr.f32.mxu0 %v1690
    %1757 = vmatmul.mubr.f32.gmra.mrb[0].mxu0 %v1688
    %v1758 = vpop.f32.mrb[0].mxu0
    %v1759 = vadd.f32 0.0, %v1758
    %v1760 = vpop.f32.mrb[0].mxu0
    %v1761 = vadd.f32 0.0, %v1760
    %1762 = vdwg.mxu0
    %1763 = vmatprep.subr.mxu0 %v621
    %1764 = vmatpush1.msra.mxu0 %v620
    %1765 = vmatprep.subr.mxu0 %v625
    %1766 = vmatpush1.msra.mxu0 %v624
    %1767 = vmatprep.subr.mxu0 %v629
    %1768 = vmatpush1.msra.mxu0 %v628
    %1769 = vmatprep.subr.mxu0 %v633
    %1770 = vmatpush1.msra.mxu0 %v632
    %1771 = vmatprep.subr.mxu0 %v637
    %1772 = vmatpush1.msra.mxu0 %v636
    %1773 = vmatprep.subr.mxu0 %v641
    %1774 = vmatpush1.msra.mxu0 %v640
    %1775 = vmatprep.subr.mxu0 %v645
    %1776 = vmatpush1.msra.mxu0 %v644
    %1777 = vmatprep.subr.mxu0 %v649
    %1778 = vmatpush1.msra.mxu0 %v648
    %1779 = vmatprep.subr.mxu0 %v653
    %1780 = vmatpush1.msra.mxu0 %v652
    %1781 = vmatprep.subr.mxu0 %v657
    %1782 = vmatpush1.msra.mxu0 %v656
    %1783 = vmatprep.subr.mxu0 %v661
    %1784 = vmatpush1.msra.mxu0 %v660
    %1785 = vmatprep.subr.mxu0 %v665
    %1786 = vmatpush1.msra.mxu0 %v664
    %1787 = vmatprep.subr.mxu0 %v669
    %1788 = vmatpush1.msra.mxu0 %v668
    %1789 = vmatprep.subr.mxu0 %v673
    %1790 = vmatpush1.msra.mxu0 %v672
    %1791 = vmatprep.subr.mxu0 %v677
    %1792 = vmatpush1.msra.mxu0 %v676
    %1793 = vmatprep.subr.mxu0 %v681
    %1794 = vmatpush1.msra.mxu0 %v680
    %1795 = vmatprep.subr.mxu0 %v685
    %1796 = vmatpush1.msra.mxu0 %v684
    %1797 = vmatprep.subr.mxu0 %v689
    %1798 = vmatpush1.msra.mxu0 %v688
    %1799 = vmatprep.subr.mxu0 %v693
    %1800 = vmatpush1.msra.mxu0 %v692
    %1801 = vmatprep.subr.mxu0 %v697
    %1802 = vmatpush1.msra.mxu0 %v696
    %1803 = vmatprep.subr.mxu0 %v701
    %1804 = vmatpush1.msra.mxu0 %v700
    %1805 = vmatprep.subr.mxu0 %v705
    %1806 = vmatpush1.msra.mxu0 %v704
    %1807 = vmatprep.subr.mxu0 %v709
    %1808 = vmatpush1.msra.mxu0 %v708
    %1809 = vmatprep.subr.mxu0 %v713
    %1810 = vmatpush1.msra.mxu0 %v712
    %1811 = vmatprep.subr.mxu0 %v717
    %1812 = vmatpush1.msra.mxu0 %v716
    %1813 = vmatprep.subr.mxu0 %v721
    %1814 = vmatpush1.msra.mxu0 %v720
    %1815 = vmatprep.subr.mxu0 %v725
    %1816 = vmatpush1.msra.mxu0 %v724
    %1817 = vmatprep.subr.mxu0 %v729
    %1818 = vmatpush1.msra.mxu0 %v728
    %1819 = vmatprep.subr.mxu0 %v733
    %1820 = vmatpush1.msra.mxu0 %v732
    %1821 = vmatprep.subr.mxu0 %v737
    %1822 = vmatpush1.msra.mxu0 %v736
    %1823 = vmatprep.subr.mxu0 %v741
    %1824 = vmatpush1.msra.mxu0 %v740
    %1825 = vmatprep.subr.mxu0 %v745
    %1826 = vmatpush1.msra.mxu0 %v744
    %1827 = vmatprep.mubr.f32.mxu0 %v1690
    %1828 = vmatmul.mubr.f32.gmra.mrb[0].mxu0 %v1688
    %v1829 = vpop.f32.mrb[0].mxu0
    %v1830 = vadd.f32 0.0, %v1829
    %v1831 = vpop.f32.mrb[0].mxu0
    %v1832 = vadd.f32 0.0, %v1831
    %1833 = vdwg.mxu0
    %1834 = vmatprep.subr.mxu0 %v491
    %1835 = vmatpush1.msra.mxu0 %v490
    %1836 = vmatprep.subr.mxu0 %v495
    %1837 = vmatpush1.msra.mxu0 %v494
    %1838 = vmatprep.subr.mxu0 %v499
    %1839 = vmatpush1.msra.mxu0 %v498
    %1840 = vmatprep.subr.mxu0 %v503
    %1841 = vmatpush1.msra.mxu0 %v502
    %1842 = vmatprep.subr.mxu0 %v507
    %1843 = vmatpush1.msra.mxu0 %v506
    %1844 = vmatprep.subr.mxu0 %v511
    %1845 = vmatpush1.msra.mxu0 %v510
    %1846 = vmatprep.subr.mxu0 %v515
    %1847 = vmatpush1.msra.mxu0 %v514
    %1848 = vmatprep.subr.mxu0 %v519
    %1849 = vmatpush1.msra.mxu0 %v518
    %1850 = vmatprep.subr.mxu0 %v523
    %1851 = vmatpush1.msra.mxu0 %v522
    %1852 = vmatprep.subr.mxu0 %v527
    %1853 = vmatpush1.msra.mxu0 %v526
    %1854 = vmatprep.subr.mxu0 %v531
    %1855 = vmatpush1.msra.mxu0 %v530
    %1856 = vmatprep.subr.mxu0 %v535
    %1857 = vmatpush1.msra.mxu0 %v534
    %1858 = vmatprep.subr.mxu0 %v539
    %1859 = vmatpush1.msra.mxu0 %v538
    %1860 = vmatprep.subr.mxu0 %v543
    %1861 = vmatpush1.msra.mxu0 %v542
    %1862 = vmatprep.subr.mxu0 %v547
    %1863 = vmatpush1.msra.mxu0 %v546
    %1864 = vmatprep.subr.mxu0 %v551
    %1865 = vmatpush1.msra.mxu0 %v550
    %1866 = vmatprep.subr.mxu0 %v555
    %1867 = vmatpush1.msra.mxu0 %v554
    %1868 = vmatprep.subr.mxu0 %v559
    %1869 = vmatpush1.msra.mxu0 %v558
    %1870 = vmatprep.subr.mxu0 %v563
    %1871 = vmatpush1.msra.mxu0 %v562
    %1872 = vmatprep.subr.mxu0 %v567
    %1873 = vmatpush1.msra.mxu0 %v566
    %1874 = vmatprep.subr.mxu0 %v571
    %1875 = vmatpush1.msra.mxu0 %v570
    %1876 = vmatprep.subr.mxu0 %v575
    %1877 = vmatpush1.msra.mxu0 %v574
    %1878 = vmatprep.subr.mxu0 %v579
    %1879 = vmatpush1.msra.mxu0 %v578
    %1880 = vmatprep.subr.mxu0 %v583
    %1881 = vmatpush1.msra.mxu0 %v582
    %1882 = vmatprep.subr.mxu0 %v587
    %1883 = vmatpush1.msra.mxu0 %v586
    %1884 = vmatprep.subr.mxu0 %v591
    %1885 = vmatpush1.msra.mxu0 %v590
    %1886 = vmatprep.subr.mxu0 %v595
    %1887 = vmatpush1.msra.mxu0 %v594
    %1888 = vmatprep.subr.mxu0 %v599
    %1889 = vmatpush1.msra.mxu0 %v598
    %1890 = vmatprep.subr.mxu0 %v603
    %1891 = vmatpush1.msra.mxu0 %v602
    %1892 = vmatprep.subr.mxu0 %v607
    %1893 = vmatpush1.msra.mxu0 %v606
    %1894 = vmatprep.subr.mxu0 %v611
    %1895 = vmatpush1.msra.mxu0 %v610
    %1896 = vmatprep.subr.mxu0 %v615
    %1897 = vmatpush1.msra.mxu0 %v614
    %1898 = vmatprep.mubr.f32.mxu0 %v1524
    %1899 = vmatmul.mubr.f32.gmra.mrb[0].mxu0 %v1522
    %v1900 = vpop.f32.mrb[0].mxu0
    %v1901 = vadd.f32 %v1759, %v1900
    %v1902 = vpop.f32.mrb[0].mxu0
    %v1903 = vadd.f32 %v1761, %v1902
    %1904 = vdwg.mxu0
    %1905 = vmatprep.subr.mxu0 %v493
    %1906 = vmatpush1.msra.mxu0 %v492
    %1907 = vmatprep.subr.mxu0 %v497
    %1908 = vmatpush1.msra.mxu0 %v496
    %1909 = vmatprep.subr.mxu0 %v501
    %1910 = vmatpush1.msra.mxu0 %v500
    %1911 = vmatprep.subr.mxu0 %v505
    %1912 = vmatpush1.msra.mxu0 %v504
    %1913 = vmatprep.subr.mxu0 %v509
    %1914 = vmatpush1.msra.mxu0 %v508
    %1915 = vmatprep.subr.mxu0 %v513
    %1916 = vmatpush1.msra.mxu0 %v512
    %1917 = vmatprep.subr.mxu0 %v517
    %1918 = vmatpush1.msra.mxu0 %v516
    %1919 = vmatprep.subr.mxu0 %v521
    %1920 = vmatpush1.msra.mxu0 %v520
    %1921 = vmatprep.subr.mxu0 %v525
    %1922 = vmatpush1.msra.mxu0 %v524
    %1923 = vmatprep.subr.mxu0 %v529
    %1924 = vmatpush1.msra.mxu0 %v528
    %1925 = vmatprep.subr.mxu0 %v533
    %1926 = vmatpush1.msra.mxu0 %v532
    %1927 = vmatprep.subr.mxu0 %v537
    %1928 = vmatpush1.msra.mxu0 %v536
    %1929 = vmatprep.subr.mxu0 %v541
    %1930 = vmatpush1.msra.mxu0 %v540
    %1931 = vmatprep.subr.mxu0 %v545
    %1932 = vmatpush1.msra.mxu0 %v544
    %1933 = vmatprep.subr.mxu0 %v549
    %1934 = vmatpush1.msra.mxu0 %v548
    %1935 = vmatprep.subr.mxu0 %v553
    %1936 = vmatpush1.msra.mxu0 %v552
    %1937 = vmatprep.subr.mxu0 %v557
    %1938 = vmatpush1.msra.mxu0 %v556
    %1939 = vmatprep.subr.mxu0 %v561
    %1940 = vmatpush1.msra.mxu0 %v560
    %1941 = vmatprep.subr.mxu0 %v565
    %1942 = vmatpush1.msra.mxu0 %v564
    %1943 = vmatprep.subr.mxu0 %v569
    %1944 = vmatpush1.msra.mxu0 %v568
    %1945 = vmatprep.subr.mxu0 %v573
    %1946 = vmatpush1.msra.mxu0 %v572
    %1947 = vmatprep.subr.mxu0 %v577
    %1948 = vmatpush1.msra.mxu0 %v576
    %1949 = vmatprep.subr.mxu0 %v581
    %1950 = vmatpush1.msra.mxu0 %v580
    %1951 = vmatprep.subr.mxu0 %v585
    %1952 = vmatpush1.msra.mxu0 %v584
    %1953 = vmatprep.subr.mxu0 %v589
    %1954 = vmatpush1.msra.mxu0 %v588
    %1955 = vmatprep.subr.mxu0 %v593
    %1956 = vmatpush1.msra.mxu0 %v592
    %1957 = vmatprep.subr.mxu0 %v597
    %1958 = vmatpush1.msra.mxu0 %v596
    %1959 = vmatprep.subr.mxu0 %v601
    %1960 = vmatpush1.msra.mxu0 %v600
    %1961 = vmatprep.subr.mxu0 %v605
    %1962 = vmatpush1.msra.mxu0 %v604
    %1963 = vmatprep.subr.mxu0 %v609
    %1964 = vmatpush1.msra.mxu0 %v608
    %1965 = vmatprep.subr.mxu0 %v613
    %1966 = vmatpush1.msra.mxu0 %v612
    %1967 = vmatprep.subr.mxu0 %v617
    %1968 = vmatpush1.msra.mxu0 %v616
    %1969 = vmatprep.mubr.f32.mxu0 %v1524
    %1970 = vmatmul.mubr.f32.gmra.mrb[0].mxu0 %v1522
    %v1971 = vpop.f32.mrb[0].mxu0
    %v1972 = vadd.f32 %v1830, %v1971
    %v1973 = vpop.f32.mrb[0].mxu0
    %v1974 = vadd.f32 %v1832, %v1973
    %1975 = vdwg.mxu0
    %v1976 = vld [vmem:[#allocation14] sm:$0xf]
    %v1978 = vlaneseq
    %v1979 = vshrl.u32 %v1978, 7
    %v1980 = vsub.s32 0, %v1979
    %v1981 = vrot.slane %v1976, %v1980
    %v1982 = vlaneseq
    %v1983 = vshrl.u32 %v1982, 7
    %v1984 = vsub.s32 1, %v1983
    %v1985 = vrot.slane %v1976, %v1984
    %v1986 = vlaneseq
    %v1987 = vshrl.u32 %v1986, 7
    %v1988 = vsub.s32 2, %v1987
    %v1989 = vrot.slane %v1976, %v1988
    %v1990 = vlaneseq
    %v1991 = vshrl.u32 %v1990, 7
    %v1992 = vsub.s32 3, %v1991
    %v1993 = vrot.slane %v1976, %v1992
    %v1998 = vadd.f32 %v1285, %v1981
    %v1999 = vadd.f32 %v1287, %v1985
    %v2000 = vadd.f32 %v1356, %v1989
    %v2001 = vadd.f32 %v1358, %v1993
    %v2002 = vadd.f32 %v1901, %v1981
    %v2003 = vadd.f32 %v1903, %v1985
    %v2004 = vadd.f32 %v1972, %v1989
    %v2005 = vadd.f32 %v1974, %v1993
    %v2006 = vadd.f32 %v1998, %v348
    %v2007 = vadd.f32 %v1999, %v349
    %v2008 = vadd.f32 %v2000, %v350
    %v2009 = vadd.f32 %v2001, %v351
    %v2010 = vadd.f32 %v2002, %v352
    %v2011 = vadd.f32 %v2003, %v353
    %v2012 = vadd.f32 %v2004, %v354
    %v2013 = vadd.f32 %v2005, %v355
    %v2014 = vld [vmem:[#allocation28] sm:$0xf]
    %v2015 = vld [vmem:[#allocation29] sm:$0xf]
    %v2016 = vadd.f32 %v2006, %v2007
    %v2017 = vadd.f32 %v2016, %v2008
    %v2018 = vadd.f32 %v2017, %v2009
    %2019 = vadd.xlane.f32.xlu0 %v2018
    %v2020 = vpop.xlane.xlu0 %2019
    %v2021 = vadd.f32 %v2010, %v2011
    %v2022 = vadd.f32 %v2021, %v2012
    %v2023 = vadd.f32 %v2022, %v2013
    %2024 = vadd.xlane.f32.xlu0 %v2023
    %v2025 = vpop.xlane.xlu0 %2024
    %v2026 = vrcp.pop 512.0
    %v2027 = vmul.f32 %v2020, %v2026
    %v2028 = vmul.f32 %v2025, %v2026
    %v2029 = vsub.f32 %v2006, %v2027
    %v2030 = vsub.f32 %v2007, %v2027
    %v2031 = vsub.f32 %v2008, %v2027
    %v2032 = vsub.f32 %v2009, %v2027
    %v2033 = vsub.f32 %v2010, %v2028
    %v2034 = vsub.f32 %v2011, %v2028
    %v2035 = vsub.f32 %v2012, %v2028
    %v2036 = vsub.f32 %v2013, %v2028
    %v2037 = vmul.f32 %v2029, %v2029
    %v2038 = vmul.f32 %v2030, %v2030
    %v2039 = vmul.f32 %v2031, %v2031
    %v2040 = vmul.f32 %v2032, %v2032
    %v2041 = vmul.f32 %v2033, %v2033
    %v2042 = vmul.f32 %v2034, %v2034
    %v2043 = vmul.f32 %v2035, %v2035
    %v2044 = vmul.f32 %v2036, %v2036
    %v2045 = vadd.f32 %v2037, %v2038
    %v2046 = vadd.f32 %v2045, %v2039
    %v2047 = vadd.f32 %v2046, %v2040
    %2048 = vadd.xlane.f32.xlu0 %v2047
    %v2049 = vpop.xlane.xlu0 %2048
    %v2050 = vadd.f32 %v2041, %v2042
    %v2051 = vadd.f32 %v2050, %v2043
    %v2052 = vadd.f32 %v2051, %v2044
    %2053 = vadd.xlane.f32.xlu0 %v2052
    %v2054 = vpop.xlane.xlu0 %2053
    %v2055 = vmul.f32 %v2049, %v2026
    %v2056 = vmul.f32 %v2054, %v2026
    %v2057 = vadd.f32 %v2055, 1e-05
    %v2058 = vadd.f32 %v2056, 1e-05
    %v2059 = vrsqrt.pop %v2057
    %v2060 = vrsqrt.pop %v2058
    %v2061 = vmul.f32 %v2029, %v2059
    %v2062 = vmul.f32 %v2030, %v2059
    %v2063 = vmul.f32 %v2031, %v2059
    %v2064 = vmul.f32 %v2032, %v2059
    %v2065 = vmul.f32 %v2033, %v2060
    %v2066 = vmul.f32 %v2034, %v2060
    %v2067 = vmul.f32 %v2035, %v2060
    %v2068 = vmul.f32 %v2036, %v2060
    %v2070 = vlaneseq
    %v2071 = vshrl.u32 %v2070, 7
    %v2072 = vsub.s32 0, %v2071
    %v2073 = vrot.slane %v2014, %v2072
    %v2074 = vlaneseq
    %v2075 = vshrl.u32 %v2074, 7
    %v2076 = vsub.s32 1, %v2075
    %v2077 = vrot.slane %v2014, %v2076
    %v2078 = vlaneseq
    %v2079 = vshrl.u32 %v2078, 7
    %v2080 = vsub.s32 2, %v2079
    %v2081 = vrot.slane %v2014, %v2080
    %v2082 = vlaneseq
    %v2083 = vshrl.u32 %v2082, 7
    %v2084 = vsub.s32 3, %v2083
    %v2085 = vrot.slane %v2014, %v2084
    %v2090 = vmul.f32 %v2061, %v2073
    %v2091 = vmul.f32 %v2062, %v2077
    %v2092 = vmul.f32 %v2063, %v2081
    %v2093 = vmul.f32 %v2064, %v2085
    %v2094 = vmul.f32 %v2065, %v2073
    %v2095 = vmul.f32 %v2066, %v2077
    %v2096 = vmul.f32 %v2067, %v2081
    %v2097 = vmul.f32 %v2068, %v2085
    %v2099 = vlaneseq
    %v2100 = vshrl.u32 %v2099, 7
    %v2101 = vsub.s32 0, %v2100
    %v2102 = vrot.slane %v2015, %v2101
    %v2103 = vlaneseq
    %v2104 = vshrl.u32 %v2103, 7
    %v2105 = vsub.s32 1, %v2104
    %v2106 = vrot.slane %v2015, %v2105
    %v2107 = vlaneseq
    %v2108 = vshrl.u32 %v2107, 7
    %v2109 = vsub.s32 2, %v2108
    %v2110 = vrot.slane %v2015, %v2109
    %v2111 = vlaneseq
    %v2112 = vshrl.u32 %v2111, 7
    %v2113 = vsub.s32 3, %v2112
    %v2114 = vrot.slane %v2015, %v2113
    %v2119 = vadd.f32 %v2090, %v2102
    %v2120 = vadd.f32 %v2091, %v2106
    %v2121 = vadd.f32 %v2092, %v2110
    %v2122 = vadd.f32 %v2093, %v2114
    %v2123 = vadd.f32 %v2094, %v2102
    %v2124 = vadd.f32 %v2095, %v2106
    %v2125 = vadd.f32 %v2096, %v2110
    %v2126 = vadd.f32 %v2097, %v2114
    %v2127 = vld [vmem:[#allocation16] sm:$0xff]
    %v2128 = vld [vmem:[#allocation16 + $0x8] sm:$0xff]
    %v2129 = vld [vmem:[#allocation16 + $0x10] sm:$0xff]
    %v2130 = vld [vmem:[#allocation16 + $0x18] sm:$0xff]
    %v2131 = vld [vmem:[#allocation16 + $0x20] sm:$0xff]
    %v2132 = vld [vmem:[#allocation16 + $0x28] sm:$0xff]
    %v2133 = vld [vmem:[#allocation16 + $0x30] sm:$0xff]
    %v2134 = vld [vmem:[#allocation16 + $0x38] sm:$0xff]
    %v2135 = vld [vmem:[#allocation16 + $0x40] sm:$0xff]
    %v2136 = vld [vmem:[#allocation16 + $0x48] sm:$0xff]
    %v2137 = vld [vmem:[#allocation16 + $0x50] sm:$0xff]
    %v2138 = vld [vmem:[#allocation16 + $0x58] sm:$0xff]
    %v2139 = vld [vmem:[#allocation16 + $0x60] sm:$0xff]
    %v2140 = vld [vmem:[#allocation16 + $0x68] sm:$0xff]
    %v2141 = vld [vmem:[#allocation16 + $0x70] sm:$0xff]
    %v2142 = vld [vmem:[#allocation16 + $0x78] sm:$0xff]
    %v2143 = vld [vmem:[#allocation16 + $0x80] sm:$0xff]
    %v2144 = vld [vmem:[#allocation16 + $0x88] sm:$0xff]
    %v2145 = vld [vmem:[#allocation16 + $0x90] sm:$0xff]
    %v2146 = vld [vmem:[#allocation16 + $0x98] sm:$0xff]
    %v2147 = vld [vmem:[#allocation16 + $0xa0] sm:$0xff]
    %v2148 = vld [vmem:[#allocation16 + $0xa8] sm:$0xff]
    %v2149 = vld [vmem:[#allocation16 + $0xb0] sm:$0xff]
    %v2150 = vld [vmem:[#allocation16 + $0xb8] sm:$0xff]
    %v2151 = vld [vmem:[#allocation16 + $0xc0] sm:$0xff]
    %v2152 = vld [vmem:[#allocation16 + $0xc8] sm:$0xff]
    %v2153 = vld [vmem:[#allocation16 + $0xd0] sm:$0xff]
    %v2154 = vld [vmem:[#allocation16 + $0xd8] sm:$0xff]
    %v2155 = vld [vmem:[#allocation16 + $0xe0] sm:$0xff]
    %v2156 = vld [vmem:[#allocation16 + $0xe8] sm:$0xff]
    %v2157 = vld [vmem:[#allocation16 + $0xf0] sm:$0xff]
    %v2158 = vld [vmem:[#allocation16 + $0xf8] sm:$0xff]
    %v2159 = vld [vmem:[#allocation16 + $0x100] sm:$0xff]
    %v2160 = vld [vmem:[#allocation16 + $0x108] sm:$0xff]
    %v2161 = vld [vmem:[#allocation16 + $0x110] sm:$0xff]
    %v2162 = vld [vmem:[#allocation16 + $0x118] sm:$0xff]
    %v2163 = vld [vmem:[#allocation16 + $0x120] sm:$0xff]
    %v2164 = vld [vmem:[#allocation16 + $0x128] sm:$0xff]
    %v2165 = vld [vmem:[#allocation16 + $0x130] sm:$0xff]
    %v2166 = vld [vmem:[#allocation16 + $0x138] sm:$0xff]
    %v2167 = vld [vmem:[#allocation16 + $0x140] sm:$0xff]
    %v2168 = vld [vmem:[#allocation16 + $0x148] sm:$0xff]
    %v2169 = vld [vmem:[#allocation16 + $0x150] sm:$0xff]
    %v2170 = vld [vmem:[#allocation16 + $0x158] sm:$0xff]
    %v2171 = vld [vmem:[#allocation16 + $0x160] sm:$0xff]
    %v2172 = vld [vmem:[#allocation16 + $0x168] sm:$0xff]
    %v2173 = vld [vmem:[#allocation16 + $0x170] sm:$0xff]
    %v2174 = vld [vmem:[#allocation16 + $0x178] sm:$0xff]
    %v2175 = vld [vmem:[#allocation16 + $0x180] sm:$0xff]
    %v2176 = vld [vmem:[#allocation16 + $0x188] sm:$0xff]
    %v2177 = vld [vmem:[#allocation16 + $0x190] sm:$0xff]
    %v2178 = vld [vmem:[#allocation16 + $0x198] sm:$0xff]
    %v2179 = vld [vmem:[#allocation16 + $0x1a0] sm:$0xff]
    %v2180 = vld [vmem:[#allocation16 + $0x1a8] sm:$0xff]
    %v2181 = vld [vmem:[#allocation16 + $0x1b0] sm:$0xff]
    %v2182 = vld [vmem:[#allocation16 + $0x1b8] sm:$0xff]
    %v2183 = vld [vmem:[#allocation16 + $0x1c0] sm:$0xff]
    %v2184 = vld [vmem:[#allocation16 + $0x1c8] sm:$0xff]
    %v2185 = vld [vmem:[#allocation16 + $0x1d0] sm:$0xff]
    %v2186 = vld [vmem:[#allocation16 + $0x1d8] sm:$0xff]
    %v2187 = vld [vmem:[#allocation16 + $0x1e0] sm:$0xff]
    %v2188 = vld [vmem:[#allocation16 + $0x1e8] sm:$0xff]
    %v2189 = vld [vmem:[#allocation16 + $0x1f0] sm:$0xff]
    %v2190 = vld [vmem:[#allocation16 + $0x1f8] sm:$0xff]
    %v2191 = vld [vmem:[#allocation16 + $0x200] sm:$0xff]
    %v2192 = vld [vmem:[#allocation16 + $0x208] sm:$0xff]
    %v2193 = vld [vmem:[#allocation16 + $0x210] sm:$0xff]
    %v2194 = vld [vmem:[#allocation16 + $0x218] sm:$0xff]
    %v2195 = vld [vmem:[#allocation16 + $0x220] sm:$0xff]
    %v2196 = vld [vmem:[#allocation16 + $0x228] sm:$0xff]
    %v2197 = vld [vmem:[#allocation16 + $0x230] sm:$0xff]
    %v2198 = vld [vmem:[#allocation16 + $0x238] sm:$0xff]
    %v2199 = vld [vmem:[#allocation16 + $0x240] sm:$0xff]
    %v2200 = vld [vmem:[#allocation16 + $0x248] sm:$0xff]
    %v2201 = vld [vmem:[#allocation16 + $0x250] sm:$0xff]
    %v2202 = vld [vmem:[#allocation16 + $0x258] sm:$0xff]
    %v2203 = vld [vmem:[#allocation16 + $0x260] sm:$0xff]
    %v2204 = vld [vmem:[#allocation16 + $0x268] sm:$0xff]
    %v2205 = vld [vmem:[#allocation16 + $0x270] sm:$0xff]
    %v2206 = vld [vmem:[#allocation16 + $0x278] sm:$0xff]
    %v2207 = vld [vmem:[#allocation16 + $0x280] sm:$0xff]
    %v2208 = vld [vmem:[#allocation16 + $0x288] sm:$0xff]
    %v2209 = vld [vmem:[#allocation16 + $0x290] sm:$0xff]
    %v2210 = vld [vmem:[#allocation16 + $0x298] sm:$0xff]
    %v2211 = vld [vmem:[#allocation16 + $0x2a0] sm:$0xff]
    %v2212 = vld [vmem:[#allocation16 + $0x2a8] sm:$0xff]
    %v2213 = vld [vmem:[#allocation16 + $0x2b0] sm:$0xff]
    %v2214 = vld [vmem:[#allocation16 + $0x2b8] sm:$0xff]
    %v2215 = vld [vmem:[#allocation16 + $0x2c0] sm:$0xff]
    %v2216 = vld [vmem:[#allocation16 + $0x2c8] sm:$0xff]
    %v2217 = vld [vmem:[#allocation16 + $0x2d0] sm:$0xff]
    %v2218 = vld [vmem:[#allocation16 + $0x2d8] sm:$0xff]
    %v2219 = vld [vmem:[#allocation16 + $0x2e0] sm:$0xff]
    %v2220 = vld [vmem:[#allocation16 + $0x2e8] sm:$0xff]
    %v2221 = vld [vmem:[#allocation16 + $0x2f0] sm:$0xff]
    %v2222 = vld [vmem:[#allocation16 + $0x2f8] sm:$0xff]
    %v2223 = vld [vmem:[#allocation16 + $0x300] sm:$0xff]
    %v2224 = vld [vmem:[#allocation16 + $0x308] sm:$0xff]
    %v2225 = vld [vmem:[#allocation16 + $0x310] sm:$0xff]
    %v2226 = vld [vmem:[#allocation16 + $0x318] sm:$0xff]
    %v2227 = vld [vmem:[#allocation16 + $0x320] sm:$0xff]
    %v2228 = vld [vmem:[#allocation16 + $0x328] sm:$0xff]
    %v2229 = vld [vmem:[#allocation16 + $0x330] sm:$0xff]
    %v2230 = vld [vmem:[#allocation16 + $0x338] sm:$0xff]
    %v2231 = vld [vmem:[#allocation16 + $0x340] sm:$0xff]
    %v2232 = vld [vmem:[#allocation16 + $0x348] sm:$0xff]
    %v2233 = vld [vmem:[#allocation16 + $0x350] sm:$0xff]
    %v2234 = vld [vmem:[#allocation16 + $0x358] sm:$0xff]
    %v2235 = vld [vmem:[#allocation16 + $0x360] sm:$0xff]
    %v2236 = vld [vmem:[#allocation16 + $0x368] sm:$0xff]
    %v2237 = vld [vmem:[#allocation16 + $0x370] sm:$0xff]
    %v2238 = vld [vmem:[#allocation16 + $0x378] sm:$0xff]
    %v2239 = vld [vmem:[#allocation16 + $0x380] sm:$0xff]
    %v2240 = vld [vmem:[#allocation16 + $0x388] sm:$0xff]
    %v2241 = vld [vmem:[#allocation16 + $0x390] sm:$0xff]
    %v2242 = vld [vmem:[#allocation16 + $0x398] sm:$0xff]
    %v2243 = vld [vmem:[#allocation16 + $0x3a0] sm:$0xff]
    %v2244 = vld [vmem:[#allocation16 + $0x3a8] sm:$0xff]
    %v2245 = vld [vmem:[#allocation16 + $0x3b0] sm:$0xff]
    %v2246 = vld [vmem:[#allocation16 + $0x3b8] sm:$0xff]
    %v2247 = vld [vmem:[#allocation16 + $0x3c0] sm:$0xff]
    %v2248 = vld [vmem:[#allocation16 + $0x3c8] sm:$0xff]
    %v2249 = vld [vmem:[#allocation16 + $0x3d0] sm:$0xff]
    %v2250 = vld [vmem:[#allocation16 + $0x3d8] sm:$0xff]
    %v2251 = vld [vmem:[#allocation16 + $0x3e0] sm:$0xff]
    %v2252 = vld [vmem:[#allocation16 + $0x3e8] sm:$0xff]
    %v2253 = vld [vmem:[#allocation16 + $0x3f0] sm:$0xff]
    %v2254 = vld [vmem:[#allocation16 + $0x3f8] sm:$0xff]
    %v2255 = vunpack.c.l.bf16 %v2127
    %v2256 = vunpack.c.h.bf16 %v2127
    %v2257 = vunpack.c.l.bf16 %v2128
    %v2258 = vunpack.c.h.bf16 %v2128
    %v2259 = vunpack.c.l.bf16 %v2129
    %v2260 = vunpack.c.h.bf16 %v2129
    %v2261 = vunpack.c.l.bf16 %v2130
    %v2262 = vunpack.c.h.bf16 %v2130
    %v2263 = vunpack.c.l.bf16 %v2131
    %v2264 = vunpack.c.h.bf16 %v2131
    %v2265 = vunpack.c.l.bf16 %v2132
    %v2266 = vunpack.c.h.bf16 %v2132
    %v2267 = vunpack.c.l.bf16 %v2133
    %v2268 = vunpack.c.h.bf16 %v2133
    %v2269 = vunpack.c.l.bf16 %v2134
    %v2270 = vunpack.c.h.bf16 %v2134
    %v2271 = vunpack.c.l.bf16 %v2135
    %v2272 = vunpack.c.h.bf16 %v2135
    %v2273 = vunpack.c.l.bf16 %v2136
    %v2274 = vunpack.c.h.bf16 %v2136
    %v2275 = vunpack.c.l.bf16 %v2137
    %v2276 = vunpack.c.h.bf16 %v2137
    %v2277 = vunpack.c.l.bf16 %v2138
    %v2278 = vunpack.c.h.bf16 %v2138
    %v2279 = vunpack.c.l.bf16 %v2139
    %v2280 = vunpack.c.h.bf16 %v2139
    %v2281 = vunpack.c.l.bf16 %v2140
    %v2282 = vunpack.c.h.bf16 %v2140
    %v2283 = vunpack.c.l.bf16 %v2141
    %v2284 = vunpack.c.h.bf16 %v2141
    %v2285 = vunpack.c.l.bf16 %v2142
    %v2286 = vunpack.c.h.bf16 %v2142
    %v2287 = vunpack.c.l.bf16 %v2143
    %v2288 = vunpack.c.h.bf16 %v2143
    %v2289 = vunpack.c.l.bf16 %v2144
    %v2290 = vunpack.c.h.bf16 %v2144
    %v2291 = vunpack.c.l.bf16 %v2145
    %v2292 = vunpack.c.h.bf16 %v2145
    %v2293 = vunpack.c.l.bf16 %v2146
    %v2294 = vunpack.c.h.bf16 %v2146
    %v2295 = vunpack.c.l.bf16 %v2147
    %v2296 = vunpack.c.h.bf16 %v2147
    %v2297 = vunpack.c.l.bf16 %v2148
    %v2298 = vunpack.c.h.bf16 %v2148
    %v2299 = vunpack.c.l.bf16 %v2149
    %v2300 = vunpack.c.h.bf16 %v2149
    %v2301 = vunpack.c.l.bf16 %v2150
    %v2302 = vunpack.c.h.bf16 %v2150
    %v2303 = vunpack.c.l.bf16 %v2151
    %v2304 = vunpack.c.h.bf16 %v2151
    %v2305 = vunpack.c.l.bf16 %v2152
    %v2306 = vunpack.c.h.bf16 %v2152
    %v2307 = vunpack.c.l.bf16 %v2153
    %v2308 = vunpack.c.h.bf16 %v2153
    %v2309 = vunpack.c.l.bf16 %v2154
    %v2310 = vunpack.c.h.bf16 %v2154
    %v2311 = vunpack.c.l.bf16 %v2155
    %v2312 = vunpack.c.h.bf16 %v2155
    %v2313 = vunpack.c.l.bf16 %v2156
    %v2314 = vunpack.c.h.bf16 %v2156
    %v2315 = vunpack.c.l.bf16 %v2157
    %v2316 = vunpack.c.h.bf16 %v2157
    %v2317 = vunpack.c.l.bf16 %v2158
    %v2318 = vunpack.c.h.bf16 %v2158
    %v2319 = vunpack.c.l.bf16 %v2159
    %v2320 = vunpack.c.h.bf16 %v2159
    %v2321 = vunpack.c.l.bf16 %v2160
    %v2322 = vunpack.c.h.bf16 %v2160
    %v2323 = vunpack.c.l.bf16 %v2161
    %v2324 = vunpack.c.h.bf16 %v2161
    %v2325 = vunpack.c.l.bf16 %v2162
    %v2326 = vunpack.c.h.bf16 %v2162
    %v2327 = vunpack.c.l.bf16 %v2163
    %v2328 = vunpack.c.h.bf16 %v2163
    %v2329 = vunpack.c.l.bf16 %v2164
    %v2330 = vunpack.c.h.bf16 %v2164
    %v2331 = vunpack.c.l.bf16 %v2165
    %v2332 = vunpack.c.h.bf16 %v2165
    %v2333 = vunpack.c.l.bf16 %v2166
    %v2334 = vunpack.c.h.bf16 %v2166
    %v2335 = vunpack.c.l.bf16 %v2167
    %v2336 = vunpack.c.h.bf16 %v2167
    %v2337 = vunpack.c.l.bf16 %v2168
    %v2338 = vunpack.c.h.bf16 %v2168
    %v2339 = vunpack.c.l.bf16 %v2169
    %v2340 = vunpack.c.h.bf16 %v2169
    %v2341 = vunpack.c.l.bf16 %v2170
    %v2342 = vunpack.c.h.bf16 %v2170
    %v2343 = vunpack.c.l.bf16 %v2171
    %v2344 = vunpack.c.h.bf16 %v2171
    %v2345 = vunpack.c.l.bf16 %v2172
    %v2346 = vunpack.c.h.bf16 %v2172
    %v2347 = vunpack.c.l.bf16 %v2173
    %v2348 = vunpack.c.h.bf16 %v2173
    %v2349 = vunpack.c.l.bf16 %v2174
    %v2350 = vunpack.c.h.bf16 %v2174
    %v2351 = vunpack.c.l.bf16 %v2175
    %v2352 = vunpack.c.h.bf16 %v2175
    %v2353 = vunpack.c.l.bf16 %v2176
    %v2354 = vunpack.c.h.bf16 %v2176
    %v2355 = vunpack.c.l.bf16 %v2177
    %v2356 = vunpack.c.h.bf16 %v2177
    %v2357 = vunpack.c.l.bf16 %v2178
    %v2358 = vunpack.c.h.bf16 %v2178
    %v2359 = vunpack.c.l.bf16 %v2179
    %v2360 = vunpack.c.h.bf16 %v2179
    %v2361 = vunpack.c.l.bf16 %v2180
    %v2362 = vunpack.c.h.bf16 %v2180
    %v2363 = vunpack.c.l.bf16 %v2181
    %v2364 = vunpack.c.h.bf16 %v2181
    %v2365 = vunpack.c.l.bf16 %v2182
    %v2366 = vunpack.c.h.bf16 %v2182
    %v2367 = vunpack.c.l.bf16 %v2183
    %v2368 = vunpack.c.h.bf16 %v2183
    %v2369 = vunpack.c.l.bf16 %v2184
    %v2370 = vunpack.c.h.bf16 %v2184
    %v2371 = vunpack.c.l.bf16 %v2185
    %v2372 = vunpack.c.h.bf16 %v2185
    %v2373 = vunpack.c.l.bf16 %v2186
    %v2374 = vunpack.c.h.bf16 %v2186
    %v2375 = vunpack.c.l.bf16 %v2187
    %v2376 = vunpack.c.h.bf16 %v2187
    %v2377 = vunpack.c.l.bf16 %v2188
    %v2378 = vunpack.c.h.bf16 %v2188
    %v2379 = vunpack.c.l.bf16 %v2189
    %v2380 = vunpack.c.h.bf16 %v2189
    %v2381 = vunpack.c.l.bf16 %v2190
    %v2382 = vunpack.c.h.bf16 %v2190
    %v2383 = vunpack.c.l.bf16 %v2191
    %v2384 = vunpack.c.h.bf16 %v2191
    %v2385 = vunpack.c.l.bf16 %v2192
    %v2386 = vunpack.c.h.bf16 %v2192
    %v2387 = vunpack.c.l.bf16 %v2193
    %v2388 = vunpack.c.h.bf16 %v2193
    %v2389 = vunpack.c.l.bf16 %v2194
    %v2390 = vunpack.c.h.bf16 %v2194
    %v2391 = vunpack.c.l.bf16 %v2195
    %v2392 = vunpack.c.h.bf16 %v2195
    %v2393 = vunpack.c.l.bf16 %v2196
    %v2394 = vunpack.c.h.bf16 %v2196
    %v2395 = vunpack.c.l.bf16 %v2197
    %v2396 = vunpack.c.h.bf16 %v2197
    %v2397 = vunpack.c.l.bf16 %v2198
    %v2398 = vunpack.c.h.bf16 %v2198
    %v2399 = vunpack.c.l.bf16 %v2199
    %v2400 = vunpack.c.h.bf16 %v2199
    %v2401 = vunpack.c.l.bf16 %v2200
    %v2402 = vunpack.c.h.bf16 %v2200
    %v2403 = vunpack.c.l.bf16 %v2201
    %v2404 = vunpack.c.h.bf16 %v2201
    %v2405 = vunpack.c.l.bf16 %v2202
    %v2406 = vunpack.c.h.bf16 %v2202
    %v2407 = vunpack.c.l.bf16 %v2203
    %v2408 = vunpack.c.h.bf16 %v2203
    %v2409 = vunpack.c.l.bf16 %v2204
    %v2410 = vunpack.c.h.bf16 %v2204
    %v2411 = vunpack.c.l.bf16 %v2205
    %v2412 = vunpack.c.h.bf16 %v2205
    %v2413 = vunpack.c.l.bf16 %v2206
    %v2414 = vunpack.c.h.bf16 %v2206
    %v2415 = vunpack.c.l.bf16 %v2207
    %v2416 = vunpack.c.h.bf16 %v2207
    %v2417 = vunpack.c.l.bf16 %v2208
    %v2418 = vunpack.c.h.bf16 %v2208
    %v2419 = vunpack.c.l.bf16 %v2209
    %v2420 = vunpack.c.h.bf16 %v2209
    %v2421 = vunpack.c.l.bf16 %v2210
    %v2422 = vunpack.c.h.bf16 %v2210
    %v2423 = vunpack.c.l.bf16 %v2211
    %v2424 = vunpack.c.h.bf16 %v2211
    %v2425 = vunpack.c.l.bf16 %v2212
    %v2426 = vunpack.c.h.bf16 %v2212
    %v2427 = vunpack.c.l.bf16 %v2213
    %v2428 = vunpack.c.h.bf16 %v2213
    %v2429 = vunpack.c.l.bf16 %v2214
    %v2430 = vunpack.c.h.bf16 %v2214
    %v2431 = vunpack.c.l.bf16 %v2215
    %v2432 = vunpack.c.h.bf16 %v2215
    %v2433 = vunpack.c.l.bf16 %v2216
    %v2434 = vunpack.c.h.bf16 %v2216
    %v2435 = vunpack.c.l.bf16 %v2217
    %v2436 = vunpack.c.h.bf16 %v2217
    %v2437 = vunpack.c.l.bf16 %v2218
    %v2438 = vunpack.c.h.bf16 %v2218
    %v2439 = vunpack.c.l.bf16 %v2219
    %v2440 = vunpack.c.h.bf16 %v2219
    %v2441 = vunpack.c.l.bf16 %v2220
    %v2442 = vunpack.c.h.bf16 %v2220
    %v2443 = vunpack.c.l.bf16 %v2221
    %v2444 = vunpack.c.h.bf16 %v2221
    %v2445 = vunpack.c.l.bf16 %v2222
    %v2446 = vunpack.c.h.bf16 %v2222
    %v2447 = vunpack.c.l.bf16 %v2223
    %v2448 = vunpack.c.h.bf16 %v2223
    %v2449 = vunpack.c.l.bf16 %v2224
    %v2450 = vunpack.c.h.bf16 %v2224
    %v2451 = vunpack.c.l.bf16 %v2225
    %v2452 = vunpack.c.h.bf16 %v2225
    %v2453 = vunpack.c.l.bf16 %v2226
    %v2454 = vunpack.c.h.bf16 %v2226
    %v2455 = vunpack.c.l.bf16 %v2227
    %v2456 = vunpack.c.h.bf16 %v2227
    %v2457 = vunpack.c.l.bf16 %v2228
    %v2458 = vunpack.c.h.bf16 %v2228
    %v2459 = vunpack.c.l.bf16 %v2229
    %v2460 = vunpack.c.h.bf16 %v2229
    %v2461 = vunpack.c.l.bf16 %v2230
    %v2462 = vunpack.c.h.bf16 %v2230
    %v2463 = vunpack.c.l.bf16 %v2231
    %v2464 = vunpack.c.h.bf16 %v2231
    %v2465 = vunpack.c.l.bf16 %v2232
    %v2466 = vunpack.c.h.bf16 %v2232
    %v2467 = vunpack.c.l.bf16 %v2233
    %v2468 = vunpack.c.h.bf16 %v2233
    %v2469 = vunpack.c.l.bf16 %v2234
    %v2470 = vunpack.c.h.bf16 %v2234
    %v2471 = vunpack.c.l.bf16 %v2235
    %v2472 = vunpack.c.h.bf16 %v2235
    %v2473 = vunpack.c.l.bf16 %v2236
    %v2474 = vunpack.c.h.bf16 %v2236
    %v2475 = vunpack.c.l.bf16 %v2237
    %v2476 = vunpack.c.h.bf16 %v2237
    %v2477 = vunpack.c.l.bf16 %v2238
    %v2478 = vunpack.c.h.bf16 %v2238
    %v2479 = vunpack.c.l.bf16 %v2239
    %v2480 = vunpack.c.h.bf16 %v2239
    %v2481 = vunpack.c.l.bf16 %v2240
    %v2482 = vunpack.c.h.bf16 %v2240
    %v2483 = vunpack.c.l.bf16 %v2241
    %v2484 = vunpack.c.h.bf16 %v2241
    %v2485 = vunpack.c.l.bf16 %v2242
    %v2486 = vunpack.c.h.bf16 %v2242
    %v2487 = vunpack.c.l.bf16 %v2243
    %v2488 = vunpack.c.h.bf16 %v2243
    %v2489 = vunpack.c.l.bf16 %v2244
    %v2490 = vunpack.c.h.bf16 %v2244
    %v2491 = vunpack.c.l.bf16 %v2245
    %v2492 = vunpack.c.h.bf16 %v2245
    %v2493 = vunpack.c.l.bf16 %v2246
    %v2494 = vunpack.c.h.bf16 %v2246
    %v2495 = vunpack.c.l.bf16 %v2247
    %v2496 = vunpack.c.h.bf16 %v2247
    %v2497 = vunpack.c.l.bf16 %v2248
    %v2498 = vunpack.c.h.bf16 %v2248
    %v2499 = vunpack.c.l.bf16 %v2249
    %v2500 = vunpack.c.h.bf16 %v2249
    %v2501 = vunpack.c.l.bf16 %v2250
    %v2502 = vunpack.c.h.bf16 %v2250
    %v2503 = vunpack.c.l.bf16 %v2251
    %v2504 = vunpack.c.h.bf16 %v2251
    %v2505 = vunpack.c.l.bf16 %v2252
    %v2506 = vunpack.c.h.bf16 %v2252
    %v2507 = vunpack.c.l.bf16 %v2253
    %v2508 = vunpack.c.h.bf16 %v2253
    %v2509 = vunpack.c.l.bf16 %v2254
    %v2510 = vunpack.c.h.bf16 %v2254
    %v2511 = vld [vmem:[#allocation17] sm:$0xf]
    %v2513 = vlaneseq
    %v2514 = vshrl.u32 %v2513, 7
    %v2515 = vsub.s32 0, %v2514
    %v2516 = vrot.slane %v2511, %v2515
    %v2517 = vlaneseq
    %v2518 = vshrl.u32 %v2517, 7
    %v2519 = vsub.s32 1, %v2518
    %v2520 = vrot.slane %v2511, %v2519
    %v2521 = vlaneseq
    %v2522 = vshrl.u32 %v2521, 7
    %v2523 = vsub.s32 2, %v2522
    %v2524 = vrot.slane %v2511, %v2523
    %v2525 = vlaneseq
    %v2526 = vshrl.u32 %v2525, 7
    %v2527 = vsub.s32 3, %v2526
    %v2528 = vrot.slane %v2511, %v2527
    %2533 = vmatprep.subr.mxu0 %v2256
    %2534 = vmatpush1.msra.mxu0 %v2255
    %2535 = vmatprep.subr.mxu0 %v2260
    %2536 = vmatpush1.msra.mxu0 %v2259
    %2537 = vmatprep.subr.mxu0 %v2264
    %2538 = vmatpush1.msra.mxu0 %v2263
    %2539 = vmatprep.subr.mxu0 %v2268
    %2540 = vmatpush1.msra.mxu0 %v2267
    %2541 = vmatprep.subr.mxu0 %v2272
    %2542 = vmatpush1.msra.mxu0 %v2271
    %2543 = vmatprep.subr.mxu0 %v2276
    %2544 = vmatpush1.msra.mxu0 %v2275
    %2545 = vmatprep.subr.mxu0 %v2280
    %2546 = vmatpush1.msra.mxu0 %v2279
    %2547 = vmatprep.subr.mxu0 %v2284
    %2548 = vmatpush1.msra.mxu0 %v2283
    %2549 = vmatprep.subr.mxu0 %v2288
    %2550 = vmatpush1.msra.mxu0 %v2287
    %2551 = vmatprep.subr.mxu0 %v2292
    %2552 = vmatpush1.msra.mxu0 %v2291
    %2553 = vmatprep.subr.mxu0 %v2296
    %2554 = vmatpush1.msra.mxu0 %v2295
    %2555 = vmatprep.subr.mxu0 %v2300
    %2556 = vmatpush1.msra.mxu0 %v2299
    %2557 = vmatprep.subr.mxu0 %v2304
    %2558 = vmatpush1.msra.mxu0 %v2303
    %2559 = vmatprep.subr.mxu0 %v2308
    %2560 = vmatpush1.msra.mxu0 %v2307
    %2561 = vmatprep.subr.mxu0 %v2312
    %2562 = vmatpush1.msra.mxu0 %v2311
    %2563 = vmatprep.subr.mxu0 %v2316
    %2564 = vmatpush1.msra.mxu0 %v2315
    %2565 = vmatprep.subr.mxu0 %v2320
    %2566 = vmatpush1.msra.mxu0 %v2319
    %2567 = vmatprep.subr.mxu0 %v2324
    %2568 = vmatpush1.msra.mxu0 %v2323
    %2569 = vmatprep.subr.mxu0 %v2328
    %2570 = vmatpush1.msra.mxu0 %v2327
    %2571 = vmatprep.subr.mxu0 %v2332
    %2572 = vmatpush1.msra.mxu0 %v2331
    %2573 = vmatprep.subr.mxu0 %v2336
    %2574 = vmatpush1.msra.mxu0 %v2335
    %2575 = vmatprep.subr.mxu0 %v2340
    %2576 = vmatpush1.msra.mxu0 %v2339
    %2577 = vmatprep.subr.mxu0 %v2344
    %2578 = vmatpush1.msra.mxu0 %v2343
    %2579 = vmatprep.subr.mxu0 %v2348
    %2580 = vmatpush1.msra.mxu0 %v2347
    %2581 = vmatprep.subr.mxu0 %v2352
    %2582 = vmatpush1.msra.mxu0 %v2351
    %2583 = vmatprep.subr.mxu0 %v2356
    %2584 = vmatpush1.msra.mxu0 %v2355
    %2585 = vmatprep.subr.mxu0 %v2360
    %2586 = vmatpush1.msra.mxu0 %v2359
    %2587 = vmatprep.subr.mxu0 %v2364
    %2588 = vmatpush1.msra.mxu0 %v2363
    %2589 = vmatprep.subr.mxu0 %v2368
    %2590 = vmatpush1.msra.mxu0 %v2367
    %2591 = vmatprep.subr.mxu0 %v2372
    %2592 = vmatpush1.msra.mxu0 %v2371
    %2593 = vmatprep.subr.mxu0 %v2376
    %2594 = vmatpush1.msra.mxu0 %v2375
    %2595 = vmatprep.subr.mxu0 %v2380
    %2596 = vmatpush1.msra.mxu0 %v2379
    %2597 = vmatprep.mubr.f32.mxu0 %v2120
    %2598 = vmatmul.mubr.f32.gmra.mrb[0].mxu0 %v2119
    %v2599 = vpop.f32.mrb[0].mxu0
    %v2600 = vadd.f32 %v2516, %v2599
    %v2601 = vpop.f32.mrb[0].mxu0
    %v2602 = vadd.f32 %v2520, %v2601
    %2603 = vmatprep.mubr.f32.mxu0 %v2124
    %2604 = vmatmul.mubr.f32.gmra.mrb[0].mxu0 %v2123
    %v2605 = vpop.f32.mrb[0].mxu0
    %v2606 = vadd.f32 %v2516, %v2605
    %v2607 = vpop.f32.mrb[0].mxu0
    %v2608 = vadd.f32 %v2520, %v2607
    %2609 = vdwg.mxu0
    %2610 = vmatprep.subr.mxu0 %v2384
    %2611 = vmatpush1.msra.mxu0 %v2383
    %2612 = vmatprep.subr.mxu0 %v2388
    %2613 = vmatpush1.msra.mxu0 %v2387
    %2614 = vmatprep.subr.mxu0 %v2392
    %2615 = vmatpush1.msra.mxu0 %v2391
    %2616 = vmatprep.subr.mxu0 %v2396
    %2617 = vmatpush1.msra.mxu0 %v2395
    %2618 = vmatprep.subr.mxu0 %v2400
    %2619 = vmatpush1.msra.mxu0 %v2399
    %2620 = vmatprep.subr.mxu0 %v2404
    %2621 = vmatpush1.msra.mxu0 %v2403
    %2622 = vmatprep.subr.mxu0 %v2408
    %2623 = vmatpush1.msra.mxu0 %v2407
    %2624 = vmatprep.subr.mxu0 %v2412
    %2625 = vmatpush1.msra.mxu0 %v2411
    %2626 = vmatprep.subr.mxu0 %v2416
    %2627 = vmatpush1.msra.mxu0 %v2415
    %2628 = vmatprep.subr.mxu0 %v2420
    %2629 = vmatpush1.msra.mxu0 %v2419
    %2630 = vmatprep.subr.mxu0 %v2424
    %2631 = vmatpush1.msra.mxu0 %v2423
    %2632 = vmatprep.subr.mxu0 %v2428
    %2633 = vmatpush1.msra.mxu0 %v2427
    %2634 = vmatprep.subr.mxu0 %v2432
    %2635 = vmatpush1.msra.mxu0 %v2431
    %2636 = vmatprep.subr.mxu0 %v2436
    %2637 = vmatpush1.msra.mxu0 %v2435
    %2638 = vmatprep.subr.mxu0 %v2440
    %2639 = vmatpush1.msra.mxu0 %v2439
    %2640 = vmatprep.subr.mxu0 %v2444
    %2641 = vmatpush1.msra.mxu0 %v2443
    %2642 = vmatprep.subr.mxu0 %v2448
    %2643 = vmatpush1.msra.mxu0 %v2447
    %2644 = vmatprep.subr.mxu0 %v2452
    %2645 = vmatpush1.msra.mxu0 %v2451
    %2646 = vmatprep.subr.mxu0 %v2456
    %2647 = vmatpush1.msra.mxu0 %v2455
    %2648 = vmatprep.subr.mxu0 %v2460
    %2649 = vmatpush1.msra.mxu0 %v2459
    %2650 = vmatprep.subr.mxu0 %v2464
    %2651 = vmatpush1.msra.mxu0 %v2463
    %2652 = vmatprep.subr.mxu0 %v2468
    %2653 = vmatpush1.msra.mxu0 %v2467
    %2654 = vmatprep.subr.mxu0 %v2472
    %2655 = vmatpush1.msra.mxu0 %v2471
    %2656 = vmatprep.subr.mxu0 %v2476
    %2657 = vmatpush1.msra.mxu0 %v2475
    %2658 = vmatprep.subr.mxu0 %v2480
    %2659 = vmatpush1.msra.mxu0 %v2479
    %2660 = vmatprep.subr.mxu0 %v2484
    %2661 = vmatpush1.msra.mxu0 %v2483
    %2662 = vmatprep.subr.mxu0 %v2488
    %2663 = vmatpush1.msra.mxu0 %v2487
    %2664 = vmatprep.subr.mxu0 %v2492
    %2665 = vmatpush1.msra.mxu0 %v2491
    %2666 = vmatprep.subr.mxu0 %v2496
    %2667 = vmatpush1.msra.mxu0 %v2495
    %2668 = vmatprep.subr.mxu0 %v2500
    %2669 = vmatpush1.msra.mxu0 %v2499
    %2670 = vmatprep.subr.mxu0 %v2504
    %2671 = vmatpush1.msra.mxu0 %v2503
    %2672 = vmatprep.subr.mxu0 %v2508
    %2673 = vmatpush1.msra.mxu0 %v2507
    %2674 = vmatprep.mubr.f32.mxu0 %v2122
    %2675 = vmatmul.mubr.f32.gmra.mrb[0].mxu0 %v2121
    %v2676 = vpop.f32.mrb[0].mxu0
    %v2677 = vadd.f32 %v2600, %v2676
    %v2678 = vpop.f32.mrb[0].mxu0
    %v2679 = vadd.f32 %v2602, %v2678
    %2680 = vmatprep.mubr.f32.mxu0 %v2126
    %2681 = vmatmul.mubr.f32.gmra.mrb[0].mxu0 %v2125
    %v2682 = vpop.f32.mrb[0].mxu0
    %v2683 = vadd.f32 %v2606, %v2682
    %v2684 = vpop.f32.mrb[0].mxu0
    %v2685 = vadd.f32 %v2608, %v2684
    %2686 = vdwg.mxu0
    %2687 = vmatprep.subr.mxu0 %v2258
    %2688 = vmatpush1.msra.mxu0 %v2257
    %2689 = vmatprep.subr.mxu0 %v2262
    %2690 = vmatpush1.msra.mxu0 %v2261
    %2691 = vmatprep.subr.mxu0 %v2266
    %2692 = vmatpush1.msra.mxu0 %v2265
    %2693 = vmatprep.subr.mxu0 %v2270
    %2694 = vmatpush1.msra.mxu0 %v2269
    %2695 = vmatprep.subr.mxu0 %v2274
    %2696 = vmatpush1.msra.mxu0 %v2273
    %2697 = vmatprep.subr.mxu0 %v2278
    %2698 = vmatpush1.msra.mxu0 %v2277
    %2699 = vmatprep.subr.mxu0 %v2282
    %2700 = vmatpush1.msra.mxu0 %v2281
    %2701 = vmatprep.subr.mxu0 %v2286
    %2702 = vmatpush1.msra.mxu0 %v2285
    %2703 = vmatprep.subr.mxu0 %v2290
    %2704 = vmatpush1.msra.mxu0 %v2289
    %2705 = vmatprep.subr.mxu0 %v2294
    %2706 = vmatpush1.msra.mxu0 %v2293
    %2707 = vmatprep.subr.mxu0 %v2298
    %2708 = vmatpush1.msra.mxu0 %v2297
    %2709 = vmatprep.subr.mxu0 %v2302
    %2710 = vmatpush1.msra.mxu0 %v2301
    %2711 = vmatprep.subr.mxu0 %v2306
    %2712 = vmatpush1.msra.mxu0 %v2305
    %2713 = vmatprep.subr.mxu0 %v2310
    %2714 = vmatpush1.msra.mxu0 %v2309
    %2715 = vmatprep.subr.mxu0 %v2314
    %2716 = vmatpush1.msra.mxu0 %v2313
    %2717 = vmatprep.subr.mxu0 %v2318
    %2718 = vmatpush1.msra.mxu0 %v2317
    %2719 = vmatprep.subr.mxu0 %v2322
    %2720 = vmatpush1.msra.mxu0 %v2321
    %2721 = vmatprep.subr.mxu0 %v2326
    %2722 = vmatpush1.msra.mxu0 %v2325
    %2723 = vmatprep.subr.mxu0 %v2330
    %2724 = vmatpush1.msra.mxu0 %v2329
    %2725 = vmatprep.subr.mxu0 %v2334
    %2726 = vmatpush1.msra.mxu0 %v2333
    %2727 = vmatprep.subr.mxu0 %v2338
    %2728 = vmatpush1.msra.mxu0 %v2337
    %2729 = vmatprep.subr.mxu0 %v2342
    %2730 = vmatpush1.msra.mxu0 %v2341
    %2731 = vmatprep.subr.mxu0 %v2346
    %2732 = vmatpush1.msra.mxu0 %v2345
    %2733 = vmatprep.subr.mxu0 %v2350
    %2734 = vmatpush1.msra.mxu0 %v2349
    %2735 = vmatprep.subr.mxu0 %v2354
    %2736 = vmatpush1.msra.mxu0 %v2353
    %2737 = vmatprep.subr.mxu0 %v2358
    %2738 = vmatpush1.msra.mxu0 %v2357
    %2739 = vmatprep.subr.mxu0 %v2362
    %2740 = vmatpush1.msra.mxu0 %v2361
    %2741 = vmatprep.subr.mxu0 %v2366
    %2742 = vmatpush1.msra.mxu0 %v2365
    %2743 = vmatprep.subr.mxu0 %v2370
    %2744 = vmatpush1.msra.mxu0 %v2369
    %2745 = vmatprep.subr.mxu0 %v2374
    %2746 = vmatpush1.msra.mxu0 %v2373
    %2747 = vmatprep.subr.mxu0 %v2378
    %2748 = vmatpush1.msra.mxu0 %v2377
    %2749 = vmatprep.subr.mxu0 %v2382
    %2750 = vmatpush1.msra.mxu0 %v2381
    %2751 = vmatprep.mubr.f32.mxu0 %v2120
    %2752 = vmatmul.mubr.f32.gmra.mrb[0].mxu0 %v2119
    %v2753 = vpop.f32.mrb[0].mxu0
    %v2754 = vadd.f32 %v2524, %v2753
    %v2755 = vpop.f32.mrb[0].mxu0
    %v2756 = vadd.f32 %v2528, %v2755
    %2757 = vmatprep.mubr.f32.mxu0 %v2124
    %2758 = vmatmul.mubr.f32.gmra.mrb[0].mxu0 %v2123
    %v2759 = vpop.f32.mrb[0].mxu0
    %v2760 = vadd.f32 %v2524, %v2759
    %v2761 = vpop.f32.mrb[0].mxu0
    %v2762 = vadd.f32 %v2528, %v2761
    %2763 = vdwg.mxu0
    %2764 = vmatprep.subr.mxu0 %v2386
    %2765 = vmatpush1.msra.mxu0 %v2385
    %2766 = vmatprep.subr.mxu0 %v2390
    %2767 = vmatpush1.msra.mxu0 %v2389
    %2768 = vmatprep.subr.mxu0 %v2394
    %2769 = vmatpush1.msra.mxu0 %v2393
    %2770 = vmatprep.subr.mxu0 %v2398
    %2771 = vmatpush1.msra.mxu0 %v2397
    %2772 = vmatprep.subr.mxu0 %v2402
    %2773 = vmatpush1.msra.mxu0 %v2401
    %2774 = vmatprep.subr.mxu0 %v2406
    %2775 = vmatpush1.msra.mxu0 %v2405
    %2776 = vmatprep.subr.mxu0 %v2410
    %2777 = vmatpush1.msra.mxu0 %v2409
    %2778 = vmatprep.subr.mxu0 %v2414
    %2779 = vmatpush1.msra.mxu0 %v2413
    %2780 = vmatprep.subr.mxu0 %v2418
    %2781 = vmatpush1.msra.mxu0 %v2417
    %2782 = vmatprep.subr.mxu0 %v2422
    %2783 = vmatpush1.msra.mxu0 %v2421
    %2784 = vmatprep.subr.mxu0 %v2426
    %2785 = vmatpush1.msra.mxu0 %v2425
    %2786 = vmatprep.subr.mxu0 %v2430
    %2787 = vmatpush1.msra.mxu0 %v2429
    %2788 = vmatprep.subr.mxu0 %v2434
    %2789 = vmatpush1.msra.mxu0 %v2433
    %2790 = vmatprep.subr.mxu0 %v2438
    %2791 = vmatpush1.msra.mxu0 %v2437
    %2792 = vmatprep.subr.mxu0 %v2442
    %2793 = vmatpush1.msra.mxu0 %v2441
    %2794 = vmatprep.subr.mxu0 %v2446
    %2795 = vmatpush1.msra.mxu0 %v2445
    %2796 = vmatprep.subr.mxu0 %v2450
    %2797 = vmatpush1.msra.mxu0 %v2449
    %2798 = vmatprep.subr.mxu0 %v2454
    %2799 = vmatpush1.msra.mxu0 %v2453
    %2800 = vmatprep.subr.mxu0 %v2458
    %2801 = vmatpush1.msra.mxu0 %v2457
    %2802 = vmatprep.subr.mxu0 %v2462
    %2803 = vmatpush1.msra.mxu0 %v2461
    %2804 = vmatprep.subr.mxu0 %v2466
    %2805 = vmatpush1.msra.mxu0 %v2465
    %2806 = vmatprep.subr.mxu0 %v2470
    %2807 = vmatpush1.msra.mxu0 %v2469
    %2808 = vmatprep.subr.mxu0 %v2474
    %2809 = vmatpush1.msra.mxu0 %v2473
    %2810 = vmatprep.subr.mxu0 %v2478
    %2811 = vmatpush1.msra.mxu0 %v2477
    %2812 = vmatprep.subr.mxu0 %v2482
    %2813 = vmatpush1.msra.mxu0 %v2481
    %2814 = vmatprep.subr.mxu0 %v2486
    %2815 = vmatpush1.msra.mxu0 %v2485
    %2816 = vmatprep.subr.mxu0 %v2490
    %2817 = vmatpush1.msra.mxu0 %v2489
    %2818 = vmatprep.subr.mxu0 %v2494
    %2819 = vmatpush1.msra.mxu0 %v2493
    %2820 = vmatprep.subr.mxu0 %v2498
    %2821 = vmatpush1.msra.mxu0 %v2497
    %2822 = vmatprep.subr.mxu0 %v2502
    %2823 = vmatpush1.msra.mxu0 %v2501
    %2824 = vmatprep.subr.mxu0 %v2506
    %2825 = vmatpush1.msra.mxu0 %v2505
    %2826 = vmatprep.subr.mxu0 %v2510
    %2827 = vmatpush1.msra.mxu0 %v2509
    %2828 = vmatprep.mubr.f32.mxu0 %v2122
    %2829 = vmatmul.mubr.f32.gmra.mrb[0].mxu0 %v2121
    %v2830 = vpop.f32.mrb[0].mxu0
    %v2831 = vadd.f32 %v2754, %v2830
    %v2832 = vpop.f32.mrb[0].mxu0
    %v2833 = vadd.f32 %v2756, %v2832
    %2834 = vmatprep.mubr.f32.mxu0 %v2126
    %2835 = vmatmul.mubr.f32.gmra.mrb[0].mxu0 %v2125
    %v2836 = vpop.f32.mrb[0].mxu0
    %v2837 = vadd.f32 %v2760, %v2836
    %v2838 = vpop.f32.mrb[0].mxu0
    %v2839 = vadd.f32 %v2762, %v2838
    %2840 = vdwg.mxu0
    %v2841 = vld [vmem:[#allocation19] sm:$0xff]
    %v2842 = vld [vmem:[#allocation19 + $0x8] sm:$0xff]
    %v2843 = vld [vmem:[#allocation19 + $0x10] sm:$0xff]
    %v2844 = vld [vmem:[#allocation19 + $0x18] sm:$0xff]
    %v2845 = vld [vmem:[#allocation19 + $0x20] sm:$0xff]
    %v2846 = vld [vmem:[#allocation19 + $0x28] sm:$0xff]
    %v2847 = vld [vmem:[#allocation19 + $0x30] sm:$0xff]
    %v2848 = vld [vmem:[#allocation19 + $0x38] sm:$0xff]
    %v2849 = vld [vmem:[#allocation19 + $0x40] sm:$0xff]
    %v2850 = vld [vmem:[#allocation19 + $0x48] sm:$0xff]
    %v2851 = vld [vmem:[#allocation19 + $0x50] sm:$0xff]
    %v2852 = vld [vmem:[#allocation19 + $0x58] sm:$0xff]
    %v2853 = vld [vmem:[#allocation19 + $0x60] sm:$0xff]
    %v2854 = vld [vmem:[#allocation19 + $0x68] sm:$0xff]
    %v2855 = vld [vmem:[#allocation19 + $0x70] sm:$0xff]
    %v2856 = vld [vmem:[#allocation19 + $0x78] sm:$0xff]
    %v2857 = vld [vmem:[#allocation19 + $0x80] sm:$0xff]
    %v2858 = vld [vmem:[#allocation19 + $0x88] sm:$0xff]
    %v2859 = vld [vmem:[#allocation19 + $0x90] sm:$0xff]
    %v2860 = vld [vmem:[#allocation19 + $0x98] sm:$0xff]
    %v2861 = vld [vmem:[#allocation19 + $0xa0] sm:$0xff]
    %v2862 = vld [vmem:[#allocation19 + $0xa8] sm:$0xff]
    %v2863 = vld [vmem:[#allocation19 + $0xb0] sm:$0xff]
    %v2864 = vld [vmem:[#allocation19 + $0xb8] sm:$0xff]
    %v2865 = vld [vmem:[#allocation19 + $0xc0] sm:$0xff]
    %v2866 = vld [vmem:[#allocation19 + $0xc8] sm:$0xff]
    %v2867 = vld [vmem:[#allocation19 + $0xd0] sm:$0xff]
    %v2868 = vld [vmem:[#allocation19 + $0xd8] sm:$0xff]
    %v2869 = vld [vmem:[#allocation19 + $0xe0] sm:$0xff]
    %v2870 = vld [vmem:[#allocation19 + $0xe8] sm:$0xff]
    %v2871 = vld [vmem:[#allocation19 + $0xf0] sm:$0xff]
    %v2872 = vld [vmem:[#allocation19 + $0xf8] sm:$0xff]
    %v2873 = vld [vmem:[#allocation19 + $0x100] sm:$0xff]
    %v2874 = vld [vmem:[#allocation19 + $0x108] sm:$0xff]
    %v2875 = vld [vmem:[#allocation19 + $0x110] sm:$0xff]
    %v2876 = vld [vmem:[#allocation19 + $0x118] sm:$0xff]
    %v2877 = vld [vmem:[#allocation19 + $0x120] sm:$0xff]
    %v2878 = vld [vmem:[#allocation19 + $0x128] sm:$0xff]
    %v2879 = vld [vmem:[#allocation19 + $0x130] sm:$0xff]
    %v2880 = vld [vmem:[#allocation19 + $0x138] sm:$0xff]
    %v2881 = vld [vmem:[#allocation19 + $0x140] sm:$0xff]
    %v2882 = vld [vmem:[#allocation19 + $0x148] sm:$0xff]
    %v2883 = vld [vmem:[#allocation19 + $0x150] sm:$0xff]
    %v2884 = vld [vmem:[#allocation19 + $0x158] sm:$0xff]
    %v2885 = vld [vmem:[#allocation19 + $0x160] sm:$0xff]
    %v2886 = vld [vmem:[#allocation19 + $0x168] sm:$0xff]
    %v2887 = vld [vmem:[#allocation19 + $0x170] sm:$0xff]
    %v2888 = vld [vmem:[#allocation19 + $0x178] sm:$0xff]
    %v2889 = vld [vmem:[#allocation19 + $0x180] sm:$0xff]
    %v2890 = vld [vmem:[#allocation19 + $0x188] sm:$0xff]
    %v2891 = vld [vmem:[#allocation19 + $0x190] sm:$0xff]
    %v2892 = vld [vmem:[#allocation19 + $0x198] sm:$0xff]
    %v2893 = vld [vmem:[#allocation19 + $0x1a0] sm:$0xff]
    %v2894 = vld [vmem:[#allocation19 + $0x1a8] sm:$0xff]
    %v2895 = vld [vmem:[#allocation19 + $0x1b0] sm:$0xff]
    %v2896 = vld [vmem:[#allocation19 + $0x1b8] sm:$0xff]
    %v2897 = vld [vmem:[#allocation19 + $0x1c0] sm:$0xff]
    %v2898 = vld [vmem:[#allocation19 + $0x1c8] sm:$0xff]
    %v2899 = vld [vmem:[#allocation19 + $0x1d0] sm:$0xff]
    %v2900 = vld [vmem:[#allocation19 + $0x1d8] sm:$0xff]
    %v2901 = vld [vmem:[#allocation19 + $0x1e0] sm:$0xff]
    %v2902 = vld [vmem:[#allocation19 + $0x1e8] sm:$0xff]
    %v2903 = vld [vmem:[#allocation19 + $0x1f0] sm:$0xff]
    %v2904 = vld [vmem:[#allocation19 + $0x1f8] sm:$0xff]
    %v2905 = vld [vmem:[#allocation19 + $0x200] sm:$0xff]
    %v2906 = vld [vmem:[#allocation19 + $0x208] sm:$0xff]
    %v2907 = vld [vmem:[#allocation19 + $0x210] sm:$0xff]
    %v2908 = vld [vmem:[#allocation19 + $0x218] sm:$0xff]
    %v2909 = vld [vmem:[#allocation19 + $0x220] sm:$0xff]
    %v2910 = vld [vmem:[#allocation19 + $0x228] sm:$0xff]
    %v2911 = vld [vmem:[#allocation19 + $0x230] sm:$0xff]
    %v2912 = vld [vmem:[#allocation19 + $0x238] sm:$0xff]
    %v2913 = vld [vmem:[#allocation19 + $0x240] sm:$0xff]
    %v2914 = vld [vmem:[#allocation19 + $0x248] sm:$0xff]
    %v2915 = vld [vmem:[#allocation19 + $0x250] sm:$0xff]
    %v2916 = vld [vmem:[#allocation19 + $0x258] sm:$0xff]
    %v2917 = vld [vmem:[#allocation19 + $0x260] sm:$0xff]
    %v2918 = vld [vmem:[#allocation19 + $0x268] sm:$0xff]
    %v2919 = vld [vmem:[#allocation19 + $0x270] sm:$0xff]
    %v2920 = vld [vmem:[#allocation19 + $0x278] sm:$0xff]
    %v2921 = vld [vmem:[#allocation19 + $0x280] sm:$0xff]
    %v2922 = vld [vmem:[#allocation19 + $0x288] sm:$0xff]
    %v2923 = vld [vmem:[#allocation19 + $0x290] sm:$0xff]
    %v2924 = vld [vmem:[#allocation19 + $0x298] sm:$0xff]
    %v2925 = vld [vmem:[#allocation19 + $0x2a0] sm:$0xff]
    %v2926 = vld [vmem:[#allocation19 + $0x2a8] sm:$0xff]
    %v2927 = vld [vmem:[#allocation19 + $0x2b0] sm:$0xff]
    %v2928 = vld [vmem:[#allocation19 + $0x2b8] sm:$0xff]
    %v2929 = vld [vmem:[#allocation19 + $0x2c0] sm:$0xff]
    %v2930 = vld [vmem:[#allocation19 + $0x2c8] sm:$0xff]
    %v2931 = vld [vmem:[#allocation19 + $0x2d0] sm:$0xff]
    %v2932 = vld [vmem:[#allocation19 + $0x2d8] sm:$0xff]
    %v2933 = vld [vmem:[#allocation19 + $0x2e0] sm:$0xff]
    %v2934 = vld [vmem:[#allocation19 + $0x2e8] sm:$0xff]
    %v2935 = vld [vmem:[#allocation19 + $0x2f0] sm:$0xff]
    %v2936 = vld [vmem:[#allocation19 + $0x2f8] sm:$0xff]
    %v2937 = vld [vmem:[#allocation19 + $0x300] sm:$0xff]
    %v2938 = vld [vmem:[#allocation19 + $0x308] sm:$0xff]
    %v2939 = vld [vmem:[#allocation19 + $0x310] sm:$0xff]
    %v2940 = vld [vmem:[#allocation19 + $0x318] sm:$0xff]
    %v2941 = vld [vmem:[#allocation19 + $0x320] sm:$0xff]
    %v2942 = vld [vmem:[#allocation19 + $0x328] sm:$0xff]
    %v2943 = vld [vmem:[#allocation19 + $0x330] sm:$0xff]
    %v2944 = vld [vmem:[#allocation19 + $0x338] sm:$0xff]
    %v2945 = vld [vmem:[#allocation19 + $0x340] sm:$0xff]
    %v2946 = vld [vmem:[#allocation19 + $0x348] sm:$0xff]
    %v2947 = vld [vmem:[#allocation19 + $0x350] sm:$0xff]
    %v2948 = vld [vmem:[#allocation19 + $0x358] sm:$0xff]
    %v2949 = vld [vmem:[#allocation19 + $0x360] sm:$0xff]
    %v2950 = vld [vmem:[#allocation19 + $0x368] sm:$0xff]
    %v2951 = vld [vmem:[#allocation19 + $0x370] sm:$0xff]
    %v2952 = vld [vmem:[#allocation19 + $0x378] sm:$0xff]
    %v2953 = vld [vmem:[#allocation19 + $0x380] sm:$0xff]
    %v2954 = vld [vmem:[#allocation19 + $0x388] sm:$0xff]
    %v2955 = vld [vmem:[#allocation19 + $0x390] sm:$0xff]
    %v2956 = vld [vmem:[#allocation19 + $0x398] sm:$0xff]
    %v2957 = vld [vmem:[#allocation19 + $0x3a0] sm:$0xff]
    %v2958 = vld [vmem:[#allocation19 + $0x3a8] sm:$0xff]
    %v2959 = vld [vmem:[#allocation19 + $0x3b0] sm:$0xff]
    %v2960 = vld [vmem:[#allocation19 + $0x3b8] sm:$0xff]
    %v2961 = vld [vmem:[#allocation19 + $0x3c0] sm:$0xff]
    %v2962 = vld [vmem:[#allocation19 + $0x3c8] sm:$0xff]
    %v2963 = vld [vmem:[#allocation19 + $0x3d0] sm:$0xff]
    %v2964 = vld [vmem:[#allocation19 + $0x3d8] sm:$0xff]
    %v2965 = vld [vmem:[#allocation19 + $0x3e0] sm:$0xff]
    %v2966 = vld [vmem:[#allocation19 + $0x3e8] sm:$0xff]
    %v2967 = vld [vmem:[#allocation19 + $0x3f0] sm:$0xff]
    %v2968 = vld [vmem:[#allocation19 + $0x3f8] sm:$0xff]
    %v2969 = vunpack.c.l.bf16 %v2841
    %v2970 = vunpack.c.h.bf16 %v2841
    %v2971 = vunpack.c.l.bf16 %v2842
    %v2972 = vunpack.c.h.bf16 %v2842
    %v2973 = vunpack.c.l.bf16 %v2843
    %v2974 = vunpack.c.h.bf16 %v2843
    %v2975 = vunpack.c.l.bf16 %v2844
    %v2976 = vunpack.c.h.bf16 %v2844
    %v2977 = vunpack.c.l.bf16 %v2845
    %v2978 = vunpack.c.h.bf16 %v2845
    %v2979 = vunpack.c.l.bf16 %v2846
    %v2980 = vunpack.c.h.bf16 %v2846
    %v2981 = vunpack.c.l.bf16 %v2847
    %v2982 = vunpack.c.h.bf16 %v2847
    %v2983 = vunpack.c.l.bf16 %v2848
    %v2984 = vunpack.c.h.bf16 %v2848
    %v2985 = vunpack.c.l.bf16 %v2849
    %v2986 = vunpack.c.h.bf16 %v2849
    %v2987 = vunpack.c.l.bf16 %v2850
    %v2988 = vunpack.c.h.bf16 %v2850
    %v2989 = vunpack.c.l.bf16 %v2851
    %v2990 = vunpack.c.h.bf16 %v2851
    %v2991 = vunpack.c.l.bf16 %v2852
    %v2992 = vunpack.c.h.bf16 %v2852
    %v2993 = vunpack.c.l.bf16 %v2853
    %v2994 = vunpack.c.h.bf16 %v2853
    %v2995 = vunpack.c.l.bf16 %v2854
    %v2996 = vunpack.c.h.bf16 %v2854
    %v2997 = vunpack.c.l.bf16 %v2855
    %v2998 = vunpack.c.h.bf16 %v2855
    %v2999 = vunpack.c.l.bf16 %v2856
    %v3000 = vunpack.c.h.bf16 %v2856
    %v3001 = vunpack.c.l.bf16 %v2857
    %v3002 = vunpack.c.h.bf16 %v2857
    %v3003 = vunpack.c.l.bf16 %v2858
    %v3004 = vunpack.c.h.bf16 %v2858
    %v3005 = vunpack.c.l.bf16 %v2859
    %v3006 = vunpack.c.h.bf16 %v2859
    %v3007 = vunpack.c.l.bf16 %v2860
    %v3008 = vunpack.c.h.bf16 %v2860
    %v3009 = vunpack.c.l.bf16 %v2861
    %v3010 = vunpack.c.h.bf16 %v2861
    %v3011 = vunpack.c.l.bf16 %v2862
    %v3012 = vunpack.c.h.bf16 %v2862
    %v3013 = vunpack.c.l.bf16 %v2863
    %v3014 = vunpack.c.h.bf16 %v2863
    %v3015 = vunpack.c.l.bf16 %v2864
    %v3016 = vunpack.c.h.bf16 %v2864
    %v3017 = vunpack.c.l.bf16 %v2865
    %v3018 = vunpack.c.h.bf16 %v2865
    %v3019 = vunpack.c.l.bf16 %v2866
    %v3020 = vunpack.c.h.bf16 %v2866
    %v3021 = vunpack.c.l.bf16 %v2867
    %v3022 = vunpack.c.h.bf16 %v2867
    %v3023 = vunpack.c.l.bf16 %v2868
    %v3024 = vunpack.c.h.bf16 %v2868
    %v3025 = vunpack.c.l.bf16 %v2869
    %v3026 = vunpack.c.h.bf16 %v2869
    %v3027 = vunpack.c.l.bf16 %v2870
    %v3028 = vunpack.c.h.bf16 %v2870
    %v3029 = vunpack.c.l.bf16 %v2871
    %v3030 = vunpack.c.h.bf16 %v2871
    %v3031 = vunpack.c.l.bf16 %v2872
    %v3032 = vunpack.c.h.bf16 %v2872
    %v3033 = vunpack.c.l.bf16 %v2873
    %v3034 = vunpack.c.h.bf16 %v2873
    %v3035 = vunpack.c.l.bf16 %v2874
    %v3036 = vunpack.c.h.bf16 %v2874
    %v3037 = vunpack.c.l.bf16 %v2875
    %v3038 = vunpack.c.h.bf16 %v2875
    %v3039 = vunpack.c.l.bf16 %v2876
    %v3040 = vunpack.c.h.bf16 %v2876
    %v3041 = vunpack.c.l.bf16 %v2877
    %v3042 = vunpack.c.h.bf16 %v2877
    %v3043 = vunpack.c.l.bf16 %v2878
    %v3044 = vunpack.c.h.bf16 %v2878
    %v3045 = vunpack.c.l.bf16 %v2879
    %v3046 = vunpack.c.h.bf16 %v2879
    %v3047 = vunpack.c.l.bf16 %v2880
    %v3048 = vunpack.c.h.bf16 %v2880
    %v3049 = vunpack.c.l.bf16 %v2881
    %v3050 = vunpack.c.h.bf16 %v2881
    %v3051 = vunpack.c.l.bf16 %v2882
    %v3052 = vunpack.c.h.bf16 %v2882
    %v3053 = vunpack.c.l.bf16 %v2883
    %v3054 = vunpack.c.h.bf16 %v2883
    %v3055 = vunpack.c.l.bf16 %v2884
    %v3056 = vunpack.c.h.bf16 %v2884
    %v3057 = vunpack.c.l.bf16 %v2885
    %v3058 = vunpack.c.h.bf16 %v2885
    %v3059 = vunpack.c.l.bf16 %v2886
    %v3060 = vunpack.c.h.bf16 %v2886
    %v3061 = vunpack.c.l.bf16 %v2887
    %v3062 = vunpack.c.h.bf16 %v2887
    %v3063 = vunpack.c.l.bf16 %v2888
    %v3064 = vunpack.c.h.bf16 %v2888
    %v3065 = vunpack.c.l.bf16 %v2889
    %v3066 = vunpack.c.h.bf16 %v2889
    %v3067 = vunpack.c.l.bf16 %v2890
    %v3068 = vunpack.c.h.bf16 %v2890
    %v3069 = vunpack.c.l.bf16 %v2891
    %v3070 = vunpack.c.h.bf16 %v2891
    %v3071 = vunpack.c.l.bf16 %v2892
    %v3072 = vunpack.c.h.bf16 %v2892
    %v3073 = vunpack.c.l.bf16 %v2893
    %v3074 = vunpack.c.h.bf16 %v2893
    %v3075 = vunpack.c.l.bf16 %v2894
    %v3076 = vunpack.c.h.bf16 %v2894
    %v3077 = vunpack.c.l.bf16 %v2895
    %v3078 = vunpack.c.h.bf16 %v2895
    %v3079 = vunpack.c.l.bf16 %v2896
    %v3080 = vunpack.c.h.bf16 %v2896
    %v3081 = vunpack.c.l.bf16 %v2897
    %v3082 = vunpack.c.h.bf16 %v2897
    %v3083 = vunpack.c.l.bf16 %v2898
    %v3084 = vunpack.c.h.bf16 %v2898
    %v3085 = vunpack.c.l.bf16 %v2899
    %v3086 = vunpack.c.h.bf16 %v2899
    %v3087 = vunpack.c.l.bf16 %v2900
    %v3088 = vunpack.c.h.bf16 %v2900
    %v3089 = vunpack.c.l.bf16 %v2901
    %v3090 = vunpack.c.h.bf16 %v2901
    %v3091 = vunpack.c.l.bf16 %v2902
    %v3092 = vunpack.c.h.bf16 %v2902
    %v3093 = vunpack.c.l.bf16 %v2903
    %v3094 = vunpack.c.h.bf16 %v2903
    %v3095 = vunpack.c.l.bf16 %v2904
    %v3096 = vunpack.c.h.bf16 %v2904
    %v3097 = vunpack.c.l.bf16 %v2905
    %v3098 = vunpack.c.h.bf16 %v2905
    %v3099 = vunpack.c.l.bf16 %v2906
    %v3100 = vunpack.c.h.bf16 %v2906
    %v3101 = vunpack.c.l.bf16 %v2907
    %v3102 = vunpack.c.h.bf16 %v2907
    %v3103 = vunpack.c.l.bf16 %v2908
    %v3104 = vunpack.c.h.bf16 %v2908
    %v3105 = vunpack.c.l.bf16 %v2909
    %v3106 = vunpack.c.h.bf16 %v2909
    %v3107 = vunpack.c.l.bf16 %v2910
    %v3108 = vunpack.c.h.bf16 %v2910
    %v3109 = vunpack.c.l.bf16 %v2911
    %v3110 = vunpack.c.h.bf16 %v2911
    %v3111 = vunpack.c.l.bf16 %v2912
    %v3112 = vunpack.c.h.bf16 %v2912
    %v3113 = vunpack.c.l.bf16 %v2913
    %v3114 = vunpack.c.h.bf16 %v2913
    %v3115 = vunpack.c.l.bf16 %v2914
    %v3116 = vunpack.c.h.bf16 %v2914
    %v3117 = vunpack.c.l.bf16 %v2915
    %v3118 = vunpack.c.h.bf16 %v2915
    %v3119 = vunpack.c.l.bf16 %v2916
    %v3120 = vunpack.c.h.bf16 %v2916
    %v3121 = vunpack.c.l.bf16 %v2917
    %v3122 = vunpack.c.h.bf16 %v2917
    %v3123 = vunpack.c.l.bf16 %v2918
    %v3124 = vunpack.c.h.bf16 %v2918
    %v3125 = vunpack.c.l.bf16 %v2919
    %v3126 = vunpack.c.h.bf16 %v2919
    %v3127 = vunpack.c.l.bf16 %v2920
    %v3128 = vunpack.c.h.bf16 %v2920
    %v3129 = vunpack.c.l.bf16 %v2921
    %v3130 = vunpack.c.h.bf16 %v2921
    %v3131 = vunpack.c.l.bf16 %v2922
    %v3132 = vunpack.c.h.bf16 %v2922
    %v3133 = vunpack.c.l.bf16 %v2923
    %v3134 = vunpack.c.h.bf16 %v2923
    %v3135 = vunpack.c.l.bf16 %v2924
    %v3136 = vunpack.c.h.bf16 %v2924
    %v3137 = vunpack.c.l.bf16 %v2925
    %v3138 = vunpack.c.h.bf16 %v2925
    %v3139 = vunpack.c.l.bf16 %v2926
    %v3140 = vunpack.c.h.bf16 %v2926
    %v3141 = vunpack.c.l.bf16 %v2927
    %v3142 = vunpack.c.h.bf16 %v2927
    %v3143 = vunpack.c.l.bf16 %v2928
    %v3144 = vunpack.c.h.bf16 %v2928
    %v3145 = vunpack.c.l.bf16 %v2929
    %v3146 = vunpack.c.h.bf16 %v2929
    %v3147 = vunpack.c.l.bf16 %v2930
    %v3148 = vunpack.c.h.bf16 %v2930
    %v3149 = vunpack.c.l.bf16 %v2931
    %v3150 = vunpack.c.h.bf16 %v2931
    %v3151 = vunpack.c.l.bf16 %v2932
    %v3152 = vunpack.c.h.bf16 %v2932
    %v3153 = vunpack.c.l.bf16 %v2933
    %v3154 = vunpack.c.h.bf16 %v2933
    %v3155 = vunpack.c.l.bf16 %v2934
    %v3156 = vunpack.c.h.bf16 %v2934
    %v3157 = vunpack.c.l.bf16 %v2935
    %v3158 = vunpack.c.h.bf16 %v2935
    %v3159 = vunpack.c.l.bf16 %v2936
    %v3160 = vunpack.c.h.bf16 %v2936
    %v3161 = vunpack.c.l.bf16 %v2937
    %v3162 = vunpack.c.h.bf16 %v2937
    %v3163 = vunpack.c.l.bf16 %v2938
    %v3164 = vunpack.c.h.bf16 %v2938
    %v3165 = vunpack.c.l.bf16 %v2939
    %v3166 = vunpack.c.h.bf16 %v2939
    %v3167 = vunpack.c.l.bf16 %v2940
    %v3168 = vunpack.c.h.bf16 %v2940
    %v3169 = vunpack.c.l.bf16 %v2941
    %v3170 = vunpack.c.h.bf16 %v2941
    %v3171 = vunpack.c.l.bf16 %v2942
    %v3172 = vunpack.c.h.bf16 %v2942
    %v3173 = vunpack.c.l.bf16 %v2943
    %v3174 = vunpack.c.h.bf16 %v2943
    %v3175 = vunpack.c.l.bf16 %v2944
    %v3176 = vunpack.c.h.bf16 %v2944
    %v3177 = vunpack.c.l.bf16 %v2945
    %v3178 = vunpack.c.h.bf16 %v2945
    %v3179 = vunpack.c.l.bf16 %v2946
    %v3180 = vunpack.c.h.bf16 %v2946
    %v3181 = vunpack.c.l.bf16 %v2947
    %v3182 = vunpack.c.h.bf16 %v2947
    %v3183 = vunpack.c.l.bf16 %v2948
    %v3184 = vunpack.c.h.bf16 %v2948
    %v3185 = vunpack.c.l.bf16 %v2949
    %v3186 = vunpack.c.h.bf16 %v2949
    %v3187 = vunpack.c.l.bf16 %v2950
    %v3188 = vunpack.c.h.bf16 %v2950
    %v3189 = vunpack.c.l.bf16 %v2951
    %v3190 = vunpack.c.h.bf16 %v2951
    %v3191 = vunpack.c.l.bf16 %v2952
    %v3192 = vunpack.c.h.bf16 %v2952
    %v3193 = vunpack.c.l.bf16 %v2953
    %v3194 = vunpack.c.h.bf16 %v2953
    %v3195 = vunpack.c.l.bf16 %v2954
    %v3196 = vunpack.c.h.bf16 %v2954
    %v3197 = vunpack.c.l.bf16 %v2955
    %v3198 = vunpack.c.h.bf16 %v2955
    %v3199 = vunpack.c.l.bf16 %v2956
    %v3200 = vunpack.c.h.bf16 %v2956
    %v3201 = vunpack.c.l.bf16 %v2957
    %v3202 = vunpack.c.h.bf16 %v2957
    %v3203 = vunpack.c.l.bf16 %v2958
    %v3204 = vunpack.c.h.bf16 %v2958
    %v3205 = vunpack.c.l.bf16 %v2959
    %v3206 = vunpack.c.h.bf16 %v2959
    %v3207 = vunpack.c.l.bf16 %v2960
    %v3208 = vunpack.c.h.bf16 %v2960
    %v3209 = vunpack.c.l.bf16 %v2961
    %v3210 = vunpack.c.h.bf16 %v2961
    %v3211 = vunpack.c.l.bf16 %v2962
    %v3212 = vunpack.c.h.bf16 %v2962
    %v3213 = vunpack.c.l.bf16 %v2963
    %v3214 = vunpack.c.h.bf16 %v2963
    %v3215 = vunpack.c.l.bf16 %v2964
    %v3216 = vunpack.c.h.bf16 %v2964
    %v3217 = vunpack.c.l.bf16 %v2965
    %v3218 = vunpack.c.h.bf16 %v2965
    %v3219 = vunpack.c.l.bf16 %v2966
    %v3220 = vunpack.c.h.bf16 %v2966
    %v3221 = vunpack.c.l.bf16 %v2967
    %v3222 = vunpack.c.h.bf16 %v2967
    %v3223 = vunpack.c.l.bf16 %v2968
    %v3224 = vunpack.c.h.bf16 %v2968
    %v3225 = vld [vmem:[#allocation10] sm:$0xff]
    %v3226 = vld [vmem:[#allocation10 + $0x8] sm:$0xff]
    %3227 = vmatprep.subr.mxu0 %v3226
    %3228 = vmatpush1.xpose.msra.mxu0 %v3225
    %3229 = vmatprep.subr.mxu0 0.0
    %3230 = vmatpush1.xpose.msra.mxu0 0.0
    %3231 = vmatprep.subr.mxu0 0.0
    %3232 = vmatpush1.xpose.msra.mxu0 0.0
    %3233 = vmatprep.subr.mxu0 0.0
    %3234 = vmatpush1.xpose.msra.mxu0 0.0
    %3235 = vmatprep.subr.mxu0 0.0
    %3236 = vmatpush1.xpose.msra.mxu0 0.0
    %3237 = vmatprep.subr.mxu0 0.0
    %3238 = vmatpush1.xpose.msra.mxu0 0.0
    %3239 = vmatprep.subr.mxu0 0.0
    %3240 = vmatpush1.xpose.msra.mxu0 0.0
    %3241 = vmatprep.subr.mxu0 0.0
    %3242 = vmatpush1.xpose.msra.mxu0 0.0
    %3243 = vmatprep.subr.mxu0 0.0
    %3244 = vmatpush1.xpose.msra.mxu0 0.0
    %3245 = vmatprep.subr.mxu0 0.0
    %3246 = vmatpush1.xpose.msra.mxu0 0.0
    %3247 = vmatprep.subr.mxu0 0.0
    %3248 = vmatpush1.xpose.msra.mxu0 0.0
    %3249 = vmatprep.subr.mxu0 0.0
    %3250 = vmatpush1.xpose.msra.mxu0 0.0
    %3251 = vmatprep.subr.mxu0 0.0
    %3252 = vmatpush1.xpose.msra.mxu0 0.0
    %3253 = vmatprep.subr.mxu0 0.0
    %3254 = vmatpush1.xpose.msra.mxu0 0.0
    %3255 = vmatprep.subr.mxu0 0.0
    %3256 = vmatpush1.xpose.msra.mxu0 0.0
    %3257 = vmatprep.subr.mxu0 0.0
    %3258 = vmatpush1.xpose.msra.mxu0 0.0
    %3259 = vmatprep.subr.mxu0 0.0
    %3260 = vmatpush1.xpose.msra.mxu0 0.0
    %3261 = vmatprep.subr.mxu0 0.0
    %3262 = vmatpush1.xpose.msra.mxu0 0.0
    %3263 = vmatprep.subr.mxu0 0.0
    %3264 = vmatpush1.xpose.msra.mxu0 0.0
    %3265 = vmatprep.subr.mxu0 0.0
    %3266 = vmatpush1.xpose.msra.mxu0 0.0
    %3267 = vmatprep.subr.mxu0 0.0
    %3268 = vmatpush1.xpose.msra.mxu0 0.0
    %3269 = vmatprep.subr.mxu0 0.0
    %3270 = vmatpush1.xpose.msra.mxu0 0.0
    %3271 = vmatprep.subr.mxu0 0.0
    %3272 = vmatpush1.xpose.msra.mxu0 0.0
    %3273 = vmatprep.subr.mxu0 0.0
    %3274 = vmatpush1.xpose.msra.mxu0 0.0
    %3275 = vmatprep.subr.mxu0 0.0
    %3276 = vmatpush1.xpose.msra.mxu0 0.0
    %3277 = vmatprep.subr.mxu0 0.0
    %3278 = vmatpush1.xpose.msra.mxu0 0.0
    %3279 = vmatprep.subr.mxu0 0.0
    %3280 = vmatpush1.xpose.msra.mxu0 0.0
    %3281 = vmatprep.subr.mxu0 0.0
    %3282 = vmatpush1.xpose.msra.mxu0 0.0
    %3283 = vmatprep.subr.mxu0 0.0
    %3284 = vmatpush1.xpose.msra.mxu0 0.0
    %3285 = vmatprep.subr.mxu0 0.0
    %3286 = vmatpush1.xpose.msra.mxu0 0.0
    %3287 = vmatprep.subr.mxu0 0.0
    %3288 = vmatpush1.xpose.msra.mxu0 0.0
    %3289 = vmatprep.subr.mxu0 0.0
    %3290 = vmatpush1.xpose.msra.mxu0 0.0
    %3291 = vmatprep.mubr.f32.mxu0 %v2679
    %3292 = vmatmul.mubr.f32.gmra.mrb[0].mxu0 %v2677
    %v3293 = vpop.f32.mrb[0].mxu0
    %v3294 = vadd.f32 0.0, %v3293
    %v3295 = vpop.f32.mrb[0].mxu0
    %3296 = vdwg.mxu0
    %v3297 = vmul.f32 %v3294, 0.0625
    %v3298 = vsel %vm822, %v3297, -inf
    %3299 = vmax.xlane.f32.xlu0 %v3298
    %v3300 = vpop.xlane.xlu0 %3299
    %v3301 = vsub.f32 %v3297, %v3300
    %v3302 = vmul.f32 %v3301, 1.442695
    %v3303 = vpow.pop %v3302
    %v3304 = vsel %vm822, %v3303, 0.0
    %3305 = vadd.xlane.f32.xlu0 %v3304
    %v3306 = vpop.xlane.xlu0 %3305
    %v3307 = vrcp.pop %v3306
    %v3308 = vmul.f32 %v3303, %v3307
    %v3309 = vld [vmem:[#allocation11] sm:$0xff]
    %v3310 = vld [vmem:[#allocation11 + $0x8] sm:$0xff]
    %v3312 = vsel %vm822, %v3308, 0
    %3314 = vmatprep.subr.mxu0 %v3310
    %3315 = vmatpush1.msra.mxu0 %v3309
    %3316 = vmatprep.subr.mxu0 0.0
    %3317 = vmatpush1.msra.mxu0 0.0
    %3318 = vmatprep.subr.mxu0 0.0
    %3319 = vmatpush1.msra.mxu0 0.0
    %3320 = vmatprep.subr.mxu0 0.0
    %3321 = vmatpush1.msra.mxu0 0.0
    %3322 = vmatprep.subr.mxu0 0.0
    %3323 = vmatpush1.msra.mxu0 0.0
    %3324 = vmatprep.subr.mxu0 0.0
    %3325 = vmatpush1.msra.mxu0 0.0
    %3326 = vmatprep.subr.mxu0 0.0
    %3327 = vmatpush1.msra.mxu0 0.0
    %3328 = vmatprep.subr.mxu0 0.0
    %3329 = vmatpush1.msra.mxu0 0.0
    %3330 = vmatprep.subr.mxu0 0.0
    %3331 = vmatpush1.msra.mxu0 0.0
    %3332 = vmatprep.subr.mxu0 0.0
    %3333 = vmatpush1.msra.mxu0 0.0
    %3334 = vmatprep.subr.mxu0 0.0
    %3335 = vmatpush1.msra.mxu0 0.0
    %3336 = vmatprep.subr.mxu0 0.0
    %3337 = vmatpush1.msra.mxu0 0.0
    %3338 = vmatprep.subr.mxu0 0.0
    %3339 = vmatpush1.msra.mxu0 0.0
    %3340 = vmatprep.subr.mxu0 0.0
    %3341 = vmatpush1.msra.mxu0 0.0
    %3342 = vmatprep.subr.mxu0 0.0
    %3343 = vmatpush1.msra.mxu0 0.0
    %3344 = vmatprep.subr.mxu0 0.0
    %3345 = vmatpush1.msra.mxu0 0.0
    %3346 = vmatprep.subr.mxu0 0.0
    %3347 = vmatpush1.msra.mxu0 0.0
    %3348 = vmatprep.subr.mxu0 0.0
    %3349 = vmatpush1.msra.mxu0 0.0
    %3350 = vmatprep.subr.mxu0 0.0
    %3351 = vmatpush1.msra.mxu0 0.0
    %3352 = vmatprep.subr.mxu0 0.0
    %3353 = vmatpush1.msra.mxu0 0.0
    %3354 = vmatprep.subr.mxu0 0.0
    %3355 = vmatpush1.msra.mxu0 0.0
    %3356 = vmatprep.subr.mxu0 0.0
    %3357 = vmatpush1.msra.mxu0 0.0
    %3358 = vmatprep.subr.mxu0 0.0
    %3359 = vmatpush1.msra.mxu0 0.0
    %3360 = vmatprep.subr.mxu0 0.0
    %3361 = vmatpush1.msra.mxu0 0.0
    %3362 = vmatprep.subr.mxu0 0.0
    %3363 = vmatpush1.msra.mxu0 0.0
    %3364 = vmatprep.subr.mxu0 0.0
    %3365 = vmatpush1.msra.mxu0 0.0
    %3366 = vmatprep.subr.mxu0 0.0
    %3367 = vmatpush1.msra.mxu0 0.0
    %3368 = vmatprep.subr.mxu0 0.0
    %3369 = vmatpush1.msra.mxu0 0.0
    %3370 = vmatprep.subr.mxu0 0.0
    %3371 = vmatpush1.msra.mxu0 0.0
    %3372 = vmatprep.subr.mxu0 0.0
    %3373 = vmatpush1.msra.mxu0 0.0
    %3374 = vmatprep.subr.mxu0 0.0
    %3375 = vmatpush1.msra.mxu0 0.0
    %3376 = vmatprep.subr.mxu0 0.0
    %3377 = vmatpush1.msra.mxu0 0.0
    %3378 = vmatprep.mubr.f32.mxu0 0.0
    %3379 = vmatmul.mubr.f32.gmra.mrb[0].mxu0 %v3312
    %v3380 = vpop.f32.mrb[0].mxu0
    %v3381 = vadd.f32 0.0, %v3380
    %v3382 = vpop.f32.mrb[0].mxu0
    %v3383 = vadd.f32 0.0, %v3382
    %3384 = vdwg.mxu0
    %s3385 = scalar_lea.vmem [#allocation10], 16
    %v3386 = vld [vmem:[%s3385] sm:$0xff]
    %v3387 = vld [vmem:[%s3385 + $0x8] sm:$0xff]
    %3388 = vmatprep.subr.mxu0 %v3387
    %3389 = vmatpush1.xpose.msra.mxu0 %v3386
    %3390 = vmatprep.subr.mxu0 0.0
    %3391 = vmatpush1.xpose.msra.mxu0 0.0
    %3392 = vmatprep.subr.mxu0 0.0
    %3393 = vmatpush1.xpose.msra.mxu0 0.0
    %3394 = vmatprep.subr.mxu0 0.0
    %3395 = vmatpush1.xpose.msra.mxu0 0.0
    %3396 = vmatprep.subr.mxu0 0.0
    %3397 = vmatpush1.xpose.msra.mxu0 0.0
    %3398 = vmatprep.subr.mxu0 0.0
    %3399 = vmatpush1.xpose.msra.mxu0 0.0
    %3400 = vmatprep.subr.mxu0 0.0
    %3401 = vmatpush1.xpose.msra.mxu0 0.0
    %3402 = vmatprep.subr.mxu0 0.0
    %3403 = vmatpush1.xpose.msra.mxu0 0.0
    %3404 = vmatprep.subr.mxu0 0.0
    %3405 = vmatpush1.xpose.msra.mxu0 0.0
    %3406 = vmatprep.subr.mxu0 0.0
    %3407 = vmatpush1.xpose.msra.mxu0 0.0
    %3408 = vmatprep.subr.mxu0 0.0
    %3409 = vmatpush1.xpose.msra.mxu0 0.0
    %3410 = vmatprep.subr.mxu0 0.0
    %3411 = vmatpush1.xpose.msra.mxu0 0.0
    %3412 = vmatprep.subr.mxu0 0.0
    %3413 = vmatpush1.xpose.msra.mxu0 0.0
    %3414 = vmatprep.subr.mxu0 0.0
    %3415 = vmatpush1.xpose.msra.mxu0 0.0
    %3416 = vmatprep.subr.mxu0 0.0
    %3417 = vmatpush1.xpose.msra.mxu0 0.0
    %3418 = vmatprep.subr.mxu0 0.0
    %3419 = vmatpush1.xpose.msra.mxu0 0.0
    %3420 = vmatprep.subr.mxu0 0.0
    %3421 = vmatpush1.xpose.msra.mxu0 0.0
    %3422 = vmatprep.subr.mxu0 0.0
    %3423 = vmatpush1.xpose.msra.mxu0 0.0
    %3424 = vmatprep.subr.mxu0 0.0
    %3425 = vmatpush1.xpose.msra.mxu0 0.0
    %3426 = vmatprep.subr.mxu0 0.0
    %3427 = vmatpush1.xpose.msra.mxu0 0.0
    %3428 = vmatprep.subr.mxu0 0.0
    %3429 = vmatpush1.xpose.msra.mxu0 0.0
    %3430 = vmatprep.subr.mxu0 0.0
    %3431 = vmatpush1.xpose.msra.mxu0 0.0
    %3432 = vmatprep.subr.mxu0 0.0
    %3433 = vmatpush1.xpose.msra.mxu0 0.0
    %3434 = vmatprep.subr.mxu0 0.0
    %3435 = vmatpush1.xpose.msra.mxu0 0.0
    %3436 = vmatprep.subr.mxu0 0.0
    %3437 = vmatpush1.xpose.msra.mxu0 0.0
    %3438 = vmatprep.subr.mxu0 0.0
    %3439 = vmatpush1.xpose.msra.mxu0 0.0
    %3440 = vmatprep.subr.mxu0 0.0
    %3441 = vmatpush1.xpose.msra.mxu0 0.0
    %3442 = vmatprep.subr.mxu0 0.0
    %3443 = vmatpush1.xpose.msra.mxu0 0.0
    %3444 = vmatprep.subr.mxu0 0.0
    %3445 = vmatpush1.xpose.msra.mxu0 0.0
    %3446 = vmatprep.subr.mxu0 0.0
    %3447 = vmatpush1.xpose.msra.mxu0 0.0
    %3448 = vmatprep.subr.mxu0 0.0
    %3449 = vmatpush1.xpose.msra.mxu0 0.0
    %3450 = vmatprep.subr.mxu0 0.0
    %3451 = vmatpush1.xpose.msra.mxu0 0.0
    %3452 = vmatprep.mubr.f32.mxu0 %v2833
    %3453 = vmatmul.mubr.f32.gmra.mrb[0].mxu0 %v2831
    %v3454 = vpop.f32.mrb[0].mxu0
    %v3455 = vadd.f32 0.0, %v3454
    %v3456 = vpop.f32.mrb[0].mxu0
    %3457 = vdwg.mxu0
    %v3458 = vmul.f32 %v3455, 0.0625
    %v3459 = vsel %vm822, %v3458, -inf
    %3460 = vmax.xlane.f32.xlu0 %v3459
    %v3461 = vpop.xlane.xlu0 %3460
    %v3462 = vsub.f32 %v3458, %v3461
    %v3463 = vmul.f32 %v3462, 1.442695
    %v3464 = vpow.pop %v3463
    %v3465 = vsel %vm822, %v3464, 0.0
    %3466 = vadd.xlane.f32.xlu0 %v3465
    %v3467 = vpop.xlane.xlu0 %3466
    %v3468 = vrcp.pop %v3467
    %v3469 = vmul.f32 %v3464, %v3468
    %s3470 = scalar_lea.vmem [#allocation11], 16
    %v3471 = vld [vmem:[%s3470] sm:$0xff]
    %v3472 = vld [vmem:[%s3470 + $0x8] sm:$0xff]
    %v3474 = vsel %vm822, %v3469, 0
    %3476 = vmatprep.subr.mxu0 %v3472
    %3477 = vmatpush1.msra.mxu0 %v3471
    %3478 = vmatprep.subr.mxu0 0.0
    %3479 = vmatpush1.msra.mxu0 0.0
    %3480 = vmatprep.subr.mxu0 0.0
    %3481 = vmatpush1.msra.mxu0 0.0
    %3482 = vmatprep.subr.mxu0 0.0
    %3483 = vmatpush1.msra.mxu0 0.0
    %3484 = vmatprep.subr.mxu0 0.0
    %3485 = vmatpush1.msra.mxu0 0.0
    %3486 = vmatprep.subr.mxu0 0.0
    %3487 = vmatpush1.msra.mxu0 0.0
    %3488 = vmatprep.subr.mxu0 0.0
    %3489 = vmatpush1.msra.mxu0 0.0
    %3490 = vmatprep.subr.mxu0 0.0
    %3491 = vmatpush1.msra.mxu0 0.0
    %3492 = vmatprep.subr.mxu0 0.0
    %3493 = vmatpush1.msra.mxu0 0.0
    %3494 = vmatprep.subr.mxu0 0.0
    %3495 = vmatpush1.msra.mxu0 0.0
    %3496 = vmatprep.subr.mxu0 0.0
    %3497 = vmatpush1.msra.mxu0 0.0
    %3498 = vmatprep.subr.mxu0 0.0
    %3499 = vmatpush1.msra.mxu0 0.0
    %3500 = vmatprep.subr.mxu0 0.0
    %3501 = vmatpush1.msra.mxu0 0.0
    %3502 = vmatprep.subr.mxu0 0.0
    %3503 = vmatpush1.msra.mxu0 0.0
    %3504 = vmatprep.subr.mxu0 0.0
    %3505 = vmatpush1.msra.mxu0 0.0
    %3506 = vmatprep.subr.mxu0 0.0
    %3507 = vmatpush1.msra.mxu0 0.0
    %3508 = vmatprep.subr.mxu0 0.0
    %3509 = vmatpush1.msra.mxu0 0.0
    %3510 = vmatprep.subr.mxu0 0.0
    %3511 = vmatpush1.msra.mxu0 0.0
    %3512 = vmatprep.subr.mxu0 0.0
    %3513 = vmatpush1.msra.mxu0 0.0
    %3514 = vmatprep.subr.mxu0 0.0
    %3515 = vmatpush1.msra.mxu0 0.0
    %3516 = vmatprep.subr.mxu0 0.0
    %3517 = vmatpush1.msra.mxu0 0.0
    %3518 = vmatprep.subr.mxu0 0.0
    %3519 = vmatpush1.msra.mxu0 0.0
    %3520 = vmatprep.subr.mxu0 0.0
    %3521 = vmatpush1.msra.mxu0 0.0
    %3522 = vmatprep.subr.mxu0 0.0
    %3523 = vmatpush1.msra.mxu0 0.0
    %3524 = vmatprep.subr.mxu0 0.0
    %3525 = vmatpush1.msra.mxu0 0.0
    %3526 = vmatprep.subr.mxu0 0.0
    %3527 = vmatpush1.msra.mxu0 0.0
    %3528 = vmatprep.subr.mxu0 0.0
    %3529 = vmatpush1.msra.mxu0 0.0
    %3530 = vmatprep.subr.mxu0 0.0
    %3531 = vmatpush1.msra.mxu0 0.0
    %3532 = vmatprep.subr.mxu0 0.0
    %3533 = vmatpush1.msra.mxu0 0.0
    %3534 = vmatprep.subr.mxu0 0.0
    %3535 = vmatpush1.msra.mxu0 0.0
    %3536 = vmatprep.subr.mxu0 0.0
    %3537 = vmatpush1.msra.mxu0 0.0
    %3538 = vmatprep.subr.mxu0 0.0
    %3539 = vmatpush1.msra.mxu0 0.0
    %3540 = vmatprep.mubr.f32.mxu0 0.0
    %3541 = vmatmul.mubr.f32.gmra.mrb[0].mxu0 %v3474
    %v3542 = vpop.f32.mrb[0].mxu0
    %v3543 = vadd.f32 0.0, %v3542
    %v3544 = vpop.f32.mrb[0].mxu0
    %v3545 = vadd.f32 0.0, %v3544
    %3546 = vdwg.mxu0
    %3547 = vmatprep.subr.mxu0 %v3098
    %3548 = vmatpush1.msra.mxu0 %v3097
    %3549 = vmatprep.subr.mxu0 %v3102
    %3550 = vmatpush1.msra.mxu0 %v3101
    %3551 = vmatprep.subr.mxu0 %v3106
    %3552 = vmatpush1.msra.mxu0 %v3105
    %3553 = vmatprep.subr.mxu0 %v3110
    %3554 = vmatpush1.msra.mxu0 %v3109
    %3555 = vmatprep.subr.mxu0 %v3114
    %3556 = vmatpush1.msra.mxu0 %v3113
    %3557 = vmatprep.subr.mxu0 %v3118
    %3558 = vmatpush1.msra.mxu0 %v3117
    %3559 = vmatprep.subr.mxu0 %v3122
    %3560 = vmatpush1.msra.mxu0 %v3121
    %3561 = vmatprep.subr.mxu0 %v3126
    %3562 = vmatpush1.msra.mxu0 %v3125
    %3563 = vmatprep.subr.mxu0 %v3130
    %3564 = vmatpush1.msra.mxu0 %v3129
    %3565 = vmatprep.subr.mxu0 %v3134
    %3566 = vmatpush1.msra.mxu0 %v3133
    %3567 = vmatprep.subr.mxu0 %v3138
    %3568 = vmatpush1.msra.mxu0 %v3137
    %3569 = vmatprep.subr.mxu0 %v3142
    %3570 = vmatpush1.msra.mxu0 %v3141
    %3571 = vmatprep.subr.mxu0 %v3146
    %3572 = vmatpush1.msra.mxu0 %v3145
    %3573 = vmatprep.subr.mxu0 %v3150
    %3574 = vmatpush1.msra.mxu0 %v3149
    %3575 = vmatprep.subr.mxu0 %v3154
    %3576 = vmatpush1.msra.mxu0 %v3153
    %3577 = vmatprep.subr.mxu0 %v3158
    %3578 = vmatpush1.msra.mxu0 %v3157
    %3579 = vmatprep.subr.mxu0 %v3162
    %3580 = vmatpush1.msra.mxu0 %v3161
    %3581 = vmatprep.subr.mxu0 %v3166
    %3582 = vmatpush1.msra.mxu0 %v3165
    %3583 = vmatprep.subr.mxu0 %v3170
    %3584 = vmatpush1.msra.mxu0 %v3169
    %3585 = vmatprep.subr.mxu0 %v3174
    %3586 = vmatpush1.msra.mxu0 %v3173
    %3587 = vmatprep.subr.mxu0 %v3178
    %3588 = vmatpush1.msra.mxu0 %v3177
    %3589 = vmatprep.subr.mxu0 %v3182
    %3590 = vmatpush1.msra.mxu0 %v3181
    %3591 = vmatprep.subr.mxu0 %v3186
    %3592 = vmatpush1.msra.mxu0 %v3185
    %3593 = vmatprep.subr.mxu0 %v3190
    %3594 = vmatpush1.msra.mxu0 %v3189
    %3595 = vmatprep.subr.mxu0 %v3194
    %3596 = vmatpush1.msra.mxu0 %v3193
    %3597 = vmatprep.subr.mxu0 %v3198
    %3598 = vmatpush1.msra.mxu0 %v3197
    %3599 = vmatprep.subr.mxu0 %v3202
    %3600 = vmatpush1.msra.mxu0 %v3201
    %3601 = vmatprep.subr.mxu0 %v3206
    %3602 = vmatpush1.msra.mxu0 %v3205
    %3603 = vmatprep.subr.mxu0 %v3210
    %3604 = vmatpush1.msra.mxu0 %v3209
    %3605 = vmatprep.subr.mxu0 %v3214
    %3606 = vmatpush1.msra.mxu0 %v3213
    %3607 = vmatprep.subr.mxu0 %v3218
    %3608 = vmatpush1.msra.mxu0 %v3217
    %3609 = vmatprep.subr.mxu0 %v3222
    %3610 = vmatpush1.msra.mxu0 %v3221
    %3611 = vmatprep.mubr.f32.mxu0 %v3545
    %3612 = vmatmul.mubr.f32.gmra.mrb[0].mxu0 %v3543
    %v3613 = vpop.f32.mrb[0].mxu0
    %v3614 = vadd.f32 0.0, %v3613
    %v3615 = vpop.f32.mrb[0].mxu0
    %v3616 = vadd.f32 0.0, %v3615
    %3617 = vdwg.mxu0
    %3618 = vmatprep.subr.mxu0 %v3100
    %3619 = vmatpush1.msra.mxu0 %v3099
    %3620 = vmatprep.subr.mxu0 %v3104
    %3621 = vmatpush1.msra.mxu0 %v3103
    %3622 = vmatprep.subr.mxu0 %v3108
    %3623 = vmatpush1.msra.mxu0 %v3107
    %3624 = vmatprep.subr.mxu0 %v3112
    %3625 = vmatpush1.msra.mxu0 %v3111
    %3626 = vmatprep.subr.mxu0 %v3116
    %3627 = vmatpush1.msra.mxu0 %v3115
    %3628 = vmatprep.subr.mxu0 %v3120
    %3629 = vmatpush1.msra.mxu0 %v3119
    %3630 = vmatprep.subr.mxu0 %v3124
    %3631 = vmatpush1.msra.mxu0 %v3123
    %3632 = vmatprep.subr.mxu0 %v3128
    %3633 = vmatpush1.msra.mxu0 %v3127
    %3634 = vmatprep.subr.mxu0 %v3132
    %3635 = vmatpush1.msra.mxu0 %v3131
    %3636 = vmatprep.subr.mxu0 %v3136
    %3637 = vmatpush1.msra.mxu0 %v3135
    %3638 = vmatprep.subr.mxu0 %v3140
    %3639 = vmatpush1.msra.mxu0 %v3139
    %3640 = vmatprep.subr.mxu0 %v3144
    %3641 = vmatpush1.msra.mxu0 %v3143
    %3642 = vmatprep.subr.mxu0 %v3148
    %3643 = vmatpush1.msra.mxu0 %v3147
    %3644 = vmatprep.subr.mxu0 %v3152
    %3645 = vmatpush1.msra.mxu0 %v3151
    %3646 = vmatprep.subr.mxu0 %v3156
    %3647 = vmatpush1.msra.mxu0 %v3155
    %3648 = vmatprep.subr.mxu0 %v3160
    %3649 = vmatpush1.msra.mxu0 %v3159
    %3650 = vmatprep.subr.mxu0 %v3164
    %3651 = vmatpush1.msra.mxu0 %v3163
    %3652 = vmatprep.subr.mxu0 %v3168
    %3653 = vmatpush1.msra.mxu0 %v3167
    %3654 = vmatprep.subr.mxu0 %v3172
    %3655 = vmatpush1.msra.mxu0 %v3171
    %3656 = vmatprep.subr.mxu0 %v3176
    %3657 = vmatpush1.msra.mxu0 %v3175
    %3658 = vmatprep.subr.mxu0 %v3180
    %3659 = vmatpush1.msra.mxu0 %v3179
    %3660 = vmatprep.subr.mxu0 %v3184
    %3661 = vmatpush1.msra.mxu0 %v3183
    %3662 = vmatprep.subr.mxu0 %v3188
    %3663 = vmatpush1.msra.mxu0 %v3187
    %3664 = vmatprep.subr.mxu0 %v3192
    %3665 = vmatpush1.msra.mxu0 %v3191
    %3666 = vmatprep.subr.mxu0 %v3196
    %3667 = vmatpush1.msra.mxu0 %v3195
    %3668 = vmatprep.subr.mxu0 %v3200
    %3669 = vmatpush1.msra.mxu0 %v3199
    %3670 = vmatprep.subr.mxu0 %v3204
    %3671 = vmatpush1.msra.mxu0 %v3203
    %3672 = vmatprep.subr.mxu0 %v3208
    %3673 = vmatpush1.msra.mxu0 %v3207
    %3674 = vmatprep.subr.mxu0 %v3212
    %3675 = vmatpush1.msra.mxu0 %v3211
    %3676 = vmatprep.subr.mxu0 %v3216
    %3677 = vmatpush1.msra.mxu0 %v3215
    %3678 = vmatprep.subr.mxu0 %v3220
    %3679 = vmatpush1.msra.mxu0 %v3219
    %3680 = vmatprep.subr.mxu0 %v3224
    %3681 = vmatpush1.msra.mxu0 %v3223
    %3682 = vmatprep.mubr.f32.mxu0 %v3545
    %3683 = vmatmul.mubr.f32.gmra.mrb[0].mxu0 %v3543
    %v3684 = vpop.f32.mrb[0].mxu0
    %v3685 = vadd.f32 0.0, %v3684
    %v3686 = vpop.f32.mrb[0].mxu0
    %v3687 = vadd.f32 0.0, %v3686
    %3688 = vdwg.mxu0
    %3689 = vmatprep.subr.mxu0 %v2970
    %3690 = vmatpush1.msra.mxu0 %v2969
    %3691 = vmatprep.subr.mxu0 %v2974
    %3692 = vmatpush1.msra.mxu0 %v2973
    %3693 = vmatprep.subr.mxu0 %v2978
    %3694 = vmatpush1.msra.mxu0 %v2977
    %3695 = vmatprep.subr.mxu0 %v2982
    %3696 = vmatpush1.msra.mxu0 %v2981
    %3697 = vmatprep.subr.mxu0 %v2986
    %3698 = vmatpush1.msra.mxu0 %v2985
    %3699 = vmatprep.subr.mxu0 %v2990
    %3700 = vmatpush1.msra.mxu0 %v2989
    %3701 = vmatprep.subr.mxu0 %v2994
    %3702 = vmatpush1.msra.mxu0 %v2993
    %3703 = vmatprep.subr.mxu0 %v2998
    %3704 = vmatpush1.msra.mxu0 %v2997
    %3705 = vmatprep.subr.mxu0 %v3002
    %3706 = vmatpush1.msra.mxu0 %v3001
    %3707 = vmatprep.subr.mxu0 %v3006
    %3708 = vmatpush1.msra.mxu0 %v3005
    %3709 = vmatprep.subr.mxu0 %v3010
    %3710 = vmatpush1.msra.mxu0 %v3009
    %3711 = vmatprep.subr.mxu0 %v3014
    %3712 = vmatpush1.msra.mxu0 %v3013
    %3713 = vmatprep.subr.mxu0 %v3018
    %3714 = vmatpush1.msra.mxu0 %v3017
    %3715 = vmatprep.subr.mxu0 %v3022
    %3716 = vmatpush1.msra.mxu0 %v3021
    %3717 = vmatprep.subr.mxu0 %v3026
    %3718 = vmatpush1.msra.mxu0 %v3025
    %3719 = vmatprep.subr.mxu0 %v3030
    %3720 = vmatpush1.msra.mxu0 %v3029
    %3721 = vmatprep.subr.mxu0 %v3034
    %3722 = vmatpush1.msra.mxu0 %v3033
    %3723 = vmatprep.subr.mxu0 %v3038
    %3724 = vmatpush1.msra.mxu0 %v3037
    %3725 = vmatprep.subr.mxu0 %v3042
    %3726 = vmatpush1.msra.mxu0 %v3041
    %3727 = vmatprep.subr.mxu0 %v3046
    %3728 = vmatpush1.msra.mxu0 %v3045
    %3729 = vmatprep.subr.mxu0 %v3050
    %3730 = vmatpush1.msra.mxu0 %v3049
    %3731 = vmatprep.subr.mxu0 %v3054
    %3732 = vmatpush1.msra.mxu0 %v3053
    %3733 = vmatprep.subr.mxu0 %v3058
    %3734 = vmatpush1.msra.mxu0 %v3057
    %3735 = vmatprep.subr.mxu0 %v3062
    %3736 = vmatpush1.msra.mxu0 %v3061
    %3737 = vmatprep.subr.mxu0 %v3066
    %3738 = vmatpush1.msra.mxu0 %v3065
    %3739 = vmatprep.subr.mxu0 %v3070
    %3740 = vmatpush1.msra.mxu0 %v3069
    %3741 = vmatprep.subr.mxu0 %v3074
    %3742 = vmatpush1.msra.mxu0 %v3073
    %3743 = vmatprep.subr.mxu0 %v3078
    %3744 = vmatpush1.msra.mxu0 %v3077
    %3745 = vmatprep.subr.mxu0 %v3082
    %3746 = vmatpush1.msra.mxu0 %v3081
    %3747 = vmatprep.subr.mxu0 %v3086
    %3748 = vmatpush1.msra.mxu0 %v3085
    %3749 = vmatprep.subr.mxu0 %v3090
    %3750 = vmatpush1.msra.mxu0 %v3089
    %3751 = vmatprep.subr.mxu0 %v3094
    %3752 = vmatpush1.msra.mxu0 %v3093
    %3753 = vmatprep.mubr.f32.mxu0 %v3383
    %3754 = vmatmul.mubr.f32.gmra.mrb[0].mxu0 %v3381
    %v3755 = vpop.f32.mrb[0].mxu0
    %v3756 = vadd.f32 %v3614, %v3755
    %v3757 = vpop.f32.mrb[0].mxu0
    %v3758 = vadd.f32 %v3616, %v3757
    %3759 = vdwg.mxu0
    %3760 = vmatprep.subr.mxu0 %v2972
    %3761 = vmatpush1.msra.mxu0 %v2971
    %3762 = vmatprep.subr.mxu0 %v2976
    %3763 = vmatpush1.msra.mxu0 %v2975
    %3764 = vmatprep.subr.mxu0 %v2980
    %3765 = vmatpush1.msra.mxu0 %v2979
    %3766 = vmatprep.subr.mxu0 %v2984
    %3767 = vmatpush1.msra.mxu0 %v2983
    %3768 = vmatprep.subr.mxu0 %v2988
    %3769 = vmatpush1.msra.mxu0 %v2987
    %3770 = vmatprep.subr.mxu0 %v2992
    %3771 = vmatpush1.msra.mxu0 %v2991
    %3772 = vmatprep.subr.mxu0 %v2996
    %3773 = vmatpush1.msra.mxu0 %v2995
    %3774 = vmatprep.subr.mxu0 %v3000
    %3775 = vmatpush1.msra.mxu0 %v2999
    %3776 = vmatprep.subr.mxu0 %v3004
    %3777 = vmatpush1.msra.mxu0 %v3003
    %3778 = vmatprep.subr.mxu0 %v3008
    %3779 = vmatpush1.msra.mxu0 %v3007
    %3780 = vmatprep.subr.mxu0 %v3012
    %3781 = vmatpush1.msra.mxu0 %v3011
    %3782 = vmatprep.subr.mxu0 %v3016
    %3783 = vmatpush1.msra.mxu0 %v3015
    %3784 = vmatprep.subr.mxu0 %v3020
    %3785 = vmatpush1.msra.mxu0 %v3019
    %3786 = vmatprep.subr.mxu0 %v3024
    %3787 = vmatpush1.msra.mxu0 %v3023
    %3788 = vmatprep.subr.mxu0 %v3028
    %3789 = vmatpush1.msra.mxu0 %v3027
    %3790 = vmatprep.subr.mxu0 %v3032
    %3791 = vmatpush1.msra.mxu0 %v3031
    %3792 = vmatprep.subr.mxu0 %v3036
    %3793 = vmatpush1.msra.mxu0 %v3035
    %3794 = vmatprep.subr.mxu0 %v3040
    %3795 = vmatpush1.msra.mxu0 %v3039
    %3796 = vmatprep.subr.mxu0 %v3044
    %3797 = vmatpush1.msra.mxu0 %v3043
    %3798 = vmatprep.subr.mxu0 %v3048
    %3799 = vmatpush1.msra.mxu0 %v3047
    %3800 = vmatprep.subr.mxu0 %v3052
    %3801 = vmatpush1.msra.mxu0 %v3051
    %3802 = vmatprep.subr.mxu0 %v3056
    %3803 = vmatpush1.msra.mxu0 %v3055
    %3804 = vmatprep.subr.mxu0 %v3060
    %3805 = vmatpush1.msra.mxu0 %v3059
    %3806 = vmatprep.subr.mxu0 %v3064
    %3807 = vmatpush1.msra.mxu0 %v3063
    %3808 = vmatprep.subr.mxu0 %v3068
    %3809 = vmatpush1.msra.mxu0 %v3067
    %3810 = vmatprep.subr.mxu0 %v3072
    %3811 = vmatpush1.msra.mxu0 %v3071
    %3812 = vmatprep.subr.mxu0 %v3076
    %3813 = vmatpush1.msra.mxu0 %v3075
    %3814 = vmatprep.subr.mxu0 %v3080
    %3815 = vmatpush1.msra.mxu0 %v3079
    %3816 = vmatprep.subr.mxu0 %v3084
    %3817 = vmatpush1.msra.mxu0 %v3083
    %3818 = vmatprep.subr.mxu0 %v3088
    %3819 = vmatpush1.msra.mxu0 %v3087
    %3820 = vmatprep.subr.mxu0 %v3092
    %3821 = vmatpush1.msra.mxu0 %v3091
    %3822 = vmatprep.subr.mxu0 %v3096
    %3823 = vmatpush1.msra.mxu0 %v3095
    %3824 = vmatprep.mubr.f32.mxu0 %v3383
    %3825 = vmatmul.mubr.f32.gmra.mrb[0].mxu0 %v3381
    %v3826 = vpop.f32.mrb[0].mxu0
    %v3827 = vadd.f32 %v3685, %v3826
    %v3828 = vpop.f32.mrb[0].mxu0
    %v3829 = vadd.f32 %v3687, %v3828
    %3830 = vdwg.mxu0
    %s3831 = scalar_lea.vmem [#allocation10], 32
    %v3832 = vld [vmem:[%s3831] sm:$0xff]
    %v3833 = vld [vmem:[%s3831 + $0x8] sm:$0xff]
    %3834 = vmatprep.subr.mxu0 %v3833
    %3835 = vmatpush1.xpose.msra.mxu0 %v3832
    %3836 = vmatprep.subr.mxu0 0.0
    %3837 = vmatpush1.xpose.msra.mxu0 0.0
    %3838 = vmatprep.subr.mxu0 0.0
    %3839 = vmatpush1.xpose.msra.mxu0 0.0
    %3840 = vmatprep.subr.mxu0 0.0
    %3841 = vmatpush1.xpose.msra.mxu0 0.0
    %3842 = vmatprep.subr.mxu0 0.0
    %3843 = vmatpush1.xpose.msra.mxu0 0.0
    %3844 = vmatprep.subr.mxu0 0.0
    %3845 = vmatpush1.xpose.msra.mxu0 0.0
    %3846 = vmatprep.subr.mxu0 0.0
    %3847 = vmatpush1.xpose.msra.mxu0 0.0
    %3848 = vmatprep.subr.mxu0 0.0
    %3849 = vmatpush1.xpose.msra.mxu0 0.0
    %3850 = vmatprep.subr.mxu0 0.0
    %3851 = vmatpush1.xpose.msra.mxu0 0.0
    %3852 = vmatprep.subr.mxu0 0.0
    %3853 = vmatpush1.xpose.msra.mxu0 0.0
    %3854 = vmatprep.subr.mxu0 0.0
    %3855 = vmatpush1.xpose.msra.mxu0 0.0
    %3856 = vmatprep.subr.mxu0 0.0
    %3857 = vmatpush1.xpose.msra.mxu0 0.0
    %3858 = vmatprep.subr.mxu0 0.0
    %3859 = vmatpush1.xpose.msra.mxu0 0.0
    %3860 = vmatprep.subr.mxu0 0.0
    %3861 = vmatpush1.xpose.msra.mxu0 0.0
    %3862 = vmatprep.subr.mxu0 0.0
    %3863 = vmatpush1.xpose.msra.mxu0 0.0
    %3864 = vmatprep.subr.mxu0 0.0
    %3865 = vmatpush1.xpose.msra.mxu0 0.0
    %3866 = vmatprep.subr.mxu0 0.0
    %3867 = vmatpush1.xpose.msra.mxu0 0.0
    %3868 = vmatprep.subr.mxu0 0.0
    %3869 = vmatpush1.xpose.msra.mxu0 0.0
    %3870 = vmatprep.subr.mxu0 0.0
    %3871 = vmatpush1.xpose.msra.mxu0 0.0
    %3872 = vmatprep.subr.mxu0 0.0
    %3873 = vmatpush1.xpose.msra.mxu0 0.0
    %3874 = vmatprep.subr.mxu0 0.0
    %3875 = vmatpush1.xpose.msra.mxu0 0.0
    %3876 = vmatprep.subr.mxu0 0.0
    %3877 = vmatpush1.xpose.msra.mxu0 0.0
    %3878 = vmatprep.subr.mxu0 0.0
    %3879 = vmatpush1.xpose.msra.mxu0 0.0
    %3880 = vmatprep.subr.mxu0 0.0
    %3881 = vmatpush1.xpose.msra.mxu0 0.0
    %3882 = vmatprep.subr.mxu0 0.0
    %3883 = vmatpush1.xpose.msra.mxu0 0.0
    %3884 = vmatprep.subr.mxu0 0.0
    %3885 = vmatpush1.xpose.msra.mxu0 0.0
    %3886 = vmatprep.subr.mxu0 0.0
    %3887 = vmatpush1.xpose.msra.mxu0 0.0
    %3888 = vmatprep.subr.mxu0 0.0
    %3889 = vmatpush1.xpose.msra.mxu0 0.0
    %3890 = vmatprep.subr.mxu0 0.0
    %3891 = vmatpush1.xpose.msra.mxu0 0.0
    %3892 = vmatprep.subr.mxu0 0.0
    %3893 = vmatpush1.xpose.msra.mxu0 0.0
    %3894 = vmatprep.subr.mxu0 0.0
    %3895 = vmatpush1.xpose.msra.mxu0 0.0
    %3896 = vmatprep.subr.mxu0 0.0
    %3897 = vmatpush1.xpose.msra.mxu0 0.0
    %3898 = vmatprep.mubr.f32.mxu0 %v2685
    %3899 = vmatmul.mubr.f32.gmra.mrb[0].mxu0 %v2683
    %v3900 = vpop.f32.mrb[0].mxu0
    %v3901 = vadd.f32 0.0, %v3900
    %v3902 = vpop.f32.mrb[0].mxu0
    %3903 = vdwg.mxu0
    %v3904 = vmul.f32 %v3901, 0.0625
    %v3905 = vsel %vm822, %v3904, -inf
    %3906 = vmax.xlane.f32.xlu0 %v3905
    %v3907 = vpop.xlane.xlu0 %3906
    %v3908 = vsub.f32 %v3904, %v3907
    %v3909 = vmul.f32 %v3908, 1.442695
    %v3910 = vpow.pop %v3909
    %v3911 = vsel %vm822, %v3910, 0.0
    %3912 = vadd.xlane.f32.xlu0 %v3911
    %v3913 = vpop.xlane.xlu0 %3912
    %v3914 = vrcp.pop %v3913
    %v3915 = vmul.f32 %v3910, %v3914
    %s3916 = scalar_lea.vmem [#allocation11], 32
    %v3917 = vld [vmem:[%s3916] sm:$0xff]
    %v3918 = vld [vmem:[%s3916 + $0x8] sm:$0xff]
    %v3920 = vsel %vm822, %v3915, 0
    %3922 = vmatprep.subr.mxu0 %v3918
    %3923 = vmatpush1.msra.mxu0 %v3917
    %3924 = vmatprep.subr.mxu0 0.0
    %3925 = vmatpush1.msra.mxu0 0.0
    %3926 = vmatprep.subr.mxu0 0.0
    %3927 = vmatpush1.msra.mxu0 0.0
    %3928 = vmatprep.subr.mxu0 0.0
    %3929 = vmatpush1.msra.mxu0 0.0
    %3930 = vmatprep.subr.mxu0 0.0
    %3931 = vmatpush1.msra.mxu0 0.0
    %3932 = vmatprep.subr.mxu0 0.0
    %3933 = vmatpush1.msra.mxu0 0.0
    %3934 = vmatprep.subr.mxu0 0.0
    %3935 = vmatpush1.msra.mxu0 0.0
    %3936 = vmatprep.subr.mxu0 0.0
    %3937 = vmatpush1.msra.mxu0 0.0
    %3938 = vmatprep.subr.mxu0 0.0
    %3939 = vmatpush1.msra.mxu0 0.0
    %3940 = vmatprep.subr.mxu0 0.0
    %3941 = vmatpush1.msra.mxu0 0.0
    %3942 = vmatprep.subr.mxu0 0.0
    %3943 = vmatpush1.msra.mxu0 0.0
    %3944 = vmatprep.subr.mxu0 0.0
    %3945 = vmatpush1.msra.mxu0 0.0
    %3946 = vmatprep.subr.mxu0 0.0
    %3947 = vmatpush1.msra.mxu0 0.0
    %3948 = vmatprep.subr.mxu0 0.0
    %3949 = vmatpush1.msra.mxu0 0.0
    %3950 = vmatprep.subr.mxu0 0.0
    %3951 = vmatpush1.msra.mxu0 0.0
    %3952 = vmatprep.subr.mxu0 0.0
    %3953 = vmatpush1.msra.mxu0 0.0
    %3954 = vmatprep.subr.mxu0 0.0
    %3955 = vmatpush1.msra.mxu0 0.0
    %3956 = vmatprep.subr.mxu0 0.0
    %3957 = vmatpush1.msra.mxu0 0.0
    %3958 = vmatprep.subr.mxu0 0.0
    %3959 = vmatpush1.msra.mxu0 0.0
    %3960 = vmatprep.subr.mxu0 0.0
    %3961 = vmatpush1.msra.mxu0 0.0
    %3962 = vmatprep.subr.mxu0 0.0
    %3963 = vmatpush1.msra.mxu0 0.0
    %3964 = vmatprep.subr.mxu0 0.0
    %3965 = vmatpush1.msra.mxu0 0.0
    %3966 = vmatprep.subr.mxu0 0.0
    %3967 = vmatpush1.msra.mxu0 0.0
    %3968 = vmatprep.subr.mxu0 0.0
    %3969 = vmatpush1.msra.mxu0 0.0
    %3970 = vmatprep.subr.mxu0 0.0
    %3971 = vmatpush1.msra.mxu0 0.0
    %3972 = vmatprep.subr.mxu0 0.0
    %3973 = vmatpush1.msra.mxu0 0.0
    %3974 = vmatprep.subr.mxu0 0.0
    %3975 = vmatpush1.msra.mxu0 0.0
    %3976 = vmatprep.subr.mxu0 0.0
    %3977 = vmatpush1.msra.mxu0 0.0
    %3978 = vmatprep.subr.mxu0 0.0
    %3979 = vmatpush1.msra.mxu0 0.0
    %3980 = vmatprep.subr.mxu0 0.0
    %3981 = vmatpush1.msra.mxu0 0.0
    %3982 = vmatprep.subr.mxu0 0.0
    %3983 = vmatpush1.msra.mxu0 0.0
    %3984 = vmatprep.subr.mxu0 0.0
    %3985 = vmatpush1.msra.mxu0 0.0
    %3986 = vmatprep.mubr.f32.mxu0 0.0
    %3987 = vmatmul.mubr.f32.gmra.mrb[0].mxu0 %v3920
    %v3988 = vpop.f32.mrb[0].mxu0
    %v3989 = vadd.f32 0.0, %v3988
    %v3990 = vpop.f32.mrb[0].mxu0
    %v3991 = vadd.f32 0.0, %v3990
    %3992 = vdwg.mxu0
    %s3993 = scalar_lea.vmem [#allocation10], 48
    %v3994 = vld [vmem:[%s3993] sm:$0xff]
    %v3995 = vld [vmem:[%s3993 + $0x8] sm:$0xff]
    %3996 = vmatprep.subr.mxu0 %v3995
    %3997 = vmatpush1.xpose.msra.mxu0 %v3994
    %3998 = vmatprep.subr.mxu0 0.0
    %3999 = vmatpush1.xpose.msra.mxu0 0.0
    %4000 = vmatprep.subr.mxu0 0.0
    %4001 = vmatpush1.xpose.msra.mxu0 0.0
    %4002 = vmatprep.subr.mxu0 0.0
    %4003 = vmatpush1.xpose.msra.mxu0 0.0
    %4004 = vmatprep.subr.mxu0 0.0
    %4005 = vmatpush1.xpose.msra.mxu0 0.0
    %4006 = vmatprep.subr.mxu0 0.0
    %4007 = vmatpush1.xpose.msra.mxu0 0.0
    %4008 = vmatprep.subr.mxu0 0.0
    %4009 = vmatpush1.xpose.msra.mxu0 0.0
    %4010 = vmatprep.subr.mxu0 0.0
    %4011 = vmatpush1.xpose.msra.mxu0 0.0
    %4012 = vmatprep.subr.mxu0 0.0
    %4013 = vmatpush1.xpose.msra.mxu0 0.0
    %4014 = vmatprep.subr.mxu0 0.0
    %4015 = vmatpush1.xpose.msra.mxu0 0.0
    %4016 = vmatprep.subr.mxu0 0.0
    %4017 = vmatpush1.xpose.msra.mxu0 0.0
    %4018 = vmatprep.subr.mxu0 0.0
    %4019 = vmatpush1.xpose.msra.mxu0 0.0
    %4020 = vmatprep.subr.mxu0 0.0
    %4021 = vmatpush1.xpose.msra.mxu0 0.0
    %4022 = vmatprep.subr.mxu0 0.0
    %4023 = vmatpush1.xpose.msra.mxu0 0.0
    %4024 = vmatprep.subr.mxu0 0.0
    %4025 = vmatpush1.xpose.msra.mxu0 0.0
    %4026 = vmatprep.subr.mxu0 0.0
    %4027 = vmatpush1.xpose.msra.mxu0 0.0
    %4028 = vmatprep.subr.mxu0 0.0
    %4029 = vmatpush1.xpose.msra.mxu0 0.0
    %4030 = vmatprep.subr.mxu0 0.0
    %4031 = vmatpush1.xpose.msra.mxu0 0.0
    %4032 = vmatprep.subr.mxu0 0.0
    %4033 = vmatpush1.xpose.msra.mxu0 0.0
    %4034 = vmatprep.subr.mxu0 0.0
    %4035 = vmatpush1.xpose.msra.mxu0 0.0
    %4036 = vmatprep.subr.mxu0 0.0
    %4037 = vmatpush1.xpose.msra.mxu0 0.0
    %4038 = vmatprep.subr.mxu0 0.0
    %4039 = vmatpush1.xpose.msra.mxu0 0.0
    %4040 = vmatprep.subr.mxu0 0.0
    %4041 = vmatpush1.xpose.msra.mxu0 0.0
    %4042 = vmatprep.subr.mxu0 0.0
    %4043 = vmatpush1.xpose.msra.mxu0 0.0
    %4044 = vmatprep.subr.mxu0 0.0
    %4045 = vmatpush1.xpose.msra.mxu0 0.0
    %4046 = vmatprep.subr.mxu0 0.0
    %4047 = vmatpush1.xpose.msra.mxu0 0.0
    %4048 = vmatprep.subr.mxu0 0.0
    %4049 = vmatpush1.xpose.msra.mxu0 0.0
    %4050 = vmatprep.subr.mxu0 0.0
    %4051 = vmatpush1.xpose.msra.mxu0 0.0
    %4052 = vmatprep.subr.mxu0 0.0
    %4053 = vmatpush1.xpose.msra.mxu0 0.0
    %4054 = vmatprep.subr.mxu0 0.0
    %4055 = vmatpush1.xpose.msra.mxu0 0.0
    %4056 = vmatprep.subr.mxu0 0.0
    %4057 = vmatpush1.xpose.msra.mxu0 0.0
    %4058 = vmatprep.subr.mxu0 0.0
    %4059 = vmatpush1.xpose.msra.mxu0 0.0
    %4060 = vmatprep.mubr.f32.mxu0 %v2839
    %4061 = vmatmul.mubr.f32.gmra.mrb[0].mxu0 %v2837
    %v4062 = vpop.f32.mrb[0].mxu0
    %v4063 = vadd.f32 0.0, %v4062
    %v4064 = vpop.f32.mrb[0].mxu0
    %4065 = vdwg.mxu0
    %v4066 = vmul.f32 %v4063, 0.0625
    %v4067 = vsel %vm822, %v4066, -inf
    %4068 = vmax.xlane.f32.xlu0 %v4067
    %v4069 = vpop.xlane.xlu0 %4068
    %v4070 = vsub.f32 %v4066, %v4069
    %v4071 = vmul.f32 %v4070, 1.442695
    %v4072 = vpow.pop %v4071
    %v4073 = vsel %vm822, %v4072, 0.0
    %4074 = vadd.xlane.f32.xlu0 %v4073
    %v4075 = vpop.xlane.xlu0 %4074
    %v4076 = vrcp.pop %v4075
    %v4077 = vmul.f32 %v4072, %v4076
    %s4078 = scalar_lea.vmem [#allocation11], 48
    %v4079 = vld [vmem:[%s4078] sm:$0xff]
    %v4080 = vld [vmem:[%s4078 + $0x8] sm:$0xff]
    %v4082 = vsel %vm822, %v4077, 0
    %4084 = vmatprep.subr.mxu0 %v4080
    %4085 = vmatpush1.msra.mxu0 %v4079
    %4086 = vmatprep.subr.mxu0 0.0
    %4087 = vmatpush1.msra.mxu0 0.0
    %4088 = vmatprep.subr.mxu0 0.0
    %4089 = vmatpush1.msra.mxu0 0.0
    %4090 = vmatprep.subr.mxu0 0.0
    %4091 = vmatpush1.msra.mxu0 0.0
    %4092 = vmatprep.subr.mxu0 0.0
    %4093 = vmatpush1.msra.mxu0 0.0
    %4094 = vmatprep.subr.mxu0 0.0
    %4095 = vmatpush1.msra.mxu0 0.0
    %4096 = vmatprep.subr.mxu0 0.0
    %4097 = vmatpush1.msra.mxu0 0.0
    %4098 = vmatprep.subr.mxu0 0.0
    %4099 = vmatpush1.msra.mxu0 0.0
    %4100 = vmatprep.subr.mxu0 0.0
    %4101 = vmatpush1.msra.mxu0 0.0
    %4102 = vmatprep.subr.mxu0 0.0
    %4103 = vmatpush1.msra.mxu0 0.0
    %4104 = vmatprep.subr.mxu0 0.0
    %4105 = vmatpush1.msra.mxu0 0.0
    %4106 = vmatprep.subr.mxu0 0.0
    %4107 = vmatpush1.msra.mxu0 0.0
    %4108 = vmatprep.subr.mxu0 0.0
    %4109 = vmatpush1.msra.mxu0 0.0
    %4110 = vmatprep.subr.mxu0 0.0
    %4111 = vmatpush1.msra.mxu0 0.0
    %4112 = vmatprep.subr.mxu0 0.0
    %4113 = vmatpush1.msra.mxu0 0.0
    %4114 = vmatprep.subr.mxu0 0.0
    %4115 = vmatpush1.msra.mxu0 0.0
    %4116 = vmatprep.subr.mxu0 0.0
    %4117 = vmatpush1.msra.mxu0 0.0
    %4118 = vmatprep.subr.mxu0 0.0
    %4119 = vmatpush1.msra.mxu0 0.0
    %4120 = vmatprep.subr.mxu0 0.0
    %4121 = vmatpush1.msra.mxu0 0.0
    %4122 = vmatprep.subr.mxu0 0.0
    %4123 = vmatpush1.msra.mxu0 0.0
    %4124 = vmatprep.subr.mxu0 0.0
    %4125 = vmatpush1.msra.mxu0 0.0
    %4126 = vmatprep.subr.mxu0 0.0
    %4127 = vmatpush1.msra.mxu0 0.0
    %4128 = vmatprep.subr.mxu0 0.0
    %4129 = vmatpush1.msra.mxu0 0.0
    %4130 = vmatprep.subr.mxu0 0.0
    %4131 = vmatpush1.msra.mxu0 0.0
    %4132 = vmatprep.subr.mxu0 0.0
    %4133 = vmatpush1.msra.mxu0 0.0
    %4134 = vmatprep.subr.mxu0 0.0
    %4135 = vmatpush1.msra.mxu0 0.0
    %4136 = vmatprep.subr.mxu0 0.0
    %4137 = vmatpush1.msra.mxu0 0.0
    %4138 = vmatprep.subr.mxu0 0.0
    %4139 = vmatpush1.msra.mxu0 0.0
    %4140 = vmatprep.subr.mxu0 0.0
    %4141 = vmatpush1.msra.mxu0 0.0
    %4142 = vmatprep.subr.mxu0 0.0
    %4143 = vmatpush1.msra.mxu0 0.0
    %4144 = vmatprep.subr.mxu0 0.0
    %4145 = vmatpush1.msra.mxu0 0.0
    %4146 = vmatprep.subr.mxu0 0.0
    %4147 = vmatpush1.msra.mxu0 0.0
    %4148 = vmatprep.mubr.f32.mxu0 0.0
    %4149 = vmatmul.mubr.f32.gmra.mrb[0].mxu0 %v4082
    %v4150 = vpop.f32.mrb[0].mxu0
    %v4151 = vadd.f32 0.0, %v4150
    %v4152 = vpop.f32.mrb[0].mxu0
    %v4153 = vadd.f32 0.0, %v4152
    %4154 = vdwg.mxu0
    %4155 = vmatprep.subr.mxu0 %v3098
    %4156 = vmatpush1.msra.mxu0 %v3097
    %4157 = vmatprep.subr.mxu0 %v3102
    %4158 = vmatpush1.msra.mxu0 %v3101
    %4159 = vmatprep.subr.mxu0 %v3106
    %4160 = vmatpush1.msra.mxu0 %v3105
    %4161 = vmatprep.subr.mxu0 %v3110
    %4162 = vmatpush1.msra.mxu0 %v3109
    %4163 = vmatprep.subr.mxu0 %v3114
    %4164 = vmatpush1.msra.mxu0 %v3113
    %4165 = vmatprep.subr.mxu0 %v3118
    %4166 = vmatpush1.msra.mxu0 %v3117
    %4167 = vmatprep.subr.mxu0 %v3122
    %4168 = vmatpush1.msra.mxu0 %v3121
    %4169 = vmatprep.subr.mxu0 %v3126
    %4170 = vmatpush1.msra.mxu0 %v3125
    %4171 = vmatprep.subr.mxu0 %v3130
    %4172 = vmatpush1.msra.mxu0 %v3129
    %4173 = vmatprep.subr.mxu0 %v3134
    %4174 = vmatpush1.msra.mxu0 %v3133
    %4175 = vmatprep.subr.mxu0 %v3138
    %4176 = vmatpush1.msra.mxu0 %v3137
    %4177 = vmatprep.subr.mxu0 %v3142
    %4178 = vmatpush1.msra.mxu0 %v3141
    %4179 = vmatprep.subr.mxu0 %v3146
    %4180 = vmatpush1.msra.mxu0 %v3145
    %4181 = vmatprep.subr.mxu0 %v3150
    %4182 = vmatpush1.msra.mxu0 %v3149
    %4183 = vmatprep.subr.mxu0 %v3154
    %4184 = vmatpush1.msra.mxu0 %v3153
    %4185 = vmatprep.subr.mxu0 %v3158
    %4186 = vmatpush1.msra.mxu0 %v3157
    %4187 = vmatprep.subr.mxu0 %v3162
    %4188 = vmatpush1.msra.mxu0 %v3161
    %4189 = vmatprep.subr.mxu0 %v3166
    %4190 = vmatpush1.msra.mxu0 %v3165
    %4191 = vmatprep.subr.mxu0 %v3170
    %4192 = vmatpush1.msra.mxu0 %v3169
    %4193 = vmatprep.subr.mxu0 %v3174
    %4194 = vmatpush1.msra.mxu0 %v3173
    %4195 = vmatprep.subr.mxu0 %v3178
    %4196 = vmatpush1.msra.mxu0 %v3177
    %4197 = vmatprep.subr.mxu0 %v3182
    %4198 = vmatpush1.msra.mxu0 %v3181
    %4199 = vmatprep.subr.mxu0 %v3186
    %4200 = vmatpush1.msra.mxu0 %v3185
    %4201 = vmatprep.subr.mxu0 %v3190
    %4202 = vmatpush1.msra.mxu0 %v3189
    %4203 = vmatprep.subr.mxu0 %v3194
    %4204 = vmatpush1.msra.mxu0 %v3193
    %4205 = vmatprep.subr.mxu0 %v3198
    %4206 = vmatpush1.msra.mxu0 %v3197
    %4207 = vmatprep.subr.mxu0 %v3202
    %4208 = vmatpush1.msra.mxu0 %v3201
    %4209 = vmatprep.subr.mxu0 %v3206
    %4210 = vmatpush1.msra.mxu0 %v3205
    %4211 = vmatprep.subr.mxu0 %v3210
    %4212 = vmatpush1.msra.mxu0 %v3209
    %4213 = vmatprep.subr.mxu0 %v3214
    %4214 = vmatpush1.msra.mxu0 %v3213
    %4215 = vmatprep.subr.mxu0 %v3218
    %4216 = vmatpush1.msra.mxu0 %v3217
    %4217 = vmatprep.subr.mxu0 %v3222
    %4218 = vmatpush1.msra.mxu0 %v3221
    %4219 = vmatprep.mubr.f32.mxu0 %v4153
    %4220 = vmatmul.mubr.f32.gmra.mrb[0].mxu0 %v4151
    %v4221 = vpop.f32.mrb[0].mxu0
    %v4222 = vadd.f32 0.0, %v4221
    %v4223 = vpop.f32.mrb[0].mxu0
    %v4224 = vadd.f32 0.0, %v4223
    %4225 = vdwg.mxu0
    %4226 = vmatprep.subr.mxu0 %v3100
    %4227 = vmatpush1.msra.mxu0 %v3099
    %4228 = vmatprep.subr.mxu0 %v3104
    %4229 = vmatpush1.msra.mxu0 %v3103
    %4230 = vmatprep.subr.mxu0 %v3108
    %4231 = vmatpush1.msra.mxu0 %v3107
    %4232 = vmatprep.subr.mxu0 %v3112
    %4233 = vmatpush1.msra.mxu0 %v3111
    %4234 = vmatprep.subr.mxu0 %v3116
    %4235 = vmatpush1.msra.mxu0 %v3115
    %4236 = vmatprep.subr.mxu0 %v3120
    %4237 = vmatpush1.msra.mxu0 %v3119
    %4238 = vmatprep.subr.mxu0 %v3124
    %4239 = vmatpush1.msra.mxu0 %v3123
    %4240 = vmatprep.subr.mxu0 %v3128
    %4241 = vmatpush1.msra.mxu0 %v3127
    %4242 = vmatprep.subr.mxu0 %v3132
    %4243 = vmatpush1.msra.mxu0 %v3131
    %4244 = vmatprep.subr.mxu0 %v3136
    %4245 = vmatpush1.msra.mxu0 %v3135
    %4246 = vmatprep.subr.mxu0 %v3140
    %4247 = vmatpush1.msra.mxu0 %v3139
    %4248 = vmatprep.subr.mxu0 %v3144
    %4249 = vmatpush1.msra.mxu0 %v3143
    %4250 = vmatprep.subr.mxu0 %v3148
    %4251 = vmatpush1.msra.mxu0 %v3147
    %4252 = vmatprep.subr.mxu0 %v3152
    %4253 = vmatpush1.msra.mxu0 %v3151
    %4254 = vmatprep.subr.mxu0 %v3156
    %4255 = vmatpush1.msra.mxu0 %v3155
    %4256 = vmatprep.subr.mxu0 %v3160
    %4257 = vmatpush1.msra.mxu0 %v3159
    %4258 = vmatprep.subr.mxu0 %v3164
    %4259 = vmatpush1.msra.mxu0 %v3163
    %4260 = vmatprep.subr.mxu0 %v3168
    %4261 = vmatpush1.msra.mxu0 %v3167
    %4262 = vmatprep.subr.mxu0 %v3172
    %4263 = vmatpush1.msra.mxu0 %v3171
    %4264 = vmatprep.subr.mxu0 %v3176
    %4265 = vmatpush1.msra.mxu0 %v3175
    %4266 = vmatprep.subr.mxu0 %v3180
    %4267 = vmatpush1.msra.mxu0 %v3179
    %4268 = vmatprep.subr.mxu0 %v3184
    %4269 = vmatpush1.msra.mxu0 %v3183
    %4270 = vmatprep.subr.mxu0 %v3188
    %4271 = vmatpush1.msra.mxu0 %v3187
    %4272 = vmatprep.subr.mxu0 %v3192
    %4273 = vmatpush1.msra.mxu0 %v3191
    %4274 = vmatprep.subr.mxu0 %v3196
    %4275 = vmatpush1.msra.mxu0 %v3195
    %4276 = vmatprep.subr.mxu0 %v3200
    %4277 = vmatpush1.msra.mxu0 %v3199
    %4278 = vmatprep.subr.mxu0 %v3204
    %4279 = vmatpush1.msra.mxu0 %v3203
    %4280 = vmatprep.subr.mxu0 %v3208
    %4281 = vmatpush1.msra.mxu0 %v3207
    %4282 = vmatprep.subr.mxu0 %v3212
    %4283 = vmatpush1.msra.mxu0 %v3211
    %4284 = vmatprep.subr.mxu0 %v3216
    %4285 = vmatpush1.msra.mxu0 %v3215
    %4286 = vmatprep.subr.mxu0 %v3220
    %4287 = vmatpush1.msra.mxu0 %v3219
    %4288 = vmatprep.subr.mxu0 %v3224
    %4289 = vmatpush1.msra.mxu0 %v3223
    %4290 = vmatprep.mubr.f32.mxu0 %v4153
    %4291 = vmatmul.mubr.f32.gmra.mrb[0].mxu0 %v4151
    %v4292 = vpop.f32.mrb[0].mxu0
    %v4293 = vadd.f32 0.0, %v4292
    %v4294 = vpop.f32.mrb[0].mxu0
    %v4295 = vadd.f32 0.0, %v4294
    %4296 = vdwg.mxu0
    %4297 = vmatprep.subr.mxu0 %v2970
    %4298 = vmatpush1.msra.mxu0 %v2969
    %4299 = vmatprep.subr.mxu0 %v2974
    %4300 = vmatpush1.msra.mxu0 %v2973
    %4301 = vmatprep.subr.mxu0 %v2978
    %4302 = vmatpush1.msra.mxu0 %v2977
    %4303 = vmatprep.subr.mxu0 %v2982
    %4304 = vmatpush1.msra.mxu0 %v2981
    %4305 = vmatprep.subr.mxu0 %v2986
    %4306 = vmatpush1.msra.mxu0 %v2985
    %4307 = vmatprep.subr.mxu0 %v2990
    %4308 = vmatpush1.msra.mxu0 %v2989
    %4309 = vmatprep.subr.mxu0 %v2994
    %4310 = vmatpush1.msra.mxu0 %v2993
    %4311 = vmatprep.subr.mxu0 %v2998
    %4312 = vmatpush1.msra.mxu0 %v2997
    %4313 = vmatprep.subr.mxu0 %v3002
    %4314 = vmatpush1.msra.mxu0 %v3001
    %4315 = vmatprep.subr.mxu0 %v3006
    %4316 = vmatpush1.msra.mxu0 %v3005
    %4317 = vmatprep.subr.mxu0 %v3010
    %4318 = vmatpush1.msra.mxu0 %v3009
    %4319 = vmatprep.subr.mxu0 %v3014
    %4320 = vmatpush1.msra.mxu0 %v3013
    %4321 = vmatprep.subr.mxu0 %v3018
    %4322 = vmatpush1.msra.mxu0 %v3017
    %4323 = vmatprep.subr.mxu0 %v3022
    %4324 = vmatpush1.msra.mxu0 %v3021
    %4325 = vmatprep.subr.mxu0 %v3026
    %4326 = vmatpush1.msra.mxu0 %v3025
    %4327 = vmatprep.subr.mxu0 %v3030
    %4328 = vmatpush1.msra.mxu0 %v3029
    %4329 = vmatprep.subr.mxu0 %v3034
    %4330 = vmatpush1.msra.mxu0 %v3033
    %4331 = vmatprep.subr.mxu0 %v3038
    %4332 = vmatpush1.msra.mxu0 %v3037
    %4333 = vmatprep.subr.mxu0 %v3042
    %4334 = vmatpush1.msra.mxu0 %v3041
    %4335 = vmatprep.subr.mxu0 %v3046
    %4336 = vmatpush1.msra.mxu0 %v3045
    %4337 = vmatprep.subr.mxu0 %v3050
    %4338 = vmatpush1.msra.mxu0 %v3049
    %4339 = vmatprep.subr.mxu0 %v3054
    %4340 = vmatpush1.msra.mxu0 %v3053
    %4341 = vmatprep.subr.mxu0 %v3058
    %4342 = vmatpush1.msra.mxu0 %v3057
    %4343 = vmatprep.subr.mxu0 %v3062
    %4344 = vmatpush1.msra.mxu0 %v3061
    %4345 = vmatprep.subr.mxu0 %v3066
    %4346 = vmatpush1.msra.mxu0 %v3065
    %4347 = vmatprep.subr.mxu0 %v3070
    %4348 = vmatpush1.msra.mxu0 %v3069
    %4349 = vmatprep.subr.mxu0 %v3074
    %4350 = vmatpush1.msra.mxu0 %v3073
    %4351 = vmatprep.subr.mxu0 %v3078
    %4352 = vmatpush1.msra.mxu0 %v3077
    %4353 = vmatprep.subr.mxu0 %v3082
    %4354 = vmatpush1.msra.mxu0 %v3081
    %4355 = vmatprep.subr.mxu0 %v3086
    %4356 = vmatpush1.msra.mxu0 %v3085
    %4357 = vmatprep.subr.mxu0 %v3090
    %4358 = vmatpush1.msra.mxu0 %v3089
    %4359 = vmatprep.subr.mxu0 %v3094
    %4360 = vmatpush1.msra.mxu0 %v3093
    %4361 = vmatprep.mubr.f32.mxu0 %v3991
    %4362 = vmatmul.mubr.f32.gmra.mrb[0].mxu0 %v3989
    %v4363 = vpop.f32.mrb[0].mxu0
    %v4364 = vadd.f32 %v4222, %v4363
    %v4365 = vpop.f32.mrb[0].mxu0
    %v4366 = vadd.f32 %v4224, %v4365
    %4367 = vdwg.mxu0
    %4368 = vmatprep.subr.mxu0 %v2972
    %4369 = vmatpush1.msra.mxu0 %v2971
    %4370 = vmatprep.subr.mxu0 %v2976
    %4371 = vmatpush1.msra.mxu0 %v2975
    %4372 = vmatprep.subr.mxu0 %v2980
    %4373 = vmatpush1.msra.mxu0 %v2979
    %4374 = vmatprep.subr.mxu0 %v2984
    %4375 = vmatpush1.msra.mxu0 %v2983
    %4376 = vmatprep.subr.mxu0 %v2988
    %4377 = vmatpush1.msra.mxu0 %v2987
    %4378 = vmatprep.subr.mxu0 %v2992
    %4379 = vmatpush1.msra.mxu0 %v2991
    %4380 = vmatprep.subr.mxu0 %v2996
    %4381 = vmatpush1.msra.mxu0 %v2995
    %4382 = vmatprep.subr.mxu0 %v3000
    %4383 = vmatpush1.msra.mxu0 %v2999
    %4384 = vmatprep.subr.mxu0 %v3004
    %4385 = vmatpush1.msra.mxu0 %v3003
    %4386 = vmatprep.subr.mxu0 %v3008
    %4387 = vmatpush1.msra.mxu0 %v3007
    %4388 = vmatprep.subr.mxu0 %v3012
    %4389 = vmatpush1.msra.mxu0 %v3011
    %4390 = vmatprep.subr.mxu0 %v3016
    %4391 = vmatpush1.msra.mxu0 %v3015
    %4392 = vmatprep.subr.mxu0 %v3020
    %4393 = vmatpush1.msra.mxu0 %v3019
    %4394 = vmatprep.subr.mxu0 %v3024
    %4395 = vmatpush1.msra.mxu0 %v3023
    %4396 = vmatprep.subr.mxu0 %v3028
    %4397 = vmatpush1.msra.mxu0 %v3027
    %4398 = vmatprep.subr.mxu0 %v3032
    %4399 = vmatpush1.msra.mxu0 %v3031
    %4400 = vmatprep.subr.mxu0 %v3036
    %4401 = vmatpush1.msra.mxu0 %v3035
    %4402 = vmatprep.subr.mxu0 %v3040
    %4403 = vmatpush1.msra.mxu0 %v3039
    %4404 = vmatprep.subr.mxu0 %v3044
    %4405 = vmatpush1.msra.mxu0 %v3043
    %4406 = vmatprep.subr.mxu0 %v3048
    %4407 = vmatpush1.msra.mxu0 %v3047
    %4408 = vmatprep.subr.mxu0 %v3052
    %4409 = vmatpush1.msra.mxu0 %v3051
    %4410 = vmatprep.subr.mxu0 %v3056
    %4411 = vmatpush1.msra.mxu0 %v3055
    %4412 = vmatprep.subr.mxu0 %v3060
    %4413 = vmatpush1.msra.mxu0 %v3059
    %4414 = vmatprep.subr.mxu0 %v3064
    %4415 = vmatpush1.msra.mxu0 %v3063
    %4416 = vmatprep.subr.mxu0 %v3068
    %4417 = vmatpush1.msra.mxu0 %v3067
    %4418 = vmatprep.subr.mxu0 %v3072
    %4419 = vmatpush1.msra.mxu0 %v3071
    %4420 = vmatprep.subr.mxu0 %v3076
    %4421 = vmatpush1.msra.mxu0 %v3075
    %4422 = vmatprep.subr.mxu0 %v3080
    %4423 = vmatpush1.msra.mxu0 %v3079
    %4424 = vmatprep.subr.mxu0 %v3084
    %4425 = vmatpush1.msra.mxu0 %v3083
    %4426 = vmatprep.subr.mxu0 %v3088
    %4427 = vmatpush1.msra.mxu0 %v3087
    %4428 = vmatprep.subr.mxu0 %v3092
    %4429 = vmatpush1.msra.mxu0 %v3091
    %4430 = vmatprep.subr.mxu0 %v3096
    %4431 = vmatpush1.msra.mxu0 %v3095
    %4432 = vmatprep.mubr.f32.mxu0 %v3991
    %4433 = vmatmul.mubr.f32.gmra.mrb[0].mxu0 %v3989
    %v4434 = vpop.f32.mrb[0].mxu0
    %v4435 = vadd.f32 %v4293, %v4434
    %v4436 = vpop.f32.mrb[0].mxu0
    %v4437 = vadd.f32 %v4295, %v4436
    %4438 = vdwg.mxu0
    %v4439 = vld [vmem:[#allocation20] sm:$0xf]
    %v4441 = vlaneseq
    %v4442 = vshrl.u32 %v4441, 7
    %v4443 = vsub.s32 0, %v4442
    %v4444 = vrot.slane %v4439, %v4443
    %v4445 = vlaneseq
    %v4446 = vshrl.u32 %v4445, 7
    %v4447 = vsub.s32 1, %v4446
    %v4448 = vrot.slane %v4439, %v4447
    %v4449 = vlaneseq
    %v4450 = vshrl.u32 %v4449, 7
    %v4451 = vsub.s32 2, %v4450
    %v4452 = vrot.slane %v4439, %v4451
    %v4453 = vlaneseq
    %v4454 = vshrl.u32 %v4453, 7
    %v4455 = vsub.s32 3, %v4454
    %v4456 = vrot.slane %v4439, %v4455
    %v4461 = vadd.f32 %v3756, %v4444
    %v4462 = vadd.f32 %v3758, %v4448
    %v4463 = vadd.f32 %v3827, %v4452
    %v4464 = vadd.f32 %v3829, %v4456
    %v4465 = vadd.f32 %v4364, %v4444
    %v4466 = vadd.f32 %v4366, %v4448
    %v4467 = vadd.f32 %v4435, %v4452
    %v4468 = vadd.f32 %v4437, %v4456
    %v4469 = vadd.f32 %v2119, %v4461
    %v4470 = vadd.f32 %v2120, %v4462
    %v4471 = vadd.f32 %v2121, %v4463
    %v4472 = vadd.f32 %v2122, %v4464
    %v4473 = vadd.f32 %v2123, %v4465
    %v4474 = vadd.f32 %v2124, %v4466
    %v4475 = vadd.f32 %v2125, %v4467
    %v4476 = vadd.f32 %v2126, %v4468
    %v4477 = vld [vmem:[#allocation31] sm:$0xf]
    %v4478 = vld [vmem:[#allocation32] sm:$0xf]
    %v4479 = vadd.f32 %v4469, %v4470
    %v4480 = vadd.f32 %v4479, %v4471
    %v4481 = vadd.f32 %v4480, %v4472
    %4482 = vadd.xlane.f32.xlu0 %v4481
    %v4483 = vpop.xlane.xlu0 %4482
    %v4484 = vadd.f32 %v4473, %v4474
    %v4485 = vadd.f32 %v4484, %v4475
    %v4486 = vadd.f32 %v4485, %v4476
    %4487 = vadd.xlane.f32.xlu0 %v4486
    %v4488 = vpop.xlane.xlu0 %4487
    %v4489 = vmul.f32 %v4483, %v2026
    %v4490 = vmul.f32 %v4488, %v2026
    %v4491 = vsub.f32 %v4469, %v4489
    %v4492 = vsub.f32 %v4470, %v4489
    %v4493 = vsub.f32 %v4471, %v4489
    %v4494 = vsub.f32 %v4472, %v4489
    %v4495 = vsub.f32 %v4473, %v4490
    %v4496 = vsub.f32 %v4474, %v4490
    %v4497 = vsub.f32 %v4475, %v4490
    %v4498 = vsub.f32 %v4476, %v4490
    %v4499 = vmul.f32 %v4491, %v4491
    %v4500 = vmul.f32 %v4492, %v4492
    %v4501 = vmul.f32 %v4493, %v4493
    %v4502 = vmul.f32 %v4494, %v4494
    %v4503 = vmul.f32 %v4495, %v4495
    %v4504 = vmul.f32 %v4496, %v4496
    %v4505 = vmul.f32 %v4497, %v4497
    %v4506 = vmul.f32 %v4498, %v4498
    %v4507 = vadd.f32 %v4499, %v4500
    %v4508 = vadd.f32 %v4507, %v4501
    %v4509 = vadd.f32 %v4508, %v4502
    %4510 = vadd.xlane.f32.xlu0 %v4509
    %v4511 = vpop.xlane.xlu0 %4510
    %v4512 = vadd.f32 %v4503, %v4504
    %v4513 = vadd.f32 %v4512, %v4505
    %v4514 = vadd.f32 %v4513, %v4506
    %4515 = vadd.xlane.f32.xlu0 %v4514
    %v4516 = vpop.xlane.xlu0 %4515
    %v4517 = vmul.f32 %v4511, %v2026
    %v4518 = vmul.f32 %v4516, %v2026
    %v4519 = vadd.f32 %v4517, 1e-05
    %v4520 = vadd.f32 %v4518, 1e-05
    %v4521 = vrsqrt.pop %v4519
    %v4522 = vrsqrt.pop %v4520
    %v4523 = vmul.f32 %v4491, %v4521
    %v4524 = vmul.f32 %v4492, %v4521
    %v4525 = vmul.f32 %v4493, %v4521
    %v4526 = vmul.f32 %v4494, %v4521
    %v4527 = vmul.f32 %v4495, %v4522
    %v4528 = vmul.f32 %v4496, %v4522
    %v4529 = vmul.f32 %v4497, %v4522
    %v4530 = vmul.f32 %v4498, %v4522
    %v4532 = vlaneseq
    %v4533 = vshrl.u32 %v4532, 7
    %v4534 = vsub.s32 0, %v4533
    %v4535 = vrot.slane %v4477, %v4534
    %v4536 = vlaneseq
    %v4537 = vshrl.u32 %v4536, 7
    %v4538 = vsub.s32 1, %v4537
    %v4539 = vrot.slane %v4477, %v4538
    %v4540 = vlaneseq
    %v4541 = vshrl.u32 %v4540, 7
    %v4542 = vsub.s32 2, %v4541
    %v4543 = vrot.slane %v4477, %v4542
    %v4544 = vlaneseq
    %v4545 = vshrl.u32 %v4544, 7
    %v4546 = vsub.s32 3, %v4545
    %v4547 = vrot.slane %v4477, %v4546
    %v4552 = vmul.f32 %v4523, %v4535
    %v4553 = vmul.f32 %v4524, %v4539
    %v4554 = vmul.f32 %v4525, %v4543
    %v4555 = vmul.f32 %v4526, %v4547
    %v4556 = vmul.f32 %v4527, %v4535
    %v4557 = vmul.f32 %v4528, %v4539
    %v4558 = vmul.f32 %v4529, %v4543
    %v4559 = vmul.f32 %v4530, %v4547
    %v4561 = vlaneseq
    %v4562 = vshrl.u32 %v4561, 7
    %v4563 = vsub.s32 0, %v4562
    %v4564 = vrot.slane %v4478, %v4563
    %v4565 = vlaneseq
    %v4566 = vshrl.u32 %v4565, 7
    %v4567 = vsub.s32 1, %v4566
    %v4568 = vrot.slane %v4478, %v4567
    %v4569 = vlaneseq
    %v4570 = vshrl.u32 %v4569, 7
    %v4571 = vsub.s32 2, %v4570
    %v4572 = vrot.slane %v4478, %v4571
    %v4573 = vlaneseq
    %v4574 = vshrl.u32 %v4573, 7
    %v4575 = vsub.s32 3, %v4574
    %v4576 = vrot.slane %v4478, %v4575
    %v4581 = vadd.f32 %v4552, %v4564
    %v4582 = vadd.f32 %v4553, %v4568
    %v4583 = vadd.f32 %v4554, %v4572
    %v4584 = vadd.f32 %v4555, %v4576
    %v4585 = vadd.f32 %v4556, %v4564
    %v4586 = vadd.f32 %v4557, %v4568
    %v4587 = vadd.f32 %v4558, %v4572
    %v4588 = vadd.f32 %v4559, %v4576
    %v4589 = vld [vmem:[#allocation22] sm:$0xff]
    %v4590 = vld [vmem:[#allocation22 + $0x8] sm:$0xff]
    %v4591 = vld [vmem:[#allocation22 + $0x10] sm:$0xff]
    %v4592 = vld [vmem:[#allocation22 + $0x18] sm:$0xff]
    %v4593 = vld [vmem:[#allocation22 + $0x20] sm:$0xff]
    %v4594 = vld [vmem:[#allocation22 + $0x28] sm:$0xff]
    %v4595 = vld [vmem:[#allocation22 + $0x30] sm:$0xff]
    %v4596 = vld [vmem:[#allocation22 + $0x38] sm:$0xff]
    %v4597 = vld [vmem:[#allocation22 + $0x40] sm:$0xff]
    %v4598 = vld [vmem:[#allocation22 + $0x48] sm:$0xff]
    %v4599 = vld [vmem:[#allocation22 + $0x50] sm:$0xff]
    %v4600 = vld [vmem:[#allocation22 + $0x58] sm:$0xff]
    %v4601 = vld [vmem:[#allocation22 + $0x60] sm:$0xff]
    %v4602 = vld [vmem:[#allocation22 + $0x68] sm:$0xff]
    %v4603 = vld [vmem:[#allocation22 + $0x70] sm:$0xff]
    %v4604 = vld [vmem:[#allocation22 + $0x78] sm:$0xff]
    %v4605 = vld [vmem:[#allocation22 + $0x80] sm:$0xff]
    %v4606 = vld [vmem:[#allocation22 + $0x88] sm:$0xff]
    %v4607 = vld [vmem:[#allocation22 + $0x90] sm:$0xff]
    %v4608 = vld [vmem:[#allocation22 + $0x98] sm:$0xff]
    %v4609 = vld [vmem:[#allocation22 + $0xa0] sm:$0xff]
    %v4610 = vld [vmem:[#allocation22 + $0xa8] sm:$0xff]
    %v4611 = vld [vmem:[#allocation22 + $0xb0] sm:$0xff]
    %v4612 = vld [vmem:[#allocation22 + $0xb8] sm:$0xff]
    %v4613 = vld [vmem:[#allocation22 + $0xc0] sm:$0xff]
    %v4614 = vld [vmem:[#allocation22 + $0xc8] sm:$0xff]
    %v4615 = vld [vmem:[#allocation22 + $0xd0] sm:$0xff]
    %v4616 = vld [vmem:[#allocation22 + $0xd8] sm:$0xff]
    %v4617 = vld [vmem:[#allocation22 + $0xe0] sm:$0xff]
    %v4618 = vld [vmem:[#allocation22 + $0xe8] sm:$0xff]
    %v4619 = vld [vmem:[#allocation22 + $0xf0] sm:$0xff]
    %v4620 = vld [vmem:[#allocation22 + $0xf8] sm:$0xff]
    %v4621 = vld [vmem:[#allocation22 + $0x100] sm:$0xff]
    %v4622 = vld [vmem:[#allocation22 + $0x108] sm:$0xff]
    %v4623 = vld [vmem:[#allocation22 + $0x110] sm:$0xff]
    %v4624 = vld [vmem:[#allocation22 + $0x118] sm:$0xff]
    %v4625 = vld [vmem:[#allocation22 + $0x120] sm:$0xff]
    %v4626 = vld [vmem:[#allocation22 + $0x128] sm:$0xff]
    %v4627 = vld [vmem:[#allocation22 + $0x130] sm:$0xff]
    %v4628 = vld [vmem:[#allocation22 + $0x138] sm:$0xff]
    %v4629 = vld [vmem:[#allocation22 + $0x140] sm:$0xff]
    %v4630 = vld [vmem:[#allocation22 + $0x148] sm:$0xff]
    %v4631 = vld [vmem:[#allocation22 + $0x150] sm:$0xff]
    %v4632 = vld [vmem:[#allocation22 + $0x158] sm:$0xff]
    %v4633 = vld [vmem:[#allocation22 + $0x160] sm:$0xff]
    %v4634 = vld [vmem:[#allocation22 + $0x168] sm:$0xff]
    %v4635 = vld [vmem:[#allocation22 + $0x170] sm:$0xff]
    %v4636 = vld [vmem:[#allocation22 + $0x178] sm:$0xff]
    %v4637 = vld [vmem:[#allocation22 + $0x180] sm:$0xff]
    %v4638 = vld [vmem:[#allocation22 + $0x188] sm:$0xff]
    %v4639 = vld [vmem:[#allocation22 + $0x190] sm:$0xff]
    %v4640 = vld [vmem:[#allocation22 + $0x198] sm:$0xff]
    %v4641 = vld [vmem:[#allocation22 + $0x1a0] sm:$0xff]
    %v4642 = vld [vmem:[#allocation22 + $0x1a8] sm:$0xff]
    %v4643 = vld [vmem:[#allocation22 + $0x1b0] sm:$0xff]
    %v4644 = vld [vmem:[#allocation22 + $0x1b8] sm:$0xff]
    %v4645 = vld [vmem:[#allocation22 + $0x1c0] sm:$0xff]
    %v4646 = vld [vmem:[#allocation22 + $0x1c8] sm:$0xff]
    %v4647 = vld [vmem:[#allocation22 + $0x1d0] sm:$0xff]
    %v4648 = vld [vmem:[#allocation22 + $0x1d8] sm:$0xff]
    %v4649 = vld [vmem:[#allocation22 + $0x1e0] sm:$0xff]
    %v4650 = vld [vmem:[#allocation22 + $0x1e8] sm:$0xff]
    %v4651 = vld [vmem:[#allocation22 + $0x1f0] sm:$0xff]
    %v4652 = vld [vmem:[#allocation22 + $0x1f8] sm:$0xff]
    %v4653 = vld [vmem:[#allocation22 + $0x200] sm:$0xff]
    %v4654 = vld [vmem:[#allocation22 + $0x208] sm:$0xff]
    %v4655 = vld [vmem:[#allocation22 + $0x210] sm:$0xff]
    %v4656 = vld [vmem:[#allocation22 + $0x218] sm:$0xff]
    %v4657 = vld [vmem:[#allocation22 + $0x220] sm:$0xff]
    %v4658 = vld [vmem:[#allocation22 + $0x228] sm:$0xff]
    %v4659 = vld [vmem:[#allocation22 + $0x230] sm:$0xff]
    %v4660 = vld [vmem:[#allocation22 + $0x238] sm:$0xff]
    %v4661 = vld [vmem:[#allocation22 + $0x240] sm:$0xff]
    %v4662 = vld [vmem:[#allocation22 + $0x248] sm:$0xff]
    %v4663 = vld [vmem:[#allocation22 + $0x250] sm:$0xff]
    %v4664 = vld [vmem:[#allocation22 + $0x258] sm:$0xff]
    %v4665 = vld [vmem:[#allocation22 + $0x260] sm:$0xff]
    %v4666 = vld [vmem:[#allocation22 + $0x268] sm:$0xff]
    %v4667 = vld [vmem:[#allocation22 + $0x270] sm:$0xff]
    %v4668 = vld [vmem:[#allocation22 + $0x278] sm:$0xff]
    %v4669 = vld [vmem:[#allocation22 + $0x280] sm:$0xff]
    %v4670 = vld [vmem:[#allocation22 + $0x288] sm:$0xff]
    %v4671 = vld [vmem:[#allocation22 + $0x290] sm:$0xff]
    %v4672 = vld [vmem:[#allocation22 + $0x298] sm:$0xff]
    %v4673 = vld [vmem:[#allocation22 + $0x2a0] sm:$0xff]
    %v4674 = vld [vmem:[#allocation22 + $0x2a8] sm:$0xff]
    %v4675 = vld [vmem:[#allocation22 + $0x2b0] sm:$0xff]
    %v4676 = vld [vmem:[#allocation22 + $0x2b8] sm:$0xff]
    %v4677 = vld [vmem:[#allocation22 + $0x2c0] sm:$0xff]
    %v4678 = vld [vmem:[#allocation22 + $0x2c8] sm:$0xff]
    %v4679 = vld [vmem:[#allocation22 + $0x2d0] sm:$0xff]
    %v4680 = vld [vmem:[#allocation22 + $0x2d8] sm:$0xff]
    %v4681 = vld [vmem:[#allocation22 + $0x2e0] sm:$0xff]
    %v4682 = vld [vmem:[#allocation22 + $0x2e8] sm:$0xff]
    %v4683 = vld [vmem:[#allocation22 + $0x2f0] sm:$0xff]
    %v4684 = vld [vmem:[#allocation22 + $0x2f8] sm:$0xff]
    %v4685 = vld [vmem:[#allocation22 + $0x300] sm:$0xff]
    %v4686 = vld [vmem:[#allocation22 + $0x308] sm:$0xff]
    %v4687 = vld [vmem:[#allocation22 + $0x310] sm:$0xff]
    %v4688 = vld [vmem:[#allocation22 + $0x318] sm:$0xff]
    %v4689 = vld [vmem:[#allocation22 + $0x320] sm:$0xff]
    %v4690 = vld [vmem:[#allocation22 + $0x328] sm:$0xff]
    %v4691 = vld [vmem:[#allocation22 + $0x330] sm:$0xff]
    %v4692 = vld [vmem:[#allocation22 + $0x338] sm:$0xff]
    %v4693 = vld [vmem:[#allocation22 + $0x340] sm:$0xff]
    %v4694 = vld [vmem:[#allocation22 + $0x348] sm:$0xff]
    %v4695 = vld [vmem:[#allocation22 + $0x350] sm:$0xff]
    %v4696 = vld [vmem:[#allocation22 + $0x358] sm:$0xff]
    %v4697 = vld [vmem:[#allocation22 + $0x360] sm:$0xff]
    %v4698 = vld [vmem:[#allocation22 + $0x368] sm:$0xff]
    %v4699 = vld [vmem:[#allocation22 + $0x370] sm:$0xff]
    %v4700 = vld [vmem:[#allocation22 + $0x378] sm:$0xff]
    %v4701 = vld [vmem:[#allocation22 + $0x380] sm:$0xff]
    %v4702 = vld [vmem:[#allocation22 + $0x388] sm:$0xff]
    %v4703 = vld [vmem:[#allocation22 + $0x390] sm:$0xff]
    %v4704 = vld [vmem:[#allocation22 + $0x398] sm:$0xff]
    %v4705 = vld [vmem:[#allocation22 + $0x3a0] sm:$0xff]
    %v4706 = vld [vmem:[#allocation22 + $0x3a8] sm:$0xff]
    %v4707 = vld [vmem:[#allocation22 + $0x3b0] sm:$0xff]
    %v4708 = vld [vmem:[#allocation22 + $0x3b8] sm:$0xff]
    %v4709 = vld [vmem:[#allocation22 + $0x3c0] sm:$0xff]
    %v4710 = vld [vmem:[#allocation22 + $0x3c8] sm:$0xff]
    %v4711 = vld [vmem:[#allocation22 + $0x3d0] sm:$0xff]
    %v4712 = vld [vmem:[#allocation22 + $0x3d8] sm:$0xff]
    %v4713 = vld [vmem:[#allocation22 + $0x3e0] sm:$0xff]
    %v4714 = vld [vmem:[#allocation22 + $0x3e8] sm:$0xff]
    %v4715 = vld [vmem:[#allocation22 + $0x3f0] sm:$0xff]
    %v4716 = vld [vmem:[#allocation22 + $0x3f8] sm:$0xff]
    %v4717 = vld [vmem:[#allocation22 + $0x400] sm:$0xff]
    %v4718 = vld [vmem:[#allocation22 + $0x408] sm:$0xff]
    %v4719 = vld [vmem:[#allocation22 + $0x410] sm:$0xff]
    %v4720 = vld [vmem:[#allocation22 + $0x418] sm:$0xff]
    %v4721 = vld [vmem:[#allocation22 + $0x420] sm:$0xff]
    %v4722 = vld [vmem:[#allocation22 + $0x428] sm:$0xff]
    %v4723 = vld [vmem:[#allocation22 + $0x430] sm:$0xff]
    %v4724 = vld [vmem:[#allocation22 + $0x438] sm:$0xff]
    %v4725 = vld [vmem:[#allocation22 + $0x440] sm:$0xff]
    %v4726 = vld [vmem:[#allocation22 + $0x448] sm:$0xff]
    %v4727 = vld [vmem:[#allocation22 + $0x450] sm:$0xff]
    %v4728 = vld [vmem:[#allocation22 + $0x458] sm:$0xff]
    %v4729 = vld [vmem:[#allocation22 + $0x460] sm:$0xff]
    %v4730 = vld [vmem:[#allocation22 + $0x468] sm:$0xff]
    %v4731 = vld [vmem:[#allocation22 + $0x470] sm:$0xff]
    %v4732 = vld [vmem:[#allocation22 + $0x478] sm:$0xff]
    %v4733 = vld [vmem:[#allocation22 + $0x480] sm:$0xff]
    %v4734 = vld [vmem:[#allocation22 + $0x488] sm:$0xff]
    %v4735 = vld [vmem:[#allocation22 + $0x490] sm:$0xff]
    %v4736 = vld [vmem:[#allocation22 + $0x498] sm:$0xff]
    %v4737 = vld [vmem:[#allocation22 + $0x4a0] sm:$0xff]
    %v4738 = vld [vmem:[#allocation22 + $0x4a8] sm:$0xff]
    %v4739 = vld [vmem:[#allocation22 + $0x4b0] sm:$0xff]
    %v4740 = vld [vmem:[#allocation22 + $0x4b8] sm:$0xff]
    %v4741 = vld [vmem:[#allocation22 + $0x4c0] sm:$0xff]
    %v4742 = vld [vmem:[#allocation22 + $0x4c8] sm:$0xff]
    %v4743 = vld [vmem:[#allocation22 + $0x4d0] sm:$0xff]
    %v4744 = vld [vmem:[#allocation22 + $0x4d8] sm:$0xff]
    %v4745 = vld [vmem:[#allocation22 + $0x4e0] sm:$0xff]
    %v4746 = vld [vmem:[#allocation22 + $0x4e8] sm:$0xff]
    %v4747 = vld [vmem:[#allocation22 + $0x4f0] sm:$0xff]
    %v4748 = vld [vmem:[#allocation22 + $0x4f8] sm:$0xff]
    %v4749 = vld [vmem:[#allocation22 + $0x500] sm:$0xff]
    %v4750 = vld [vmem:[#allocation22 + $0x508] sm:$0xff]
    %v4751 = vld [vmem:[#allocation22 + $0x510] sm:$0xff]
    %v4752 = vld [vmem:[#allocation22 + $0x518] sm:$0xff]
    %v4753 = vld [vmem:[#allocation22 + $0x520] sm:$0xff]
    %v4754 = vld [vmem:[#allocation22 + $0x528] sm:$0xff]
    %v4755 = vld [vmem:[#allocation22 + $0x530] sm:$0xff]
    %v4756 = vld [vmem:[#allocation22 + $0x538] sm:$0xff]
    %v4757 = vld [vmem:[#allocation22 + $0x540] sm:$0xff]
    %v4758 = vld [vmem:[#allocation22 + $0x548] sm:$0xff]
    %v4759 = vld [vmem:[#allocation22 + $0x550] sm:$0xff]
    %v4760 = vld [vmem:[#allocation22 + $0x558] sm:$0xff]
    %v4761 = vld [vmem:[#allocation22 + $0x560] sm:$0xff]
    %v4762 = vld [vmem:[#allocation22 + $0x568] sm:$0xff]
    %v4763 = vld [vmem:[#allocation22 + $0x570] sm:$0xff]
    %v4764 = vld [vmem:[#allocation22 + $0x578] sm:$0xff]
    %v4765 = vld [vmem:[#allocation22 + $0x580] sm:$0xff]
    %v4766 = vld [vmem:[#allocation22 + $0x588] sm:$0xff]
    %v4767 = vld [vmem:[#allocation22 + $0x590] sm:$0xff]
    %v4768 = vld [vmem:[#allocation22 + $0x598] sm:$0xff]
    %v4769 = vld [vmem:[#allocation22 + $0x5a0] sm:$0xff]
    %v4770 = vld [vmem:[#allocation22 + $0x5a8] sm:$0xff]
    %v4771 = vld [vmem:[#allocation22 + $0x5b0] sm:$0xff]
    %v4772 = vld [vmem:[#allocation22 + $0x5b8] sm:$0xff]
    %v4773 = vld [vmem:[#allocation22 + $0x5c0] sm:$0xff]
    %v4774 = vld [vmem:[#allocation22 + $0x5c8] sm:$0xff]
    %v4775 = vld [vmem:[#allocation22 + $0x5d0] sm:$0xff]
    %v4776 = vld [vmem:[#allocation22 + $0x5d8] sm:$0xff]
    %v4777 = vld [vmem:[#allocation22 + $0x5e0] sm:$0xff]
    %v4778 = vld [vmem:[#allocation22 + $0x5e8] sm:$0xff]
    %v4779 = vld [vmem:[#allocation22 + $0x5f0] sm:$0xff]
    %v4780 = vld [vmem:[#allocation22 + $0x5f8] sm:$0xff]
    %v4781 = vld [vmem:[#allocation22 + $0x600] sm:$0xff]
    %v4782 = vld [vmem:[#allocation22 + $0x608] sm:$0xff]
    %v4783 = vld [vmem:[#allocation22 + $0x610] sm:$0xff]
    %v4784 = vld [vmem:[#allocation22 + $0x618] sm:$0xff]
    %v4785 = vld [vmem:[#allocation22 + $0x620] sm:$0xff]
    %v4786 = vld [vmem:[#allocation22 + $0x628] sm:$0xff]
    %v4787 = vld [vmem:[#allocation22 + $0x630] sm:$0xff]
    %v4788 = vld [vmem:[#allocation22 + $0x638] sm:$0xff]
    %v4789 = vld [vmem:[#allocation22 + $0x640] sm:$0xff]
    %v4790 = vld [vmem:[#allocation22 + $0x648] sm:$0xff]
    %v4791 = vld [vmem:[#allocation22 + $0x650] sm:$0xff]
    %v4792 = vld [vmem:[#allocation22 + $0x658] sm:$0xff]
    %v4793 = vld [vmem:[#allocation22 + $0x660] sm:$0xff]
    %v4794 = vld [vmem:[#allocation22 + $0x668] sm:$0xff]
    %v4795 = vld [vmem:[#allocation22 + $0x670] sm:$0xff]
    %v4796 = vld [vmem:[#allocation22 + $0x678] sm:$0xff]
    %v4797 = vld [vmem:[#allocation22 + $0x680] sm:$0xff]
    %v4798 = vld [vmem:[#allocation22 + $0x688] sm:$0xff]
    %v4799 = vld [vmem:[#allocation22 + $0x690] sm:$0xff]
    %v4800 = vld [vmem:[#allocation22 + $0x698] sm:$0xff]
    %v4801 = vld [vmem:[#allocation22 + $0x6a0] sm:$0xff]
    %v4802 = vld [vmem:[#allocation22 + $0x6a8] sm:$0xff]
    %v4803 = vld [vmem:[#allocation22 + $0x6b0] sm:$0xff]
    %v4804 = vld [vmem:[#allocation22 + $0x6b8] sm:$0xff]
    %v4805 = vld [vmem:[#allocation22 + $0x6c0] sm:$0xff]
    %v4806 = vld [vmem:[#allocation22 + $0x6c8] sm:$0xff]
    %v4807 = vld [vmem:[#allocation22 + $0x6d0] sm:$0xff]
    %v4808 = vld [vmem:[#allocation22 + $0x6d8] sm:$0xff]
    %v4809 = vld [vmem:[#allocation22 + $0x6e0] sm:$0xff]
    %v4810 = vld [vmem:[#allocation22 + $0x6e8] sm:$0xff]
    %v4811 = vld [vmem:[#allocation22 + $0x6f0] sm:$0xff]
    %v4812 = vld [vmem:[#allocation22 + $0x6f8] sm:$0xff]
    %v4813 = vld [vmem:[#allocation22 + $0x700] sm:$0xff]
    %v4814 = vld [vmem:[#allocation22 + $0x708] sm:$0xff]
    %v4815 = vld [vmem:[#allocation22 + $0x710] sm:$0xff]
    %v4816 = vld [vmem:[#allocation22 + $0x718] sm:$0xff]
    %v4817 = vld [vmem:[#allocation22 + $0x720] sm:$0xff]
    %v4818 = vld [vmem:[#allocation22 + $0x728] sm:$0xff]
    %v4819 = vld [vmem:[#allocation22 + $0x730] sm:$0xff]
    %v4820 = vld [vmem:[#allocation22 + $0x738] sm:$0xff]
    %v4821 = vld [vmem:[#allocation22 + $0x740] sm:$0xff]
    %v4822 = vld [vmem:[#allocation22 + $0x748] sm:$0xff]
    %v4823 = vld [vmem:[#allocation22 + $0x750] sm:$0xff]
    %v4824 = vld [vmem:[#allocation22 + $0x758] sm:$0xff]
    %v4825 = vld [vmem:[#allocation22 + $0x760] sm:$0xff]
    %v4826 = vld [vmem:[#allocation22 + $0x768] sm:$0xff]
    %v4827 = vld [vmem:[#allocation22 + $0x770] sm:$0xff]
    %v4828 = vld [vmem:[#allocation22 + $0x778] sm:$0xff]
    %v4829 = vld [vmem:[#allocation22 + $0x780] sm:$0xff]
    %v4830 = vld [vmem:[#allocation22 + $0x788] sm:$0xff]
    %v4831 = vld [vmem:[#allocation22 + $0x790] sm:$0xff]
    %v4832 = vld [vmem:[#allocation22 + $0x798] sm:$0xff]
    %v4833 = vld [vmem:[#allocation22 + $0x7a0] sm:$0xff]
    %v4834 = vld [vmem:[#allocation22 + $0x7a8] sm:$0xff]
    %v4835 = vld [vmem:[#allocation22 + $0x7b0] sm:$0xff]
    %v4836 = vld [vmem:[#allocation22 + $0x7b8] sm:$0xff]
    %v4837 = vld [vmem:[#allocation22 + $0x7c0] sm:$0xff]
    %v4838 = vld [vmem:[#allocation22 + $0x7c8] sm:$0xff]
    %v4839 = vld [vmem:[#allocation22 + $0x7d0] sm:$0xff]
    %v4840 = vld [vmem:[#allocation22 + $0x7d8] sm:$0xff]
    %v4841 = vld [vmem:[#allocation22 + $0x7e0] sm:$0xff]
    %v4842 = vld [vmem:[#allocation22 + $0x7e8] sm:$0xff]
    %v4843 = vld [vmem:[#allocation22 + $0x7f0] sm:$0xff]
    %v4844 = vld [vmem:[#allocation22 + $0x7f8] sm:$0xff]
    %v4845 = vld [vmem:[#allocation22 + $0x800] sm:$0xff]
    %v4846 = vld [vmem:[#allocation22 + $0x808] sm:$0xff]
    %v4847 = vld [vmem:[#allocation22 + $0x810] sm:$0xff]
    %v4848 = vld [vmem:[#allocation22 + $0x818] sm:$0xff]
    %v4849 = vld [vmem:[#allocation22 + $0x820] sm:$0xff]
    %v4850 = vld [vmem:[#allocation22 + $0x828] sm:$0xff]
    %v4851 = vld [vmem:[#allocation22 + $0x830] sm:$0xff]
    %v4852 = vld [vmem:[#allocation22 + $0x838] sm:$0xff]
    %v4853 = vld [vmem:[#allocation22 + $0x840] sm:$0xff]
    %v4854 = vld [vmem:[#allocation22 + $0x848] sm:$0xff]
    %v4855 = vld [vmem:[#allocation22 + $0x850] sm:$0xff]
    %v4856 = vld [vmem:[#allocation22 + $0x858] sm:$0xff]
    %v4857 = vld [vmem:[#allocation22 + $0x860] sm:$0xff]
    %v4858 = vld [vmem:[#allocation22 + $0x868] sm:$0xff]
    %v4859 = vld [vmem:[#allocation22 + $0x870] sm:$0xff]
    %v4860 = vld [vmem:[#allocation22 + $0x878] sm:$0xff]
    %v4861 = vld [vmem:[#allocation22 + $0x880] sm:$0xff]
    %v4862 = vld [vmem:[#allocation22 + $0x888] sm:$0xff]
    %v4863 = vld [vmem:[#allocation22 + $0x890] sm:$0xff]
    %v4864 = vld [vmem:[#allocation22 + $0x898] sm:$0xff]
    %v4865 = vld [vmem:[#allocation22 + $0x8a0] sm:$0xff]
    %v4866 = vld [vmem:[#allocation22 + $0x8a8] sm:$0xff]
    %v4867 = vld [vmem:[#allocation22 + $0x8b0] sm:$0xff]
    %v4868 = vld [vmem:[#allocation22 + $0x8b8] sm:$0xff]
    %v4869 = vld [vmem:[#allocation22 + $0x8c0] sm:$0xff]
    %v4870 = vld [vmem:[#allocation22 + $0x8c8] sm:$0xff]
    %v4871 = vld [vmem:[#allocation22 + $0x8d0] sm:$0xff]
    %v4872 = vld [vmem:[#allocation22 + $0x8d8] sm:$0xff]
    %v4873 = vld [vmem:[#allocation22 + $0x8e0] sm:$0xff]
    %v4874 = vld [vmem:[#allocation22 + $0x8e8] sm:$0xff]
    %v4875 = vld [vmem:[#allocation22 + $0x8f0] sm:$0xff]
    %v4876 = vld [vmem:[#allocation22 + $0x8f8] sm:$0xff]
    %v4877 = vld [vmem:[#allocation22 + $0x900] sm:$0xff]
    %v4878 = vld [vmem:[#allocation22 + $0x908] sm:$0xff]
    %v4879 = vld [vmem:[#allocation22 + $0x910] sm:$0xff]
    %v4880 = vld [vmem:[#allocation22 + $0x918] sm:$0xff]
    %v4881 = vld [vmem:[#allocation22 + $0x920] sm:$0xff]
    %v4882 = vld [vmem:[#allocation22 + $0x928] sm:$0xff]
    %v4883 = vld [vmem:[#allocation22 + $0x930] sm:$0xff]
    %v4884 = vld [vmem:[#allocation22 + $0x938] sm:$0xff]
    %v4885 = vld [vmem:[#allocation22 + $0x940] sm:$0xff]
    %v4886 = vld [vmem:[#allocation22 + $0x948] sm:$0xff]
    %v4887 = vld [vmem:[#allocation22 + $0x950] sm:$0xff]
    %v4888 = vld [vmem:[#allocation22 + $0x958] sm:$0xff]
    %v4889 = vld [vmem:[#allocation22 + $0x960] sm:$0xff]
    %v4890 = vld [vmem:[#allocation22 + $0x968] sm:$0xff]
    %v4891 = vld [vmem:[#allocation22 + $0x970] sm:$0xff]
    %v4892 = vld [vmem:[#allocation22 + $0x978] sm:$0xff]
    %v4893 = vld [vmem:[#allocation22 + $0x980] sm:$0xff]
    %v4894 = vld [vmem:[#allocation22 + $0x988] sm:$0xff]
    %v4895 = vld [vmem:[#allocation22 + $0x990] sm:$0xff]
    %v4896 = vld [vmem:[#allocation22 + $0x998] sm:$0xff]
    %v4897 = vld [vmem:[#allocation22 + $0x9a0] sm:$0xff]
    %v4898 = vld [vmem:[#allocation22 + $0x9a8] sm:$0xff]
    %v4899 = vld [vmem:[#allocation22 + $0x9b0] sm:$0xff]
    %v4900 = vld [vmem:[#allocation22 + $0x9b8] sm:$0xff]
    %v4901 = vld [vmem:[#allocation22 + $0x9c0] sm:$0xff]
    %v4902 = vld [vmem:[#allocation22 + $0x9c8] sm:$0xff]
    %v4903 = vld [vmem:[#allocation22 + $0x9d0] sm:$0xff]
    %v4904 = vld [vmem:[#allocation22 + $0x9d8] sm:$0xff]
    %v4905 = vld [vmem:[#allocation22 + $0x9e0] sm:$0xff]
    %v4906 = vld [vmem:[#allocation22 + $0x9e8] sm:$0xff]
    %v4907 = vld [vmem:[#allocation22 + $0x9f0] sm:$0xff]
    %v4908 = vld [vmem:[#allocation22 + $0x9f8] sm:$0xff]
    %v4909 = vld [vmem:[#allocation22 + $0xa00] sm:$0xff]
    %v4910 = vld [vmem:[#allocation22 + $0xa08] sm:$0xff]
    %v4911 = vld [vmem:[#allocation22 + $0xa10] sm:$0xff]
    %v4912 = vld [vmem:[#allocation22 + $0xa18] sm:$0xff]
    %v4913 = vld [vmem:[#allocation22 + $0xa20] sm:$0xff]
    %v4914 = vld [vmem:[#allocation22 + $0xa28] sm:$0xff]
    %v4915 = vld [vmem:[#allocation22 + $0xa30] sm:$0xff]
    %v4916 = vld [vmem:[#allocation22 + $0xa38] sm:$0xff]
    %v4917 = vld [vmem:[#allocation22 + $0xa40] sm:$0xff]
    %v4918 = vld [vmem:[#allocation22 + $0xa48] sm:$0xff]
    %v4919 = vld [vmem:[#allocation22 + $0xa50] sm:$0xff]
    %v4920 = vld [vmem:[#allocation22 + $0xa58] sm:$0xff]
    %v4921 = vld [vmem:[#allocation22 + $0xa60] sm:$0xff]
    %v4922 = vld [vmem:[#allocation22 + $0xa68] sm:$0xff]
    %v4923 = vld [vmem:[#allocation22 + $0xa70] sm:$0xff]
    %v4924 = vld [vmem:[#allocation22 + $0xa78] sm:$0xff]
    %v4925 = vld [vmem:[#allocation22 + $0xa80] sm:$0xff]
    %v4926 = vld [vmem:[#allocation22 + $0xa88] sm:$0xff]
    %v4927 = vld [vmem:[#allocation22 + $0xa90] sm:$0xff]
    %v4928 = vld [vmem:[#allocation22 + $0xa98] sm:$0xff]
    %v4929 = vld [vmem:[#allocation22 + $0xaa0] sm:$0xff]
    %v4930 = vld [vmem:[#allocation22 + $0xaa8] sm:$0xff]
    %v4931 = vld [vmem:[#allocation22 + $0xab0] sm:$0xff]
    %v4932 = vld [vmem:[#allocation22 + $0xab8] sm:$0xff]
    %v4933 = vld [vmem:[#allocation22 + $0xac0] sm:$0xff]
    %v4934 = vld [vmem:[#allocation22 + $0xac8] sm:$0xff]
    %v4935 = vld [vmem:[#allocation22 + $0xad0] sm:$0xff]
    %v4936 = vld [vmem:[#allocation22 + $0xad8] sm:$0xff]
    %v4937 = vld [vmem:[#allocation22 + $0xae0] sm:$0xff]
    %v4938 = vld [vmem:[#allocation22 + $0xae8] sm:$0xff]
    %v4939 = vld [vmem:[#allocation22 + $0xaf0] sm:$0xff]
    %v4940 = vld [vmem:[#allocation22 + $0xaf8] sm:$0xff]
    %v4941 = vld [vmem:[#allocation22 + $0xb00] sm:$0xff]
    %v4942 = vld [vmem:[#allocation22 + $0xb08] sm:$0xff]
    %v4943 = vld [vmem:[#allocation22 + $0xb10] sm:$0xff]
    %v4944 = vld [vmem:[#allocation22 + $0xb18] sm:$0xff]
    %v4945 = vld [vmem:[#allocation22 + $0xb20] sm:$0xff]
    %v4946 = vld [vmem:[#allocation22 + $0xb28] sm:$0xff]
    %v4947 = vld [vmem:[#allocation22 + $0xb30] sm:$0xff]
    %v4948 = vld [vmem:[#allocation22 + $0xb38] sm:$0xff]
    %v4949 = vld [vmem:[#allocation22 + $0xb40] sm:$0xff]
    %v4950 = vld [vmem:[#allocation22 + $0xb48] sm:$0xff]
    %v4951 = vld [vmem:[#allocation22 + $0xb50] sm:$0xff]
    %v4952 = vld [vmem:[#allocation22 + $0xb58] sm:$0xff]
    %v4953 = vld [vmem:[#allocation22 + $0xb60] sm:$0xff]
    %v4954 = vld [vmem:[#allocation22 + $0xb68] sm:$0xff]
    %v4955 = vld [vmem:[#allocation22 + $0xb70] sm:$0xff]
    %v4956 = vld [vmem:[#allocation22 + $0xb78] sm:$0xff]
    %v4957 = vld [vmem:[#allocation22 + $0xb80] sm:$0xff]
    %v4958 = vld [vmem:[#allocation22 + $0xb88] sm:$0xff]
    %v4959 = vld [vmem:[#allocation22 + $0xb90] sm:$0xff]
    %v4960 = vld [vmem:[#allocation22 + $0xb98] sm:$0xff]
    %v4961 = vld [vmem:[#allocation22 + $0xba0] sm:$0xff]
    %v4962 = vld [vmem:[#allocation22 + $0xba8] sm:$0xff]
    %v4963 = vld [vmem:[#allocation22 + $0xbb0] sm:$0xff]
    %v4964 = vld [vmem:[#allocation22 + $0xbb8] sm:$0xff]
    %v4965 = vld [vmem:[#allocation22 + $0xbc0] sm:$0xff]
    %v4966 = vld [vmem:[#allocation22 + $0xbc8] sm:$0xff]
    %v4967 = vld [vmem:[#allocation22 + $0xbd0] sm:$0xff]
    %v4968 = vld [vmem:[#allocation22 + $0xbd8] sm:$0xff]
    %v4969 = vld [vmem:[#allocation22 + $0xbe0] sm:$0xff]
    %v4970 = vld [vmem:[#allocation22 + $0xbe8] sm:$0xff]
    %v4971 = vld [vmem:[#allocation22 + $0xbf0] sm:$0xff]
    %v4972 = vld [vmem:[#allocation22 + $0xbf8] sm:$0xff]
    %v4973 = vld [vmem:[#allocation22 + $0xc00] sm:$0xff]
    %v4974 = vld [vmem:[#allocation22 + $0xc08] sm:$0xff]
    %v4975 = vld [vmem:[#allocation22 + $0xc10] sm:$0xff]
    %v4976 = vld [vmem:[#allocation22 + $0xc18] sm:$0xff]
    %v4977 = vld [vmem:[#allocation22 + $0xc20] sm:$0xff]
    %v4978 = vld [vmem:[#allocation22 + $0xc28] sm:$0xff]
    %v4979 = vld [vmem:[#allocation22 + $0xc30] sm:$0xff]
    %v4980 = vld [vmem:[#allocation22 + $0xc38] sm:$0xff]
    %v4981 = vld [vmem:[#allocation22 + $0xc40] sm:$0xff]
    %v4982 = vld [vmem:[#allocation22 + $0xc48] sm:$0xff]
    %v4983 = vld [vmem:[#allocation22 + $0xc50] sm:$0xff]
    %v4984 = vld [vmem:[#allocation22 + $0xc58] sm:$0xff]
    %v4985 = vld [vmem:[#allocation22 + $0xc60] sm:$0xff]
    %v4986 = vld [vmem:[#allocation22 + $0xc68] sm:$0xff]
    %v4987 = vld [vmem:[#allocation22 + $0xc70] sm:$0xff]
    %v4988 = vld [vmem:[#allocation22 + $0xc78] sm:$0xff]
    %v4989 = vld [vmem:[#allocation22 + $0xc80] sm:$0xff]
    %v4990 = vld [vmem:[#allocation22 + $0xc88] sm:$0xff]
    %v4991 = vld [vmem:[#allocation22 + $0xc90] sm:$0xff]
    %v4992 = vld [vmem:[#allocation22 + $0xc98] sm:$0xff]
    %v4993 = vld [vmem:[#allocation22 + $0xca0] sm:$0xff]
    %v4994 = vld [vmem:[#allocation22 + $0xca8] sm:$0xff]
    %v4995 = vld [vmem:[#allocation22 + $0xcb0] sm:$0xff]
    %v4996 = vld [vmem:[#allocation22 + $0xcb8] sm:$0xff]
    %v4997 = vld [vmem:[#allocation22 + $0xcc0] sm:$0xff]
    %v4998 = vld [vmem:[#allocation22 + $0xcc8] sm:$0xff]
    %v4999 = vld [vmem:[#allocation22 + $0xcd0] sm:$0xff]
    %v5000 = vld [vmem:[#allocation22 + $0xcd8] sm:$0xff]
    %v5001 = vld [vmem:[#allocation22 + $0xce0] sm:$0xff]
    %v5002 = vld [vmem:[#allocation22 + $0xce8] sm:$0xff]
    %v5003 = vld [vmem:[#allocation22 + $0xcf0] sm:$0xff]
    %v5004 = vld [vmem:[#allocation22 + $0xcf8] sm:$0xff]
    %v5005 = vld [vmem:[#allocation22 + $0xd00] sm:$0xff]
    %v5006 = vld [vmem:[#allocation22 + $0xd08] sm:$0xff]
    %v5007 = vld [vmem:[#allocation22 + $0xd10] sm:$0xff]
    %v5008 = vld [vmem:[#allocation22 + $0xd18] sm:$0xff]
    %v5009 = vld [vmem:[#allocation22 + $0xd20] sm:$0xff]
    %v5010 = vld [vmem:[#allocation22 + $0xd28] sm:$0xff]
    %v5011 = vld [vmem:[#allocation22 + $0xd30] sm:$0xff]
    %v5012 = vld [vmem:[#allocation22 + $0xd38] sm:$0xff]
    %v5013 = vld [vmem:[#allocation22 + $0xd40] sm:$0xff]
    %v5014 = vld [vmem:[#allocation22 + $0xd48] sm:$0xff]
    %v5015 = vld [vmem:[#allocation22 + $0xd50] sm:$0xff]
    %v5016 = vld [vmem:[#allocation22 + $0xd58] sm:$0xff]
    %v5017 = vld [vmem:[#allocation22 + $0xd60] sm:$0xff]
    %v5018 = vld [vmem:[#allocation22 + $0xd68] sm:$0xff]
    %v5019 = vld [vmem:[#allocation22 + $0xd70] sm:$0xff]
    %v5020 = vld [vmem:[#allocation22 + $0xd78] sm:$0xff]
    %v5021 = vld [vmem:[#allocation22 + $0xd80] sm:$0xff]
    %v5022 = vld [vmem:[#allocation22 + $0xd88] sm:$0xff]
    %v5023 = vld [vmem:[#allocation22 + $0xd90] sm:$0xff]
    %v5024 = vld [vmem:[#allocation22 + $0xd98] sm:$0xff]
    %v5025 = vld [vmem:[#allocation22 + $0xda0] sm:$0xff]
    %v5026 = vld [vmem:[#allocation22 + $0xda8] sm:$0xff]
    %v5027 = vld [vmem:[#allocation22 + $0xdb0] sm:$0xff]
    %v5028 = vld [vmem:[#allocation22 + $0xdb8] sm:$0xff]
    %v5029 = vld [vmem:[#allocation22 + $0xdc0] sm:$0xff]
    %v5030 = vld [vmem:[#allocation22 + $0xdc8] sm:$0xff]
    %v5031 = vld [vmem:[#allocation22 + $0xdd0] sm:$0xff]
    %v5032 = vld [vmem:[#allocation22 + $0xdd8] sm:$0xff]
    %v5033 = vld [vmem:[#allocation22 + $0xde0] sm:$0xff]
    %v5034 = vld [vmem:[#allocation22 + $0xde8] sm:$0xff]
    %v5035 = vld [vmem:[#allocation22 + $0xdf0] sm:$0xff]
    %v5036 = vld [vmem:[#allocation22 + $0xdf8] sm:$0xff]
    %v5037 = vld [vmem:[#allocation22 + $0xe00] sm:$0xff]
    %v5038 = vld [vmem:[#allocation22 + $0xe08] sm:$0xff]
    %v5039 = vld [vmem:[#allocation22 + $0xe10] sm:$0xff]
    %v5040 = vld [vmem:[#allocation22 + $0xe18] sm:$0xff]
    %v5041 = vld [vmem:[#allocation22 + $0xe20] sm:$0xff]
    %v5042 = vld [vmem:[#allocation22 + $0xe28] sm:$0xff]
    %v5043 = vld [vmem:[#allocation22 + $0xe30] sm:$0xff]
    %v5044 = vld [vmem:[#allocation22 + $0xe38] sm:$0xff]
    %v5045 = vld [vmem:[#allocation22 + $0xe40] sm:$0xff]
    %v5046 = vld [vmem:[#allocation22 + $0xe48] sm:$0xff]
    %v5047 = vld [vmem:[#allocation22 + $0xe50] sm:$0xff]
    %v5048 = vld [vmem:[#allocation22 + $0xe58] sm:$0xff]
    %v5049 = vld [vmem:[#allocation22 + $0xe60] sm:$0xff]
    %v5050 = vld [vmem:[#allocation22 + $0xe68] sm:$0xff]
    %v5051 = vld [vmem:[#allocation22 + $0xe70] sm:$0xff]
    %v5052 = vld [vmem:[#allocation22 + $0xe78] sm:$0xff]
    %v5053 = vld [vmem:[#allocation22 + $0xe80] sm:$0xff]
    %v5054 = vld [vmem:[#allocation22 + $0xe88] sm:$0xff]
    %v5055 = vld [vmem:[#allocation22 + $0xe90] sm:$0xff]
    %v5056 = vld [vmem:[#allocation22 + $0xe98] sm:$0xff]
    %v5057 = vld [vmem:[#allocation22 + $0xea0] sm:$0xff]
    %v5058 = vld [vmem:[#allocation22 + $0xea8] sm:$0xff]
    %v5059 = vld [vmem:[#allocation22 + $0xeb0] sm:$0xff]
    %v5060 = vld [vmem:[#allocation22 + $0xeb8] sm:$0xff]
    %v5061 = vld [vmem:[#allocation22 + $0xec0] sm:$0xff]
    %v5062 = vld [vmem:[#allocation22 + $0xec8] sm:$0xff]
    %v5063 = vld [vmem:[#allocation22 + $0xed0] sm:$0xff]
    %v5064 = vld [vmem:[#allocation22 + $0xed8] sm:$0xff]
    %v5065 = vld [vmem:[#allocation22 + $0xee0] sm:$0xff]
    %v5066 = vld [vmem:[#allocation22 + $0xee8] sm:$0xff]
    %v5067 = vld [vmem:[#allocation22 + $0xef0] sm:$0xff]
    %v5068 = vld [vmem:[#allocation22 + $0xef8] sm:$0xff]
    %v5069 = vld [vmem:[#allocation22 + $0xf00] sm:$0xff]
    %v5070 = vld [vmem:[#allocation22 + $0xf08] sm:$0xff]
    %v5071 = vld [vmem:[#allocation22 + $0xf10] sm:$0xff]
    %v5072 = vld [vmem:[#allocation22 + $0xf18] sm:$0xff]
    %v5073 = vld [vmem:[#allocation22 + $0xf20] sm:$0xff]
    %v5074 = vld [vmem:[#allocation22 + $0xf28] sm:$0xff]
    %v5075 = vld [vmem:[#allocation22 + $0xf30] sm:$0xff]
    %v5076 = vld [vmem:[#allocation22 + $0xf38] sm:$0xff]
    %v5077 = vld [vmem:[#allocation22 + $0xf40] sm:$0xff]
    %v5078 = vld [vmem:[#allocation22 + $0xf48] sm:$0xff]
    %v5079 = vld [vmem:[#allocation22 + $0xf50] sm:$0xff]
    %v5080 = vld [vmem:[#allocation22 + $0xf58] sm:$0xff]
    %v5081 = vld [vmem:[#allocation22 + $0xf60] sm:$0xff]
    %v5082 = vld [vmem:[#allocation22 + $0xf68] sm:$0xff]
    %v5083 = vld [vmem:[#allocation22 + $0xf70] sm:$0xff]
    %v5084 = vld [vmem:[#allocation22 + $0xf78] sm:$0xff]
    %v5085 = vld [vmem:[#allocation22 + $0xf80] sm:$0xff]
    %v5086 = vld [vmem:[#allocation22 + $0xf88] sm:$0xff]
    %v5087 = vld [vmem:[#allocation22 + $0xf90] sm:$0xff]
    %v5088 = vld [vmem:[#allocation22 + $0xf98] sm:$0xff]
    %v5089 = vld [vmem:[#allocation22 + $0xfa0] sm:$0xff]
    %v5090 = vld [vmem:[#allocation22 + $0xfa8] sm:$0xff]
    %v5091 = vld [vmem:[#allocation22 + $0xfb0] sm:$0xff]
    %v5092 = vld [vmem:[#allocation22 + $0xfb8] sm:$0xff]
    %v5093 = vld [vmem:[#allocation22 + $0xfc0] sm:$0xff]
    %v5094 = vld [vmem:[#allocation22 + $0xfc8] sm:$0xff]
    %v5095 = vld [vmem:[#allocation22 + $0xfd0] sm:$0xff]
    %v5096 = vld [vmem:[#allocation22 + $0xfd8] sm:$0xff]
    %v5097 = vld [vmem:[#allocation22 + $0xfe0] sm:$0xff]
    %v5098 = vld [vmem:[#allocation22 + $0xfe8] sm:$0xff]
    %v5099 = vld [vmem:[#allocation22 + $0xff0] sm:$0xff]
    %v5100 = vld [vmem:[#allocation22 + $0xff8] sm:$0xff]
    %v5101 = vunpack.c.l.bf16 %v4589
    %v5102 = vunpack.c.h.bf16 %v4589
    %v5103 = vunpack.c.l.bf16 %v4590
    %v5104 = vunpack.c.h.bf16 %v4590
    %v5105 = vunpack.c.l.bf16 %v4591
    %v5106 = vunpack.c.h.bf16 %v4591
    %v5107 = vunpack.c.l.bf16 %v4592
    %v5108 = vunpack.c.h.bf16 %v4592
    %v5109 = vunpack.c.l.bf16 %v4593
    %v5110 = vunpack.c.h.bf16 %v4593
    %v5111 = vunpack.c.l.bf16 %v4594
    %v5112 = vunpack.c.h.bf16 %v4594
    %v5113 = vunpack.c.l.bf16 %v4595
    %v5114 = vunpack.c.h.bf16 %v4595
    %v5115 = vunpack.c.l.bf16 %v4596
    %v5116 = vunpack.c.h.bf16 %v4596
    %v5117 = vunpack.c.l.bf16 %v4597
    %v5118 = vunpack.c.h.bf16 %v4597
    %v5119 = vunpack.c.l.bf16 %v4598
    %v5120 = vunpack.c.h.bf16 %v4598
    %v5121 = vunpack.c.l.bf16 %v4599
    %v5122 = vunpack.c.h.bf16 %v4599
    %v5123 = vunpack.c.l.bf16 %v4600
    %v5124 = vunpack.c.h.bf16 %v4600
    %v5125 = vunpack.c.l.bf16 %v4601
    %v5126 = vunpack.c.h.bf16 %v4601
    %v5127 = vunpack.c.l.bf16 %v4602
    %v5128 = vunpack.c.h.bf16 %v4602
    %v5129 = vunpack.c.l.bf16 %v4603
    %v5130 = vunpack.c.h.bf16 %v4603
    %v5131 = vunpack.c.l.bf16 %v4604
    %v5132 = vunpack.c.h.bf16 %v4604
    %v5133 = vunpack.c.l.bf16 %v4605
    %v5134 = vunpack.c.h.bf16 %v4605
    %v5135 = vunpack.c.l.bf16 %v4606
    %v5136 = vunpack.c.h.bf16 %v4606
    %v5137 = vunpack.c.l.bf16 %v4607
    %v5138 = vunpack.c.h.bf16 %v4607
    %v5139 = vunpack.c.l.bf16 %v4608
    %v5140 = vunpack.c.h.bf16 %v4608
    %v5141 = vunpack.c.l.bf16 %v4609
    %v5142 = vunpack.c.h.bf16 %v4609
    %v5143 = vunpack.c.l.bf16 %v4610
    %v5144 = vunpack.c.h.bf16 %v4610
    %v5145 = vunpack.c.l.bf16 %v4611
    %v5146 = vunpack.c.h.bf16 %v4611
    %v5147 = vunpack.c.l.bf16 %v4612
    %v5148 = vunpack.c.h.bf16 %v4612
    %v5149 = vunpack.c.l.bf16 %v4613
    %v5150 = vunpack.c.h.bf16 %v4613
    %v5151 = vunpack.c.l.bf16 %v4614
    %v5152 = vunpack.c.h.bf16 %v4614
    %v5153 = vunpack.c.l.bf16 %v4615
    %v5154 = vunpack.c.h.bf16 %v4615
    %v5155 = vunpack.c.l.bf16 %v4616
    %v5156 = vunpack.c.h.bf16 %v4616
    %v5157 = vunpack.c.l.bf16 %v4617
    %v5158 = vunpack.c.h.bf16 %v4617
    %v5159 = vunpack.c.l.bf16 %v4618
    %v5160 = vunpack.c.h.bf16 %v4618
    %v5161 = vunpack.c.l.bf16 %v4619
    %v5162 = vunpack.c.h.bf16 %v4619
    %v5163 = vunpack.c.l.bf16 %v4620
    %v5164 = vunpack.c.h.bf16 %v4620
    %v5165 = vunpack.c.l.bf16 %v4621
    %v5166 = vunpack.c.h.bf16 %v4621
    %v5167 = vunpack.c.l.bf16 %v4622
    %v5168 = vunpack.c.h.bf16 %v4622
    %v5169 = vunpack.c.l.bf16 %v4623
    %v5170 = vunpack.c.h.bf16 %v4623
    %v5171 = vunpack.c.l.bf16 %v4624
    %v5172 = vunpack.c.h.bf16 %v4624
    %v5173 = vunpack.c.l.bf16 %v4625
    %v5174 = vunpack.c.h.bf16 %v4625
    %v5175 = vunpack.c.l.bf16 %v4626
    %v5176 = vunpack.c.h.bf16 %v4626
    %v5177 = vunpack.c.l.bf16 %v4627
    %v5178 = vunpack.c.h.bf16 %v4627
    %v5179 = vunpack.c.l.bf16 %v4628
    %v5180 = vunpack.c.h.bf16 %v4628
    %v5181 = vunpack.c.l.bf16 %v4629
    %v5182 = vunpack.c.h.bf16 %v4629
    %v5183 = vunpack.c.l.bf16 %v4630
    %v5184 = vunpack.c.h.bf16 %v4630
    %v5185 = vunpack.c.l.bf16 %v4631
    %v5186 = vunpack.c.h.bf16 %v4631
    %v5187 = vunpack.c.l.bf16 %v4632
    %v5188 = vunpack.c.h.bf16 %v4632
    %v5189 = vunpack.c.l.bf16 %v4633
    %v5190 = vunpack.c.h.bf16 %v4633
    %v5191 = vunpack.c.l.bf16 %v4634
    %v5192 = vunpack.c.h.bf16 %v4634
    %v5193 = vunpack.c.l.bf16 %v4635
    %v5194 = vunpack.c.h.bf16 %v4635
    %v5195 = vunpack.c.l.bf16 %v4636
    %v5196 = vunpack.c.h.bf16 %v4636
    %v5197 = vunpack.c.l.bf16 %v4637
    %v5198 = vunpack.c.h.bf16 %v4637
    %v5199 = vunpack.c.l.bf16 %v4638
    %v5200 = vunpack.c.h.bf16 %v4638
    %v5201 = vunpack.c.l.bf16 %v4639
    %v5202 = vunpack.c.h.bf16 %v4639
    %v5203 = vunpack.c.l.bf16 %v4640
    %v5204 = vunpack.c.h.bf16 %v4640
    %v5205 = vunpack.c.l.bf16 %v4641
    %v5206 = vunpack.c.h.bf16 %v4641
    %v5207 = vunpack.c.l.bf16 %v4642
    %v5208 = vunpack.c.h.bf16 %v4642
    %v5209 = vunpack.c.l.bf16 %v4643
    %v5210 = vunpack.c.h.bf16 %v4643
    %v5211 = vunpack.c.l.bf16 %v4644
    %v5212 = vunpack.c.h.bf16 %v4644
    %v5213 = vunpack.c.l.bf16 %v4645
    %v5214 = vunpack.c.h.bf16 %v4645
    %v5215 = vunpack.c.l.bf16 %v4646
    %v5216 = vunpack.c.h.bf16 %v4646
    %v5217 = vunpack.c.l.bf16 %v4647
    %v5218 = vunpack.c.h.bf16 %v4647
    %v5219 = vunpack.c.l.bf16 %v4648
    %v5220 = vunpack.c.h.bf16 %v4648
    %v5221 = vunpack.c.l.bf16 %v4649
    %v5222 = vunpack.c.h.bf16 %v4649
    %v5223 = vunpack.c.l.bf16 %v4650
    %v5224 = vunpack.c.h.bf16 %v4650
    %v5225 = vunpack.c.l.bf16 %v4651
    %v5226 = vunpack.c.h.bf16 %v4651
    %v5227 = vunpack.c.l.bf16 %v4652
    %v5228 = vunpack.c.h.bf16 %v4652
    %v5229 = vunpack.c.l.bf16 %v4653
    %v5230 = vunpack.c.h.bf16 %v4653
    %v5231 = vunpack.c.l.bf16 %v4654
    %v5232 = vunpack.c.h.bf16 %v4654
    %v5233 = vunpack.c.l.bf16 %v4655
    %v5234 = vunpack.c.h.bf16 %v4655
    %v5235 = vunpack.c.l.bf16 %v4656
    %v5236 = vunpack.c.h.bf16 %v4656
    %v5237 = vunpack.c.l.bf16 %v4657
    %v5238 = vunpack.c.h.bf16 %v4657
    %v5239 = vunpack.c.l.bf16 %v4658
    %v5240 = vunpack.c.h.bf16 %v4658
    %v5241 = vunpack.c.l.bf16 %v4659
    %v5242 = vunpack.c.h.bf16 %v4659
    %v5243 = vunpack.c.l.bf16 %v4660
    %v5244 = vunpack.c.h.bf16 %v4660
    %v5245 = vunpack.c.l.bf16 %v4661
    %v5246 = vunpack.c.h.bf16 %v4661
    %v5247 = vunpack.c.l.bf16 %v4662
    %v5248 = vunpack.c.h.bf16 %v4662
    %v5249 = vunpack.c.l.bf16 %v4663
    %v5250 = vunpack.c.h.bf16 %v4663
    %v5251 = vunpack.c.l.bf16 %v4664
    %v5252 = vunpack.c.h.bf16 %v4664
    %v5253 = vunpack.c.l.bf16 %v4665
    %v5254 = vunpack.c.h.bf16 %v4665
    %v5255 = vunpack.c.l.bf16 %v4666
    %v5256 = vunpack.c.h.bf16 %v4666
    %v5257 = vunpack.c.l.bf16 %v4667
    %v5258 = vunpack.c.h.bf16 %v4667
    %v5259 = vunpack.c.l.bf16 %v4668
    %v5260 = vunpack.c.h.bf16 %v4668
    %v5261 = vunpack.c.l.bf16 %v4669
    %v5262 = vunpack.c.h.bf16 %v4669
    %v5263 = vunpack.c.l.bf16 %v4670
    %v5264 = vunpack.c.h.bf16 %v4670
    %v5265 = vunpack.c.l.bf16 %v4671
    %v5266 = vunpack.c.h.bf16 %v4671
    %v5267 = vunpack.c.l.bf16 %v4672
    %v5268 = vunpack.c.h.bf16 %v4672
    %v5269 = vunpack.c.l.bf16 %v4673
    %v5270 = vunpack.c.h.bf16 %v4673
    %v5271 = vunpack.c.l.bf16 %v4674
    %v5272 = vunpack.c.h.bf16 %v4674
    %v5273 = vunpack.c.l.bf16 %v4675
    %v5274 = vunpack.c.h.bf16 %v4675
    %v5275 = vunpack.c.l.bf16 %v4676
    %v5276 = vunpack.c.h.bf16 %v4676
    %v5277 = vunpack.c.l.bf16 %v4677
    %v5278 = vunpack.c.h.bf16 %v4677
    %v5279 = vunpack.c.l.bf16 %v4678
    %v5280 = vunpack.c.h.bf16 %v4678
    %v5281 = vunpack.c.l.bf16 %v4679
    %v5282 = vunpack.c.h.bf16 %v4679
    %v5283 = vunpack.c.l.bf16 %v4680
    %v5284 = vunpack.c.h.bf16 %v4680
    %v5285 = vunpack.c.l.bf16 %v4681
    %v5286 = vunpack.c.h.bf16 %v4681
    %v5287 = vunpack.c.l.bf16 %v4682
    %v5288 = vunpack.c.h.bf16 %v4682
    %v5289 = vunpack.c.l.bf16 %v4683
    %v5290 = vunpack.c.h.bf16 %v4683
    %v5291 = vunpack.c.l.bf16 %v4684
    %v5292 = vunpack.c.h.bf16 %v4684
    %v5293 = vunpack.c.l.bf16 %v4685
    %v5294 = vunpack.c.h.bf16 %v4685
    %v5295 = vunpack.c.l.bf16 %v4686
    %v5296 = vunpack.c.h.bf16 %v4686
    %v5297 = vunpack.c.l.bf16 %v4687
    %v5298 = vunpack.c.h.bf16 %v4687
    %v5299 = vunpack.c.l.bf16 %v4688
    %v5300 = vunpack.c.h.bf16 %v4688
    %v5301 = vunpack.c.l.bf16 %v4689
    %v5302 = vunpack.c.h.bf16 %v4689
    %v5303 = vunpack.c.l.bf16 %v4690
    %v5304 = vunpack.c.h.bf16 %v4690
    %v5305 = vunpack.c.l.bf16 %v4691
    %v5306 = vunpack.c.h.bf16 %v4691
    %v5307 = vunpack.c.l.bf16 %v4692
    %v5308 = vunpack.c.h.bf16 %v4692
    %v5309 = vunpack.c.l.bf16 %v4693
    %v5310 = vunpack.c.h.bf16 %v4693
    %v5311 = vunpack.c.l.bf16 %v4694
    %v5312 = vunpack.c.h.bf16 %v4694
    %v5313 = vunpack.c.l.bf16 %v4695
    %v5314 = vunpack.c.h.bf16 %v4695
    %v5315 = vunpack.c.l.bf16 %v4696
    %v5316 = vunpack.c.h.bf16 %v4696
    %v5317 = vunpack.c.l.bf16 %v4697
    %v5318 = vunpack.c.h.bf16 %v4697
    %v5319 = vunpack.c.l.bf16 %v4698
    %v5320 = vunpack.c.h.bf16 %v4698
    %v5321 = vunpack.c.l.bf16 %v4699
    %v5322 = vunpack.c.h.bf16 %v4699
    %v5323 = vunpack.c.l.bf16 %v4700
    %v5324 = vunpack.c.h.bf16 %v4700
    %v5325 = vunpack.c.l.bf16 %v4701
    %v5326 = vunpack.c.h.bf16 %v4701
    %v5327 = vunpack.c.l.bf16 %v4702
    %v5328 = vunpack.c.h.bf16 %v4702
    %v5329 = vunpack.c.l.bf16 %v4703
    %v5330 = vunpack.c.h.bf16 %v4703
    %v5331 = vunpack.c.l.bf16 %v4704
    %v5332 = vunpack.c.h.bf16 %v4704
    %v5333 = vunpack.c.l.bf16 %v4705
    %v5334 = vunpack.c.h.bf16 %v4705
    %v5335 = vunpack.c.l.bf16 %v4706
    %v5336 = vunpack.c.h.bf16 %v4706
    %v5337 = vunpack.c.l.bf16 %v4707
    %v5338 = vunpack.c.h.bf16 %v4707
    %v5339 = vunpack.c.l.bf16 %v4708
    %v5340 = vunpack.c.h.bf16 %v4708
    %v5341 = vunpack.c.l.bf16 %v4709
    %v5342 = vunpack.c.h.bf16 %v4709
    %v5343 = vunpack.c.l.bf16 %v4710
    %v5344 = vunpack.c.h.bf16 %v4710
    %v5345 = vunpack.c.l.bf16 %v4711
    %v5346 = vunpack.c.h.bf16 %v4711
    %v5347 = vunpack.c.l.bf16 %v4712
    %v5348 = vunpack.c.h.bf16 %v4712
    %v5349 = vunpack.c.l.bf16 %v4713
    %v5350 = vunpack.c.h.bf16 %v4713
    %v5351 = vunpack.c.l.bf16 %v4714
    %v5352 = vunpack.c.h.bf16 %v4714
    %v5353 = vunpack.c.l.bf16 %v4715
    %v5354 = vunpack.c.h.bf16 %v4715
    %v5355 = vunpack.c.l.bf16 %v4716
    %v5356 = vunpack.c.h.bf16 %v4716
    %v5357 = vunpack.c.l.bf16 %v4717
    %v5358 = vunpack.c.h.bf16 %v4717
    %v5359 = vunpack.c.l.bf16 %v4718
    %v5360 = vunpack.c.h.bf16 %v4718
    %v5361 = vunpack.c.l.bf16 %v4719
    %v5362 = vunpack.c.h.bf16 %v4719
    %v5363 = vunpack.c.l.bf16 %v4720
    %v5364 = vunpack.c.h.bf16 %v4720
    %v5365 = vunpack.c.l.bf16 %v4721
    %v5366 = vunpack.c.h.bf16 %v4721
    %v5367 = vunpack.c.l.bf16 %v4722
    %v5368 = vunpack.c.h.bf16 %v4722
    %v5369 = vunpack.c.l.bf16 %v4723
    %v5370 = vunpack.c.h.bf16 %v4723
    %v5371 = vunpack.c.l.bf16 %v4724
    %v5372 = vunpack.c.h.bf16 %v4724
    %v5373 = vunpack.c.l.bf16 %v4725
    %v5374 = vunpack.c.h.bf16 %v4725
    %v5375 = vunpack.c.l.bf16 %v4726
    %v5376 = vunpack.c.h.bf16 %v4726
    %v5377 = vunpack.c.l.bf16 %v4727
    %v5378 = vunpack.c.h.bf16 %v4727
    %v5379 = vunpack.c.l.bf16 %v4728
    %v5380 = vunpack.c.h.bf16 %v4728
    %v5381 = vunpack.c.l.bf16 %v4729
    %v5382 = vunpack.c.h.bf16 %v4729
    %v5383 = vunpack.c.l.bf16 %v4730
    %v5384 = vunpack.c.h.bf16 %v4730
    %v5385 = vunpack.c.l.bf16 %v4731
    %v5386 = vunpack.c.h.bf16 %v4731
    %v5387 = vunpack.c.l.bf16 %v4732
    %v5388 = vunpack.c.h.bf16 %v4732
    %v5389 = vunpack.c.l.bf16 %v4733
    %v5390 = vunpack.c.h.bf16 %v4733
    %v5391 = vunpack.c.l.bf16 %v4734
    %v5392 = vunpack.c.h.bf16 %v4734
    %v5393 = vunpack.c.l.bf16 %v4735
    %v5394 = vunpack.c.h.bf16 %v4735
    %v5395 = vunpack.c.l.bf16 %v4736
    %v5396 = vunpack.c.h.bf16 %v4736
    %v5397 = vunpack.c.l.bf16 %v4737
    %v5398 = vunpack.c.h.bf16 %v4737
    %v5399 = vunpack.c.l.bf16 %v4738
    %v5400 = vunpack.c.h.bf16 %v4738
    %v5401 = vunpack.c.l.bf16 %v4739
    %v5402 = vunpack.c.h.bf16 %v4739
    %v5403 = vunpack.c.l.bf16 %v4740
    %v5404 = vunpack.c.h.bf16 %v4740
    %v5405 = vunpack.c.l.bf16 %v4741
    %v5406 = vunpack.c.h.bf16 %v4741
    %v5407 = vunpack.c.l.bf16 %v4742
    %v5408 = vunpack.c.h.bf16 %v4742
    %v5409 = vunpack.c.l.bf16 %v4743
    %v5410 = vunpack.c.h.bf16 %v4743
    %v5411 = vunpack.c.l.bf16 %v4744
    %v5412 = vunpack.c.h.bf16 %v4744
    %v5413 = vunpack.c.l.bf16 %v4745
    %v5414 = vunpack.c.h.bf16 %v4745
    %v5415 = vunpack.c.l.bf16 %v4746
    %v5416 = vunpack.c.h.bf16 %v4746
    %v5417 = vunpack.c.l.bf16 %v4747
    %v5418 = vunpack.c.h.bf16 %v4747
    %v5419 = vunpack.c.l.bf16 %v4748
    %v5420 = vunpack.c.h.bf16 %v4748
    %v5421 = vunpack.c.l.bf16 %v4749
    %v5422 = vunpack.c.h.bf16 %v4749
    %v5423 = vunpack.c.l.bf16 %v4750
    %v5424 = vunpack.c.h.bf16 %v4750
    %v5425 = vunpack.c.l.bf16 %v4751
    %v5426 = vunpack.c.h.bf16 %v4751
    %v5427 = vunpack.c.l.bf16 %v4752
    %v5428 = vunpack.c.h.bf16 %v4752
    %v5429 = vunpack.c.l.bf16 %v4753
    %v5430 = vunpack.c.h.bf16 %v4753
    %v5431 = vunpack.c.l.bf16 %v4754
    %v5432 = vunpack.c.h.bf16 %v4754
    %v5433 = vunpack.c.l.bf16 %v4755
    %v5434 = vunpack.c.h.bf16 %v4755
    %v5435 = vunpack.c.l.bf16 %v4756
    %v5436 = vunpack.c.h.bf16 %v4756
    %v5437 = vunpack.c.l.bf16 %v4757
    %v5438 = vunpack.c.h.bf16 %v4757
    %v5439 = vunpack.c.l.bf16 %v4758
    %v5440 = vunpack.c.h.bf16 %v4758
    %v5441 = vunpack.c.l.bf16 %v4759
    %v5442 = vunpack.c.h.bf16 %v4759
    %v5443 = vunpack.c.l.bf16 %v4760
    %v5444 = vunpack.c.h.bf16 %v4760
    %v5445 = vunpack.c.l.bf16 %v4761
    %v5446 = vunpack.c.h.bf16 %v4761
    %v5447 = vunpack.c.l.bf16 %v4762
    %v5448 = vunpack.c.h.bf16 %v4762
    %v5449 = vunpack.c.l.bf16 %v4763
    %v5450 = vunpack.c.h.bf16 %v4763
    %v5451 = vunpack.c.l.bf16 %v4764
    %v5452 = vunpack.c.h.bf16 %v4764
    %v5453 = vunpack.c.l.bf16 %v4765
    %v5454 = vunpack.c.h.bf16 %v4765
    %v5455 = vunpack.c.l.bf16 %v4766
    %v5456 = vunpack.c.h.bf16 %v4766
    %v5457 = vunpack.c.l.bf16 %v4767
    %v5458 = vunpack.c.h.bf16 %v4767
    %v5459 = vunpack.c.l.bf16 %v4768
    %v5460 = vunpack.c.h.bf16 %v4768
    %v5461 = vunpack.c.l.bf16 %v4769
    %v5462 = vunpack.c.h.bf16 %v4769
    %v5463 = vunpack.c.l.bf16 %v4770
    %v5464 = vunpack.c.h.bf16 %v4770
    %v5465 = vunpack.c.l.bf16 %v4771
    %v5466 = vunpack.c.h.bf16 %v4771
    %v5467 = vunpack.c.l.bf16 %v4772
    %v5468 = vunpack.c.h.bf16 %v4772
    %v5469 = vunpack.c.l.bf16 %v4773
    %v5470 = vunpack.c.h.bf16 %v4773
    %v5471 = vunpack.c.l.bf16 %v4774
    %v5472 = vunpack.c.h.bf16 %v4774
    %v5473 = vunpack.c.l.bf16 %v4775
    %v5474 = vunpack.c.h.bf16 %v4775
    %v5475 = vunpack.c.l.bf16 %v4776
    %v5476 = vunpack.c.h.bf16 %v4776
    %v5477 = vunpack.c.l.bf16 %v4777
    %v5478 = vunpack.c.h.bf16 %v4777
    %v5479 = vunpack.c.l.bf16 %v4778
    %v5480 = vunpack.c.h.bf16 %v4778
    %v5481 = vunpack.c.l.bf16 %v4779
    %v5482 = vunpack.c.h.bf16 %v4779
    %v5483 = vunpack.c.l.bf16 %v4780
    %v5484 = vunpack.c.h.bf16 %v4780
    %v5485 = vunpack.c.l.bf16 %v4781
    %v5486 = vunpack.c.h.bf16 %v4781
    %v5487 = vunpack.c.l.bf16 %v4782
    %v5488 = vunpack.c.h.bf16 %v4782
    %v5489 = vunpack.c.l.bf16 %v4783
    %v5490 = vunpack.c.h.bf16 %v4783
    %v5491 = vunpack.c.l.bf16 %v4784
    %v5492 = vunpack.c.h.bf16 %v4784
    %v5493 = vunpack.c.l.bf16 %v4785
    %v5494 = vunpack.c.h.bf16 %v4785
    %v5495 = vunpack.c.l.bf16 %v4786
    %v5496 = vunpack.c.h.bf16 %v4786
    %v5497 = vunpack.c.l.bf16 %v4787
    %v5498 = vunpack.c.h.bf16 %v4787
    %v5499 = vunpack.c.l.bf16 %v4788
    %v5500 = vunpack.c.h.bf16 %v4788
    %v5501 = vunpack.c.l.bf16 %v4789
    %v5502 = vunpack.c.h.bf16 %v4789
    %v5503 = vunpack.c.l.bf16 %v4790
    %v5504 = vunpack.c.h.bf16 %v4790
    %v5505 = vunpack.c.l.bf16 %v4791
    %v5506 = vunpack.c.h.bf16 %v4791
    %v5507 = vunpack.c.l.bf16 %v4792
    %v5508 = vunpack.c.h.bf16 %v4792
    %v5509 = vunpack.c.l.bf16 %v4793
    %v5510 = vunpack.c.h.bf16 %v4793
    %v5511 = vunpack.c.l.bf16 %v4794
    %v5512 = vunpack.c.h.bf16 %v4794
    %v5513 = vunpack.c.l.bf16 %v4795
    %v5514 = vunpack.c.h.bf16 %v4795
    %v5515 = vunpack.c.l.bf16 %v4796
    %v5516 = vunpack.c.h.bf16 %v4796
    %v5517 = vunpack.c.l.bf16 %v4797
    %v5518 = vunpack.c.h.bf16 %v4797
    %v5519 = vunpack.c.l.bf16 %v4798
    %v5520 = vunpack.c.h.bf16 %v4798
    %v5521 = vunpack.c.l.bf16 %v4799
    %v5522 = vunpack.c.h.bf16 %v4799
    %v5523 = vunpack.c.l.bf16 %v4800
    %v5524 = vunpack.c.h.bf16 %v4800
    %v5525 = vunpack.c.l.bf16 %v4801
    %v5526 = vunpack.c.h.bf16 %v4801
    %v5527 = vunpack.c.l.bf16 %v4802
    %v5528 = vunpack.c.h.bf16 %v4802
    %v5529 = vunpack.c.l.bf16 %v4803
    %v5530 = vunpack.c.h.bf16 %v4803
    %v5531 = vunpack.c.l.bf16 %v4804
    %v5532 = vunpack.c.h.bf16 %v4804
    %v5533 = vunpack.c.l.bf16 %v4805
    %v5534 = vunpack.c.h.bf16 %v4805
    %v5535 = vunpack.c.l.bf16 %v4806
    %v5536 = vunpack.c.h.bf16 %v4806
    %v5537 = vunpack.c.l.bf16 %v4807
    %v5538 = vunpack.c.h.bf16 %v4807
    %v5539 = vunpack.c.l.bf16 %v4808
    %v5540 = vunpack.c.h.bf16 %v4808
    %v5541 = vunpack.c.l.bf16 %v4809
    %v5542 = vunpack.c.h.bf16 %v4809
    %v5543 = vunpack.c.l.bf16 %v4810
    %v5544 = vunpack.c.h.bf16 %v4810
    %v5545 = vunpack.c.l.bf16 %v4811
    %v5546 = vunpack.c.h.bf16 %v4811
    %v5547 = vunpack.c.l.bf16 %v4812
    %v5548 = vunpack.c.h.bf16 %v4812
    %v5549 = vunpack.c.l.bf16 %v4813
    %v5550 = vunpack.c.h.bf16 %v4813
    %v5551 = vunpack.c.l.bf16 %v4814
    %v5552 = vunpack.c.h.bf16 %v4814
    %v5553 = vunpack.c.l.bf16 %v4815
    %v5554 = vunpack.c.h.bf16 %v4815
    %v5555 = vunpack.c.l.bf16 %v4816
    %v5556 = vunpack.c.h.bf16 %v4816
    %v5557 = vunpack.c.l.bf16 %v4817
    %v5558 = vunpack.c.h.bf16 %v4817
    %v5559 = vunpack.c.l.bf16 %v4818
    %v5560 = vunpack.c.h.bf16 %v4818
    %v5561 = vunpack.c.l.bf16 %v4819
    %v5562 = vunpack.c.h.bf16 %v4819
    %v5563 = vunpack.c.l.bf16 %v4820
    %v5564 = vunpack.c.h.bf16 %v4820
    %v5565 = vunpack.c.l.bf16 %v4821
    %v5566 = vunpack.c.h.bf16 %v4821
    %v5567 = vunpack.c.l.bf16 %v4822
    %v5568 = vunpack.c.h.bf16 %v4822
    %v5569 = vunpack.c.l.bf16 %v4823
    %v5570 = vunpack.c.h.bf16 %v4823
    %v5571 = vunpack.c.l.bf16 %v4824
    %v5572 = vunpack.c.h.bf16 %v4824
    %v5573 = vunpack.c.l.bf16 %v4825
    %v5574 = vunpack.c.h.bf16 %v4825
    %v5575 = vunpack.c.l.bf16 %v4826
    %v5576 = vunpack.c.h.bf16 %v4826
    %v5577 = vunpack.c.l.bf16 %v4827
    %v5578 = vunpack.c.h.bf16 %v4827
    %v5579 = vunpack.c.l.bf16 %v4828
    %v5580 = vunpack.c.h.bf16 %v4828
    %v5581 = vunpack.c.l.bf16 %v4829
    %v5582 = vunpack.c.h.bf16 %v4829
    %v5583 = vunpack.c.l.bf16 %v4830
    %v5584 = vunpack.c.h.bf16 %v4830
    %v5585 = vunpack.c.l.bf16 %v4831
    %v5586 = vunpack.c.h.bf16 %v4831
    %v5587 = vunpack.c.l.bf16 %v4832
    %v5588 = vunpack.c.h.bf16 %v4832
    %v5589 = vunpack.c.l.bf16 %v4833
    %v5590 = vunpack.c.h.bf16 %v4833
    %v5591 = vunpack.c.l.bf16 %v4834
    %v5592 = vunpack.c.h.bf16 %v4834
    %v5593 = vunpack.c.l.bf16 %v4835
    %v5594 = vunpack.c.h.bf16 %v4835
    %v5595 = vunpack.c.l.bf16 %v4836
    %v5596 = vunpack.c.h.bf16 %v4836
    %v5597 = vunpack.c.l.bf16 %v4837
    %v5598 = vunpack.c.h.bf16 %v4837
    %v5599 = vunpack.c.l.bf16 %v4838
    %v5600 = vunpack.c.h.bf16 %v4838
    %v5601 = vunpack.c.l.bf16 %v4839
    %v5602 = vunpack.c.h.bf16 %v4839
    %v5603 = vunpack.c.l.bf16 %v4840
    %v5604 = vunpack.c.h.bf16 %v4840
    %v5605 = vunpack.c.l.bf16 %v4841
    %v5606 = vunpack.c.h.bf16 %v4841
    %v5607 = vunpack.c.l.bf16 %v4842
    %v5608 = vunpack.c.h.bf16 %v4842
    %v5609 = vunpack.c.l.bf16 %v4843
    %v5610 = vunpack.c.h.bf16 %v4843
    %v5611 = vunpack.c.l.bf16 %v4844
    %v5612 = vunpack.c.h.bf16 %v4844
    %v5613 = vunpack.c.l.bf16 %v4845
    %v5614 = vunpack.c.h.bf16 %v4845
    %v5615 = vunpack.c.l.bf16 %v4846
    %v5616 = vunpack.c.h.bf16 %v4846
    %v5617 = vunpack.c.l.bf16 %v4847
    %v5618 = vunpack.c.h.bf16 %v4847
    %v5619 = vunpack.c.l.bf16 %v4848
    %v5620 = vunpack.c.h.bf16 %v4848
    %v5621 = vunpack.c.l.bf16 %v4849
    %v5622 = vunpack.c.h.bf16 %v4849
    %v5623 = vunpack.c.l.bf16 %v4850
    %v5624 = vunpack.c.h.bf16 %v4850
    %v5625 = vunpack.c.l.bf16 %v4851
    %v5626 = vunpack.c.h.bf16 %v4851
    %v5627 = vunpack.c.l.bf16 %v4852
    %v5628 = vunpack.c.h.bf16 %v4852
    %v5629 = vunpack.c.l.bf16 %v4853
    %v5630 = vunpack.c.h.bf16 %v4853
    %v5631 = vunpack.c.l.bf16 %v4854
    %v5632 = vunpack.c.h.bf16 %v4854
    %v5633 = vunpack.c.l.bf16 %v4855
    %v5634 = vunpack.c.h.bf16 %v4855
    %v5635 = vunpack.c.l.bf16 %v4856
    %v5636 = vunpack.c.h.bf16 %v4856
    %v5637 = vunpack.c.l.bf16 %v4857
    %v5638 = vunpack.c.h.bf16 %v4857
    %v5639 = vunpack.c.l.bf16 %v4858
    %v5640 = vunpack.c.h.bf16 %v4858
    %v5641 = vunpack.c.l.bf16 %v4859
    %v5642 = vunpack.c.h.bf16 %v4859
    %v5643 = vunpack.c.l.bf16 %v4860
    %v5644 = vunpack.c.h.bf16 %v4860
    %v5645 = vunpack.c.l.bf16 %v4861
    %v5646 = vunpack.c.h.bf16 %v4861
    %v5647 = vunpack.c.l.bf16 %v4862
    %v5648 = vunpack.c.h.bf16 %v4862
    %v5649 = vunpack.c.l.bf16 %v4863
    %v5650 = vunpack.c.h.bf16 %v4863
    %v5651 = vunpack.c.l.bf16 %v4864
    %v5652 = vunpack.c.h.bf16 %v4864
    %v5653 = vunpack.c.l.bf16 %v4865
    %v5654 = vunpack.c.h.bf16 %v4865
    %v5655 = vunpack.c.l.bf16 %v4866
    %v5656 = vunpack.c.h.bf16 %v4866
    %v5657 = vunpack.c.l.bf16 %v4867
    %v5658 = vunpack.c.h.bf16 %v4867
    %v5659 = vunpack.c.l.bf16 %v4868
    %v5660 = vunpack.c.h.bf16 %v4868
    %v5661 = vunpack.c.l.bf16 %v4869
    %v5662 = vunpack.c.h.bf16 %v4869
    %v5663 = vunpack.c.l.bf16 %v4870
    %v5664 = vunpack.c.h.bf16 %v4870
    %v5665 = vunpack.c.l.bf16 %v4871
    %v5666 = vunpack.c.h.bf16 %v4871
    %v5667 = vunpack.c.l.bf16 %v4872
    %v5668 = vunpack.c.h.bf16 %v4872
    %v5669 = vunpack.c.l.bf16 %v4873
    %v5670 = vunpack.c.h.bf16 %v4873
    %v5671 = vunpack.c.l.bf16 %v4874
    %v5672 = vunpack.c.h.bf16 %v4874
    %v5673 = vunpack.c.l.bf16 %v4875
    %v5674 = vunpack.c.h.bf16 %v4875
    %v5675 = vunpack.c.l.bf16 %v4876
    %v5676 = vunpack.c.h.bf16 %v4876
    %v5677 = vunpack.c.l.bf16 %v4877
    %v5678 = vunpack.c.h.bf16 %v4877
    %v5679 = vunpack.c.l.bf16 %v4878
    %v5680 = vunpack.c.h.bf16 %v4878
    %v5681 = vunpack.c.l.bf16 %v4879
    %v5682 = vunpack.c.h.bf16 %v4879
    %v5683 = vunpack.c.l.bf16 %v4880
    %v5684 = vunpack.c.h.bf16 %v4880
    %v5685 = vunpack.c.l.bf16 %v4881
    %v5686 = vunpack.c.h.bf16 %v4881
    %v5687 = vunpack.c.l.bf16 %v4882
    %v5688 = vunpack.c.h.bf16 %v4882
    %v5689 = vunpack.c.l.bf16 %v4883
    %v5690 = vunpack.c.h.bf16 %v4883
    %v5691 = vunpack.c.l.bf16 %v4884
    %v5692 = vunpack.c.h.bf16 %v4884
    %v5693 = vunpack.c.l.bf16 %v4885
    %v5694 = vunpack.c.h.bf16 %v4885
    %v5695 = vunpack.c.l.bf16 %v4886
    %v5696 = vunpack.c.h.bf16 %v4886
    %v5697 = vunpack.c.l.bf16 %v4887
    %v5698 = vunpack.c.h.bf16 %v4887
    %v5699 = vunpack.c.l.bf16 %v4888
    %v5700 = vunpack.c.h.bf16 %v4888
    %v5701 = vunpack.c.l.bf16 %v4889
    %v5702 = vunpack.c.h.bf16 %v4889
    %v5703 = vunpack.c.l.bf16 %v4890
    %v5704 = vunpack.c.h.bf16 %v4890
    %v5705 = vunpack.c.l.bf16 %v4891
    %v5706 = vunpack.c.h.bf16 %v4891
    %v5707 = vunpack.c.l.bf16 %v4892
    %v5708 = vunpack.c.h.bf16 %v4892
    %v5709 = vunpack.c.l.bf16 %v4893
    %v5710 = vunpack.c.h.bf16 %v4893
    %v5711 = vunpack.c.l.bf16 %v4894
    %v5712 = vunpack.c.h.bf16 %v4894
    %v5713 = vunpack.c.l.bf16 %v4895
    %v5714 = vunpack.c.h.bf16 %v4895
    %v5715 = vunpack.c.l.bf16 %v4896
    %v5716 = vunpack.c.h.bf16 %v4896
    %v5717 = vunpack.c.l.bf16 %v4897
    %v5718 = vunpack.c.h.bf16 %v4897
    %v5719 = vunpack.c.l.bf16 %v4898
    %v5720 = vunpack.c.h.bf16 %v4898
    %v5721 = vunpack.c.l.bf16 %v4899
    %v5722 = vunpack.c.h.bf16 %v4899
    %v5723 = vunpack.c.l.bf16 %v4900
    %v5724 = vunpack.c.h.bf16 %v4900
    %v5725 = vunpack.c.l.bf16 %v4901
    %v5726 = vunpack.c.h.bf16 %v4901
    %v5727 = vunpack.c.l.bf16 %v4902
    %v5728 = vunpack.c.h.bf16 %v4902
    %v5729 = vunpack.c.l.bf16 %v4903
    %v5730 = vunpack.c.h.bf16 %v4903
    %v5731 = vunpack.c.l.bf16 %v4904
    %v5732 = vunpack.c.h.bf16 %v4904
    %v5733 = vunpack.c.l.bf16 %v4905
    %v5734 = vunpack.c.h.bf16 %v4905
    %v5735 = vunpack.c.l.bf16 %v4906
    %v5736 = vunpack.c.h.bf16 %v4906
    %v5737 = vunpack.c.l.bf16 %v4907
    %v5738 = vunpack.c.h.bf16 %v4907
    %v5739 = vunpack.c.l.bf16 %v4908
    %v5740 = vunpack.c.h.bf16 %v4908
    %v5741 = vunpack.c.l.bf16 %v4909
    %v5742 = vunpack.c.h.bf16 %v4909
    %v5743 = vunpack.c.l.bf16 %v4910
    %v5744 = vunpack.c.h.bf16 %v4910
    %v5745 = vunpack.c.l.bf16 %v4911
    %v5746 = vunpack.c.h.bf16 %v4911
    %v5747 = vunpack.c.l.bf16 %v4912
    %v5748 = vunpack.c.h.bf16 %v4912
    %v5749 = vunpack.c.l.bf16 %v4913
    %v5750 = vunpack.c.h.bf16 %v4913
    %v5751 = vunpack.c.l.bf16 %v4914
    %v5752 = vunpack.c.h.bf16 %v4914
    %v5753 = vunpack.c.l.bf16 %v4915
    %v5754 = vunpack.c.h.bf16 %v4915
    %v5755 = vunpack.c.l.bf16 %v4916
    %v5756 = vunpack.c.h.bf16 %v4916
    %v5757 = vunpack.c.l.bf16 %v4917
    %v5758 = vunpack.c.h.bf16 %v4917
    %v5759 = vunpack.c.l.bf16 %v4918
    %v5760 = vunpack.c.h.bf16 %v4918
    %v5761 = vunpack.c.l.bf16 %v4919
    %v5762 = vunpack.c.h.bf16 %v4919
    %v5763 = vunpack.c.l.bf16 %v4920
    %v5764 = vunpack.c.h.bf16 %v4920
    %v5765 = vunpack.c.l.bf16 %v4921
    %v5766 = vunpack.c.h.bf16 %v4921
    %v5767 = vunpack.c.l.bf16 %v4922
    %v5768 = vunpack.c.h.bf16 %v4922
    %v5769 = vunpack.c.l.bf16 %v4923
    %v5770 = vunpack.c.h.bf16 %v4923
    %v5771 = vunpack.c.l.bf16 %v4924
    %v5772 = vunpack.c.h.bf16 %v4924
    %v5773 = vunpack.c.l.bf16 %v4925
    %v5774 = vunpack.c.h.bf16 %v4925
    %v5775 = vunpack.c.l.bf16 %v4926
    %v5776 = vunpack.c.h.bf16 %v4926
    %v5777 = vunpack.c.l.bf16 %v4927
    %v5778 = vunpack.c.h.bf16 %v4927
    %v5779 = vunpack.c.l.bf16 %v4928
    %v5780 = vunpack.c.h.bf16 %v4928
    %v5781 = vunpack.c.l.bf16 %v4929
    %v5782 = vunpack.c.h.bf16 %v4929
    %v5783 = vunpack.c.l.bf16 %v4930
    %v5784 = vunpack.c.h.bf16 %v4930
    %v5785 = vunpack.c.l.bf16 %v4931
    %v5786 = vunpack.c.h.bf16 %v4931
    %v5787 = vunpack.c.l.bf16 %v4932
    %v5788 = vunpack.c.h.bf16 %v4932
    %v5789 = vunpack.c.l.bf16 %v4933
    %v5790 = vunpack.c.h.bf16 %v4933
    %v5791 = vunpack.c.l.bf16 %v4934
    %v5792 = vunpack.c.h.bf16 %v4934
    %v5793 = vunpack.c.l.bf16 %v4935
    %v5794 = vunpack.c.h.bf16 %v4935
    %v5795 = vunpack.c.l.bf16 %v4936
    %v5796 = vunpack.c.h.bf16 %v4936
    %v5797 = vunpack.c.l.bf16 %v4937
    %v5798 = vunpack.c.h.bf16 %v4937
    %v5799 = vunpack.c.l.bf16 %v4938
    %v5800 = vunpack.c.h.bf16 %v4938
    %v5801 = vunpack.c.l.bf16 %v4939
    %v5802 = vunpack.c.h.bf16 %v4939
    %v5803 = vunpack.c.l.bf16 %v4940
    %v5804 = vunpack.c.h.bf16 %v4940
    %v5805 = vunpack.c.l.bf16 %v4941
    %v5806 = vunpack.c.h.bf16 %v4941
    %v5807 = vunpack.c.l.bf16 %v4942
    %v5808 = vunpack.c.h.bf16 %v4942
    %v5809 = vunpack.c.l.bf16 %v4943
    %v5810 = vunpack.c.h.bf16 %v4943
    %v5811 = vunpack.c.l.bf16 %v4944
    %v5812 = vunpack.c.h.bf16 %v4944
    %v5813 = vunpack.c.l.bf16 %v4945
    %v5814 = vunpack.c.h.bf16 %v4945
    %v5815 = vunpack.c.l.bf16 %v4946
    %v5816 = vunpack.c.h.bf16 %v4946
    %v5817 = vunpack.c.l.bf16 %v4947
    %v5818 = vunpack.c.h.bf16 %v4947
    %v5819 = vunpack.c.l.bf16 %v4948
    %v5820 = vunpack.c.h.bf16 %v4948
    %v5821 = vunpack.c.l.bf16 %v4949
    %v5822 = vunpack.c.h.bf16 %v4949
    %v5823 = vunpack.c.l.bf16 %v4950
    %v5824 = vunpack.c.h.bf16 %v4950
    %v5825 = vunpack.c.l.bf16 %v4951
    %v5826 = vunpack.c.h.bf16 %v4951
    %v5827 = vunpack.c.l.bf16 %v4952
    %v5828 = vunpack.c.h.bf16 %v4952
    %v5829 = vunpack.c.l.bf16 %v4953
    %v5830 = vunpack.c.h.bf16 %v4953
    %v5831 = vunpack.c.l.bf16 %v4954
    %v5832 = vunpack.c.h.bf16 %v4954
    %v5833 = vunpack.c.l.bf16 %v4955
    %v5834 = vunpack.c.h.bf16 %v4955
    %v5835 = vunpack.c.l.bf16 %v4956
    %v5836 = vunpack.c.h.bf16 %v4956
    %v5837 = vunpack.c.l.bf16 %v4957
    %v5838 = vunpack.c.h.bf16 %v4957
    %v5839 = vunpack.c.l.bf16 %v4958
    %v5840 = vunpack.c.h.bf16 %v4958
    %v5841 = vunpack.c.l.bf16 %v4959
    %v5842 = vunpack.c.h.bf16 %v4959
    %v5843 = vunpack.c.l.bf16 %v4960
    %v5844 = vunpack.c.h.bf16 %v4960
    %v5845 = vunpack.c.l.bf16 %v4961
    %v5846 = vunpack.c.h.bf16 %v4961
    %v5847 = vunpack.c.l.bf16 %v4962
    %v5848 = vunpack.c.h.bf16 %v4962
    %v5849 = vunpack.c.l.bf16 %v4963
    %v5850 = vunpack.c.h.bf16 %v4963
    %v5851 = vunpack.c.l.bf16 %v4964
    %v5852 = vunpack.c.h.bf16 %v4964
    %v5853 = vunpack.c.l.bf16 %v4965
    %v5854 = vunpack.c.h.bf16 %v4965
    %v5855 = vunpack.c.l.bf16 %v4966
    %v5856 = vunpack.c.h.bf16 %v4966
    %v5857 = vunpack.c.l.bf16 %v4967
    %v5858 = vunpack.c.h.bf16 %v4967
    %v5859 = vunpack.c.l.bf16 %v4968
    %v5860 = vunpack.c.h.bf16 %v4968
    %v5861 = vunpack.c.l.bf16 %v4969
    %v5862 = vunpack.c.h.bf16 %v4969
    %v5863 = vunpack.c.l.bf16 %v4970
    %v5864 = vunpack.c.h.bf16 %v4970
    %v5865 = vunpack.c.l.bf16 %v4971
    %v5866 = vunpack.c.h.bf16 %v4971
    %v5867 = vunpack.c.l.bf16 %v4972
    %v5868 = vunpack.c.h.bf16 %v4972
    %v5869 = vunpack.c.l.bf16 %v4973
    %v5870 = vunpack.c.h.bf16 %v4973
    %v5871 = vunpack.c.l.bf16 %v4974
    %v5872 = vunpack.c.h.bf16 %v4974
    %v5873 = vunpack.c.l.bf16 %v4975
    %v5874 = vunpack.c.h.bf16 %v4975
    %v5875 = vunpack.c.l.bf16 %v4976
    %v5876 = vunpack.c.h.bf16 %v4976
    %v5877 = vunpack.c.l.bf16 %v4977
    %v5878 = vunpack.c.h.bf16 %v4977
    %v5879 = vunpack.c.l.bf16 %v4978
    %v5880 = vunpack.c.h.bf16 %v4978
    %v5881 = vunpack.c.l.bf16 %v4979
    %v5882 = vunpack.c.h.bf16 %v4979
    %v5883 = vunpack.c.l.bf16 %v4980
    %v5884 = vunpack.c.h.bf16 %v4980
    %v5885 = vunpack.c.l.bf16 %v4981
    %v5886 = vunpack.c.h.bf16 %v4981
    %v5887 = vunpack.c.l.bf16 %v4982
    %v5888 = vunpack.c.h.bf16 %v4982
    %v5889 = vunpack.c.l.bf16 %v4983
    %v5890 = vunpack.c.h.bf16 %v4983
    %v5891 = vunpack.c.l.bf16 %v4984
    %v5892 = vunpack.c.h.bf16 %v4984
    %v5893 = vunpack.c.l.bf16 %v4985
    %v5894 = vunpack.c.h.bf16 %v4985
    %v5895 = vunpack.c.l.bf16 %v4986
    %v5896 = vunpack.c.h.bf16 %v4986
    %v5897 = vunpack.c.l.bf16 %v4987
    %v5898 = vunpack.c.h.bf16 %v4987
    %v5899 = vunpack.c.l.bf16 %v4988
    %v5900 = vunpack.c.h.bf16 %v4988
    %v5901 = vunpack.c.l.bf16 %v4989
    %v5902 = vunpack.c.h.bf16 %v4989
    %v5903 = vunpack.c.l.bf16 %v4990
    %v5904 = vunpack.c.h.bf16 %v4990
    %v5905 = vunpack.c.l.bf16 %v4991
    %v5906 = vunpack.c.h.bf16 %v4991
    %v5907 = vunpack.c.l.bf16 %v4992
    %v5908 = vunpack.c.h.bf16 %v4992
    %v5909 = vunpack.c.l.bf16 %v4993
    %v5910 = vunpack.c.h.bf16 %v4993
    %v5911 = vunpack.c.l.bf16 %v4994
    %v5912 = vunpack.c.h.bf16 %v4994
    %v5913 = vunpack.c.l.bf16 %v4995
    %v5914 = vunpack.c.h.bf16 %v4995
    %v5915 = vunpack.c.l.bf16 %v4996
    %v5916 = vunpack.c.h.bf16 %v4996
    %v5917 = vunpack.c.l.bf16 %v4997
    %v5918 = vunpack.c.h.bf16 %v4997
    %v5919 = vunpack.c.l.bf16 %v4998
    %v5920 = vunpack.c.h.bf16 %v4998
    %v5921 = vunpack.c.l.bf16 %v4999
    %v5922 = vunpack.c.h.bf16 %v4999
    %v5923 = vunpack.c.l.bf16 %v5000
    %v5924 = vunpack.c.h.bf16 %v5000
    %v5925 = vunpack.c.l.bf16 %v5001
    %v5926 = vunpack.c.h.bf16 %v5001
    %v5927 = vunpack.c.l.bf16 %v5002
    %v5928 = vunpack.c.h.bf16 %v5002
    %v5929 = vunpack.c.l.bf16 %v5003
    %v5930 = vunpack.c.h.bf16 %v5003
    %v5931 = vunpack.c.l.bf16 %v5004
    %v5932 = vunpack.c.h.bf16 %v5004
    %v5933 = vunpack.c.l.bf16 %v5005
    %v5934 = vunpack.c.h.bf16 %v5005
    %v5935 = vunpack.c.l.bf16 %v5006
    %v5936 = vunpack.c.h.bf16 %v5006
    %v5937 = vunpack.c.l.bf16 %v5007
    %v5938 = vunpack.c.h.bf16 %v5007
    %v5939 = vunpack.c.l.bf16 %v5008
    %v5940 = vunpack.c.h.bf16 %v5008
    %v5941 = vunpack.c.l.bf16 %v5009
    %v5942 = vunpack.c.h.bf16 %v5009
    %v5943 = vunpack.c.l.bf16 %v5010
    %v5944 = vunpack.c.h.bf16 %v5010
    %v5945 = vunpack.c.l.bf16 %v5011
    %v5946 = vunpack.c.h.bf16 %v5011
    %v5947 = vunpack.c.l.bf16 %v5012
    %v5948 = vunpack.c.h.bf16 %v5012
    %v5949 = vunpack.c.l.bf16 %v5013
    %v5950 = vunpack.c.h.bf16 %v5013
    %v5951 = vunpack.c.l.bf16 %v5014
    %v5952 = vunpack.c.h.bf16 %v5014
    %v5953 = vunpack.c.l.bf16 %v5015
    %v5954 = vunpack.c.h.bf16 %v5015
    %v5955 = vunpack.c.l.bf16 %v5016
    %v5956 = vunpack.c.h.bf16 %v5016
    %v5957 = vunpack.c.l.bf16 %v5017
    %v5958 = vunpack.c.h.bf16 %v5017
    %v5959 = vunpack.c.l.bf16 %v5018
    %v5960 = vunpack.c.h.bf16 %v5018
    %v5961 = vunpack.c.l.bf16 %v5019
    %v5962 = vunpack.c.h.bf16 %v5019
    %v5963 = vunpack.c.l.bf16 %v5020
    %v5964 = vunpack.c.h.bf16 %v5020
    %v5965 = vunpack.c.l.bf16 %v5021
    %v5966 = vunpack.c.h.bf16 %v5021
    %v5967 = vunpack.c.l.bf16 %v5022
    %v5968 = vunpack.c.h.bf16 %v5022
    %v5969 = vunpack.c.l.bf16 %v5023
    %v5970 = vunpack.c.h.bf16 %v5023
    %v5971 = vunpack.c.l.bf16 %v5024
    %v5972 = vunpack.c.h.bf16 %v5024
    %v5973 = vunpack.c.l.bf16 %v5025
    %v5974 = vunpack.c.h.bf16 %v5025
    %v5975 = vunpack.c.l.bf16 %v5026
    %v5976 = vunpack.c.h.bf16 %v5026
    %v5977 = vunpack.c.l.bf16 %v5027
    %v5978 = vunpack.c.h.bf16 %v5027
    %v5979 = vunpack.c.l.bf16 %v5028
    %v5980 = vunpack.c.h.bf16 %v5028
    %v5981 = vunpack.c.l.bf16 %v5029
    %v5982 = vunpack.c.h.bf16 %v5029
    %v5983 = vunpack.c.l.bf16 %v5030
    %v5984 = vunpack.c.h.bf16 %v5030
    %v5985 = vunpack.c.l.bf16 %v5031
    %v5986 = vunpack.c.h.bf16 %v5031
    %v5987 = vunpack.c.l.bf16 %v5032
    %v5988 = vunpack.c.h.bf16 %v5032
    %v5989 = vunpack.c.l.bf16 %v5033
    %v5990 = vunpack.c.h.bf16 %v5033
    %v5991 = vunpack.c.l.bf16 %v5034
    %v5992 = vunpack.c.h.bf16 %v5034
    %v5993 = vunpack.c.l.bf16 %v5035
    %v5994 = vunpack.c.h.bf16 %v5035
    %v5995 = vunpack.c.l.bf16 %v5036
    %v5996 = vunpack.c.h.bf16 %v5036
    %v5997 = vunpack.c.l.bf16 %v5037
    %v5998 = vunpack.c.h.bf16 %v5037
    %v5999 = vunpack.c.l.bf16 %v5038
    %v6000 = vunpack.c.h.bf16 %v5038
    %v6001 = vunpack.c.l.bf16 %v5039
    %v6002 = vunpack.c.h.bf16 %v5039
    %v6003 = vunpack.c.l.bf16 %v5040
    %v6004 = vunpack.c.h.bf16 %v5040
    %v6005 = vunpack.c.l.bf16 %v5041
    %v6006 = vunpack.c.h.bf16 %v5041
    %v6007 = vunpack.c.l.bf16 %v5042
    %v6008 = vunpack.c.h.bf16 %v5042
    %v6009 = vunpack.c.l.bf16 %v5043
    %v6010 = vunpack.c.h.bf16 %v5043
    %v6011 = vunpack.c.l.bf16 %v5044
    %v6012 = vunpack.c.h.bf16 %v5044
    %v6013 = vunpack.c.l.bf16 %v5045
    %v6014 = vunpack.c.h.bf16 %v5045
    %v6015 = vunpack.c.l.bf16 %v5046
    %v6016 = vunpack.c.h.bf16 %v5046
    %v6017 = vunpack.c.l.bf16 %v5047
    %v6018 = vunpack.c.h.bf16 %v5047
    %v6019 = vunpack.c.l.bf16 %v5048
    %v6020 = vunpack.c.h.bf16 %v5048
    %v6021 = vunpack.c.l.bf16 %v5049
    %v6022 = vunpack.c.h.bf16 %v5049
    %v6023 = vunpack.c.l.bf16 %v5050
    %v6024 = vunpack.c.h.bf16 %v5050
    %v6025 = vunpack.c.l.bf16 %v5051
    %v6026 = vunpack.c.h.bf16 %v5051
    %v6027 = vunpack.c.l.bf16 %v5052
    %v6028 = vunpack.c.h.bf16 %v5052
    %v6029 = vunpack.c.l.bf16 %v5053
    %v6030 = vunpack.c.h.bf16 %v5053
    %v6031 = vunpack.c.l.bf16 %v5054
    %v6032 = vunpack.c.h.bf16 %v5054
    %v6033 = vunpack.c.l.bf16 %v5055
    %v6034 = vunpack.c.h.bf16 %v5055
    %v6035 = vunpack.c.l.bf16 %v5056
    %v6036 = vunpack.c.h.bf16 %v5056
    %v6037 = vunpack.c.l.bf16 %v5057
    %v6038 = vunpack.c.h.bf16 %v5057
    %v6039 = vunpack.c.l.bf16 %v5058
    %v6040 = vunpack.c.h.bf16 %v5058
    %v6041 = vunpack.c.l.bf16 %v5059
    %v6042 = vunpack.c.h.bf16 %v5059
    %v6043 = vunpack.c.l.bf16 %v5060
    %v6044 = vunpack.c.h.bf16 %v5060
    %v6045 = vunpack.c.l.bf16 %v5061
    %v6046 = vunpack.c.h.bf16 %v5061
    %v6047 = vunpack.c.l.bf16 %v5062
    %v6048 = vunpack.c.h.bf16 %v5062
    %v6049 = vunpack.c.l.bf16 %v5063
    %v6050 = vunpack.c.h.bf16 %v5063
    %v6051 = vunpack.c.l.bf16 %v5064
    %v6052 = vunpack.c.h.bf16 %v5064
    %v6053 = vunpack.c.l.bf16 %v5065
    %v6054 = vunpack.c.h.bf16 %v5065
    %v6055 = vunpack.c.l.bf16 %v5066
    %v6056 = vunpack.c.h.bf16 %v5066
    %v6057 = vunpack.c.l.bf16 %v5067
    %v6058 = vunpack.c.h.bf16 %v5067
    %v6059 = vunpack.c.l.bf16 %v5068
    %v6060 = vunpack.c.h.bf16 %v5068
    %v6061 = vunpack.c.l.bf16 %v5069
    %v6062 = vunpack.c.h.bf16 %v5069
    %v6063 = vunpack.c.l.bf16 %v5070
    %v6064 = vunpack.c.h.bf16 %v5070
    %v6065 = vunpack.c.l.bf16 %v5071
    %v6066 = vunpack.c.h.bf16 %v5071
    %v6067 = vunpack.c.l.bf16 %v5072
    %v6068 = vunpack.c.h.bf16 %v5072
    %v6069 = vunpack.c.l.bf16 %v5073
    %v6070 = vunpack.c.h.bf16 %v5073
    %v6071 = vunpack.c.l.bf16 %v5074
    %v6072 = vunpack.c.h.bf16 %v5074
    %v6073 = vunpack.c.l.bf16 %v5075
    %v6074 = vunpack.c.h.bf16 %v5075
    %v6075 = vunpack.c.l.bf16 %v5076
    %v6076 = vunpack.c.h.bf16 %v5076
    %v6077 = vunpack.c.l.bf16 %v5077
    %v6078 = vunpack.c.h.bf16 %v5077
    %v6079 = vunpack.c.l.bf16 %v5078
    %v6080 = vunpack.c.h.bf16 %v5078
    %v6081 = vunpack.c.l.bf16 %v5079
    %v6082 = vunpack.c.h.bf16 %v5079
    %v6083 = vunpack.c.l.bf16 %v5080
    %v6084 = vunpack.c.h.bf16 %v5080
    %v6085 = vunpack.c.l.bf16 %v5081
    %v6086 = vunpack.c.h.bf16 %v5081
    %v6087 = vunpack.c.l.bf16 %v5082
    %v6088 = vunpack.c.h.bf16 %v5082
    %v6089 = vunpack.c.l.bf16 %v5083
    %v6090 = vunpack.c.h.bf16 %v5083
    %v6091 = vunpack.c.l.bf16 %v5084
    %v6092 = vunpack.c.h.bf16 %v5084
    %v6093 = vunpack.c.l.bf16 %v5085
    %v6094 = vunpack.c.h.bf16 %v5085
    %v6095 = vunpack.c.l.bf16 %v5086
    %v6096 = vunpack.c.h.bf16 %v5086
    %v6097 = vunpack.c.l.bf16 %v5087
    %v6098 = vunpack.c.h.bf16 %v5087
    %v6099 = vunpack.c.l.bf16 %v5088
    %v6100 = vunpack.c.h.bf16 %v5088
    %v6101 = vunpack.c.l.bf16 %v5089
    %v6102 = vunpack.c.h.bf16 %v5089
    %v6103 = vunpack.c.l.bf16 %v5090
    %v6104 = vunpack.c.h.bf16 %v5090
    %v6105 = vunpack.c.l.bf16 %v5091
    %v6106 = vunpack.c.h.bf16 %v5091
    %v6107 = vunpack.c.l.bf16 %v5092
    %v6108 = vunpack.c.h.bf16 %v5092
    %v6109 = vunpack.c.l.bf16 %v5093
    %v6110 = vunpack.c.h.bf16 %v5093
    %v6111 = vunpack.c.l.bf16 %v5094
    %v6112 = vunpack.c.h.bf16 %v5094
    %v6113 = vunpack.c.l.bf16 %v5095
    %v6114 = vunpack.c.h.bf16 %v5095
    %v6115 = vunpack.c.l.bf16 %v5096
    %v6116 = vunpack.c.h.bf16 %v5096
    %v6117 = vunpack.c.l.bf16 %v5097
    %v6118 = vunpack.c.h.bf16 %v5097
    %v6119 = vunpack.c.l.bf16 %v5098
    %v6120 = vunpack.c.h.bf16 %v5098
    %v6121 = vunpack.c.l.bf16 %v5099
    %v6122 = vunpack.c.h.bf16 %v5099
    %v6123 = vunpack.c.l.bf16 %v5100
    %v6124 = vunpack.c.h.bf16 %v5100
    %v6125 = vld [vmem:[#allocation23] sm:$0xff]
    %v6126 = vld [vmem:[#allocation23 + $0x8] sm:$0xff]
    %v6129 = vlaneseq
    %v6130 = vshrl.u32 %v6129, 7
    %v6131 = vsub.s32 0, %v6130
    %v6132 = vrot.slane %v6125, %v6131
    %v6133 = vlaneseq
    %v6134 = vshrl.u32 %v6133, 7
    %v6135 = vsub.s32 1, %v6134
    %v6136 = vrot.slane %v6125, %v6135
    %v6137 = vlaneseq
    %v6138 = vshrl.u32 %v6137, 7
    %v6139 = vsub.s32 2, %v6138
    %v6140 = vrot.slane %v6125, %v6139
    %v6141 = vlaneseq
    %v6142 = vshrl.u32 %v6141, 7
    %v6143 = vsub.s32 3, %v6142
    %v6144 = vrot.slane %v6125, %v6143
    %v6145 = vlaneseq
    %v6146 = vshrl.u32 %v6145, 7
    %v6147 = vsub.s32 4, %v6146
    %v6148 = vrot.slane %v6125, %v6147
    %v6149 = vlaneseq
    %v6150 = vshrl.u32 %v6149, 7
    %v6151 = vsub.s32 5, %v6150
    %v6152 = vrot.slane %v6125, %v6151
    %v6153 = vlaneseq
    %v6154 = vshrl.u32 %v6153, 7
    %v6155 = vsub.s32 6, %v6154
    %v6156 = vrot.slane %v6125, %v6155
    %v6157 = vlaneseq
    %v6158 = vshrl.u32 %v6157, 7
    %v6159 = vsub.s32 7, %v6158
    %v6160 = vrot.slane %v6125, %v6159
    %v6161 = vlaneseq
    %v6162 = vshrl.u32 %v6161, 7
    %v6163 = vsub.s32 0, %v6162
    %v6164 = vrot.slane %v6126, %v6163
    %v6165 = vlaneseq
    %v6166 = vshrl.u32 %v6165, 7
    %v6167 = vsub.s32 1, %v6166
    %v6168 = vrot.slane %v6126, %v6167
    %v6169 = vlaneseq
    %v6170 = vshrl.u32 %v6169, 7
    %v6171 = vsub.s32 2, %v6170
    %v6172 = vrot.slane %v6126, %v6171
    %v6173 = vlaneseq
    %v6174 = vshrl.u32 %v6173, 7
    %v6175 = vsub.s32 3, %v6174
    %v6176 = vrot.slane %v6126, %v6175
    %v6177 = vlaneseq
    %v6178 = vshrl.u32 %v6177, 7
    %v6179 = vsub.s32 4, %v6178
    %v6180 = vrot.slane %v6126, %v6179
    %v6181 = vlaneseq
    %v6182 = vshrl.u32 %v6181, 7
    %v6183 = vsub.s32 5, %v6182
    %v6184 = vrot.slane %v6126, %v6183
    %v6185 = vlaneseq
    %v6186 = vshrl.u32 %v6185, 7
    %v6187 = vsub.s32 6, %v6186
    %v6188 = vrot.slane %v6126, %v6187
    %v6189 = vlaneseq
    %v6190 = vshrl.u32 %v6189, 7
    %v6191 = vsub.s32 7, %v6190
    %v6192 = vrot.slane %v6126, %v6191
    %6209 = vmatprep.subr.mxu0 %v5102
    %6210 = vmatpush1.msra.mxu0 %v5101
    %6211 = vmatprep.subr.mxu0 %v5118
    %6212 = vmatpush1.msra.mxu0 %v5117
    %6213 = vmatprep.subr.mxu0 %v5134
    %6214 = vmatpush1.msra.mxu0 %v5133
    %6215 = vmatprep.subr.mxu0 %v5150
    %6216 = vmatpush1.msra.mxu0 %v5149
    %6217 = vmatprep.subr.mxu0 %v5166
    %6218 = vmatpush1.msra.mxu0 %v5165
    %6219 = vmatprep.subr.mxu0 %v5182
    %6220 = vmatpush1.msra.mxu0 %v5181
    %6221 = vmatprep.subr.mxu0 %v5198
    %6222 = vmatpush1.msra.mxu0 %v5197
    %6223 = vmatprep.subr.mxu0 %v5214
    %6224 = vmatpush1.msra.mxu0 %v5213
    %6225 = vmatprep.subr.mxu0 %v5230
    %6226 = vmatpush1.msra.mxu0 %v5229
    %6227 = vmatprep.subr.mxu0 %v5246
    %6228 = vmatpush1.msra.mxu0 %v5245
    %6229 = vmatprep.subr.mxu0 %v5262
    %6230 = vmatpush1.msra.mxu0 %v5261
    %6231 = vmatprep.subr.mxu0 %v5278
    %6232 = vmatpush1.msra.mxu0 %v5277
    %6233 = vmatprep.subr.mxu0 %v5294
    %6234 = vmatpush1.msra.mxu0 %v5293
    %6235 = vmatprep.subr.mxu0 %v5310
    %6236 = vmatpush1.msra.mxu0 %v5309
    %6237 = vmatprep.subr.mxu0 %v5326
    %6238 = vmatpush1.msra.mxu0 %v5325
    %6239 = vmatprep.subr.mxu0 %v5342
    %6240 = vmatpush1.msra.mxu0 %v5341
    %6241 = vmatprep.subr.mxu0 %v5358
    %6242 = vmatpush1.msra.mxu0 %v5357
    %6243 = vmatprep.subr.mxu0 %v5374
    %6244 = vmatpush1.msra.mxu0 %v5373
    %6245 = vmatprep.subr.mxu0 %v5390
    %6246 = vmatpush1.msra.mxu0 %v5389
    %6247 = vmatprep.subr.mxu0 %v5406
    %6248 = vmatpush1.msra.mxu0 %v5405
    %6249 = vmatprep.subr.mxu0 %v5422
    %6250 = vmatpush1.msra.mxu0 %v5421
    %6251 = vmatprep.subr.mxu0 %v5438
    %6252 = vmatpush1.msra.mxu0 %v5437
    %6253 = vmatprep.subr.mxu0 %v5454
    %6254 = vmatpush1.msra.mxu0 %v5453
    %6255 = vmatprep.subr.mxu0 %v5470
    %6256 = vmatpush1.msra.mxu0 %v5469
    %6257 = vmatprep.subr.mxu0 %v5486
    %6258 = vmatpush1.msra.mxu0 %v5485
    %6259 = vmatprep.subr.mxu0 %v5502
    %6260 = vmatpush1.msra.mxu0 %v5501
    %6261 = vmatprep.subr.mxu0 %v5518
    %6262 = vmatpush1.msra.mxu0 %v5517
    %6263 = vmatprep.subr.mxu0 %v5534
    %6264 = vmatpush1.msra.mxu0 %v5533
    %6265 = vmatprep.subr.mxu0 %v5550
    %6266 = vmatpush1.msra.mxu0 %v5549
    %6267 = vmatprep.subr.mxu0 %v5566
    %6268 = vmatpush1.msra.mxu0 %v5565
    %6269 = vmatprep.subr.mxu0 %v5582
    %6270 = vmatpush1.msra.mxu0 %v5581
    %6271 = vmatprep.subr.mxu0 %v5598
    %6272 = vmatpush1.msra.mxu0 %v5597
    %6273 = vmatprep.mubr.f32.mxu0 %v4582
    %6274 = vmatmul.mubr.f32.gmra.mrb[0].mxu0 %v4581
    %v6275 = vpop.f32.mrb[0].mxu0
    %v6276 = vadd.f32 %v6132, %v6275
    %v6277 = vpop.f32.mrb[0].mxu0
    %v6278 = vadd.f32 %v6136, %v6277
    %6279 = vmatprep.mubr.f32.mxu0 %v4586
    %6280 = vmatmul.mubr.f32.gmra.mrb[0].mxu0 %v4585
    %v6281 = vpop.f32.mrb[0].mxu0
    %v6282 = vadd.f32 %v6132, %v6281
    %v6283 = vpop.f32.mrb[0].mxu0
    %v6284 = vadd.f32 %v6136, %v6283
    %6285 = vdwg.mxu0
    %6286 = vmatprep.subr.mxu0 %v5614
    %6287 = vmatpush1.msra.mxu0 %v5613
    %6288 = vmatprep.subr.mxu0 %v5630
    %6289 = vmatpush1.msra.mxu0 %v5629
    %6290 = vmatprep.subr.mxu0 %v5646
    %6291 = vmatpush1.msra.mxu0 %v5645
    %6292 = vmatprep.subr.mxu0 %v5662
    %6293 = vmatpush1.msra.mxu0 %v5661
    %6294 = vmatprep.subr.mxu0 %v5678
    %6295 = vmatpush1.msra.mxu0 %v5677
    %6296 = vmatprep.subr.mxu0 %v5694
    %6297 = vmatpush1.msra.mxu0 %v5693
    %6298 = vmatprep.subr.mxu0 %v5710
    %6299 = vmatpush1.msra.mxu0 %v5709
    %6300 = vmatprep.subr.mxu0 %v5726
    %6301 = vmatpush1.msra.mxu0 %v5725
    %6302 = vmatprep.subr.mxu0 %v5742
    %6303 = vmatpush1.msra.mxu0 %v5741
    %6304 = vmatprep.subr.mxu0 %v5758
    %6305 = vmatpush1.msra.mxu0 %v5757
    %6306 = vmatprep.subr.mxu0 %v5774
    %6307 = vmatpush1.msra.mxu0 %v5773
    %6308 = vmatprep.subr.mxu0 %v5790
    %6309 = vmatpush1.msra.mxu0 %v5789
    %6310 = vmatprep.subr.mxu0 %v5806
    %6311 = vmatpush1.msra.mxu0 %v5805
    %6312 = vmatprep.subr.mxu0 %v5822
    %6313 = vmatpush1.msra.mxu0 %v5821
    %6314 = vmatprep.subr.mxu0 %v5838
    %6315 = vmatpush1.msra.mxu0 %v5837
    %6316 = vmatprep.subr.mxu0 %v5854
    %6317 = vmatpush1.msra.mxu0 %v5853
    %6318 = vmatprep.subr.mxu0 %v5870
    %6319 = vmatpush1.msra.mxu0 %v5869
    %6320 = vmatprep.subr.mxu0 %v5886
    %6321 = vmatpush1.msra.mxu0 %v5885
    %6322 = vmatprep.subr.mxu0 %v5902
    %6323 = vmatpush1.msra.mxu0 %v5901
    %6324 = vmatprep.subr.mxu0 %v5918
    %6325 = vmatpush1.msra.mxu0 %v5917
    %6326 = vmatprep.subr.mxu0 %v5934
    %6327 = vmatpush1.msra.mxu0 %v5933
    %6328 = vmatprep.subr.mxu0 %v5950
    %6329 = vmatpush1.msra.mxu0 %v5949
    %6330 = vmatprep.subr.mxu0 %v5966
    %6331 = vmatpush1.msra.mxu0 %v5965
    %6332 = vmatprep.subr.mxu0 %v5982
    %6333 = vmatpush1.msra.mxu0 %v5981
    %6334 = vmatprep.subr.mxu0 %v5998
    %6335 = vmatpush1.msra.mxu0 %v5997
    %6336 = vmatprep.subr.mxu0 %v6014
    %6337 = vmatpush1.msra.mxu0 %v6013
    %6338 = vmatprep.subr.mxu0 %v6030
    %6339 = vmatpush1.msra.mxu0 %v6029
    %6340 = vmatprep.subr.mxu0 %v6046
    %6341 = vmatpush1.msra.mxu0 %v6045
    %6342 = vmatprep.subr.mxu0 %v6062
    %6343 = vmatpush1.msra.mxu0 %v6061
    %6344 = vmatprep.subr.mxu0 %v6078
    %6345 = vmatpush1.msra.mxu0 %v6077
    %6346 = vmatprep.subr.mxu0 %v6094
    %6347 = vmatpush1.msra.mxu0 %v6093
    %6348 = vmatprep.subr.mxu0 %v6110
    %6349 = vmatpush1.msra.mxu0 %v6109
    %6350 = vmatprep.mubr.f32.mxu0 %v4584
    %6351 = vmatmul.mubr.f32.gmra.mrb[0].mxu0 %v4583
    %v6352 = vpop.f32.mrb[0].mxu0
    %v6353 = vadd.f32 %v6276, %v6352
    %v6354 = vpop.f32.mrb[0].mxu0
    %v6355 = vadd.f32 %v6278, %v6354
    %6356 = vmatprep.mubr.f32.mxu0 %v4588
    %6357 = vmatmul.mubr.f32.gmra.mrb[0].mxu0 %v4587
    %v6358 = vpop.f32.mrb[0].mxu0
    %v6359 = vadd.f32 %v6282, %v6358
    %v6360 = vpop.f32.mrb[0].mxu0
    %v6361 = vadd.f32 %v6284, %v6360
    %6362 = vdwg.mxu0
    %6363 = vmatprep.subr.mxu0 %v5104
    %6364 = vmatpush1.msra.mxu0 %v5103
    %6365 = vmatprep.subr.mxu0 %v5120
    %6366 = vmatpush1.msra.mxu0 %v5119
    %6367 = vmatprep.subr.mxu0 %v5136
    %6368 = vmatpush1.msra.mxu0 %v5135
    %6369 = vmatprep.subr.mxu0 %v5152
    %6370 = vmatpush1.msra.mxu0 %v5151
    %6371 = vmatprep.subr.mxu0 %v5168
    %6372 = vmatpush1.msra.mxu0 %v5167
    %6373 = vmatprep.subr.mxu0 %v5184
    %6374 = vmatpush1.msra.mxu0 %v5183
    %6375 = vmatprep.subr.mxu0 %v5200
    %6376 = vmatpush1.msra.mxu0 %v5199
    %6377 = vmatprep.subr.mxu0 %v5216
    %6378 = vmatpush1.msra.mxu0 %v5215
    %6379 = vmatprep.subr.mxu0 %v5232
    %6380 = vmatpush1.msra.mxu0 %v5231
    %6381 = vmatprep.subr.mxu0 %v5248
    %6382 = vmatpush1.msra.mxu0 %v5247
    %6383 = vmatprep.subr.mxu0 %v5264
    %6384 = vmatpush1.msra.mxu0 %v5263
    %6385 = vmatprep.subr.mxu0 %v5280
    %6386 = vmatpush1.msra.mxu0 %v5279
    %6387 = vmatprep.subr.mxu0 %v5296
    %6388 = vmatpush1.msra.mxu0 %v5295
    %6389 = vmatprep.subr.mxu0 %v5312
    %6390 = vmatpush1.msra.mxu0 %v5311
    %6391 = vmatprep.subr.mxu0 %v5328
    %6392 = vmatpush1.msra.mxu0 %v5327
    %6393 = vmatprep.subr.mxu0 %v5344
    %6394 = vmatpush1.msra.mxu0 %v5343
    %6395 = vmatprep.subr.mxu0 %v5360
    %6396 = vmatpush1.msra.mxu0 %v5359
    %6397 = vmatprep.subr.mxu0 %v5376
    %6398 = vmatpush1.msra.mxu0 %v5375
    %6399 = vmatprep.subr.mxu0 %v5392
    %6400 = vmatpush1.msra.mxu0 %v5391
    %6401 = vmatprep.subr.mxu0 %v5408
    %6402 = vmatpush1.msra.mxu0 %v5407
    %6403 = vmatprep.subr.mxu0 %v5424
    %6404 = vmatpush1.msra.mxu0 %v5423
    %6405 = vmatprep.subr.mxu0 %v5440
    %6406 = vmatpush1.msra.mxu0 %v5439
    %6407 = vmatprep.subr.mxu0 %v5456
    %6408 = vmatpush1.msra.mxu0 %v5455
    %6409 = vmatprep.subr.mxu0 %v5472
    %6410 = vmatpush1.msra.mxu0 %v5471
    %6411 = vmatprep.subr.mxu0 %v5488
    %6412 = vmatpush1.msra.mxu0 %v5487
    %6413 = vmatprep.subr.mxu0 %v5504
    %6414 = vmatpush1.msra.mxu0 %v5503
    %6415 = vmatprep.subr.mxu0 %v5520
    %6416 = vmatpush1.msra.mxu0 %v5519
    %6417 = vmatprep.subr.mxu0 %v5536
    %6418 = vmatpush1.msra.mxu0 %v5535
    %6419 = vmatprep.subr.mxu0 %v5552
    %6420 = vmatpush1.msra.mxu0 %v5551
    %6421 = vmatprep.subr.mxu0 %v5568
    %6422 = vmatpush1.msra.mxu0 %v5567
    %6423 = vmatprep.subr.mxu0 %v5584
    %6424 = vmatpush1.msra.mxu0 %v5583
    %6425 = vmatprep.subr.mxu0 %v5600
    %6426 = vmatpush1.msra.mxu0 %v5599
    %6427 = vmatprep.mubr.f32.mxu0 %v4582
    %6428 = vmatmul.mubr.f32.gmra.mrb[0].mxu0 %v4581
    %v6429 = vpop.f32.mrb[0].mxu0
    %v6430 = vadd.f32 %v6140, %v6429
    %v6431 = vpop.f32.mrb[0].mxu0
    %v6432 = vadd.f32 %v6144, %v6431
    %6433 = vmatprep.mubr.f32.mxu0 %v4586
    %6434 = vmatmul.mubr.f32.gmra.mrb[0].mxu0 %v4585
    %v6435 = vpop.f32.mrb[0].mxu0
    %v6436 = vadd.f32 %v6140, %v6435
    %v6437 = vpop.f32.mrb[0].mxu0
    %v6438 = vadd.f32 %v6144, %v6437
    %6439 = vdwg.mxu0
    %6440 = vmatprep.subr.mxu0 %v5616
    %6441 = vmatpush1.msra.mxu0 %v5615
    %6442 = vmatprep.subr.mxu0 %v5632
    %6443 = vmatpush1.msra.mxu0 %v5631
    %6444 = vmatprep.subr.mxu0 %v5648
    %6445 = vmatpush1.msra.mxu0 %v5647
    %6446 = vmatprep.subr.mxu0 %v5664
    %6447 = vmatpush1.msra.mxu0 %v5663
    %6448 = vmatprep.subr.mxu0 %v5680
    %6449 = vmatpush1.msra.mxu0 %v5679
    %6450 = vmatprep.subr.mxu0 %v5696
    %6451 = vmatpush1.msra.mxu0 %v5695
    %6452 = vmatprep.subr.mxu0 %v5712
    %6453 = vmatpush1.msra.mxu0 %v5711
    %6454 = vmatprep.subr.mxu0 %v5728
    %6455 = vmatpush1.msra.mxu0 %v5727
    %6456 = vmatprep.subr.mxu0 %v5744
    %6457 = vmatpush1.msra.mxu0 %v5743
    %6458 = vmatprep.subr.mxu0 %v5760
    %6459 = vmatpush1.msra.mxu0 %v5759
    %6460 = vmatprep.subr.mxu0 %v5776
    %6461 = vmatpush1.msra.mxu0 %v5775
    %6462 = vmatprep.subr.mxu0 %v5792
    %6463 = vmatpush1.msra.mxu0 %v5791
    %6464 = vmatprep.subr.mxu0 %v5808
    %6465 = vmatpush1.msra.mxu0 %v5807
    %6466 = vmatprep.subr.mxu0 %v5824
    %6467 = vmatpush1.msra.mxu0 %v5823
    %6468 = vmatprep.subr.mxu0 %v5840
    %6469 = vmatpush1.msra.mxu0 %v5839
    %6470 = vmatprep.subr.mxu0 %v5856
    %6471 = vmatpush1.msra.mxu0 %v5855
    %6472 = vmatprep.subr.mxu0 %v5872
    %6473 = vmatpush1.msra.mxu0 %v5871
    %6474 = vmatprep.subr.mxu0 %v5888
    %6475 = vmatpush1.msra.mxu0 %v5887
    %6476 = vmatprep.subr.mxu0 %v5904
    %6477 = vmatpush1.msra.mxu0 %v5903
    %6478 = vmatprep.subr.mxu0 %v5920
    %6479 = vmatpush1.msra.mxu0 %v5919
    %6480 = vmatprep.subr.mxu0 %v5936
    %6481 = vmatpush1.msra.mxu0 %v5935
    %6482 = vmatprep.subr.mxu0 %v5952
    %6483 = vmatpush1.msra.mxu0 %v5951
    %6484 = vmatprep.subr.mxu0 %v5968
    %6485 = vmatpush1.msra.mxu0 %v5967
    %6486 = vmatprep.subr.mxu0 %v5984
    %6487 = vmatpush1.msra.mxu0 %v5983
    %6488 = vmatprep.subr.mxu0 %v6000
    %6489 = vmatpush1.msra.mxu0 %v5999
    %6490 = vmatprep.subr.mxu0 %v6016
    %6491 = vmatpush1.msra.mxu0 %v6015
    %6492 = vmatprep.subr.mxu0 %v6032
    %6493 = vmatpush1.msra.mxu0 %v6031
    %6494 = vmatprep.subr.mxu0 %v6048
    %6495 = vmatpush1.msra.mxu0 %v6047
    %6496 = vmatprep.subr.mxu0 %v6064
    %6497 = vmatpush1.msra.mxu0 %v6063
    %6498 = vmatprep.subr.mxu0 %v6080
    %6499 = vmatpush1.msra.mxu0 %v6079
    %6500 = vmatprep.subr.mxu0 %v6096
    %6501 = vmatpush1.msra.mxu0 %v6095
    %6502 = vmatprep.subr.mxu0 %v6112
    %6503 = vmatpush1.msra.mxu0 %v6111
    %6504 = vmatprep.mubr.f32.mxu0 %v4584
    %6505 = vmatmul.mubr.f32.gmra.mrb[0].mxu0 %v4583
    %v6506 = vpop.f32.mrb[0].mxu0
    %v6507 = vadd.f32 %v6430, %v6506
    %v6508 = vpop.f32.mrb[0].mxu0
    %v6509 = vadd.f32 %v6432, %v6508
    %6510 = vmatprep.mubr.f32.mxu0 %v4588
    %6511 = vmatmul.mubr.f32.gmra.mrb[0].mxu0 %v4587
    %v6512 = vpop.f32.mrb[0].mxu0
    %v6513 = vadd.f32 %v6436, %v6512
    %v6514 = vpop.f32.mrb[0].mxu0
    %v6515 = vadd.f32 %v6438, %v6514
    %6516 = vdwg.mxu0
    %6517 = vmatprep.subr.mxu0 %v5106
    %6518 = vmatpush1.msra.mxu0 %v5105
    %6519 = vmatprep.subr.mxu0 %v5122
    %6520 = vmatpush1.msra.mxu0 %v5121
    %6521 = vmatprep.subr.mxu0 %v5138
    %6522 = vmatpush1.msra.mxu0 %v5137
    %6523 = vmatprep.subr.mxu0 %v5154
    %6524 = vmatpush1.msra.mxu0 %v5153
    %6525 = vmatprep.subr.mxu0 %v5170
    %6526 = vmatpush1.msra.mxu0 %v5169
    %6527 = vmatprep.subr.mxu0 %v5186
    %6528 = vmatpush1.msra.mxu0 %v5185
    %6529 = vmatprep.subr.mxu0 %v5202
    %6530 = vmatpush1.msra.mxu0 %v5201
    %6531 = vmatprep.subr.mxu0 %v5218
    %6532 = vmatpush1.msra.mxu0 %v5217
    %6533 = vmatprep.subr.mxu0 %v5234
    %6534 = vmatpush1.msra.mxu0 %v5233
    %6535 = vmatprep.subr.mxu0 %v5250
    %6536 = vmatpush1.msra.mxu0 %v5249
    %6537 = vmatprep.subr.mxu0 %v5266
    %6538 = vmatpush1.msra.mxu0 %v5265
    %6539 = vmatprep.subr.mxu0 %v5282
    %6540 = vmatpush1.msra.mxu0 %v5281
    %6541 = vmatprep.subr.mxu0 %v5298
    %6542 = vmatpush1.msra.mxu0 %v5297
    %6543 = vmatprep.subr.mxu0 %v5314
    %6544 = vmatpush1.msra.mxu0 %v5313
    %6545 = vmatprep.subr.mxu0 %v5330
    %6546 = vmatpush1.msra.mxu0 %v5329
    %6547 = vmatprep.subr.mxu0 %v5346
    %6548 = vmatpush1.msra.mxu0 %v5345
    %6549 = vmatprep.subr.mxu0 %v5362
    %6550 = vmatpush1.msra.mxu0 %v5361
    %6551 = vmatprep.subr.mxu0 %v5378
    %6552 = vmatpush1.msra.mxu0 %v5377
    %6553 = vmatprep.subr.mxu0 %v5394
    %6554 = vmatpush1.msra.mxu0 %v5393
    %6555 = vmatprep.subr.mxu0 %v5410
    %6556 = vmatpush1.msra.mxu0 %v5409
    %6557 = vmatprep.subr.mxu0 %v5426
    %6558 = vmatpush1.msra.mxu0 %v5425
    %6559 = vmatprep.subr.mxu0 %v5442
    %6560 = vmatpush1.msra.mxu0 %v5441
    %6561 = vmatprep.subr.mxu0 %v5458
    %6562 = vmatpush1.msra.mxu0 %v5457
    %6563 = vmatprep.subr.mxu0 %v5474
    %6564 = vmatpush1.msra.mxu0 %v5473
    %6565 = vmatprep.subr.mxu0 %v5490
    %6566 = vmatpush1.msra.mxu0 %v5489
    %6567 = vmatprep.subr.mxu0 %v5506
    %6568 = vmatpush1.msra.mxu0 %v5505
    %6569 = vmatprep.subr.mxu0 %v5522
    %6570 = vmatpush1.msra.mxu0 %v5521
    %6571 = vmatprep.subr.mxu0 %v5538
    %6572 = vmatpush1.msra.mxu0 %v5537
    %6573 = vmatprep.subr.mxu0 %v5554
    %6574 = vmatpush1.msra.mxu0 %v5553
    %6575 = vmatprep.subr.mxu0 %v5570
    %6576 = vmatpush1.msra.mxu0 %v5569
    %6577 = vmatprep.subr.mxu0 %v5586
    %6578 = vmatpush1.msra.mxu0 %v5585
    %6579 = vmatprep.subr.mxu0 %v5602
    %6580 = vmatpush1.msra.mxu0 %v5601
    %6581 = vmatprep.mubr.f32.mxu0 %v4582
    %6582 = vmatmul.mubr.f32.gmra.mrb[0].mxu0 %v4581
    %v6583 = vpop.f32.mrb[0].mxu0
    %v6584 = vadd.f32 %v6148, %v6583
    %v6585 = vpop.f32.mrb[0].mxu0
    %v6586 = vadd.f32 %v6152, %v6585
    %6587 = vmatprep.mubr.f32.mxu0 %v4586
    %6588 = vmatmul.mubr.f32.gmra.mrb[0].mxu0 %v4585
    %v6589 = vpop.f32.mrb[0].mxu0
    %v6590 = vadd.f32 %v6148, %v6589
    %v6591 = vpop.f32.mrb[0].mxu0
    %v6592 = vadd.f32 %v6152, %v6591
    %6593 = vdwg.mxu0
    %6594 = vmatprep.subr.mxu0 %v5618
    %6595 = vmatpush1.msra.mxu0 %v5617
    %6596 = vmatprep.subr.mxu0 %v5634
    %6597 = vmatpush1.msra.mxu0 %v5633
    %6598 = vmatprep.subr.mxu0 %v5650
    %6599 = vmatpush1.msra.mxu0 %v5649
    %6600 = vmatprep.subr.mxu0 %v5666
    %6601 = vmatpush1.msra.mxu0 %v5665
    %6602 = vmatprep.subr.mxu0 %v5682
    %6603 = vmatpush1.msra.mxu0 %v5681
    %6604 = vmatprep.subr.mxu0 %v5698
    %6605 = vmatpush1.msra.mxu0 %v5697
    %6606 = vmatprep.subr.mxu0 %v5714
    %6607 = vmatpush1.msra.mxu0 %v5713
    %6608 = vmatprep.subr.mxu0 %v5730
    %6609 = vmatpush1.msra.mxu0 %v5729
    %6610 = vmatprep.subr.mxu0 %v5746
    %6611 = vmatpush1.msra.mxu0 %v5745
    %6612 = vmatprep.subr.mxu0 %v5762
    %6613 = vmatpush1.msra.mxu0 %v5761
    %6614 = vmatprep.subr.mxu0 %v5778
    %6615 = vmatpush1.msra.mxu0 %v5777
    %6616 = vmatprep.subr.mxu0 %v5794
    %6617 = vmatpush1.msra.mxu0 %v5793
    %6618 = vmatprep.subr.mxu0 %v5810
    %6619 = vmatpush1.msra.mxu0 %v5809
    %6620 = vmatprep.subr.mxu0 %v5826
    %6621 = vmatpush1.msra.mxu0 %v5825
    %6622 = vmatprep.subr.mxu0 %v5842
    %6623 = vmatpush1.msra.mxu0 %v5841
    %6624 = vmatprep.subr.mxu0 %v5858
    %6625 = vmatpush1.msra.mxu0 %v5857
    %6626 = vmatprep.subr.mxu0 %v5874
    %6627 = vmatpush1.msra.mxu0 %v5873
    %6628 = vmatprep.subr.mxu0 %v5890
    %6629 = vmatpush1.msra.mxu0 %v5889
    %6630 = vmatprep.subr.mxu0 %v5906
    %6631 = vmatpush1.msra.mxu0 %v5905
    %6632 = vmatprep.subr.mxu0 %v5922
    %6633 = vmatpush1.msra.mxu0 %v5921
    %6634 = vmatprep.subr.mxu0 %v5938
    %6635 = vmatpush1.msra.mxu0 %v5937
    %6636 = vmatprep.subr.mxu0 %v5954
    %6637 = vmatpush1.msra.mxu0 %v5953
    %6638 = vmatprep.subr.mxu0 %v5970
    %6639 = vmatpush1.msra.mxu0 %v5969
    %6640 = vmatprep.subr.mxu0 %v5986
    %6641 = vmatpush1.msra.mxu0 %v5985
    %6642 = vmatprep.subr.mxu0 %v6002
    %6643 = vmatpush1.msra.mxu0 %v6001
    %6644 = vmatprep.subr.mxu0 %v6018
    %6645 = vmatpush1.msra.mxu0 %v6017
    %6646 = vmatprep.subr.mxu0 %v6034
    %6647 = vmatpush1.msra.mxu0 %v6033
    %6648 = vmatprep.subr.mxu0 %v6050
    %6649 = vmatpush1.msra.mxu0 %v6049
    %6650 = vmatprep.subr.mxu0 %v6066
    %6651 = vmatpush1.msra.mxu0 %v6065
    %6652 = vmatprep.subr.mxu0 %v6082
    %6653 = vmatpush1.msra.mxu0 %v6081
    %6654 = vmatprep.subr.mxu0 %v6098
    %6655 = vmatpush1.msra.mxu0 %v6097
    %6656 = vmatprep.subr.mxu0 %v6114
    %6657 = vmatpush1.msra.mxu0 %v6113
    %6658 = vmatprep.mubr.f32.mxu0 %v4584
    %6659 = vmatmul.mubr.f32.gmra.mrb[0].mxu0 %v4583
    %v6660 = vpop.f32.mrb[0].mxu0
    %v6661 = vadd.f32 %v6584, %v6660
    %v6662 = vpop.f32.mrb[0].mxu0
    %v6663 = vadd.f32 %v6586, %v6662
    %6664 = vmatprep.mubr.f32.mxu0 %v4588
    %6665 = vmatmul.mubr.f32.gmra.mrb[0].mxu0 %v4587
    %v6666 = vpop.f32.mrb[0].mxu0
    %v6667 = vadd.f32 %v6590, %v6666
    %v6668 = vpop.f32.mrb[0].mxu0
    %v6669 = vadd.f32 %v6592, %v6668
    %6670 = vdwg.mxu0
    %6671 = vmatprep.subr.mxu0 %v5108
    %6672 = vmatpush1.msra.mxu0 %v5107
    %6673 = vmatprep.subr.mxu0 %v5124
    %6674 = vmatpush1.msra.mxu0 %v5123
    %6675 = vmatprep.subr.mxu0 %v5140
    %6676 = vmatpush1.msra.mxu0 %v5139
    %6677 = vmatprep.subr.mxu0 %v5156
    %6678 = vmatpush1.msra.mxu0 %v5155
    %6679 = vmatprep.subr.mxu0 %v5172
    %6680 = vmatpush1.msra.mxu0 %v5171
    %6681 = vmatprep.subr.mxu0 %v5188
    %6682 = vmatpush1.msra.mxu0 %v5187
    %6683 = vmatprep.subr.mxu0 %v5204
    %6684 = vmatpush1.msra.mxu0 %v5203
    %6685 = vmatprep.subr.mxu0 %v5220
    %6686 = vmatpush1.msra.mxu0 %v5219
    %6687 = vmatprep.subr.mxu0 %v5236
    %6688 = vmatpush1.msra.mxu0 %v5235
    %6689 = vmatprep.subr.mxu0 %v5252
    %6690 = vmatpush1.msra.mxu0 %v5251
    %6691 = vmatprep.subr.mxu0 %v5268
    %6692 = vmatpush1.msra.mxu0 %v5267
    %6693 = vmatprep.subr.mxu0 %v5284
    %6694 = vmatpush1.msra.mxu0 %v5283
    %6695 = vmatprep.subr.mxu0 %v5300
    %6696 = vmatpush1.msra.mxu0 %v5299
    %6697 = vmatprep.subr.mxu0 %v5316
    %6698 = vmatpush1.msra.mxu0 %v5315
    %6699 = vmatprep.subr.mxu0 %v5332
    %6700 = vmatpush1.msra.mxu0 %v5331
    %6701 = vmatprep.subr.mxu0 %v5348
    %6702 = vmatpush1.msra.mxu0 %v5347
    %6703 = vmatprep.subr.mxu0 %v5364
    %6704 = vmatpush1.msra.mxu0 %v5363
    %6705 = vmatprep.subr.mxu0 %v5380
    %6706 = vmatpush1.msra.mxu0 %v5379
    %6707 = vmatprep.subr.mxu0 %v5396
    %6708 = vmatpush1.msra.mxu0 %v5395
    %6709 = vmatprep.subr.mxu0 %v5412
    %6710 = vmatpush1.msra.mxu0 %v5411
    %6711 = vmatprep.subr.mxu0 %v5428
    %6712 = vmatpush1.msra.mxu0 %v5427
    %6713 = vmatprep.subr.mxu0 %v5444
    %6714 = vmatpush1.msra.mxu0 %v5443
    %6715 = vmatprep.subr.mxu0 %v5460
    %6716 = vmatpush1.msra.mxu0 %v5459
    %6717 = vmatprep.subr.mxu0 %v5476
    %6718 = vmatpush1.msra.mxu0 %v5475
    %6719 = vmatprep.subr.mxu0 %v5492
    %6720 = vmatpush1.msra.mxu0 %v5491
    %6721 = vmatprep.subr.mxu0 %v5508
    %6722 = vmatpush1.msra.mxu0 %v5507
    %6723 = vmatprep.subr.mxu0 %v5524
    %6724 = vmatpush1.msra.mxu0 %v5523
    %6725 = vmatprep.subr.mxu0 %v5540
    %6726 = vmatpush1.msra.mxu0 %v5539
    %6727 = vmatprep.subr.mxu0 %v5556
    %6728 = vmatpush1.msra.mxu0 %v5555
    %6729 = vmatprep.subr.mxu0 %v5572
    %6730 = vmatpush1.msra.mxu0 %v5571
    %6731 = vmatprep.subr.mxu0 %v5588
    %6732 = vmatpush1.msra.mxu0 %v5587
    %6733 = vmatprep.subr.mxu0 %v5604
    %6734 = vmatpush1.msra.mxu0 %v5603
    %6735 = vmatprep.mubr.f32.mxu0 %v4582
    %6736 = vmatmul.mubr.f32.gmra.mrb[0].mxu0 %v4581
    %v6737 = vpop.f32.mrb[0].mxu0
    %v6738 = vadd.f32 %v6156, %v6737
    %v6739 = vpop.f32.mrb[0].mxu0
    %v6740 = vadd.f32 %v6160, %v6739
    %6741 = vmatprep.mubr.f32.mxu0 %v4586
    %6742 = vmatmul.mubr.f32.gmra.mrb[0].mxu0 %v4585
    %v6743 = vpop.f32.mrb[0].mxu0
    %v6744 = vadd.f32 %v6156, %v6743
    %v6745 = vpop.f32.mrb[0].mxu0
    %v6746 = vadd.f32 %v6160, %v6745
    %6747 = vdwg.mxu0
    %6748 = vmatprep.subr.mxu0 %v5620
    %6749 = vmatpush1.msra.mxu0 %v5619
    %6750 = vmatprep.subr.mxu0 %v5636
    %6751 = vmatpush1.msra.mxu0 %v5635
    %6752 = vmatprep.subr.mxu0 %v5652
    %6753 = vmatpush1.msra.mxu0 %v5651
    %6754 = vmatprep.subr.mxu0 %v5668
    %6755 = vmatpush1.msra.mxu0 %v5667
    %6756 = vmatprep.subr.mxu0 %v5684
    %6757 = vmatpush1.msra.mxu0 %v5683
    %6758 = vmatprep.subr.mxu0 %v5700
    %6759 = vmatpush1.msra.mxu0 %v5699
    %6760 = vmatprep.subr.mxu0 %v5716
    %6761 = vmatpush1.msra.mxu0 %v5715
    %6762 = vmatprep.subr.mxu0 %v5732
    %6763 = vmatpush1.msra.mxu0 %v5731
    %6764 = vmatprep.subr.mxu0 %v5748
    %6765 = vmatpush1.msra.mxu0 %v5747
    %6766 = vmatprep.subr.mxu0 %v5764
    %6767 = vmatpush1.msra.mxu0 %v5763
    %6768 = vmatprep.subr.mxu0 %v5780
    %6769 = vmatpush1.msra.mxu0 %v5779
    %6770 = vmatprep.subr.mxu0 %v5796
    %6771 = vmatpush1.msra.mxu0 %v5795
    %6772 = vmatprep.subr.mxu0 %v5812
    %6773 = vmatpush1.msra.mxu0 %v5811
    %6774 = vmatprep.subr.mxu0 %v5828
    %6775 = vmatpush1.msra.mxu0 %v5827
    %6776 = vmatprep.subr.mxu0 %v5844
    %6777 = vmatpush1.msra.mxu0 %v5843
    %6778 = vmatprep.subr.mxu0 %v5860
    %6779 = vmatpush1.msra.mxu0 %v5859
    %6780 = vmatprep.subr.mxu0 %v5876
    %6781 = vmatpush1.msra.mxu0 %v5875
    %6782 = vmatprep.subr.mxu0 %v5892
    %6783 = vmatpush1.msra.mxu0 %v5891
    %6784 = vmatprep.subr.mxu0 %v5908
    %6785 = vmatpush1.msra.mxu0 %v5907
    %6786 = vmatprep.subr.mxu0 %v5924
    %6787 = vmatpush1.msra.mxu0 %v5923
    %6788 = vmatprep.subr.mxu0 %v5940
    %6789 = vmatpush1.msra.mxu0 %v5939
    %6790 = vmatprep.subr.mxu0 %v5956
    %6791 = vmatpush1.msra.mxu0 %v5955
    %6792 = vmatprep.subr.mxu0 %v5972
    %6793 = vmatpush1.msra.mxu0 %v5971
    %6794 = vmatprep.subr.mxu0 %v5988
    %6795 = vmatpush1.msra.mxu0 %v5987
    %6796 = vmatprep.subr.mxu0 %v6004
    %6797 = vmatpush1.msra.mxu0 %v6003
    %6798 = vmatprep.subr.mxu0 %v6020
    %6799 = vmatpush1.msra.mxu0 %v6019
    %6800 = vmatprep.subr.mxu0 %v6036
    %6801 = vmatpush1.msra.mxu0 %v6035
    %6802 = vmatprep.subr.mxu0 %v6052
    %6803 = vmatpush1.msra.mxu0 %v6051
    %6804 = vmatprep.subr.mxu0 %v6068
    %6805 = vmatpush1.msra.mxu0 %v6067
    %6806 = vmatprep.subr.mxu0 %v6084
    %6807 = vmatpush1.msra.mxu0 %v6083
    %6808 = vmatprep.subr.mxu0 %v6100
    %6809 = vmatpush1.msra.mxu0 %v6099
    %6810 = vmatprep.subr.mxu0 %v6116
    %6811 = vmatpush1.msra.mxu0 %v6115
    %6812 = vmatprep.mubr.f32.mxu0 %v4584
    %6813 = vmatmul.mubr.f32.gmra.mrb[0].mxu0 %v4583
    %v6814 = vpop.f32.mrb[0].mxu0
    %v6815 = vadd.f32 %v6738, %v6814
    %v6816 = vpop.f32.mrb[0].mxu0
    %v6817 = vadd.f32 %v6740, %v6816
    %6818 = vmatprep.mubr.f32.mxu0 %v4588
    %6819 = vmatmul.mubr.f32.gmra.mrb[0].mxu0 %v4587
    %v6820 = vpop.f32.mrb[0].mxu0
    %v6821 = vadd.f32 %v6744, %v6820
    %v6822 = vpop.f32.mrb[0].mxu0
    %v6823 = vadd.f32 %v6746, %v6822
    %6824 = vdwg.mxu0
    %6825 = vmatprep.subr.mxu0 %v5110
    %6826 = vmatpush1.msra.mxu0 %v5109
    %6827 = vmatprep.subr.mxu0 %v5126
    %6828 = vmatpush1.msra.mxu0 %v5125
    %6829 = vmatprep.subr.mxu0 %v5142
    %6830 = vmatpush1.msra.mxu0 %v5141
    %6831 = vmatprep.subr.mxu0 %v5158
    %6832 = vmatpush1.msra.mxu0 %v5157
    %6833 = vmatprep.subr.mxu0 %v5174
    %6834 = vmatpush1.msra.mxu0 %v5173
    %6835 = vmatprep.subr.mxu0 %v5190
    %6836 = vmatpush1.msra.mxu0 %v5189
    %6837 = vmatprep.subr.mxu0 %v5206
    %6838 = vmatpush1.msra.mxu0 %v5205
    %6839 = vmatprep.subr.mxu0 %v5222
    %6840 = vmatpush1.msra.mxu0 %v5221
    %6841 = vmatprep.subr.mxu0 %v5238
    %6842 = vmatpush1.msra.mxu0 %v5237
    %6843 = vmatprep.subr.mxu0 %v5254
    %6844 = vmatpush1.msra.mxu0 %v5253
    %6845 = vmatprep.subr.mxu0 %v5270
    %6846 = vmatpush1.msra.mxu0 %v5269
    %6847 = vmatprep.subr.mxu0 %v5286
    %6848 = vmatpush1.msra.mxu0 %v5285
    %6849 = vmatprep.subr.mxu0 %v5302
    %6850 = vmatpush1.msra.mxu0 %v5301
    %6851 = vmatprep.subr.mxu0 %v5318
    %6852 = vmatpush1.msra.mxu0 %v5317
    %6853 = vmatprep.subr.mxu0 %v5334
    %6854 = vmatpush1.msra.mxu0 %v5333
    %6855 = vmatprep.subr.mxu0 %v5350
    %6856 = vmatpush1.msra.mxu0 %v5349
    %6857 = vmatprep.subr.mxu0 %v5366
    %6858 = vmatpush1.msra.mxu0 %v5365
    %6859 = vmatprep.subr.mxu0 %v5382
    %6860 = vmatpush1.msra.mxu0 %v5381
    %6861 = vmatprep.subr.mxu0 %v5398
    %6862 = vmatpush1.msra.mxu0 %v5397
    %6863 = vmatprep.subr.mxu0 %v5414
    %6864 = vmatpush1.msra.mxu0 %v5413
    %6865 = vmatprep.subr.mxu0 %v5430
    %6866 = vmatpush1.msra.mxu0 %v5429
    %6867 = vmatprep.subr.mxu0 %v5446
    %6868 = vmatpush1.msra.mxu0 %v5445
    %6869 = vmatprep.subr.mxu0 %v5462
    %6870 = vmatpush1.msra.mxu0 %v5461
    %6871 = vmatprep.subr.mxu0 %v5478
    %6872 = vmatpush1.msra.mxu0 %v5477
    %6873 = vmatprep.subr.mxu0 %v5494
    %6874 = vmatpush1.msra.mxu0 %v5493
    %6875 = vmatprep.subr.mxu0 %v5510
    %6876 = vmatpush1.msra.mxu0 %v5509
    %6877 = vmatprep.subr.mxu0 %v5526
    %6878 = vmatpush1.msra.mxu0 %v5525
    %6879 = vmatprep.subr.mxu0 %v5542
    %6880 = vmatpush1.msra.mxu0 %v5541
    %6881 = vmatprep.subr.mxu0 %v5558
    %6882 = vmatpush1.msra.mxu0 %v5557
    %6883 = vmatprep.subr.mxu0 %v5574
    %6884 = vmatpush1.msra.mxu0 %v5573
    %6885 = vmatprep.subr.mxu0 %v5590
    %6886 = vmatpush1.msra.mxu0 %v5589
    %6887 = vmatprep.subr.mxu0 %v5606
    %6888 = vmatpush1.msra.mxu0 %v5605
    %6889 = vmatprep.mubr.f32.mxu0 %v4582
    %6890 = vmatmul.mubr.f32.gmra.mrb[0].mxu0 %v4581
    %v6891 = vpop.f32.mrb[0].mxu0
    %v6892 = vadd.f32 %v6164, %v6891
    %v6893 = vpop.f32.mrb[0].mxu0
    %v6894 = vadd.f32 %v6168, %v6893
    %6895 = vmatprep.mubr.f32.mxu0 %v4586
    %6896 = vmatmul.mubr.f32.gmra.mrb[0].mxu0 %v4585
    %v6897 = vpop.f32.mrb[0].mxu0
    %v6898 = vadd.f32 %v6164, %v6897
    %v6899 = vpop.f32.mrb[0].mxu0
    %v6900 = vadd.f32 %v6168, %v6899
    %6901 = vdwg.mxu0
    %6902 = vmatprep.subr.mxu0 %v5622
    %6903 = vmatpush1.msra.mxu0 %v5621
    %6904 = vmatprep.subr.mxu0 %v5638
    %6905 = vmatpush1.msra.mxu0 %v5637
    %6906 = vmatprep.subr.mxu0 %v5654
    %6907 = vmatpush1.msra.mxu0 %v5653
    %6908 = vmatprep.subr.mxu0 %v5670
    %6909 = vmatpush1.msra.mxu0 %v5669
    %6910 = vmatprep.subr.mxu0 %v5686
    %6911 = vmatpush1.msra.mxu0 %v5685
    %6912 = vmatprep.subr.mxu0 %v5702
    %6913 = vmatpush1.msra.mxu0 %v5701
    %6914 = vmatprep.subr.mxu0 %v5718
    %6915 = vmatpush1.msra.mxu0 %v5717
    %6916 = vmatprep.subr.mxu0 %v5734
    %6917 = vmatpush1.msra.mxu0 %v5733
    %6918 = vmatprep.subr.mxu0 %v5750
    %6919 = vmatpush1.msra.mxu0 %v5749
    %6920 = vmatprep.subr.mxu0 %v5766
    %6921 = vmatpush1.msra.mxu0 %v5765
    %6922 = vmatprep.subr.mxu0 %v5782
    %6923 = vmatpush1.msra.mxu0 %v5781
    %6924 = vmatprep.subr.mxu0 %v5798
    %6925 = vmatpush1.msra.mxu0 %v5797
    %6926 = vmatprep.subr.mxu0 %v5814
    %6927 = vmatpush1.msra.mxu0 %v5813
    %6928 = vmatprep.subr.mxu0 %v5830
    %6929 = vmatpush1.msra.mxu0 %v5829
    %6930 = vmatprep.subr.mxu0 %v5846
    %6931 = vmatpush1.msra.mxu0 %v5845
    %6932 = vmatprep.subr.mxu0 %v5862
    %6933 = vmatpush1.msra.mxu0 %v5861
    %6934 = vmatprep.subr.mxu0 %v5878
    %6935 = vmatpush1.msra.mxu0 %v5877
    %6936 = vmatprep.subr.mxu0 %v5894
    %6937 = vmatpush1.msra.mxu0 %v5893
    %6938 = vmatprep.subr.mxu0 %v5910
    %6939 = vmatpush1.msra.mxu0 %v5909
    %6940 = vmatprep.subr.mxu0 %v5926
    %6941 = vmatpush1.msra.mxu0 %v5925
    %6942 = vmatprep.subr.mxu0 %v5942
    %6943 = vmatpush1.msra.mxu0 %v5941
    %6944 = vmatprep.subr.mxu0 %v5958
    %6945 = vmatpush1.msra.mxu0 %v5957
    %6946 = vmatprep.subr.mxu0 %v5974
    %6947 = vmatpush1.msra.mxu0 %v5973
    %6948 = vmatprep.subr.mxu0 %v5990
    %6949 = vmatpush1.msra.mxu0 %v5989
    %6950 = vmatprep.subr.mxu0 %v6006
    %6951 = vmatpush1.msra.mxu0 %v6005
    %6952 = vmatprep.subr.mxu0 %v6022
    %6953 = vmatpush1.msra.mxu0 %v6021
    %6954 = vmatprep.subr.mxu0 %v6038
    %6955 = vmatpush1.msra.mxu0 %v6037
    %6956 = vmatprep.subr.mxu0 %v6054
    %6957 = vmatpush1.msra.mxu0 %v6053
    %6958 = vmatprep.subr.mxu0 %v6070
    %6959 = vmatpush1.msra.mxu0 %v6069
    %6960 = vmatprep.subr.mxu0 %v6086
    %6961 = vmatpush1.msra.mxu0 %v6085
    %6962 = vmatprep.subr.mxu0 %v6102
    %6963 = vmatpush1.msra.mxu0 %v6101
    %6964 = vmatprep.subr.mxu0 %v6118
    %6965 = vmatpush1.msra.mxu0 %v6117
    %6966 = vmatprep.mubr.f32.mxu0 %v4584
    %6967 = vmatmul.mubr.f32.gmra.mrb[0].mxu0 %v4583
    %v6968 = vpop.f32.mrb[0].mxu0
    %v6969 = vadd.f32 %v6892, %v6968
    %v6970 = vpop.f32.mrb[0].mxu0
    %v6971 = vadd.f32 %v6894, %v6970
    %6972 = vmatprep.mubr.f32.mxu0 %v4588
    %6973 = vmatmul.mubr.f32.gmra.mrb[0].mxu0 %v4587
    %v6974 = vpop.f32.mrb[0].mxu0
    %v6975 = vadd.f32 %v6898, %v6974
    %v6976 = vpop.f32.mrb[0].mxu0
    %v6977 = vadd.f32 %v6900, %v6976
    %6978 = vdwg.mxu0
    %6979 = vmatprep.subr.mxu0 %v5112
    %6980 = vmatpush1.msra.mxu0 %v5111
    %6981 = vmatprep.subr.mxu0 %v5128
    %6982 = vmatpush1.msra.mxu0 %v5127
    %6983 = vmatprep.subr.mxu0 %v5144
    %6984 = vmatpush1.msra.mxu0 %v5143
    %6985 = vmatprep.subr.mxu0 %v5160
    %6986 = vmatpush1.msra.mxu0 %v5159
    %6987 = vmatprep.subr.mxu0 %v5176
    %6988 = vmatpush1.msra.mxu0 %v5175
    %6989 = vmatprep.subr.mxu0 %v5192
    %6990 = vmatpush1.msra.mxu0 %v5191
    %6991 = vmatprep.subr.mxu0 %v5208
    %6992 = vmatpush1.msra.mxu0 %v5207
    %6993 = vmatprep.subr.mxu0 %v5224
    %6994 = vmatpush1.msra.mxu0 %v5223
    %6995 = vmatprep.subr.mxu0 %v5240
    %6996 = vmatpush1.msra.mxu0 %v5239
    %6997 = vmatprep.subr.mxu0 %v5256
    %6998 = vmatpush1.msra.mxu0 %v5255
    %6999 = vmatprep.subr.mxu0 %v5272
    %7000 = vmatpush1.msra.mxu0 %v5271
    %7001 = vmatprep.subr.mxu0 %v5288
    %7002 = vmatpush1.msra.mxu0 %v5287
    %7003 = vmatprep.subr.mxu0 %v5304
    %7004 = vmatpush1.msra.mxu0 %v5303
    %7005 = vmatprep.subr.mxu0 %v5320
    %7006 = vmatpush1.msra.mxu0 %v5319
    %7007 = vmatprep.subr.mxu0 %v5336
    %7008 = vmatpush1.msra.mxu0 %v5335
    %7009 = vmatprep.subr.mxu0 %v5352
    %7010 = vmatpush1.msra.mxu0 %v5351
    %7011 = vmatprep.subr.mxu0 %v5368
    %7012 = vmatpush1.msra.mxu0 %v5367
    %7013 = vmatprep.subr.mxu0 %v5384
    %7014 = vmatpush1.msra.mxu0 %v5383
    %7015 = vmatprep.subr.mxu0 %v5400
    %7016 = vmatpush1.msra.mxu0 %v5399
    %7017 = vmatprep.subr.mxu0 %v5416
    %7018 = vmatpush1.msra.mxu0 %v5415
    %7019 = vmatprep.subr.mxu0 %v5432
    %7020 = vmatpush1.msra.mxu0 %v5431
    %7021 = vmatprep.subr.mxu0 %v5448
    %7022 = vmatpush1.msra.mxu0 %v5447
    %7023 = vmatprep.subr.mxu0 %v5464
    %7024 = vmatpush1.msra.mxu0 %v5463
    %7025 = vmatprep.subr.mxu0 %v5480
    %7026 = vmatpush1.msra.mxu0 %v5479
    %7027 = vmatprep.subr.mxu0 %v5496
    %7028 = vmatpush1.msra.mxu0 %v5495
    %7029 = vmatprep.subr.mxu0 %v5512
    %7030 = vmatpush1.msra.mxu0 %v5511
    %7031 = vmatprep.subr.mxu0 %v5528
    %7032 = vmatpush1.msra.mxu0 %v5527
    %7033 = vmatprep.subr.mxu0 %v5544
    %7034 = vmatpush1.msra.mxu0 %v5543
    %7035 = vmatprep.subr.mxu0 %v5560
    %7036 = vmatpush1.msra.mxu0 %v5559
    %7037 = vmatprep.subr.mxu0 %v5576
    %7038 = vmatpush1.msra.mxu0 %v5575
    %7039 = vmatprep.subr.mxu0 %v5592
    %7040 = vmatpush1.msra.mxu0 %v5591
    %7041 = vmatprep.subr.mxu0 %v5608
    %7042 = vmatpush1.msra.mxu0 %v5607
    %7043 = vmatprep.mubr.f32.mxu0 %v4582
    %7044 = vmatmul.mubr.f32.gmra.mrb[0].mxu0 %v4581
    %v7045 = vpop.f32.mrb[0].mxu0
    %v7046 = vadd.f32 %v6172, %v7045
    %v7047 = vpop.f32.mrb[0].mxu0
    %v7048 = vadd.f32 %v6176, %v7047
    %7049 = vmatprep.mubr.f32.mxu0 %v4586
    %7050 = vmatmul.mubr.f32.gmra.mrb[0].mxu0 %v4585
    %v7051 = vpop.f32.mrb[0].mxu0
    %v7052 = vadd.f32 %v6172, %v7051
    %v7053 = vpop.f32.mrb[0].mxu0
    %v7054 = vadd.f32 %v6176, %v7053
    %7055 = vdwg.mxu0
    %7056 = vmatprep.subr.mxu0 %v5624
    %7057 = vmatpush1.msra.mxu0 %v5623
    %7058 = vmatprep.subr.mxu0 %v5640
    %7059 = vmatpush1.msra.mxu0 %v5639
    %7060 = vmatprep.subr.mxu0 %v5656
    %7061 = vmatpush1.msra.mxu0 %v5655
    %7062 = vmatprep.subr.mxu0 %v5672
    %7063 = vmatpush1.msra.mxu0 %v5671
    %7064 = vmatprep.subr.mxu0 %v5688
    %7065 = vmatpush1.msra.mxu0 %v5687
    %7066 = vmatprep.subr.mxu0 %v5704
    %7067 = vmatpush1.msra.mxu0 %v5703
    %7068 = vmatprep.subr.mxu0 %v5720
    %7069 = vmatpush1.msra.mxu0 %v5719
    %7070 = vmatprep.subr.mxu0 %v5736
    %7071 = vmatpush1.msra.mxu0 %v5735
    %7072 = vmatprep.subr.mxu0 %v5752
    %7073 = vmatpush1.msra.mxu0 %v5751
    %7074 = vmatprep.subr.mxu0 %v5768
    %7075 = vmatpush1.msra.mxu0 %v5767
    %7076 = vmatprep.subr.mxu0 %v5784
    %7077 = vmatpush1.msra.mxu0 %v5783
    %7078 = vmatprep.subr.mxu0 %v5800
    %7079 = vmatpush1.msra.mxu0 %v5799
    %7080 = vmatprep.subr.mxu0 %v5816
    %7081 = vmatpush1.msra.mxu0 %v5815
    %7082 = vmatprep.subr.mxu0 %v5832
    %7083 = vmatpush1.msra.mxu0 %v5831
    %7084 = vmatprep.subr.mxu0 %v5848
    %7085 = vmatpush1.msra.mxu0 %v5847
    %7086 = vmatprep.subr.mxu0 %v5864
    %7087 = vmatpush1.msra.mxu0 %v5863
    %7088 = vmatprep.subr.mxu0 %v5880
    %7089 = vmatpush1.msra.mxu0 %v5879
    %7090 = vmatprep.subr.mxu0 %v5896
    %7091 = vmatpush1.msra.mxu0 %v5895
    %7092 = vmatprep.subr.mxu0 %v5912
    %7093 = vmatpush1.msra.mxu0 %v5911
    %7094 = vmatprep.subr.mxu0 %v5928
    %7095 = vmatpush1.msra.mxu0 %v5927
    %7096 = vmatprep.subr.mxu0 %v5944
    %7097 = vmatpush1.msra.mxu0 %v5943
    %7098 = vmatprep.subr.mxu0 %v5960
    %7099 = vmatpush1.msra.mxu0 %v5959
    %7100 = vmatprep.subr.mxu0 %v5976
    %7101 = vmatpush1.msra.mxu0 %v5975
    %7102 = vmatprep.subr.mxu0 %v5992
    %7103 = vmatpush1.msra.mxu0 %v5991
    %7104 = vmatprep.subr.mxu0 %v6008
    %7105 = vmatpush1.msra.mxu0 %v6007
    %7106 = vmatprep.subr.mxu0 %v6024
    %7107 = vmatpush1.msra.mxu0 %v6023
    %7108 = vmatprep.subr.mxu0 %v6040
    %7109 = vmatpush1.msra.mxu0 %v6039
    %7110 = vmatprep.subr.mxu0 %v6056
    %7111 = vmatpush1.msra.mxu0 %v6055
    %7112 = vmatprep.subr.mxu0 %v6072
    %7113 = vmatpush1.msra.mxu0 %v6071
    %7114 = vmatprep.subr.mxu0 %v6088
    %7115 = vmatpush1.msra.mxu0 %v6087
    %7116 = vmatprep.subr.mxu0 %v6104
    %7117 = vmatpush1.msra.mxu0 %v6103
    %7118 = vmatprep.subr.mxu0 %v6120
    %7119 = vmatpush1.msra.mxu0 %v6119
    %7120 = vmatprep.mubr.f32.mxu0 %v4584
    %7121 = vmatmul.mubr.f32.gmra.mrb[0].mxu0 %v4583
    %v7122 = vpop.f32.mrb[0].mxu0
    %v7123 = vadd.f32 %v7046, %v7122
    %v7124 = vpop.f32.mrb[0].mxu0
    %v7125 = vadd.f32 %v7048, %v7124
    %7126 = vmatprep.mubr.f32.mxu0 %v4588
    %7127 = vmatmul.mubr.f32.gmra.mrb[0].mxu0 %v4587
    %v7128 = vpop.f32.mrb[0].mxu0
    %v7129 = vadd.f32 %v7052, %v7128
    %v7130 = vpop.f32.mrb[0].mxu0
    %v7131 = vadd.f32 %v7054, %v7130
    %7132 = vdwg.mxu0
    %7133 = vmatprep.subr.mxu0 %v5114
    %7134 = vmatpush1.msra.mxu0 %v5113
    %7135 = vmatprep.subr.mxu0 %v5130
    %7136 = vmatpush1.msra.mxu0 %v5129
    %7137 = vmatprep.subr.mxu0 %v5146
    %7138 = vmatpush1.msra.mxu0 %v5145
    %7139 = vmatprep.subr.mxu0 %v5162
    %7140 = vmatpush1.msra.mxu0 %v5161
    %7141 = vmatprep.subr.mxu0 %v5178
    %7142 = vmatpush1.msra.mxu0 %v5177
    %7143 = vmatprep.subr.mxu0 %v5194
    %7144 = vmatpush1.msra.mxu0 %v5193
    %7145 = vmatprep.subr.mxu0 %v5210
    %7146 = vmatpush1.msra.mxu0 %v5209
    %7147 = vmatprep.subr.mxu0 %v5226
    %7148 = vmatpush1.msra.mxu0 %v5225
    %7149 = vmatprep.subr.mxu0 %v5242
    %7150 = vmatpush1.msra.mxu0 %v5241
    %7151 = vmatprep.subr.mxu0 %v5258
    %7152 = vmatpush1.msra.mxu0 %v5257
    %7153 = vmatprep.subr.mxu0 %v5274
    %7154 = vmatpush1.msra.mxu0 %v5273
    %7155 = vmatprep.subr.mxu0 %v5290
    %7156 = vmatpush1.msra.mxu0 %v5289
    %7157 = vmatprep.subr.mxu0 %v5306
    %7158 = vmatpush1.msra.mxu0 %v5305
    %7159 = vmatprep.subr.mxu0 %v5322
    %7160 = vmatpush1.msra.mxu0 %v5321
    %7161 = vmatprep.subr.mxu0 %v5338
    %7162 = vmatpush1.msra.mxu0 %v5337
    %7163 = vmatprep.subr.mxu0 %v5354
    %7164 = vmatpush1.msra.mxu0 %v5353
    %7165 = vmatprep.subr.mxu0 %v5370
    %7166 = vmatpush1.msra.mxu0 %v5369
    %7167 = vmatprep.subr.mxu0 %v5386
    %7168 = vmatpush1.msra.mxu0 %v5385
    %7169 = vmatprep.subr.mxu0 %v5402
    %7170 = vmatpush1.msra.mxu0 %v5401
    %7171 = vmatprep.subr.mxu0 %v5418
    %7172 = vmatpush1.msra.mxu0 %v5417
    %7173 = vmatprep.subr.mxu0 %v5434
    %7174 = vmatpush1.msra.mxu0 %v5433
    %7175 = vmatprep.subr.mxu0 %v5450
    %7176 = vmatpush1.msra.mxu0 %v5449
    %7177 = vmatprep.subr.mxu0 %v5466
    %7178 = vmatpush1.msra.mxu0 %v5465
    %7179 = vmatprep.subr.mxu0 %v5482
    %7180 = vmatpush1.msra.mxu0 %v5481
    %7181 = vmatprep.subr.mxu0 %v5498
    %7182 = vmatpush1.msra.mxu0 %v5497
    %7183 = vmatprep.subr.mxu0 %v5514
    %7184 = vmatpush1.msra.mxu0 %v5513
    %7185 = vmatprep.subr.mxu0 %v5530
    %7186 = vmatpush1.msra.mxu0 %v5529
    %7187 = vmatprep.subr.mxu0 %v5546
    %7188 = vmatpush1.msra.mxu0 %v5545
    %7189 = vmatprep.subr.mxu0 %v5562
    %7190 = vmatpush1.msra.mxu0 %v5561
    %7191 = vmatprep.subr.mxu0 %v5578
    %7192 = vmatpush1.msra.mxu0 %v5577
    %7193 = vmatprep.subr.mxu0 %v5594
    %7194 = vmatpush1.msra.mxu0 %v5593
    %7195 = vmatprep.subr.mxu0 %v5610
    %7196 = vmatpush1.msra.mxu0 %v5609
    %7197 = vmatprep.mubr.f32.mxu0 %v4582
    %7198 = vmatmul.mubr.f32.gmra.mrb[0].mxu0 %v4581
    %v7199 = vpop.f32.mrb[0].mxu0
    %v7200 = vadd.f32 %v6180, %v7199
    %v7201 = vpop.f32.mrb[0].mxu0
    %v7202 = vadd.f32 %v6184, %v7201
    %7203 = vmatprep.mubr.f32.mxu0 %v4586
    %7204 = vmatmul.mubr.f32.gmra.mrb[0].mxu0 %v4585
    %v7205 = vpop.f32.mrb[0].mxu0
    %v7206 = vadd.f32 %v6180, %v7205
    %v7207 = vpop.f32.mrb[0].mxu0
    %v7208 = vadd.f32 %v6184, %v7207
    %7209 = vdwg.mxu0
    %7210 = vmatprep.subr.mxu0 %v5626
    %7211 = vmatpush1.msra.mxu0 %v5625
    %7212 = vmatprep.subr.mxu0 %v5642
    %7213 = vmatpush1.msra.mxu0 %v5641
    %7214 = vmatprep.subr.mxu0 %v5658
    %7215 = vmatpush1.msra.mxu0 %v5657
    %7216 = vmatprep.subr.mxu0 %v5674
    %7217 = vmatpush1.msra.mxu0 %v5673
    %7218 = vmatprep.subr.mxu0 %v5690
    %7219 = vmatpush1.msra.mxu0 %v5689
    %7220 = vmatprep.subr.mxu0 %v5706
    %7221 = vmatpush1.msra.mxu0 %v5705
    %7222 = vmatprep.subr.mxu0 %v5722
    %7223 = vmatpush1.msra.mxu0 %v5721
    %7224 = vmatprep.subr.mxu0 %v5738
    %7225 = vmatpush1.msra.mxu0 %v5737
    %7226 = vmatprep.subr.mxu0 %v5754
    %7227 = vmatpush1.msra.mxu0 %v5753
    %7228 = vmatprep.subr.mxu0 %v5770
    %7229 = vmatpush1.msra.mxu0 %v5769
    %7230 = vmatprep.subr.mxu0 %v5786
    %7231 = vmatpush1.msra.mxu0 %v5785
    %7232 = vmatprep.subr.mxu0 %v5802
    %7233 = vmatpush1.msra.mxu0 %v5801
    %7234 = vmatprep.subr.mxu0 %v5818
    %7235 = vmatpush1.msra.mxu0 %v5817
    %7236 = vmatprep.subr.mxu0 %v5834
    %7237 = vmatpush1.msra.mxu0 %v5833
    %7238 = vmatprep.subr.mxu0 %v5850
    %7239 = vmatpush1.msra.mxu0 %v5849
    %7240 = vmatprep.subr.mxu0 %v5866
    %7241 = vmatpush1.msra.mxu0 %v5865
    %7242 = vmatprep.subr.mxu0 %v5882
    %7243 = vmatpush1.msra.mxu0 %v5881
    %7244 = vmatprep.subr.mxu0 %v5898
    %7245 = vmatpush1.msra.mxu0 %v5897
    %7246 = vmatprep.subr.mxu0 %v5914
    %7247 = vmatpush1.msra.mxu0 %v5913
    %7248 = vmatprep.subr.mxu0 %v5930
    %7249 = vmatpush1.msra.mxu0 %v5929
    %7250 = vmatprep.subr.mxu0 %v5946
    %7251 = vmatpush1.msra.mxu0 %v5945
    %7252 = vmatprep.subr.mxu0 %v5962
    %7253 = vmatpush1.msra.mxu0 %v5961
    %7254 = vmatprep.subr.mxu0 %v5978
    %7255 = vmatpush1.msra.mxu0 %v5977
    %7256 = vmatprep.subr.mxu0 %v5994
    %7257 = vmatpush1.msra.mxu0 %v5993
    %7258 = vmatprep.subr.mxu0 %v6010
    %7259 = vmatpush1.msra.mxu0 %v6009
    %7260 = vmatprep.subr.mxu0 %v6026
    %7261 = vmatpush1.msra.mxu0 %v6025
    %7262 = vmatprep.subr.mxu0 %v6042
    %7263 = vmatpush1.msra.mxu0 %v6041
    %7264 = vmatprep.subr.mxu0 %v6058
    %7265 = vmatpush1.msra.mxu0 %v6057
    %7266 = vmatprep.subr.mxu0 %v6074
    %7267 = vmatpush1.msra.mxu0 %v6073
    %7268 = vmatprep.subr.mxu0 %v6090
    %7269 = vmatpush1.msra.mxu0 %v6089
    %7270 = vmatprep.subr.mxu0 %v6106
    %7271 = vmatpush1.msra.mxu0 %v6105
    %7272 = vmatprep.subr.mxu0 %v6122
    %7273 = vmatpush1.msra.mxu0 %v6121
    %7274 = vmatprep.mubr.f32.mxu0 %v4584
    %7275 = vmatmul.mubr.f32.gmra.mrb[0].mxu0 %v4583
    %v7276 = vpop.f32.mrb[0].mxu0
    %v7277 = vadd.f32 %v7200, %v7276
    %v7278 = vpop.f32.mrb[0].mxu0
    %v7279 = vadd.f32 %v7202, %v7278
    %7280 = vmatprep.mubr.f32.mxu0 %v4588
    %7281 = vmatmul.mubr.f32.gmra.mrb[0].mxu0 %v4587
    %v7282 = vpop.f32.mrb[0].mxu0
    %v7283 = vadd.f32 %v7206, %v7282
    %v7284 = vpop.f32.mrb[0].mxu0
    %v7285 = vadd.f32 %v7208, %v7284
    %7286 = vdwg.mxu0
    %7287 = vmatprep.subr.mxu0 %v5116
    %7288 = vmatpush1.msra.mxu0 %v5115
    %7289 = vmatprep.subr.mxu0 %v5132
    %7290 = vmatpush1.msra.mxu0 %v5131
    %7291 = vmatprep.subr.mxu0 %v5148
    %7292 = vmatpush1.msra.mxu0 %v5147
    %7293 = vmatprep.subr.mxu0 %v5164
    %7294 = vmatpush1.msra.mxu0 %v5163
    %7295 = vmatprep.subr.mxu0 %v5180
    %7296 = vmatpush1.msra.mxu0 %v5179
    %7297 = vmatprep.subr.mxu0 %v5196
    %7298 = vmatpush1.msra.mxu0 %v5195
    %7299 = vmatprep.subr.mxu0 %v5212
    %7300 = vmatpush1.msra.mxu0 %v5211
    %7301 = vmatprep.subr.mxu0 %v5228
    %7302 = vmatpush1.msra.mxu0 %v5227
    %7303 = vmatprep.subr.mxu0 %v5244
    %7304 = vmatpush1.msra.mxu0 %v5243
    %7305 = vmatprep.subr.mxu0 %v5260
    %7306 = vmatpush1.msra.mxu0 %v5259
    %7307 = vmatprep.subr.mxu0 %v5276
    %7308 = vmatpush1.msra.mxu0 %v5275
    %7309 = vmatprep.subr.mxu0 %v5292
    %7310 = vmatpush1.msra.mxu0 %v5291
    %7311 = vmatprep.subr.mxu0 %v5308
    %7312 = vmatpush1.msra.mxu0 %v5307
    %7313 = vmatprep.subr.mxu0 %v5324
    %7314 = vmatpush1.msra.mxu0 %v5323
    %7315 = vmatprep.subr.mxu0 %v5340
    %7316 = vmatpush1.msra.mxu0 %v5339
    %7317 = vmatprep.subr.mxu0 %v5356
    %7318 = vmatpush1.msra.mxu0 %v5355
    %7319 = vmatprep.subr.mxu0 %v5372
    %7320 = vmatpush1.msra.mxu0 %v5371
    %7321 = vmatprep.subr.mxu0 %v5388
    %7322 = vmatpush1.msra.mxu0 %v5387
    %7323 = vmatprep.subr.mxu0 %v5404
    %7324 = vmatpush1.msra.mxu0 %v5403
    %7325 = vmatprep.subr.mxu0 %v5420
    %7326 = vmatpush1.msra.mxu0 %v5419
    %7327 = vmatprep.subr.mxu0 %v5436
    %7328 = vmatpush1.msra.mxu0 %v5435
    %7329 = vmatprep.subr.mxu0 %v5452
    %7330 = vmatpush1.msra.mxu0 %v5451
    %7331 = vmatprep.subr.mxu0 %v5468
    %7332 = vmatpush1.msra.mxu0 %v5467
    %7333 = vmatprep.subr.mxu0 %v5484
    %7334 = vmatpush1.msra.mxu0 %v5483
    %7335 = vmatprep.subr.mxu0 %v5500
    %7336 = vmatpush1.msra.mxu0 %v5499
    %7337 = vmatprep.subr.mxu0 %v5516
    %7338 = vmatpush1.msra.mxu0 %v5515
    %7339 = vmatprep.subr.mxu0 %v5532
    %7340 = vmatpush1.msra.mxu0 %v5531
    %7341 = vmatprep.subr.mxu0 %v5548
    %7342 = vmatpush1.msra.mxu0 %v5547
    %7343 = vmatprep.subr.mxu0 %v5564
    %7344 = vmatpush1.msra.mxu0 %v5563
    %7345 = vmatprep.subr.mxu0 %v5580
    %7346 = vmatpush1.msra.mxu0 %v5579
    %7347 = vmatprep.subr.mxu0 %v5596
    %7348 = vmatpush1.msra.mxu0 %v5595
    %7349 = vmatprep.subr.mxu0 %v5612
    %7350 = vmatpush1.msra.mxu0 %v5611
    %7351 = vmatprep.mubr.f32.mxu0 %v4582
    %7352 = vmatmul.mubr.f32.gmra.mrb[0].mxu0 %v4581
    %v7353 = vpop.f32.mrb[0].mxu0
    %v7354 = vadd.f32 %v6188, %v7353
    %v7355 = vpop.f32.mrb[0].mxu0
    %v7356 = vadd.f32 %v6192, %v7355
    %7357 = vmatprep.mubr.f32.mxu0 %v4586
    %7358 = vmatmul.mubr.f32.gmra.mrb[0].mxu0 %v4585
    %v7359 = vpop.f32.mrb[0].mxu0
    %v7360 = vadd.f32 %v6188, %v7359
    %v7361 = vpop.f32.mrb[0].mxu0
    %v7362 = vadd.f32 %v6192, %v7361
    %7363 = vdwg.mxu0
    %7364 = vmatprep.subr.mxu0 %v5628
    %7365 = vmatpush1.msra.mxu0 %v5627
    %7366 = vmatprep.subr.mxu0 %v5644
    %7367 = vmatpush1.msra.mxu0 %v5643
    %7368 = vmatprep.subr.mxu0 %v5660
    %7369 = vmatpush1.msra.mxu0 %v5659
    %7370 = vmatprep.subr.mxu0 %v5676
    %7371 = vmatpush1.msra.mxu0 %v5675
    %7372 = vmatprep.subr.mxu0 %v5692
    %7373 = vmatpush1.msra.mxu0 %v5691
    %7374 = vmatprep.subr.mxu0 %v5708
    %7375 = vmatpush1.msra.mxu0 %v5707
    %7376 = vmatprep.subr.mxu0 %v5724
    %7377 = vmatpush1.msra.mxu0 %v5723
    %7378 = vmatprep.subr.mxu0 %v5740
    %7379 = vmatpush1.msra.mxu0 %v5739
    %7380 = vmatprep.subr.mxu0 %v5756
    %7381 = vmatpush1.msra.mxu0 %v5755
    %7382 = vmatprep.subr.mxu0 %v5772
    %7383 = vmatpush1.msra.mxu0 %v5771
    %7384 = vmatprep.subr.mxu0 %v5788
    %7385 = vmatpush1.msra.mxu0 %v5787
    %7386 = vmatprep.subr.mxu0 %v5804
    %7387 = vmatpush1.msra.mxu0 %v5803
    %7388 = vmatprep.subr.mxu0 %v5820
    %7389 = vmatpush1.msra.mxu0 %v5819
    %7390 = vmatprep.subr.mxu0 %v5836
    %7391 = vmatpush1.msra.mxu0 %v5835
    %7392 = vmatprep.subr.mxu0 %v5852
    %7393 = vmatpush1.msra.mxu0 %v5851
    %7394 = vmatprep.subr.mxu0 %v5868
    %7395 = vmatpush1.msra.mxu0 %v5867
    %7396 = vmatprep.subr.mxu0 %v5884
    %7397 = vmatpush1.msra.mxu0 %v5883
    %7398 = vmatprep.subr.mxu0 %v5900
    %7399 = vmatpush1.msra.mxu0 %v5899
    %7400 = vmatprep.subr.mxu0 %v5916
    %7401 = vmatpush1.msra.mxu0 %v5915
    %7402 = vmatprep.subr.mxu0 %v5932
    %7403 = vmatpush1.msra.mxu0 %v5931
    %7404 = vmatprep.subr.mxu0 %v5948
    %7405 = vmatpush1.msra.mxu0 %v5947
    %7406 = vmatprep.subr.mxu0 %v5964
    %7407 = vmatpush1.msra.mxu0 %v5963
    %7408 = vmatprep.subr.mxu0 %v5980
    %7409 = vmatpush1.msra.mxu0 %v5979
    %7410 = vmatprep.subr.mxu0 %v5996
    %7411 = vmatpush1.msra.mxu0 %v5995
    %7412 = vmatprep.subr.mxu0 %v6012
    %7413 = vmatpush1.msra.mxu0 %v6011
    %7414 = vmatprep.subr.mxu0 %v6028
    %7415 = vmatpush1.msra.mxu0 %v6027
    %7416 = vmatprep.subr.mxu0 %v6044
    %7417 = vmatpush1.msra.mxu0 %v6043
    %7418 = vmatprep.subr.mxu0 %v6060
    %7419 = vmatpush1.msra.mxu0 %v6059
    %7420 = vmatprep.subr.mxu0 %v6076
    %7421 = vmatpush1.msra.mxu0 %v6075
    %7422 = vmatprep.subr.mxu0 %v6092
    %7423 = vmatpush1.msra.mxu0 %v6091
    %7424 = vmatprep.subr.mxu0 %v6108
    %7425 = vmatpush1.msra.mxu0 %v6107
    %7426 = vmatprep.subr.mxu0 %v6124
    %7427 = vmatpush1.msra.mxu0 %v6123
    %7428 = vmatprep.mubr.f32.mxu0 %v4584
    %7429 = vmatmul.mubr.f32.gmra.mrb[0].mxu0 %v4583
    %v7430 = vpop.f32.mrb[0].mxu0
    %v7431 = vadd.f32 %v7354, %v7430
    %v7432 = vpop.f32.mrb[0].mxu0
    %v7433 = vadd.f32 %v7356, %v7432
    %7434 = vmatprep.mubr.f32.mxu0 %v4588
    %7435 = vmatmul.mubr.f32.gmra.mrb[0].mxu0 %v4587
    %v7436 = vpop.f32.mrb[0].mxu0
    %v7437 = vadd.f32 %v7360, %v7436
    %v7438 = vpop.f32.mrb[0].mxu0
    %v7439 = vadd.f32 %v7362, %v7438
    %7440 = vdwg.mxu0
    %v7441 = vmax.f32 %v6353, 0.0
    %v7442 = vmax.f32 %v6355, 0.0
    %v7443 = vmax.f32 %v6507, 0.0
    %v7444 = vmax.f32 %v6509, 0.0
    %v7445 = vmax.f32 %v6661, 0.0
    %v7446 = vmax.f32 %v6663, 0.0
    %v7447 = vmax.f32 %v6815, 0.0
    %v7448 = vmax.f32 %v6817, 0.0
    %v7449 = vmax.f32 %v6969, 0.0
    %v7450 = vmax.f32 %v6971, 0.0
    %v7451 = vmax.f32 %v7123, 0.0
    %v7452 = vmax.f32 %v7125, 0.0
    %v7453 = vmax.f32 %v7277, 0.0
    %v7454 = vmax.f32 %v7279, 0.0
    %v7455 = vmax.f32 %v7431, 0.0
    %v7456 = vmax.f32 %v7433, 0.0
    %v7457 = vmax.f32 %v6359, 0.0
    %v7458 = vmax.f32 %v6361, 0.0
    %v7459 = vmax.f32 %v6513, 0.0
    %v7460 = vmax.f32 %v6515, 0.0
    %v7461 = vmax.f32 %v6667, 0.0
    %v7462 = vmax.f32 %v6669, 0.0
    %v7463 = vmax.f32 %v6821, 0.0
    %v7464 = vmax.f32 %v6823, 0.0
    %v7465 = vmax.f32 %v6975, 0.0
    %v7466 = vmax.f32 %v6977, 0.0
    %v7467 = vmax.f32 %v7129, 0.0
    %v7468 = vmax.f32 %v7131, 0.0
    %v7469 = vmax.f32 %v7283, 0.0
    %v7470 = vmax.f32 %v7285, 0.0
    %v7471 = vmax.f32 %v7437, 0.0
    %v7472 = vmax.f32 %v7439, 0.0
    %v7473 = vld [vmem:[#allocation25] sm:$0xff]
    %v7474 = vld [vmem:[#allocation25 + $0x8] sm:$0xff]
    %v7475 = vld [vmem:[#allocation25 + $0x10] sm:$0xff]
    %v7476 = vld [vmem:[#allocation25 + $0x18] sm:$0xff]
    %v7477 = vld [vmem:[#allocation25 + $0x20] sm:$0xff]
    %v7478 = vld [vmem:[#allocation25 + $0x28] sm:$0xff]
    %v7479 = vld [vmem:[#allocation25 + $0x30] sm:$0xff]
    %v7480 = vld [vmem:[#allocation25 + $0x38] sm:$0xff]
    %v7481 = vld [vmem:[#allocation25 + $0x40] sm:$0xff]
    %v7482 = vld [vmem:[#allocation25 + $0x48] sm:$0xff]
    %v7483 = vld [vmem:[#allocation25 + $0x50] sm:$0xff]
    %v7484 = vld [vmem:[#allocation25 + $0x58] sm:$0xff]
    %v7485 = vld [vmem:[#allocation25 + $0x60] sm:$0xff]
    %v7486 = vld [vmem:[#allocation25 + $0x68] sm:$0xff]
    %v7487 = vld [vmem:[#allocation25 + $0x70] sm:$0xff]
    %v7488 = vld [vmem:[#allocation25 + $0x78] sm:$0xff]
    %v7489 = vld [vmem:[#allocation25 + $0x80] sm:$0xff]
    %v7490 = vld [vmem:[#allocation25 + $0x88] sm:$0xff]
    %v7491 = vld [vmem:[#allocation25 + $0x90] sm:$0xff]
    %v7492 = vld [vmem:[#allocation25 + $0x98] sm:$0xff]
    %v7493 = vld [vmem:[#allocation25 + $0xa0] sm:$0xff]
    %v7494 = vld [vmem:[#allocation25 + $0xa8] sm:$0xff]
    %v7495 = vld [vmem:[#allocation25 + $0xb0] sm:$0xff]
    %v7496 = vld [vmem:[#allocation25 + $0xb8] sm:$0xff]
    %v7497 = vld [vmem:[#allocation25 + $0xc0] sm:$0xff]
    %v7498 = vld [vmem:[#allocation25 + $0xc8] sm:$0xff]
    %v7499 = vld [vmem:[#allocation25 + $0xd0] sm:$0xff]
    %v7500 = vld [vmem:[#allocation25 + $0xd8] sm:$0xff]
    %v7501 = vld [vmem:[#allocation25 + $0xe0] sm:$0xff]
    %v7502 = vld [vmem:[#allocation25 + $0xe8] sm:$0xff]
    %v7503 = vld [vmem:[#allocation25 + $0xf0] sm:$0xff]
    %v7504 = vld [vmem:[#allocation25 + $0xf8] sm:$0xff]
    %v7505 = vld [vmem:[#allocation25 + $0x100] sm:$0xff]
    %v7506 = vld [vmem:[#allocation25 + $0x108] sm:$0xff]
    %v7507 = vld [vmem:[#allocation25 + $0x110] sm:$0xff]
    %v7508 = vld [vmem:[#allocation25 + $0x118] sm:$0xff]
    %v7509 = vld [vmem:[#allocation25 + $0x120] sm:$0xff]
    %v7510 = vld [vmem:[#allocation25 + $0x128] sm:$0xff]
    %v7511 = vld [vmem:[#allocation25 + $0x130] sm:$0xff]
    %v7512 = vld [vmem:[#allocation25 + $0x138] sm:$0xff]
    %v7513 = vld [vmem:[#allocation25 + $0x140] sm:$0xff]
    %v7514 = vld [vmem:[#allocation25 + $0x148] sm:$0xff]
    %v7515 = vld [vmem:[#allocation25 + $0x150] sm:$0xff]
    %v7516 = vld [vmem:[#allocation25 + $0x158] sm:$0xff]
    %v7517 = vld [vmem:[#allocation25 + $0x160] sm:$0xff]
    %v7518 = vld [vmem:[#allocation25 + $0x168] sm:$0xff]
    %v7519 = vld [vmem:[#allocation25 + $0x170] sm:$0xff]
    %v7520 = vld [vmem:[#allocation25 + $0x178] sm:$0xff]
    %v7521 = vld [vmem:[#allocation25 + $0x180] sm:$0xff]
    %v7522 = vld [vmem:[#allocation25 + $0x188] sm:$0xff]
    %v7523 = vld [vmem:[#allocation25 + $0x190] sm:$0xff]
    %v7524 = vld [vmem:[#allocation25 + $0x198] sm:$0xff]
    %v7525 = vld [vmem:[#allocation25 + $0x1a0] sm:$0xff]
    %v7526 = vld [vmem:[#allocation25 + $0x1a8] sm:$0xff]
    %v7527 = vld [vmem:[#allocation25 + $0x1b0] sm:$0xff]
    %v7528 = vld [vmem:[#allocation25 + $0x1b8] sm:$0xff]
    %v7529 = vld [vmem:[#allocation25 + $0x1c0] sm:$0xff]
    %v7530 = vld [vmem:[#allocation25 + $0x1c8] sm:$0xff]
    %v7531 = vld [vmem:[#allocation25 + $0x1d0] sm:$0xff]
    %v7532 = vld [vmem:[#allocation25 + $0x1d8] sm:$0xff]
    %v7533 = vld [vmem:[#allocation25 + $0x1e0] sm:$0xff]
    %v7534 = vld [vmem:[#allocation25 + $0x1e8] sm:$0xff]
    %v7535 = vld [vmem:[#allocation25 + $0x1f0] sm:$0xff]
    %v7536 = vld [vmem:[#allocation25 + $0x1f8] sm:$0xff]
    %v7537 = vld [vmem:[#allocation25 + $0x200] sm:$0xff]
    %v7538 = vld [vmem:[#allocation25 + $0x208] sm:$0xff]
    %v7539 = vld [vmem:[#allocation25 + $0x210] sm:$0xff]
    %v7540 = vld [vmem:[#allocation25 + $0x218] sm:$0xff]
    %v7541 = vld [vmem:[#allocation25 + $0x220] sm:$0xff]
    %v7542 = vld [vmem:[#allocation25 + $0x228] sm:$0xff]
    %v7543 = vld [vmem:[#allocation25 + $0x230] sm:$0xff]
    %v7544 = vld [vmem:[#allocation25 + $0x238] sm:$0xff]
    %v7545 = vld [vmem:[#allocation25 + $0x240] sm:$0xff]
    %v7546 = vld [vmem:[#allocation25 + $0x248] sm:$0xff]
    %v7547 = vld [vmem:[#allocation25 + $0x250] sm:$0xff]
    %v7548 = vld [vmem:[#allocation25 + $0x258] sm:$0xff]
    %v7549 = vld [vmem:[#allocation25 + $0x260] sm:$0xff]
    %v7550 = vld [vmem:[#allocation25 + $0x268] sm:$0xff]
    %v7551 = vld [vmem:[#allocation25 + $0x270] sm:$0xff]
    %v7552 = vld [vmem:[#allocation25 + $0x278] sm:$0xff]
    %v7553 = vld [vmem:[#allocation25 + $0x280] sm:$0xff]
    %v7554 = vld [vmem:[#allocation25 + $0x288] sm:$0xff]
    %v7555 = vld [vmem:[#allocation25 + $0x290] sm:$0xff]
    %v7556 = vld [vmem:[#allocation25 + $0x298] sm:$0xff]
    %v7557 = vld [vmem:[#allocation25 + $0x2a0] sm:$0xff]
    %v7558 = vld [vmem:[#allocation25 + $0x2a8] sm:$0xff]
    %v7559 = vld [vmem:[#allocation25 + $0x2b0] sm:$0xff]
    %v7560 = vld [vmem:[#allocation25 + $0x2b8] sm:$0xff]
    %v7561 = vld [vmem:[#allocation25 + $0x2c0] sm:$0xff]
    %v7562 = vld [vmem:[#allocation25 + $0x2c8] sm:$0xff]
    %v7563 = vld [vmem:[#allocation25 + $0x2d0] sm:$0xff]
    %v7564 = vld [vmem:[#allocation25 + $0x2d8] sm:$0xff]
    %v7565 = vld [vmem:[#allocation25 + $0x2e0] sm:$0xff]
    %v7566 = vld [vmem:[#allocation25 + $0x2e8] sm:$0xff]
    %v7567 = vld [vmem:[#allocation25 + $0x2f0] sm:$0xff]
    %v7568 = vld [vmem:[#allocation25 + $0x2f8] sm:$0xff]
    %v7569 = vld [vmem:[#allocation25 + $0x300] sm:$0xff]
    %v7570 = vld [vmem:[#allocation25 + $0x308] sm:$0xff]
    %v7571 = vld [vmem:[#allocation25 + $0x310] sm:$0xff]
    %v7572 = vld [vmem:[#allocation25 + $0x318] sm:$0xff]
    %v7573 = vld [vmem:[#allocation25 + $0x320] sm:$0xff]
    %v7574 = vld [vmem:[#allocation25 + $0x328] sm:$0xff]
    %v7575 = vld [vmem:[#allocation25 + $0x330] sm:$0xff]
    %v7576 = vld [vmem:[#allocation25 + $0x338] sm:$0xff]
    %v7577 = vld [vmem:[#allocation25 + $0x340] sm:$0xff]
    %v7578 = vld [vmem:[#allocation25 + $0x348] sm:$0xff]
    %v7579 = vld [vmem:[#allocation25 + $0x350] sm:$0xff]
    %v7580 = vld [vmem:[#allocation25 + $0x358] sm:$0xff]
    %v7581 = vld [vmem:[#allocation25 + $0x360] sm:$0xff]
    %v7582 = vld [vmem:[#allocation25 + $0x368] sm:$0xff]
    %v7583 = vld [vmem:[#allocation25 + $0x370] sm:$0xff]
    %v7584 = vld [vmem:[#allocation25 + $0x378] sm:$0xff]
    %v7585 = vld [vmem:[#allocation25 + $0x380] sm:$0xff]
    %v7586 = vld [vmem:[#allocation25 + $0x388] sm:$0xff]
    %v7587 = vld [vmem:[#allocation25 + $0x390] sm:$0xff]
    %v7588 = vld [vmem:[#allocation25 + $0x398] sm:$0xff]
    %v7589 = vld [vmem:[#allocation25 + $0x3a0] sm:$0xff]
    %v7590 = vld [vmem:[#allocation25 + $0x3a8] sm:$0xff]
    %v7591 = vld [vmem:[#allocation25 + $0x3b0] sm:$0xff]
    %v7592 = vld [vmem:[#allocation25 + $0x3b8] sm:$0xff]
    %v7593 = vld [vmem:[#allocation25 + $0x3c0] sm:$0xff]
    %v7594 = vld [vmem:[#allocation25 + $0x3c8] sm:$0xff]
    %v7595 = vld [vmem:[#allocation25 + $0x3d0] sm:$0xff]
    %v7596 = vld [vmem:[#allocation25 + $0x3d8] sm:$0xff]
    %v7597 = vld [vmem:[#allocation25 + $0x3e0] sm:$0xff]
    %v7598 = vld [vmem:[#allocation25 + $0x3e8] sm:$0xff]
    %v7599 = vld [vmem:[#allocation25 + $0x3f0] sm:$0xff]
    %v7600 = vld [vmem:[#allocation25 + $0x3f8] sm:$0xff]
    %v7601 = vld [vmem:[#allocation25 + $0x400] sm:$0xff]
    %v7602 = vld [vmem:[#allocation25 + $0x408] sm:$0xff]
    %v7603 = vld [vmem:[#allocation25 + $0x410] sm:$0xff]
    %v7604 = vld [vmem:[#allocation25 + $0x418] sm:$0xff]
    %v7605 = vld [vmem:[#allocation25 + $0x420] sm:$0xff]
    %v7606 = vld [vmem:[#allocation25 + $0x428] sm:$0xff]
    %v7607 = vld [vmem:[#allocation25 + $0x430] sm:$0xff]
    %v7608 = vld [vmem:[#allocation25 + $0x438] sm:$0xff]
    %v7609 = vld [vmem:[#allocation25 + $0x440] sm:$0xff]
    %v7610 = vld [vmem:[#allocation25 + $0x448] sm:$0xff]
    %v7611 = vld [vmem:[#allocation25 + $0x450] sm:$0xff]
    %v7612 = vld [vmem:[#allocation25 + $0x458] sm:$0xff]
    %v7613 = vld [vmem:[#allocation25 + $0x460] sm:$0xff]
    %v7614 = vld [vmem:[#allocation25 + $0x468] sm:$0xff]
    %v7615 = vld [vmem:[#allocation25 + $0x470] sm:$0xff]
    %v7616 = vld [vmem:[#allocation25 + $0x478] sm:$0xff]
    %v7617 = vld [vmem:[#allocation25 + $0x480] sm:$0xff]
    %v7618 = vld [vmem:[#allocation25 + $0x488] sm:$0xff]
    %v7619 = vld [vmem:[#allocation25 + $0x490] sm:$0xff]
    %v7620 = vld [vmem:[#allocation25 + $0x498] sm:$0xff]
    %v7621 = vld [vmem:[#allocation25 + $0x4a0] sm:$0xff]
    %v7622 = vld [vmem:[#allocation25 + $0x4a8] sm:$0xff]
    %v7623 = vld [vmem:[#allocation25 + $0x4b0] sm:$0xff]
    %v7624 = vld [vmem:[#allocation25 + $0x4b8] sm:$0xff]
    %v7625 = vld [vmem:[#allocation25 + $0x4c0] sm:$0xff]
    %v7626 = vld [vmem:[#allocation25 + $0x4c8] sm:$0xff]
    %v7627 = vld [vmem:[#allocation25 + $0x4d0] sm:$0xff]
    %v7628 = vld [vmem:[#allocation25 + $0x4d8] sm:$0xff]
    %v7629 = vld [vmem:[#allocation25 + $0x4e0] sm:$0xff]
    %v7630 = vld [vmem:[#allocation25 + $0x4e8] sm:$0xff]
    %v7631 = vld [vmem:[#allocation25 + $0x4f0] sm:$0xff]
    %v7632 = vld [vmem:[#allocation25 + $0x4f8] sm:$0xff]
    %v7633 = vld [vmem:[#allocation25 + $0x500] sm:$0xff]
    %v7634 = vld [vmem:[#allocation25 + $0x508] sm:$0xff]
    %v7635 = vld [vmem:[#allocation25 + $0x510] sm:$0xff]
    %v7636 = vld [vmem:[#allocation25 + $0x518] sm:$0xff]
    %v7637 = vld [vmem:[#allocation25 + $0x520] sm:$0xff]
    %v7638 = vld [vmem:[#allocation25 + $0x528] sm:$0xff]
    %v7639 = vld [vmem:[#allocation25 + $0x530] sm:$0xff]
    %v7640 = vld [vmem:[#allocation25 + $0x538] sm:$0xff]
    %v7641 = vld [vmem:[#allocation25 + $0x540] sm:$0xff]
    %v7642 = vld [vmem:[#allocation25 + $0x548] sm:$0xff]
    %v7643 = vld [vmem:[#allocation25 + $0x550] sm:$0xff]
    %v7644 = vld [vmem:[#allocation25 + $0x558] sm:$0xff]
    %v7645 = vld [vmem:[#allocation25 + $0x560] sm:$0xff]
    %v7646 = vld [vmem:[#allocation25 + $0x568] sm:$0xff]
    %v7647 = vld [vmem:[#allocation25 + $0x570] sm:$0xff]
    %v7648 = vld [vmem:[#allocation25 + $0x578] sm:$0xff]
    %v7649 = vld [vmem:[#allocation25 + $0x580] sm:$0xff]
    %v7650 = vld [vmem:[#allocation25 + $0x588] sm:$0xff]
    %v7651 = vld [vmem:[#allocation25 + $0x590] sm:$0xff]
    %v7652 = vld [vmem:[#allocation25 + $0x598] sm:$0xff]
    %v7653 = vld [vmem:[#allocation25 + $0x5a0] sm:$0xff]
    %v7654 = vld [vmem:[#allocation25 + $0x5a8] sm:$0xff]
    %v7655 = vld [vmem:[#allocation25 + $0x5b0] sm:$0xff]
    %v7656 = vld [vmem:[#allocation25 + $0x5b8] sm:$0xff]
    %v7657 = vld [vmem:[#allocation25 + $0x5c0] sm:$0xff]
    %v7658 = vld [vmem:[#allocation25 + $0x5c8] sm:$0xff]
    %v7659 = vld [vmem:[#allocation25 + $0x5d0] sm:$0xff]
    %v7660 = vld [vmem:[#allocation25 + $0x5d8] sm:$0xff]
    %v7661 = vld [vmem:[#allocation25 + $0x5e0] sm:$0xff]
    %v7662 = vld [vmem:[#allocation25 + $0x5e8] sm:$0xff]
    %v7663 = vld [vmem:[#allocation25 + $0x5f0] sm:$0xff]
    %v7664 = vld [vmem:[#allocation25 + $0x5f8] sm:$0xff]
    %v7665 = vld [vmem:[#allocation25 + $0x600] sm:$0xff]
    %v7666 = vld [vmem:[#allocation25 + $0x608] sm:$0xff]
    %v7667 = vld [vmem:[#allocation25 + $0x610] sm:$0xff]
    %v7668 = vld [vmem:[#allocation25 + $0x618] sm:$0xff]
    %v7669 = vld [vmem:[#allocation25 + $0x620] sm:$0xff]
    %v7670 = vld [vmem:[#allocation25 + $0x628] sm:$0xff]
    %v7671 = vld [vmem:[#allocation25 + $0x630] sm:$0xff]
    %v7672 = vld [vmem:[#allocation25 + $0x638] sm:$0xff]
    %v7673 = vld [vmem:[#allocation25 + $0x640] sm:$0xff]
    %v7674 = vld [vmem:[#allocation25 + $0x648] sm:$0xff]
    %v7675 = vld [vmem:[#allocation25 + $0x650] sm:$0xff]
    %v7676 = vld [vmem:[#allocation25 + $0x658] sm:$0xff]
    %v7677 = vld [vmem:[#allocation25 + $0x660] sm:$0xff]
    %v7678 = vld [vmem:[#allocation25 + $0x668] sm:$0xff]
    %v7679 = vld [vmem:[#allocation25 + $0x670] sm:$0xff]
    %v7680 = vld [vmem:[#allocation25 + $0x678] sm:$0xff]
    %v7681 = vld [vmem:[#allocation25 + $0x680] sm:$0xff]
    %v7682 = vld [vmem:[#allocation25 + $0x688] sm:$0xff]
    %v7683 = vld [vmem:[#allocation25 + $0x690] sm:$0xff]
    %v7684 = vld [vmem:[#allocation25 + $0x698] sm:$0xff]
    %v7685 = vld [vmem:[#allocation25 + $0x6a0] sm:$0xff]
    %v7686 = vld [vmem:[#allocation25 + $0x6a8] sm:$0xff]
    %v7687 = vld [vmem:[#allocation25 + $0x6b0] sm:$0xff]
    %v7688 = vld [vmem:[#allocation25 + $0x6b8] sm:$0xff]
    %v7689 = vld [vmem:[#allocation25 + $0x6c0] sm:$0xff]
    %v7690 = vld [vmem:[#allocation25 + $0x6c8] sm:$0xff]
    %v7691 = vld [vmem:[#allocation25 + $0x6d0] sm:$0xff]
    %v7692 = vld [vmem:[#allocation25 + $0x6d8] sm:$0xff]
    %v7693 = vld [vmem:[#allocation25 + $0x6e0] sm:$0xff]
    %v7694 = vld [vmem:[#allocation25 + $0x6e8] sm:$0xff]
    %v7695 = vld [vmem:[#allocation25 + $0x6f0] sm:$0xff]
    %v7696 = vld [vmem:[#allocation25 + $0x6f8] sm:$0xff]
    %v7697 = vld [vmem:[#allocation25 + $0x700] sm:$0xff]
    %v7698 = vld [vmem:[#allocation25 + $0x708] sm:$0xff]
    %v7699 = vld [vmem:[#allocation25 + $0x710] sm:$0xff]
    %v7700 = vld [vmem:[#allocation25 + $0x718] sm:$0xff]
    %v7701 = vld [vmem:[#allocation25 + $0x720] sm:$0xff]
    %v7702 = vld [vmem:[#allocation25 + $0x728] sm:$0xff]
    %v7703 = vld [vmem:[#allocation25 + $0x730] sm:$0xff]
    %v7704 = vld [vmem:[#allocation25 + $0x738] sm:$0xff]
    %v7705 = vld [vmem:[#allocation25 + $0x740] sm:$0xff]
    %v7706 = vld [vmem:[#allocation25 + $0x748] sm:$0xff]
    %v7707 = vld [vmem:[#allocation25 + $0x750] sm:$0xff]
    %v7708 = vld [vmem:[#allocation25 + $0x758] sm:$0xff]
    %v7709 = vld [vmem:[#allocation25 + $0x760] sm:$0xff]
    %v7710 = vld [vmem:[#allocation25 + $0x768] sm:$0xff]
    %v7711 = vld [vmem:[#allocation25 + $0x770] sm:$0xff]
    %v7712 = vld [vmem:[#allocation25 + $0x778] sm:$0xff]
    %v7713 = vld [vmem:[#allocation25 + $0x780] sm:$0xff]
    %v7714 = vld [vmem:[#allocation25 + $0x788] sm:$0xff]
    %v7715 = vld [vmem:[#allocation25 + $0x790] sm:$0xff]
    %v7716 = vld [vmem:[#allocation25 + $0x798] sm:$0xff]
    %v7717 = vld [vmem:[#allocation25 + $0x7a0] sm:$0xff]
    %v7718 = vld [vmem:[#allocation25 + $0x7a8] sm:$0xff]
    %v7719 = vld [vmem:[#allocation25 + $0x7b0] sm:$0xff]
    %v7720 = vld [vmem:[#allocation25 + $0x7b8] sm:$0xff]
    %v7721 = vld [vmem:[#allocation25 + $0x7c0] sm:$0xff]
    %v7722 = vld [vmem:[#allocation25 + $0x7c8] sm:$0xff]
    %v7723 = vld [vmem:[#allocation25 + $0x7d0] sm:$0xff]
    %v7724 = vld [vmem:[#allocation25 + $0x7d8] sm:$0xff]
    %v7725 = vld [vmem:[#allocation25 + $0x7e0] sm:$0xff]
    %v7726 = vld [vmem:[#allocation25 + $0x7e8] sm:$0xff]
    %v7727 = vld [vmem:[#allocation25 + $0x7f0] sm:$0xff]
    %v7728 = vld [vmem:[#allocation25 + $0x7f8] sm:$0xff]
    %v7729 = vld [vmem:[#allocation25 + $0x800] sm:$0xff]
    %v7730 = vld [vmem:[#allocation25 + $0x808] sm:$0xff]
    %v7731 = vld [vmem:[#allocation25 + $0x810] sm:$0xff]
    %v7732 = vld [vmem:[#allocation25 + $0x818] sm:$0xff]
    %v7733 = vld [vmem:[#allocation25 + $0x820] sm:$0xff]
    %v7734 = vld [vmem:[#allocation25 + $0x828] sm:$0xff]
    %v7735 = vld [vmem:[#allocation25 + $0x830] sm:$0xff]
    %v7736 = vld [vmem:[#allocation25 + $0x838] sm:$0xff]
    %v7737 = vld [vmem:[#allocation25 + $0x840] sm:$0xff]
    %v7738 = vld [vmem:[#allocation25 + $0x848] sm:$0xff]
    %v7739 = vld [vmem:[#allocation25 + $0x850] sm:$0xff]
    %v7740 = vld [vmem:[#allocation25 + $0x858] sm:$0xff]
    %v7741 = vld [vmem:[#allocation25 + $0x860] sm:$0xff]
    %v7742 = vld [vmem:[#allocation25 + $0x868] sm:$0xff]
    %v7743 = vld [vmem:[#allocation25 + $0x870] sm:$0xff]
    %v7744 = vld [vmem:[#allocation25 + $0x878] sm:$0xff]
    %v7745 = vld [vmem:[#allocation25 + $0x880] sm:$0xff]
    %v7746 = vld [vmem:[#allocation25 + $0x888] sm:$0xff]
    %v7747 = vld [vmem:[#allocation25 + $0x890] sm:$0xff]
    %v7748 = vld [vmem:[#allocation25 + $0x898] sm:$0xff]
    %v7749 = vld [vmem:[#allocation25 + $0x8a0] sm:$0xff]
    %v7750 = vld [vmem:[#allocation25 + $0x8a8] sm:$0xff]
    %v7751 = vld [vmem:[#allocation25 + $0x8b0] sm:$0xff]
    %v7752 = vld [vmem:[#allocation25 + $0x8b8] sm:$0xff]
    %v7753 = vld [vmem:[#allocation25 + $0x8c0] sm:$0xff]
    %v7754 = vld [vmem:[#allocation25 + $0x8c8] sm:$0xff]
    %v7755 = vld [vmem:[#allocation25 + $0x8d0] sm:$0xff]
    %v7756 = vld [vmem:[#allocation25 + $0x8d8] sm:$0xff]
    %v7757 = vld [vmem:[#allocation25 + $0x8e0] sm:$0xff]
    %v7758 = vld [vmem:[#allocation25 + $0x8e8] sm:$0xff]
    %v7759 = vld [vmem:[#allocation25 + $0x8f0] sm:$0xff]
    %v7760 = vld [vmem:[#allocation25 + $0x8f8] sm:$0xff]
    %v7761 = vld [vmem:[#allocation25 + $0x900] sm:$0xff]
    %v7762 = vld [vmem:[#allocation25 + $0x908] sm:$0xff]
    %v7763 = vld [vmem:[#allocation25 + $0x910] sm:$0xff]
    %v7764 = vld [vmem:[#allocation25 + $0x918] sm:$0xff]
    %v7765 = vld [vmem:[#allocation25 + $0x920] sm:$0xff]
    %v7766 = vld [vmem:[#allocation25 + $0x928] sm:$0xff]
    %v7767 = vld [vmem:[#allocation25 + $0x930] sm:$0xff]
    %v7768 = vld [vmem:[#allocation25 + $0x938] sm:$0xff]
    %v7769 = vld [vmem:[#allocation25 + $0x940] sm:$0xff]
    %v7770 = vld [vmem:[#allocation25 + $0x948] sm:$0xff]
    %v7771 = vld [vmem:[#allocation25 + $0x950] sm:$0xff]
    %v7772 = vld [vmem:[#allocation25 + $0x958] sm:$0xff]
    %v7773 = vld [vmem:[#allocation25 + $0x960] sm:$0xff]
    %v7774 = vld [vmem:[#allocation25 + $0x968] sm:$0xff]
    %v7775 = vld [vmem:[#allocation25 + $0x970] sm:$0xff]
    %v7776 = vld [vmem:[#allocation25 + $0x978] sm:$0xff]
    %v7777 = vld [vmem:[#allocation25 + $0x980] sm:$0xff]
    %v7778 = vld [vmem:[#allocation25 + $0x988] sm:$0xff]
    %v7779 = vld [vmem:[#allocation25 + $0x990] sm:$0xff]
    %v7780 = vld [vmem:[#allocation25 + $0x998] sm:$0xff]
    %v7781 = vld [vmem:[#allocation25 + $0x9a0] sm:$0xff]
    %v7782 = vld [vmem:[#allocation25 + $0x9a8] sm:$0xff]
    %v7783 = vld [vmem:[#allocation25 + $0x9b0] sm:$0xff]
    %v7784 = vld [vmem:[#allocation25 + $0x9b8] sm:$0xff]
    %v7785 = vld [vmem:[#allocation25 + $0x9c0] sm:$0xff]
    %v7786 = vld [vmem:[#allocation25 + $0x9c8] sm:$0xff]
    %v7787 = vld [vmem:[#allocation25 + $0x9d0] sm:$0xff]
    %v7788 = vld [vmem:[#allocation25 + $0x9d8] sm:$0xff]
    %v7789 = vld [vmem:[#allocation25 + $0x9e0] sm:$0xff]
    %v7790 = vld [vmem:[#allocation25 + $0x9e8] sm:$0xff]
    %v7791 = vld [vmem:[#allocation25 + $0x9f0] sm:$0xff]
    %v7792 = vld [vmem:[#allocation25 + $0x9f8] sm:$0xff]
    %v7793 = vld [vmem:[#allocation25 + $0xa00] sm:$0xff]
    %v7794 = vld [vmem:[#allocation25 + $0xa08] sm:$0xff]
    %v7795 = vld [vmem:[#allocation25 + $0xa10] sm:$0xff]
    %v7796 = vld [vmem:[#allocation25 + $0xa18] sm:$0xff]
    %v7797 = vld [vmem:[#allocation25 + $0xa20] sm:$0xff]
    %v7798 = vld [vmem:[#allocation25 + $0xa28] sm:$0xff]
    %v7799 = vld [vmem:[#allocation25 + $0xa30] sm:$0xff]
    %v7800 = vld [vmem:[#allocation25 + $0xa38] sm:$0xff]
    %v7801 = vld [vmem:[#allocation25 + $0xa40] sm:$0xff]
    %v7802 = vld [vmem:[#allocation25 + $0xa48] sm:$0xff]
    %v7803 = vld [vmem:[#allocation25 + $0xa50] sm:$0xff]
    %v7804 = vld [vmem:[#allocation25 + $0xa58] sm:$0xff]
    %v7805 = vld [vmem:[#allocation25 + $0xa60] sm:$0xff]
    %v7806 = vld [vmem:[#allocation25 + $0xa68] sm:$0xff]
    %v7807 = vld [vmem:[#allocation25 + $0xa70] sm:$0xff]
    %v7808 = vld [vmem:[#allocation25 + $0xa78] sm:$0xff]
    %v7809 = vld [vmem:[#allocation25 + $0xa80] sm:$0xff]
    %v7810 = vld [vmem:[#allocation25 + $0xa88] sm:$0xff]
    %v7811 = vld [vmem:[#allocation25 + $0xa90] sm:$0xff]
    %v7812 = vld [vmem:[#allocation25 + $0xa98] sm:$0xff]
    %v7813 = vld [vmem:[#allocation25 + $0xaa0] sm:$0xff]
    %v7814 = vld [vmem:[#allocation25 + $0xaa8] sm:$0xff]
    %v7815 = vld [vmem:[#allocation25 + $0xab0] sm:$0xff]
    %v7816 = vld [vmem:[#allocation25 + $0xab8] sm:$0xff]
    %v7817 = vld [vmem:[#allocation25 + $0xac0] sm:$0xff]
    %v7818 = vld [vmem:[#allocation25 + $0xac8] sm:$0xff]
    %v7819 = vld [vmem:[#allocation25 + $0xad0] sm:$0xff]
    %v7820 = vld [vmem:[#allocation25 + $0xad8] sm:$0xff]
    %v7821 = vld [vmem:[#allocation25 + $0xae0] sm:$0xff]
    %v7822 = vld [vmem:[#allocation25 + $0xae8] sm:$0xff]
    %v7823 = vld [vmem:[#allocation25 + $0xaf0] sm:$0xff]
    %v7824 = vld [vmem:[#allocation25 + $0xaf8] sm:$0xff]
    %v7825 = vld [vmem:[#allocation25 + $0xb00] sm:$0xff]
    %v7826 = vld [vmem:[#allocation25 + $0xb08] sm:$0xff]
    %v7827 = vld [vmem:[#allocation25 + $0xb10] sm:$0xff]
    %v7828 = vld [vmem:[#allocation25 + $0xb18] sm:$0xff]
    %v7829 = vld [vmem:[#allocation25 + $0xb20] sm:$0xff]
    %v7830 = vld [vmem:[#allocation25 + $0xb28] sm:$0xff]
    %v7831 = vld [vmem:[#allocation25 + $0xb30] sm:$0xff]
    %v7832 = vld [vmem:[#allocation25 + $0xb38] sm:$0xff]
    %v7833 = vld [vmem:[#allocation25 + $0xb40] sm:$0xff]
    %v7834 = vld [vmem:[#allocation25 + $0xb48] sm:$0xff]
    %v7835 = vld [vmem:[#allocation25 + $0xb50] sm:$0xff]
    %v7836 = vld [vmem:[#allocation25 + $0xb58] sm:$0xff]
    %v7837 = vld [vmem:[#allocation25 + $0xb60] sm:$0xff]
    %v7838 = vld [vmem:[#allocation25 + $0xb68] sm:$0xff]
    %v7839 = vld [vmem:[#allocation25 + $0xb70] sm:$0xff]
    %v7840 = vld [vmem:[#allocation25 + $0xb78] sm:$0xff]
    %v7841 = vld [vmem:[#allocation25 + $0xb80] sm:$0xff]
    %v7842 = vld [vmem:[#allocation25 + $0xb88] sm:$0xff]
    %v7843 = vld [vmem:[#allocation25 + $0xb90] sm:$0xff]
    %v7844 = vld [vmem:[#allocation25 + $0xb98] sm:$0xff]
    %v7845 = vld [vmem:[#allocation25 + $0xba0] sm:$0xff]
    %v7846 = vld [vmem:[#allocation25 + $0xba8] sm:$0xff]
    %v7847 = vld [vmem:[#allocation25 + $0xbb0] sm:$0xff]
    %v7848 = vld [vmem:[#allocation25 + $0xbb8] sm:$0xff]
    %v7849 = vld [vmem:[#allocation25 + $0xbc0] sm:$0xff]
    %v7850 = vld [vmem:[#allocation25 + $0xbc8] sm:$0xff]
    %v7851 = vld [vmem:[#allocation25 + $0xbd0] sm:$0xff]
    %v7852 = vld [vmem:[#allocation25 + $0xbd8] sm:$0xff]
    %v7853 = vld [vmem:[#allocation25 + $0xbe0] sm:$0xff]
    %v7854 = vld [vmem:[#allocation25 + $0xbe8] sm:$0xff]
    %v7855 = vld [vmem:[#allocation25 + $0xbf0] sm:$0xff]
    %v7856 = vld [vmem:[#allocation25 + $0xbf8] sm:$0xff]
    %v7857 = vld [vmem:[#allocation25 + $0xc00] sm:$0xff]
    %v7858 = vld [vmem:[#allocation25 + $0xc08] sm:$0xff]
    %v7859 = vld [vmem:[#allocation25 + $0xc10] sm:$0xff]
    %v7860 = vld [vmem:[#allocation25 + $0xc18] sm:$0xff]
    %v7861 = vld [vmem:[#allocation25 + $0xc20] sm:$0xff]
    %v7862 = vld [vmem:[#allocation25 + $0xc28] sm:$0xff]
    %v7863 = vld [vmem:[#allocation25 + $0xc30] sm:$0xff]
    %v7864 = vld [vmem:[#allocation25 + $0xc38] sm:$0xff]
    %v7865 = vld [vmem:[#allocation25 + $0xc40] sm:$0xff]
    %v7866 = vld [vmem:[#allocation25 + $0xc48] sm:$0xff]
    %v7867 = vld [vmem:[#allocation25 + $0xc50] sm:$0xff]
    %v7868 = vld [vmem:[#allocation25 + $0xc58] sm:$0xff]
    %v7869 = vld [vmem:[#allocation25 + $0xc60] sm:$0xff]
    %v7870 = vld [vmem:[#allocation25 + $0xc68] sm:$0xff]
    %v7871 = vld [vmem:[#allocation25 + $0xc70] sm:$0xff]
    %v7872 = vld [vmem:[#allocation25 + $0xc78] sm:$0xff]
    %v7873 = vld [vmem:[#allocation25 + $0xc80] sm:$0xff]
    %v7874 = vld [vmem:[#allocation25 + $0xc88] sm:$0xff]
    %v7875 = vld [vmem:[#allocation25 + $0xc90] sm:$0xff]
    %v7876 = vld [vmem:[#allocation25 + $0xc98] sm:$0xff]
    %v7877 = vld [vmem:[#allocation25 + $0xca0] sm:$0xff]
    %v7878 = vld [vmem:[#allocation25 + $0xca8] sm:$0xff]
    %v7879 = vld [vmem:[#allocation25 + $0xcb0] sm:$0xff]
    %v7880 = vld [vmem:[#allocation25 + $0xcb8] sm:$0xff]
    %v7881 = vld [vmem:[#allocation25 + $0xcc0] sm:$0xff]
    %v7882 = vld [vmem:[#allocation25 + $0xcc8] sm:$0xff]
    %v7883 = vld [vmem:[#allocation25 + $0xcd0] sm:$0xff]
    %v7884 = vld [vmem:[#allocation25 + $0xcd8] sm:$0xff]
    %v7885 = vld [vmem:[#allocation25 + $0xce0] sm:$0xff]
    %v7886 = vld [vmem:[#allocation25 + $0xce8] sm:$0xff]
    %v7887 = vld [vmem:[#allocation25 + $0xcf0] sm:$0xff]
    %v7888 = vld [vmem:[#allocation25 + $0xcf8] sm:$0xff]
    %v7889 = vld [vmem:[#allocation25 + $0xd00] sm:$0xff]
    %v7890 = vld [vmem:[#allocation25 + $0xd08] sm:$0xff]
    %v7891 = vld [vmem:[#allocation25 + $0xd10] sm:$0xff]
    %v7892 = vld [vmem:[#allocation25 + $0xd18] sm:$0xff]
    %v7893 = vld [vmem:[#allocation25 + $0xd20] sm:$0xff]
    %v7894 = vld [vmem:[#allocation25 + $0xd28] sm:$0xff]
    %v7895 = vld [vmem:[#allocation25 + $0xd30] sm:$0xff]
    %v7896 = vld [vmem:[#allocation25 + $0xd38] sm:$0xff]
    %v7897 = vld [vmem:[#allocation25 + $0xd40] sm:$0xff]
    %v7898 = vld [vmem:[#allocation25 + $0xd48] sm:$0xff]
    %v7899 = vld [vmem:[#allocation25 + $0xd50] sm:$0xff]
    %v7900 = vld [vmem:[#allocation25 + $0xd58] sm:$0xff]
    %v7901 = vld [vmem:[#allocation25 + $0xd60] sm:$0xff]
    %v7902 = vld [vmem:[#allocation25 + $0xd68] sm:$0xff]
    %v7903 = vld [vmem:[#allocation25 + $0xd70] sm:$0xff]
    %v7904 = vld [vmem:[#allocation25 + $0xd78] sm:$0xff]
    %v7905 = vld [vmem:[#allocation25 + $0xd80] sm:$0xff]
    %v7906 = vld [vmem:[#allocation25 + $0xd88] sm:$0xff]
    %v7907 = vld [vmem:[#allocation25 + $0xd90] sm:$0xff]
    %v7908 = vld [vmem:[#allocation25 + $0xd98] sm:$0xff]
    %v7909 = vld [vmem:[#allocation25 + $0xda0] sm:$0xff]
    %v7910 = vld [vmem:[#allocation25 + $0xda8] sm:$0xff]
    %v7911 = vld [vmem:[#allocation25 + $0xdb0] sm:$0xff]
    %v7912 = vld [vmem:[#allocation25 + $0xdb8] sm:$0xff]
    %v7913 = vld [vmem:[#allocation25 + $0xdc0] sm:$0xff]
    %v7914 = vld [vmem:[#allocation25 + $0xdc8] sm:$0xff]
    %v7915 = vld [vmem:[#allocation25 + $0xdd0] sm:$0xff]
    %v7916 = vld [vmem:[#allocation25 + $0xdd8] sm:$0xff]
    %v7917 = vld [vmem:[#allocation25 + $0xde0] sm:$0xff]
    %v7918 = vld [vmem:[#allocation25 + $0xde8] sm:$0xff]
    %v7919 = vld [vmem:[#allocation25 + $0xdf0] sm:$0xff]
    %v7920 = vld [vmem:[#allocation25 + $0xdf8] sm:$0xff]
    %v7921 = vld [vmem:[#allocation25 + $0xe00] sm:$0xff]
    %v7922 = vld [vmem:[#allocation25 + $0xe08] sm:$0xff]
    %v7923 = vld [vmem:[#allocation25 + $0xe10] sm:$0xff]
    %v7924 = vld [vmem:[#allocation25 + $0xe18] sm:$0xff]
    %v7925 = vld [vmem:[#allocation25 + $0xe20] sm:$0xff]
    %v7926 = vld [vmem:[#allocation25 + $0xe28] sm:$0xff]
    %v7927 = vld [vmem:[#allocation25 + $0xe30] sm:$0xff]
    %v7928 = vld [vmem:[#allocation25 + $0xe38] sm:$0xff]
    %v7929 = vld [vmem:[#allocation25 + $0xe40] sm:$0xff]
    %v7930 = vld [vmem:[#allocation25 + $0xe48] sm:$0xff]
    %v7931 = vld [vmem:[#allocation25 + $0xe50] sm:$0xff]
    %v7932 = vld [vmem:[#allocation25 + $0xe58] sm:$0xff]
    %v7933 = vld [vmem:[#allocation25 + $0xe60] sm:$0xff]
    %v7934 = vld [vmem:[#allocation25 + $0xe68] sm:$0xff]
    %v7935 = vld [vmem:[#allocation25 + $0xe70] sm:$0xff]
    %v7936 = vld [vmem:[#allocation25 + $0xe78] sm:$0xff]
    %v7937 = vld [vmem:[#allocation25 + $0xe80] sm:$0xff]
    %v7938 = vld [vmem:[#allocation25 + $0xe88] sm:$0xff]
    %v7939 = vld [vmem:[#allocation25 + $0xe90] sm:$0xff]
    %v7940 = vld [vmem:[#allocation25 + $0xe98] sm:$0xff]
    %v7941 = vld [vmem:[#allocation25 + $0xea0] sm:$0xff]
    %v7942 = vld [vmem:[#allocation25 + $0xea8] sm:$0xff]
    %v7943 = vld [vmem:[#allocation25 + $0xeb0] sm:$0xff]
    %v7944 = vld [vmem:[#allocation25 + $0xeb8] sm:$0xff]
    %v7945 = vld [vmem:[#allocation25 + $0xec0] sm:$0xff]
    %v7946 = vld [vmem:[#allocation25 + $0xec8] sm:$0xff]
    %v7947 = vld [vmem:[#allocation25 + $0xed0] sm:$0xff]
    %v7948 = vld [vmem:[#allocation25 + $0xed8] sm:$0xff]
    %v7949 = vld [vmem:[#allocation25 + $0xee0] sm:$0xff]
    %v7950 = vld [vmem:[#allocation25 + $0xee8] sm:$0xff]
    %v7951 = vld [vmem:[#allocation25 + $0xef0] sm:$0xff]
    %v7952 = vld [vmem:[#allocation25 + $0xef8] sm:$0xff]
    %v7953 = vld [vmem:[#allocation25 + $0xf00] sm:$0xff]
    %v7954 = vld [vmem:[#allocation25 + $0xf08] sm:$0xff]
    %v7955 = vld [vmem:[#allocation25 + $0xf10] sm:$0xff]
    %v7956 = vld [vmem:[#allocation25 + $0xf18] sm:$0xff]
    %v7957 = vld [vmem:[#allocation25 + $0xf20] sm:$0xff]
    %v7958 = vld [vmem:[#allocation25 + $0xf28] sm:$0xff]
    %v7959 = vld [vmem:[#allocation25 + $0xf30] sm:$0xff]
    %v7960 = vld [vmem:[#allocation25 + $0xf38] sm:$0xff]
    %v7961 = vld [vmem:[#allocation25 + $0xf40] sm:$0xff]
    %v7962 = vld [vmem:[#allocation25 + $0xf48] sm:$0xff]
    %v7963 = vld [vmem:[#allocation25 + $0xf50] sm:$0xff]
    %v7964 = vld [vmem:[#allocation25 + $0xf58] sm:$0xff]
    %v7965 = vld [vmem:[#allocation25 + $0xf60] sm:$0xff]
    %v7966 = vld [vmem:[#allocation25 + $0xf68] sm:$0xff]
    %v7967 = vld [vmem:[#allocation25 + $0xf70] sm:$0xff]
    %v7968 = vld [vmem:[#allocation25 + $0xf78] sm:$0xff]
    %v7969 = vld [vmem:[#allocation25 + $0xf80] sm:$0xff]
    %v7970 = vld [vmem:[#allocation25 + $0xf88] sm:$0xff]
    %v7971 = vld [vmem:[#allocation25 + $0xf90] sm:$0xff]
    %v7972 = vld [vmem:[#allocation25 + $0xf98] sm:$0xff]
    %v7973 = vld [vmem:[#allocation25 + $0xfa0] sm:$0xff]
    %v7974 = vld [vmem:[#allocation25 + $0xfa8] sm:$0xff]
    %v7975 = vld [vmem:[#allocation25 + $0xfb0] sm:$0xff]
    %v7976 = vld [vmem:[#allocation25 + $0xfb8] sm:$0xff]
    %v7977 = vld [vmem:[#allocation25 + $0xfc0] sm:$0xff]
    %v7978 = vld [vmem:[#allocation25 + $0xfc8] sm:$0xff]
    %v7979 = vld [vmem:[#allocation25 + $0xfd0] sm:$0xff]
    %v7980 = vld [vmem:[#allocation25 + $0xfd8] sm:$0xff]
    %v7981 = vld [vmem:[#allocation25 + $0xfe0] sm:$0xff]
    %v7982 = vld [vmem:[#allocation25 + $0xfe8] sm:$0xff]
    %v7983 = vld [vmem:[#allocation25 + $0xff0] sm:$0xff]
    %v7984 = vld [vmem:[#allocation25 + $0xff8] sm:$0xff]
    %v7985 = vunpack.c.l.bf16 %v7473
    %v7986 = vunpack.c.h.bf16 %v7473
    %v7987 = vunpack.c.l.bf16 %v7474
    %v7988 = vunpack.c.h.bf16 %v7474
    %v7989 = vunpack.c.l.bf16 %v7475
    %v7990 = vunpack.c.h.bf16 %v7475
    %v7991 = vunpack.c.l.bf16 %v7476
    %v7992 = vunpack.c.h.bf16 %v7476
    %v7993 = vunpack.c.l.bf16 %v7477
    %v7994 = vunpack.c.h.bf16 %v7477
    %v7995 = vunpack.c.l.bf16 %v7478
    %v7996 = vunpack.c.h.bf16 %v7478
    %v7997 = vunpack.c.l.bf16 %v7479
    %v7998 = vunpack.c.h.bf16 %v7479
    %v7999 = vunpack.c.l.bf16 %v7480
    %v8000 = vunpack.c.h.bf16 %v7480
    %v8001 = vunpack.c.l.bf16 %v7481
    %v8002 = vunpack.c.h.bf16 %v7481
    %v8003 = vunpack.c.l.bf16 %v7482
    %v8004 = vunpack.c.h.bf16 %v7482
    %v8005 = vunpack.c.l.bf16 %v7483
    %v8006 = vunpack.c.h.bf16 %v7483
    %v8007 = vunpack.c.l.bf16 %v7484
    %v8008 = vunpack.c.h.bf16 %v7484
    %v8009 = vunpack.c.l.bf16 %v7485
    %v8010 = vunpack.c.h.bf16 %v7485
    %v8011 = vunpack.c.l.bf16 %v7486
    %v8012 = vunpack.c.h.bf16 %v7486
    %v8013 = vunpack.c.l.bf16 %v7487
    %v8014 = vunpack.c.h.bf16 %v7487
    %v8015 = vunpack.c.l.bf16 %v7488
    %v8016 = vunpack.c.h.bf16 %v7488
    %v8017 = vunpack.c.l.bf16 %v7489
    %v8018 = vunpack.c.h.bf16 %v7489
    %v8019 = vunpack.c.l.bf16 %v7490
    %v8020 = vunpack.c.h.bf16 %v7490
    %v8021 = vunpack.c.l.bf16 %v7491
    %v8022 = vunpack.c.h.bf16 %v7491
    %v8023 = vunpack.c.l.bf16 %v7492
    %v8024 = vunpack.c.h.bf16 %v7492
    %v8025 = vunpack.c.l.bf16 %v7493
    %v8026 = vunpack.c.h.bf16 %v7493
    %v8027 = vunpack.c.l.bf16 %v7494
    %v8028 = vunpack.c.h.bf16 %v7494
    %v8029 = vunpack.c.l.bf16 %v7495
    %v8030 = vunpack.c.h.bf16 %v7495
    %v8031 = vunpack.c.l.bf16 %v7496
    %v8032 = vunpack.c.h.bf16 %v7496
    %v8033 = vunpack.c.l.bf16 %v7497
    %v8034 = vunpack.c.h.bf16 %v7497
    %v8035 = vunpack.c.l.bf16 %v7498
    %v8036 = vunpack.c.h.bf16 %v7498
    %v8037 = vunpack.c.l.bf16 %v7499
    %v8038 = vunpack.c.h.bf16 %v7499
    %v8039 = vunpack.c.l.bf16 %v7500
    %v8040 = vunpack.c.h.bf16 %v7500
    %v8041 = vunpack.c.l.bf16 %v7501
    %v8042 = vunpack.c.h.bf16 %v7501
    %v8043 = vunpack.c.l.bf16 %v7502
    %v8044 = vunpack.c.h.bf16 %v7502
    %v8045 = vunpack.c.l.bf16 %v7503
    %v8046 = vunpack.c.h.bf16 %v7503
    %v8047 = vunpack.c.l.bf16 %v7504
    %v8048 = vunpack.c.h.bf16 %v7504
    %v8049 = vunpack.c.l.bf16 %v7505
    %v8050 = vunpack.c.h.bf16 %v7505
    %v8051 = vunpack.c.l.bf16 %v7506
    %v8052 = vunpack.c.h.bf16 %v7506
    %v8053 = vunpack.c.l.bf16 %v7507
    %v8054 = vunpack.c.h.bf16 %v7507
    %v8055 = vunpack.c.l.bf16 %v7508
    %v8056 = vunpack.c.h.bf16 %v7508
    %v8057 = vunpack.c.l.bf16 %v7509
    %v8058 = vunpack.c.h.bf16 %v7509
    %v8059 = vunpack.c.l.bf16 %v7510
    %v8060 = vunpack.c.h.bf16 %v7510
    %v8061 = vunpack.c.l.bf16 %v7511
    %v8062 = vunpack.c.h.bf16 %v7511
    %v8063 = vunpack.c.l.bf16 %v7512
    %v8064 = vunpack.c.h.bf16 %v7512
    %v8065 = vunpack.c.l.bf16 %v7513
    %v8066 = vunpack.c.h.bf16 %v7513
    %v8067 = vunpack.c.l.bf16 %v7514
    %v8068 = vunpack.c.h.bf16 %v7514
    %v8069 = vunpack.c.l.bf16 %v7515
    %v8070 = vunpack.c.h.bf16 %v7515
    %v8071 = vunpack.c.l.bf16 %v7516
    %v8072 = vunpack.c.h.bf16 %v7516
    %v8073 = vunpack.c.l.bf16 %v7517
    %v8074 = vunpack.c.h.bf16 %v7517
    %v8075 = vunpack.c.l.bf16 %v7518
    %v8076 = vunpack.c.h.bf16 %v7518
    %v8077 = vunpack.c.l.bf16 %v7519
    %v8078 = vunpack.c.h.bf16 %v7519
    %v8079 = vunpack.c.l.bf16 %v7520
    %v8080 = vunpack.c.h.bf16 %v7520
    %v8081 = vunpack.c.l.bf16 %v7521
    %v8082 = vunpack.c.h.bf16 %v7521
    %v8083 = vunpack.c.l.bf16 %v7522
    %v8084 = vunpack.c.h.bf16 %v7522
    %v8085 = vunpack.c.l.bf16 %v7523
    %v8086 = vunpack.c.h.bf16 %v7523
    %v8087 = vunpack.c.l.bf16 %v7524
    %v8088 = vunpack.c.h.bf16 %v7524
    %v8089 = vunpack.c.l.bf16 %v7525
    %v8090 = vunpack.c.h.bf16 %v7525
    %v8091 = vunpack.c.l.bf16 %v7526
    %v8092 = vunpack.c.h.bf16 %v7526
    %v8093 = vunpack.c.l.bf16 %v7527
    %v8094 = vunpack.c.h.bf16 %v7527
    %v8095 = vunpack.c.l.bf16 %v7528
    %v8096 = vunpack.c.h.bf16 %v7528
    %v8097 = vunpack.c.l.bf16 %v7529
    %v8098 = vunpack.c.h.bf16 %v7529
    %v8099 = vunpack.c.l.bf16 %v7530
    %v8100 = vunpack.c.h.bf16 %v7530
    %v8101 = vunpack.c.l.bf16 %v7531
    %v8102 = vunpack.c.h.bf16 %v7531
    %v8103 = vunpack.c.l.bf16 %v7532
    %v8104 = vunpack.c.h.bf16 %v7532
    %v8105 = vunpack.c.l.bf16 %v7533
    %v8106 = vunpack.c.h.bf16 %v7533
    %v8107 = vunpack.c.l.bf16 %v7534
    %v8108 = vunpack.c.h.bf16 %v7534
    %v8109 = vunpack.c.l.bf16 %v7535
    %v8110 = vunpack.c.h.bf16 %v7535
    %v8111 = vunpack.c.l.bf16 %v7536
    %v8112 = vunpack.c.h.bf16 %v7536
    %v8113 = vunpack.c.l.bf16 %v7537
    %v8114 = vunpack.c.h.bf16 %v7537
    %v8115 = vunpack.c.l.bf16 %v7538
    %v8116 = vunpack.c.h.bf16 %v7538
    %v8117 = vunpack.c.l.bf16 %v7539
    %v8118 = vunpack.c.h.bf16 %v7539
    %v8119 = vunpack.c.l.bf16 %v7540
    %v8120 = vunpack.c.h.bf16 %v7540
    %v8121 = vunpack.c.l.bf16 %v7541
    %v8122 = vunpack.c.h.bf16 %v7541
    %v8123 = vunpack.c.l.bf16 %v7542
    %v8124 = vunpack.c.h.bf16 %v7542
    %v8125 = vunpack.c.l.bf16 %v7543
    %v8126 = vunpack.c.h.bf16 %v7543
    %v8127 = vunpack.c.l.bf16 %v7544
    %v8128 = vunpack.c.h.bf16 %v7544
    %v8129 = vunpack.c.l.bf16 %v7545
    %v8130 = vunpack.c.h.bf16 %v7545
    %v8131 = vunpack.c.l.bf16 %v7546
    %v8132 = vunpack.c.h.bf16 %v7546
    %v8133 = vunpack.c.l.bf16 %v7547
    %v8134 = vunpack.c.h.bf16 %v7547
    %v8135 = vunpack.c.l.bf16 %v7548
    %v8136 = vunpack.c.h.bf16 %v7548
    %v8137 = vunpack.c.l.bf16 %v7549
    %v8138 = vunpack.c.h.bf16 %v7549
    %v8139 = vunpack.c.l.bf16 %v7550
    %v8140 = vunpack.c.h.bf16 %v7550
    %v8141 = vunpack.c.l.bf16 %v7551
    %v8142 = vunpack.c.h.bf16 %v7551
    %v8143 = vunpack.c.l.bf16 %v7552
    %v8144 = vunpack.c.h.bf16 %v7552
    %v8145 = vunpack.c.l.bf16 %v7553
    %v8146 = vunpack.c.h.bf16 %v7553
    %v8147 = vunpack.c.l.bf16 %v7554
    %v8148 = vunpack.c.h.bf16 %v7554
    %v8149 = vunpack.c.l.bf16 %v7555
    %v8150 = vunpack.c.h.bf16 %v7555
    %v8151 = vunpack.c.l.bf16 %v7556
    %v8152 = vunpack.c.h.bf16 %v7556
    %v8153 = vunpack.c.l.bf16 %v7557
    %v8154 = vunpack.c.h.bf16 %v7557
    %v8155 = vunpack.c.l.bf16 %v7558
    %v8156 = vunpack.c.h.bf16 %v7558
    %v8157 = vunpack.c.l.bf16 %v7559
    %v8158 = vunpack.c.h.bf16 %v7559
    %v8159 = vunpack.c.l.bf16 %v7560
    %v8160 = vunpack.c.h.bf16 %v7560
    %v8161 = vunpack.c.l.bf16 %v7561
    %v8162 = vunpack.c.h.bf16 %v7561
    %v8163 = vunpack.c.l.bf16 %v7562
    %v8164 = vunpack.c.h.bf16 %v7562
    %v8165 = vunpack.c.l.bf16 %v7563
    %v8166 = vunpack.c.h.bf16 %v7563
    %v8167 = vunpack.c.l.bf16 %v7564
    %v8168 = vunpack.c.h.bf16 %v7564
    %v8169 = vunpack.c.l.bf16 %v7565
    %v8170 = vunpack.c.h.bf16 %v7565
    %v8171 = vunpack.c.l.bf16 %v7566
    %v8172 = vunpack.c.h.bf16 %v7566
    %v8173 = vunpack.c.l.bf16 %v7567
    %v8174 = vunpack.c.h.bf16 %v7567
    %v8175 = vunpack.c.l.bf16 %v7568
    %v8176 = vunpack.c.h.bf16 %v7568
    %v8177 = vunpack.c.l.bf16 %v7569
    %v8178 = vunpack.c.h.bf16 %v7569
    %v8179 = vunpack.c.l.bf16 %v7570
    %v8180 = vunpack.c.h.bf16 %v7570
    %v8181 = vunpack.c.l.bf16 %v7571
    %v8182 = vunpack.c.h.bf16 %v7571
    %v8183 = vunpack.c.l.bf16 %v7572
    %v8184 = vunpack.c.h.bf16 %v7572
    %v8185 = vunpack.c.l.bf16 %v7573
    %v8186 = vunpack.c.h.bf16 %v7573
    %v8187 = vunpack.c.l.bf16 %v7574
    %v8188 = vunpack.c.h.bf16 %v7574
    %v8189 = vunpack.c.l.bf16 %v7575
    %v8190 = vunpack.c.h.bf16 %v7575
    %v8191 = vunpack.c.l.bf16 %v7576
    %v8192 = vunpack.c.h.bf16 %v7576
    %v8193 = vunpack.c.l.bf16 %v7577
    %v8194 = vunpack.c.h.bf16 %v7577
    %v8195 = vunpack.c.l.bf16 %v7578
    %v8196 = vunpack.c.h.bf16 %v7578
    %v8197 = vunpack.c.l.bf16 %v7579
    %v8198 = vunpack.c.h.bf16 %v7579
    %v8199 = vunpack.c.l.bf16 %v7580
    %v8200 = vunpack.c.h.bf16 %v7580
    %v8201 = vunpack.c.l.bf16 %v7581
    %v8202 = vunpack.c.h.bf16 %v7581
    %v8203 = vunpack.c.l.bf16 %v7582
    %v8204 = vunpack.c.h.bf16 %v7582
    %v8205 = vunpack.c.l.bf16 %v7583
    %v8206 = vunpack.c.h.bf16 %v7583
    %v8207 = vunpack.c.l.bf16 %v7584
    %v8208 = vunpack.c.h.bf16 %v7584
    %v8209 = vunpack.c.l.bf16 %v7585
    %v8210 = vunpack.c.h.bf16 %v7585
    %v8211 = vunpack.c.l.bf16 %v7586
    %v8212 = vunpack.c.h.bf16 %v7586
    %v8213 = vunpack.c.l.bf16 %v7587
    %v8214 = vunpack.c.h.bf16 %v7587
    %v8215 = vunpack.c.l.bf16 %v7588
    %v8216 = vunpack.c.h.bf16 %v7588
    %v8217 = vunpack.c.l.bf16 %v7589
    %v8218 = vunpack.c.h.bf16 %v7589
    %v8219 = vunpack.c.l.bf16 %v7590
    %v8220 = vunpack.c.h.bf16 %v7590
    %v8221 = vunpack.c.l.bf16 %v7591
    %v8222 = vunpack.c.h.bf16 %v7591
    %v8223 = vunpack.c.l.bf16 %v7592
    %v8224 = vunpack.c.h.bf16 %v7592
    %v8225 = vunpack.c.l.bf16 %v7593
    %v8226 = vunpack.c.h.bf16 %v7593
    %v8227 = vunpack.c.l.bf16 %v7594
    %v8228 = vunpack.c.h.bf16 %v7594
    %v8229 = vunpack.c.l.bf16 %v7595
    %v8230 = vunpack.c.h.bf16 %v7595
    %v8231 = vunpack.c.l.bf16 %v7596
    %v8232 = vunpack.c.h.bf16 %v7596
    %v8233 = vunpack.c.l.bf16 %v7597
    %v8234 = vunpack.c.h.bf16 %v7597
    %v8235 = vunpack.c.l.bf16 %v7598
    %v8236 = vunpack.c.h.bf16 %v7598
    %v8237 = vunpack.c.l.bf16 %v7599
    %v8238 = vunpack.c.h.bf16 %v7599
    %v8239 = vunpack.c.l.bf16 %v7600
    %v8240 = vunpack.c.h.bf16 %v7600
    %v8241 = vunpack.c.l.bf16 %v7601
    %v8242 = vunpack.c.h.bf16 %v7601
    %v8243 = vunpack.c.l.bf16 %v7602
    %v8244 = vunpack.c.h.bf16 %v7602
    %v8245 = vunpack.c.l.bf16 %v7603
    %v8246 = vunpack.c.h.bf16 %v7603
    %v8247 = vunpack.c.l.bf16 %v7604
    %v8248 = vunpack.c.h.bf16 %v7604
    %v8249 = vunpack.c.l.bf16 %v7605
    %v8250 = vunpack.c.h.bf16 %v7605
    %v8251 = vunpack.c.l.bf16 %v7606
    %v8252 = vunpack.c.h.bf16 %v7606
    %v8253 = vunpack.c.l.bf16 %v7607
    %v8254 = vunpack.c.h.bf16 %v7607
    %v8255 = vunpack.c.l.bf16 %v7608
    %v8256 = vunpack.c.h.bf16 %v7608
    %v8257 = vunpack.c.l.bf16 %v7609
    %v8258 = vunpack.c.h.bf16 %v7609
    %v8259 = vunpack.c.l.bf16 %v7610
    %v8260 = vunpack.c.h.bf16 %v7610
    %v8261 = vunpack.c.l.bf16 %v7611
    %v8262 = vunpack.c.h.bf16 %v7611
    %v8263 = vunpack.c.l.bf16 %v7612
    %v8264 = vunpack.c.h.bf16 %v7612
    %v8265 = vunpack.c.l.bf16 %v7613
    %v8266 = vunpack.c.h.bf16 %v7613
    %v8267 = vunpack.c.l.bf16 %v7614
    %v8268 = vunpack.c.h.bf16 %v7614
    %v8269 = vunpack.c.l.bf16 %v7615
    %v8270 = vunpack.c.h.bf16 %v7615
    %v8271 = vunpack.c.l.bf16 %v7616
    %v8272 = vunpack.c.h.bf16 %v7616
    %v8273 = vunpack.c.l.bf16 %v7617
    %v8274 = vunpack.c.h.bf16 %v7617
    %v8275 = vunpack.c.l.bf16 %v7618
    %v8276 = vunpack.c.h.bf16 %v7618
    %v8277 = vunpack.c.l.bf16 %v7619
    %v8278 = vunpack.c.h.bf16 %v7619
    %v8279 = vunpack.c.l.bf16 %v7620
    %v8280 = vunpack.c.h.bf16 %v7620
    %v8281 = vunpack.c.l.bf16 %v7621
    %v8282 = vunpack.c.h.bf16 %v7621
    %v8283 = vunpack.c.l.bf16 %v7622
    %v8284 = vunpack.c.h.bf16 %v7622
    %v8285 = vunpack.c.l.bf16 %v7623
    %v8286 = vunpack.c.h.bf16 %v7623
    %v8287 = vunpack.c.l.bf16 %v7624
    %v8288 = vunpack.c.h.bf16 %v7624
    %v8289 = vunpack.c.l.bf16 %v7625
    %v8290 = vunpack.c.h.bf16 %v7625
    %v8291 = vunpack.c.l.bf16 %v7626
    %v8292 = vunpack.c.h.bf16 %v7626
    %v8293 = vunpack.c.l.bf16 %v7627
    %v8294 = vunpack.c.h.bf16 %v7627
    %v8295 = vunpack.c.l.bf16 %v7628
    %v8296 = vunpack.c.h.bf16 %v7628
    %v8297 = vunpack.c.l.bf16 %v7629
    %v8298 = vunpack.c.h.bf16 %v7629
    %v8299 = vunpack.c.l.bf16 %v7630
    %v8300 = vunpack.c.h.bf16 %v7630
    %v8301 = vunpack.c.l.bf16 %v7631
    %v8302 = vunpack.c.h.bf16 %v7631
    %v8303 = vunpack.c.l.bf16 %v7632
    %v8304 = vunpack.c.h.bf16 %v7632
    %v8305 = vunpack.c.l.bf16 %v7633
    %v8306 = vunpack.c.h.bf16 %v7633
    %v8307 = vunpack.c.l.bf16 %v7634
    %v8308 = vunpack.c.h.bf16 %v7634
    %v8309 = vunpack.c.l.bf16 %v7635
    %v8310 = vunpack.c.h.bf16 %v7635
    %v8311 = vunpack.c.l.bf16 %v7636
    %v8312 = vunpack.c.h.bf16 %v7636
    %v8313 = vunpack.c.l.bf16 %v7637
    %v8314 = vunpack.c.h.bf16 %v7637
    %v8315 = vunpack.c.l.bf16 %v7638
    %v8316 = vunpack.c.h.bf16 %v7638
    %v8317 = vunpack.c.l.bf16 %v7639
    %v8318 = vunpack.c.h.bf16 %v7639
    %v8319 = vunpack.c.l.bf16 %v7640
    %v8320 = vunpack.c.h.bf16 %v7640
    %v8321 = vunpack.c.l.bf16 %v7641
    %v8322 = vunpack.c.h.bf16 %v7641
    %v8323 = vunpack.c.l.bf16 %v7642
    %v8324 = vunpack.c.h.bf16 %v7642
    %v8325 = vunpack.c.l.bf16 %v7643
    %v8326 = vunpack.c.h.bf16 %v7643
    %v8327 = vunpack.c.l.bf16 %v7644
    %v8328 = vunpack.c.h.bf16 %v7644
    %v8329 = vunpack.c.l.bf16 %v7645
    %v8330 = vunpack.c.h.bf16 %v7645
    %v8331 = vunpack.c.l.bf16 %v7646
    %v8332 = vunpack.c.h.bf16 %v7646
    %v8333 = vunpack.c.l.bf16 %v7647
    %v8334 = vunpack.c.h.bf16 %v7647
    %v8335 = vunpack.c.l.bf16 %v7648
    %v8336 = vunpack.c.h.bf16 %v7648
    %v8337 = vunpack.c.l.bf16 %v7649
    %v8338 = vunpack.c.h.bf16 %v7649
    %v8339 = vunpack.c.l.bf16 %v7650
    %v8340 = vunpack.c.h.bf16 %v7650
    %v8341 = vunpack.c.l.bf16 %v7651
    %v8342 = vunpack.c.h.bf16 %v7651
    %v8343 = vunpack.c.l.bf16 %v7652
    %v8344 = vunpack.c.h.bf16 %v7652
    %v8345 = vunpack.c.l.bf16 %v7653
    %v8346 = vunpack.c.h.bf16 %v7653
    %v8347 = vunpack.c.l.bf16 %v7654
    %v8348 = vunpack.c.h.bf16 %v7654
    %v8349 = vunpack.c.l.bf16 %v7655
    %v8350 = vunpack.c.h.bf16 %v7655
    %v8351 = vunpack.c.l.bf16 %v7656
    %v8352 = vunpack.c.h.bf16 %v7656
    %v8353 = vunpack.c.l.bf16 %v7657
    %v8354 = vunpack.c.h.bf16 %v7657
    %v8355 = vunpack.c.l.bf16 %v7658
    %v8356 = vunpack.c.h.bf16 %v7658
    %v8357 = vunpack.c.l.bf16 %v7659
    %v8358 = vunpack.c.h.bf16 %v7659
    %v8359 = vunpack.c.l.bf16 %v7660
    %v8360 = vunpack.c.h.bf16 %v7660
    %v8361 = vunpack.c.l.bf16 %v7661
    %v8362 = vunpack.c.h.bf16 %v7661
    %v8363 = vunpack.c.l.bf16 %v7662
    %v8364 = vunpack.c.h.bf16 %v7662
    %v8365 = vunpack.c.l.bf16 %v7663
    %v8366 = vunpack.c.h.bf16 %v7663
    %v8367 = vunpack.c.l.bf16 %v7664
    %v8368 = vunpack.c.h.bf16 %v7664
    %v8369 = vunpack.c.l.bf16 %v7665
    %v8370 = vunpack.c.h.bf16 %v7665
    %v8371 = vunpack.c.l.bf16 %v7666
    %v8372 = vunpack.c.h.bf16 %v7666
    %v8373 = vunpack.c.l.bf16 %v7667
    %v8374 = vunpack.c.h.bf16 %v7667
    %v8375 = vunpack.c.l.bf16 %v7668
    %v8376 = vunpack.c.h.bf16 %v7668
    %v8377 = vunpack.c.l.bf16 %v7669
    %v8378 = vunpack.c.h.bf16 %v7669
    %v8379 = vunpack.c.l.bf16 %v7670
    %v8380 = vunpack.c.h.bf16 %v7670
    %v8381 = vunpack.c.l.bf16 %v7671
    %v8382 = vunpack.c.h.bf16 %v7671
    %v8383 = vunpack.c.l.bf16 %v7672
    %v8384 = vunpack.c.h.bf16 %v7672
    %v8385 = vunpack.c.l.bf16 %v7673
    %v8386 = vunpack.c.h.bf16 %v7673
    %v8387 = vunpack.c.l.bf16 %v7674
    %v8388 = vunpack.c.h.bf16 %v7674
    %v8389 = vunpack.c.l.bf16 %v7675
    %v8390 = vunpack.c.h.bf16 %v7675
    %v8391 = vunpack.c.l.bf16 %v7676
    %v8392 = vunpack.c.h.bf16 %v7676
    %v8393 = vunpack.c.l.bf16 %v7677
    %v8394 = vunpack.c.h.bf16 %v7677
    %v8395 = vunpack.c.l.bf16 %v7678
    %v8396 = vunpack.c.h.bf16 %v7678
    %v8397 = vunpack.c.l.bf16 %v7679
    %v8398 = vunpack.c.h.bf16 %v7679
    %v8399 = vunpack.c.l.bf16 %v7680
    %v8400 = vunpack.c.h.bf16 %v7680
    %v8401 = vunpack.c.l.bf16 %v7681
    %v8402 = vunpack.c.h.bf16 %v7681
    %v8403 = vunpack.c.l.bf16 %v7682
    %v8404 = vunpack.c.h.bf16 %v7682
    %v8405 = vunpack.c.l.bf16 %v7683
    %v8406 = vunpack.c.h.bf16 %v7683
    %v8407 = vunpack.c.l.bf16 %v7684
    %v8408 = vunpack.c.h.bf16 %v7684
    %v8409 = vunpack.c.l.bf16 %v7685
    %v8410 = vunpack.c.h.bf16 %v7685
    %v8411 = vunpack.c.l.bf16 %v7686
    %v8412 = vunpack.c.h.bf16 %v7686
    %v8413 = vunpack.c.l.bf16 %v7687
    %v8414 = vunpack.c.h.bf16 %v7687
    %v8415 = vunpack.c.l.bf16 %v7688
    %v8416 = vunpack.c.h.bf16 %v7688
    %v8417 = vunpack.c.l.bf16 %v7689
    %v8418 = vunpack.c.h.bf16 %v7689
    %v8419 = vunpack.c.l.bf16 %v7690
    %v8420 = vunpack.c.h.bf16 %v7690
    %v8421 = vunpack.c.l.bf16 %v7691
    %v8422 = vunpack.c.h.bf16 %v7691
    %v8423 = vunpack.c.l.bf16 %v7692
    %v8424 = vunpack.c.h.bf16 %v7692
    %v8425 = vunpack.c.l.bf16 %v7693
    %v8426 = vunpack.c.h.bf16 %v7693
    %v8427 = vunpack.c.l.bf16 %v7694
    %v8428 = vunpack.c.h.bf16 %v7694
    %v8429 = vunpack.c.l.bf16 %v7695
    %v8430 = vunpack.c.h.bf16 %v7695
    %v8431 = vunpack.c.l.bf16 %v7696
    %v8432 = vunpack.c.h.bf16 %v7696
    %v8433 = vunpack.c.l.bf16 %v7697
    %v8434 = vunpack.c.h.bf16 %v7697
    %v8435 = vunpack.c.l.bf16 %v7698
    %v8436 = vunpack.c.h.bf16 %v7698
    %v8437 = vunpack.c.l.bf16 %v7699
    %v8438 = vunpack.c.h.bf16 %v7699
    %v8439 = vunpack.c.l.bf16 %v7700
    %v8440 = vunpack.c.h.bf16 %v7700
    %v8441 = vunpack.c.l.bf16 %v7701
    %v8442 = vunpack.c.h.bf16 %v7701
    %v8443 = vunpack.c.l.bf16 %v7702
    %v8444 = vunpack.c.h.bf16 %v7702
    %v8445 = vunpack.c.l.bf16 %v7703
    %v8446 = vunpack.c.h.bf16 %v7703
    %v8447 = vunpack.c.l.bf16 %v7704
    %v8448 = vunpack.c.h.bf16 %v7704
    %v8449 = vunpack.c.l.bf16 %v7705
    %v8450 = vunpack.c.h.bf16 %v7705
    %v8451 = vunpack.c.l.bf16 %v7706
    %v8452 = vunpack.c.h.bf16 %v7706
    %v8453 = vunpack.c.l.bf16 %v7707
    %v8454 = vunpack.c.h.bf16 %v7707
    %v8455 = vunpack.c.l.bf16 %v7708
    %v8456 = vunpack.c.h.bf16 %v7708
    %v8457 = vunpack.c.l.bf16 %v7709
    %v8458 = vunpack.c.h.bf16 %v7709
    %v8459 = vunpack.c.l.bf16 %v7710
    %v8460 = vunpack.c.h.bf16 %v7710
    %v8461 = vunpack.c.l.bf16 %v7711
    %v8462 = vunpack.c.h.bf16 %v7711
    %v8463 = vunpack.c.l.bf16 %v7712
    %v8464 = vunpack.c.h.bf16 %v7712
    %v8465 = vunpack.c.l.bf16 %v7713
    %v8466 = vunpack.c.h.bf16 %v7713
    %v8467 = vunpack.c.l.bf16 %v7714
    %v8468 = vunpack.c.h.bf16 %v7714
    %v8469 = vunpack.c.l.bf16 %v7715
    %v8470 = vunpack.c.h.bf16 %v7715
    %v8471 = vunpack.c.l.bf16 %v7716
    %v8472 = vunpack.c.h.bf16 %v7716
    %v8473 = vunpack.c.l.bf16 %v7717
    %v8474 = vunpack.c.h.bf16 %v7717
    %v8475 = vunpack.c.l.bf16 %v7718
    %v8476 = vunpack.c.h.bf16 %v7718
    %v8477 = vunpack.c.l.bf16 %v7719
    %v8478 = vunpack.c.h.bf16 %v7719
    %v8479 = vunpack.c.l.bf16 %v7720
    %v8480 = vunpack.c.h.bf16 %v7720
    %v8481 = vunpack.c.l.bf16 %v7721
    %v8482 = vunpack.c.h.bf16 %v7721
    %v8483 = vunpack.c.l.bf16 %v7722
    %v8484 = vunpack.c.h.bf16 %v7722
    %v8485 = vunpack.c.l.bf16 %v7723
    %v8486 = vunpack.c.h.bf16 %v7723
    %v8487 = vunpack.c.l.bf16 %v7724
    %v8488 = vunpack.c.h.bf16 %v7724
    %v8489 = vunpack.c.l.bf16 %v7725
    %v8490 = vunpack.c.h.bf16 %v7725
    %v8491 = vunpack.c.l.bf16 %v7726
    %v8492 = vunpack.c.h.bf16 %v7726
    %v8493 = vunpack.c.l.bf16 %v7727
    %v8494 = vunpack.c.h.bf16 %v7727
    %v8495 = vunpack.c.l.bf16 %v7728
    %v8496 = vunpack.c.h.bf16 %v7728
    %v8497 = vunpack.c.l.bf16 %v7729
    %v8498 = vunpack.c.h.bf16 %v7729
    %v8499 = vunpack.c.l.bf16 %v7730
    %v8500 = vunpack.c.h.bf16 %v7730
    %v8501 = vunpack.c.l.bf16 %v7731
    %v8502 = vunpack.c.h.bf16 %v7731
    %v8503 = vunpack.c.l.bf16 %v7732
    %v8504 = vunpack.c.h.bf16 %v7732
    %v8505 = vunpack.c.l.bf16 %v7733
    %v8506 = vunpack.c.h.bf16 %v7733
    %v8507 = vunpack.c.l.bf16 %v7734
    %v8508 = vunpack.c.h.bf16 %v7734
    %v8509 = vunpack.c.l.bf16 %v7735
    %v8510 = vunpack.c.h.bf16 %v7735
    %v8511 = vunpack.c.l.bf16 %v7736
    %v8512 = vunpack.c.h.bf16 %v7736
    %v8513 = vunpack.c.l.bf16 %v7737
    %v8514 = vunpack.c.h.bf16 %v7737
    %v8515 = vunpack.c.l.bf16 %v7738
    %v8516 = vunpack.c.h.bf16 %v7738
    %v8517 = vunpack.c.l.bf16 %v7739
    %v8518 = vunpack.c.h.bf16 %v7739
    %v8519 = vunpack.c.l.bf16 %v7740
    %v8520 = vunpack.c.h.bf16 %v7740
    %v8521 = vunpack.c.l.bf16 %v7741
    %v8522 = vunpack.c.h.bf16 %v7741
    %v8523 = vunpack.c.l.bf16 %v7742
    %v8524 = vunpack.c.h.bf16 %v7742
    %v8525 = vunpack.c.l.bf16 %v7743
    %v8526 = vunpack.c.h.bf16 %v7743
    %v8527 = vunpack.c.l.bf16 %v7744
    %v8528 = vunpack.c.h.bf16 %v7744
    %v8529 = vunpack.c.l.bf16 %v7745
    %v8530 = vunpack.c.h.bf16 %v7745
    %v8531 = vunpack.c.l.bf16 %v7746
    %v8532 = vunpack.c.h.bf16 %v7746
    %v8533 = vunpack.c.l.bf16 %v7747
    %v8534 = vunpack.c.h.bf16 %v7747
    %v8535 = vunpack.c.l.bf16 %v7748
    %v8536 = vunpack.c.h.bf16 %v7748
    %v8537 = vunpack.c.l.bf16 %v7749
    %v8538 = vunpack.c.h.bf16 %v7749
    %v8539 = vunpack.c.l.bf16 %v7750
    %v8540 = vunpack.c.h.bf16 %v7750
    %v8541 = vunpack.c.l.bf16 %v7751
    %v8542 = vunpack.c.h.bf16 %v7751
    %v8543 = vunpack.c.l.bf16 %v7752
    %v8544 = vunpack.c.h.bf16 %v7752
    %v8545 = vunpack.c.l.bf16 %v7753
    %v8546 = vunpack.c.h.bf16 %v7753
    %v8547 = vunpack.c.l.bf16 %v7754
    %v8548 = vunpack.c.h.bf16 %v7754
    %v8549 = vunpack.c.l.bf16 %v7755
    %v8550 = vunpack.c.h.bf16 %v7755
    %v8551 = vunpack.c.l.bf16 %v7756
    %v8552 = vunpack.c.h.bf16 %v7756
    %v8553 = vunpack.c.l.bf16 %v7757
    %v8554 = vunpack.c.h.bf16 %v7757
    %v8555 = vunpack.c.l.bf16 %v7758
    %v8556 = vunpack.c.h.bf16 %v7758
    %v8557 = vunpack.c.l.bf16 %v7759
    %v8558 = vunpack.c.h.bf16 %v7759
    %v8559 = vunpack.c.l.bf16 %v7760
    %v8560 = vunpack.c.h.bf16 %v7760
    %v8561 = vunpack.c.l.bf16 %v7761
    %v8562 = vunpack.c.h.bf16 %v7761
    %v8563 = vunpack.c.l.bf16 %v7762
    %v8564 = vunpack.c.h.bf16 %v7762
    %v8565 = vunpack.c.l.bf16 %v7763
    %v8566 = vunpack.c.h.bf16 %v7763
    %v8567 = vunpack.c.l.bf16 %v7764
    %v8568 = vunpack.c.h.bf16 %v7764
    %v8569 = vunpack.c.l.bf16 %v7765
    %v8570 = vunpack.c.h.bf16 %v7765
    %v8571 = vunpack.c.l.bf16 %v7766
    %v8572 = vunpack.c.h.bf16 %v7766
    %v8573 = vunpack.c.l.bf16 %v7767
    %v8574 = vunpack.c.h.bf16 %v7767
    %v8575 = vunpack.c.l.bf16 %v7768
    %v8576 = vunpack.c.h.bf16 %v7768
    %v8577 = vunpack.c.l.bf16 %v7769
    %v8578 = vunpack.c.h.bf16 %v7769
    %v8579 = vunpack.c.l.bf16 %v7770
    %v8580 = vunpack.c.h.bf16 %v7770
    %v8581 = vunpack.c.l.bf16 %v7771
    %v8582 = vunpack.c.h.bf16 %v7771
    %v8583 = vunpack.c.l.bf16 %v7772
    %v8584 = vunpack.c.h.bf16 %v7772
    %v8585 = vunpack.c.l.bf16 %v7773
    %v8586 = vunpack.c.h.bf16 %v7773
    %v8587 = vunpack.c.l.bf16 %v7774
    %v8588 = vunpack.c.h.bf16 %v7774
    %v8589 = vunpack.c.l.bf16 %v7775
    %v8590 = vunpack.c.h.bf16 %v7775
    %v8591 = vunpack.c.l.bf16 %v7776
    %v8592 = vunpack.c.h.bf16 %v7776
    %v8593 = vunpack.c.l.bf16 %v7777
    %v8594 = vunpack.c.h.bf16 %v7777
    %v8595 = vunpack.c.l.bf16 %v7778
    %v8596 = vunpack.c.h.bf16 %v7778
    %v8597 = vunpack.c.l.bf16 %v7779
    %v8598 = vunpack.c.h.bf16 %v7779
    %v8599 = vunpack.c.l.bf16 %v7780
    %v8600 = vunpack.c.h.bf16 %v7780
    %v8601 = vunpack.c.l.bf16 %v7781
    %v8602 = vunpack.c.h.bf16 %v7781
    %v8603 = vunpack.c.l.bf16 %v7782
    %v8604 = vunpack.c.h.bf16 %v7782
    %v8605 = vunpack.c.l.bf16 %v7783
    %v8606 = vunpack.c.h.bf16 %v7783
    %v8607 = vunpack.c.l.bf16 %v7784
    %v8608 = vunpack.c.h.bf16 %v7784
    %v8609 = vunpack.c.l.bf16 %v7785
    %v8610 = vunpack.c.h.bf16 %v7785
    %v8611 = vunpack.c.l.bf16 %v7786
    %v8612 = vunpack.c.h.bf16 %v7786
    %v8613 = vunpack.c.l.bf16 %v7787
    %v8614 = vunpack.c.h.bf16 %v7787
    %v8615 = vunpack.c.l.bf16 %v7788
    %v8616 = vunpack.c.h.bf16 %v7788
    %v8617 = vunpack.c.l.bf16 %v7789
    %v8618 = vunpack.c.h.bf16 %v7789
    %v8619 = vunpack.c.l.bf16 %v7790
    %v8620 = vunpack.c.h.bf16 %v7790
    %v8621 = vunpack.c.l.bf16 %v7791
    %v8622 = vunpack.c.h.bf16 %v7791
    %v8623 = vunpack.c.l.bf16 %v7792
    %v8624 = vunpack.c.h.bf16 %v7792
    %v8625 = vunpack.c.l.bf16 %v7793
    %v8626 = vunpack.c.h.bf16 %v7793
    %v8627 = vunpack.c.l.bf16 %v7794
    %v8628 = vunpack.c.h.bf16 %v7794
    %v8629 = vunpack.c.l.bf16 %v7795
    %v8630 = vunpack.c.h.bf16 %v7795
    %v8631 = vunpack.c.l.bf16 %v7796
    %v8632 = vunpack.c.h.bf16 %v7796
    %v8633 = vunpack.c.l.bf16 %v7797
    %v8634 = vunpack.c.h.bf16 %v7797
    %v8635 = vunpack.c.l.bf16 %v7798
    %v8636 = vunpack.c.h.bf16 %v7798
    %v8637 = vunpack.c.l.bf16 %v7799
    %v8638 = vunpack.c.h.bf16 %v7799
    %v8639 = vunpack.c.l.bf16 %v7800
    %v8640 = vunpack.c.h.bf16 %v7800
    %v8641 = vunpack.c.l.bf16 %v7801
    %v8642 = vunpack.c.h.bf16 %v7801
    %v8643 = vunpack.c.l.bf16 %v7802
    %v8644 = vunpack.c.h.bf16 %v7802
    %v8645 = vunpack.c.l.bf16 %v7803
    %v8646 = vunpack.c.h.bf16 %v7803
    %v8647 = vunpack.c.l.bf16 %v7804
    %v8648 = vunpack.c.h.bf16 %v7804
    %v8649 = vunpack.c.l.bf16 %v7805
    %v8650 = vunpack.c.h.bf16 %v7805
    %v8651 = vunpack.c.l.bf16 %v7806
    %v8652 = vunpack.c.h.bf16 %v7806
    %v8653 = vunpack.c.l.bf16 %v7807
    %v8654 = vunpack.c.h.bf16 %v7807
    %v8655 = vunpack.c.l.bf16 %v7808
    %v8656 = vunpack.c.h.bf16 %v7808
    %v8657 = vunpack.c.l.bf16 %v7809
    %v8658 = vunpack.c.h.bf16 %v7809
    %v8659 = vunpack.c.l.bf16 %v7810
    %v8660 = vunpack.c.h.bf16 %v7810
    %v8661 = vunpack.c.l.bf16 %v7811
    %v8662 = vunpack.c.h.bf16 %v7811
    %v8663 = vunpack.c.l.bf16 %v7812
    %v8664 = vunpack.c.h.bf16 %v7812
    %v8665 = vunpack.c.l.bf16 %v7813
    %v8666 = vunpack.c.h.bf16 %v7813
    %v8667 = vunpack.c.l.bf16 %v7814
    %v8668 = vunpack.c.h.bf16 %v7814
    %v8669 = vunpack.c.l.bf16 %v7815
    %v8670 = vunpack.c.h.bf16 %v7815
    %v8671 = vunpack.c.l.bf16 %v7816
    %v8672 = vunpack.c.h.bf16 %v7816
    %v8673 = vunpack.c.l.bf16 %v7817
    %v8674 = vunpack.c.h.bf16 %v7817
    %v8675 = vunpack.c.l.bf16 %v7818
    %v8676 = vunpack.c.h.bf16 %v7818
    %v8677 = vunpack.c.l.bf16 %v7819
    %v8678 = vunpack.c.h.bf16 %v7819
    %v8679 = vunpack.c.l.bf16 %v7820
    %v8680 = vunpack.c.h.bf16 %v7820
    %v8681 = vunpack.c.l.bf16 %v7821
    %v8682 = vunpack.c.h.bf16 %v7821
    %v8683 = vunpack.c.l.bf16 %v7822
    %v8684 = vunpack.c.h.bf16 %v7822
    %v8685 = vunpack.c.l.bf16 %v7823
    %v8686 = vunpack.c.h.bf16 %v7823
    %v8687 = vunpack.c.l.bf16 %v7824
    %v8688 = vunpack.c.h.bf16 %v7824
    %v8689 = vunpack.c.l.bf16 %v7825
    %v8690 = vunpack.c.h.bf16 %v7825
    %v8691 = vunpack.c.l.bf16 %v7826
    %v8692 = vunpack.c.h.bf16 %v7826
    %v8693 = vunpack.c.l.bf16 %v7827
    %v8694 = vunpack.c.h.bf16 %v7827
    %v8695 = vunpack.c.l.bf16 %v7828
    %v8696 = vunpack.c.h.bf16 %v7828
    %v8697 = vunpack.c.l.bf16 %v7829
    %v8698 = vunpack.c.h.bf16 %v7829
    %v8699 = vunpack.c.l.bf16 %v7830
    %v8700 = vunpack.c.h.bf16 %v7830
    %v8701 = vunpack.c.l.bf16 %v7831
    %v8702 = vunpack.c.h.bf16 %v7831
    %v8703 = vunpack.c.l.bf16 %v7832
    %v8704 = vunpack.c.h.bf16 %v7832
    %v8705 = vunpack.c.l.bf16 %v7833
    %v8706 = vunpack.c.h.bf16 %v7833
    %v8707 = vunpack.c.l.bf16 %v7834
    %v8708 = vunpack.c.h.bf16 %v7834
    %v8709 = vunpack.c.l.bf16 %v7835
    %v8710 = vunpack.c.h.bf16 %v7835
    %v8711 = vunpack.c.l.bf16 %v7836
    %v8712 = vunpack.c.h.bf16 %v7836
    %v8713 = vunpack.c.l.bf16 %v7837
    %v8714 = vunpack.c.h.bf16 %v7837
    %v8715 = vunpack.c.l.bf16 %v7838
    %v8716 = vunpack.c.h.bf16 %v7838
    %v8717 = vunpack.c.l.bf16 %v7839
    %v8718 = vunpack.c.h.bf16 %v7839
    %v8719 = vunpack.c.l.bf16 %v7840
    %v8720 = vunpack.c.h.bf16 %v7840
    %v8721 = vunpack.c.l.bf16 %v7841
    %v8722 = vunpack.c.h.bf16 %v7841
    %v8723 = vunpack.c.l.bf16 %v7842
    %v8724 = vunpack.c.h.bf16 %v7842
    %v8725 = vunpack.c.l.bf16 %v7843
    %v8726 = vunpack.c.h.bf16 %v7843
    %v8727 = vunpack.c.l.bf16 %v7844
    %v8728 = vunpack.c.h.bf16 %v7844
    %v8729 = vunpack.c.l.bf16 %v7845
    %v8730 = vunpack.c.h.bf16 %v7845
    %v8731 = vunpack.c.l.bf16 %v7846
    %v8732 = vunpack.c.h.bf16 %v7846
    %v8733 = vunpack.c.l.bf16 %v7847
    %v8734 = vunpack.c.h.bf16 %v7847
    %v8735 = vunpack.c.l.bf16 %v7848
    %v8736 = vunpack.c.h.bf16 %v7848
    %v8737 = vunpack.c.l.bf16 %v7849
    %v8738 = vunpack.c.h.bf16 %v7849
    %v8739 = vunpack.c.l.bf16 %v7850
    %v8740 = vunpack.c.h.bf16 %v7850
    %v8741 = vunpack.c.l.bf16 %v7851
    %v8742 = vunpack.c.h.bf16 %v7851
    %v8743 = vunpack.c.l.bf16 %v7852
    %v8744 = vunpack.c.h.bf16 %v7852
    %v8745 = vunpack.c.l.bf16 %v7853
    %v8746 = vunpack.c.h.bf16 %v7853
    %v8747 = vunpack.c.l.bf16 %v7854
    %v8748 = vunpack.c.h.bf16 %v7854
    %v8749 = vunpack.c.l.bf16 %v7855
    %v8750 = vunpack.c.h.bf16 %v7855
    %v8751 = vunpack.c.l.bf16 %v7856
    %v8752 = vunpack.c.h.bf16 %v7856
    %v8753 = vunpack.c.l.bf16 %v7857
    %v8754 = vunpack.c.h.bf16 %v7857
    %v8755 = vunpack.c.l.bf16 %v7858
    %v8756 = vunpack.c.h.bf16 %v7858
    %v8757 = vunpack.c.l.bf16 %v7859
    %v8758 = vunpack.c.h.bf16 %v7859
    %v8759 = vunpack.c.l.bf16 %v7860
    %v8760 = vunpack.c.h.bf16 %v7860
    %v8761 = vunpack.c.l.bf16 %v7861
    %v8762 = vunpack.c.h.bf16 %v7861
    %v8763 = vunpack.c.l.bf16 %v7862
    %v8764 = vunpack.c.h.bf16 %v7862
    %v8765 = vunpack.c.l.bf16 %v7863
    %v8766 = vunpack.c.h.bf16 %v7863
    %v8767 = vunpack.c.l.bf16 %v7864
    %v8768 = vunpack.c.h.bf16 %v7864
    %v8769 = vunpack.c.l.bf16 %v7865
    %v8770 = vunpack.c.h.bf16 %v7865
    %v8771 = vunpack.c.l.bf16 %v7866
    %v8772 = vunpack.c.h.bf16 %v7866
    %v8773 = vunpack.c.l.bf16 %v7867
    %v8774 = vunpack.c.h.bf16 %v7867
    %v8775 = vunpack.c.l.bf16 %v7868
    %v8776 = vunpack.c.h.bf16 %v7868
    %v8777 = vunpack.c.l.bf16 %v7869
    %v8778 = vunpack.c.h.bf16 %v7869
    %v8779 = vunpack.c.l.bf16 %v7870
    %v8780 = vunpack.c.h.bf16 %v7870
    %v8781 = vunpack.c.l.bf16 %v7871
    %v8782 = vunpack.c.h.bf16 %v7871
    %v8783 = vunpack.c.l.bf16 %v7872
    %v8784 = vunpack.c.h.bf16 %v7872
    %v8785 = vunpack.c.l.bf16 %v7873
    %v8786 = vunpack.c.h.bf16 %v7873
    %v8787 = vunpack.c.l.bf16 %v7874
    %v8788 = vunpack.c.h.bf16 %v7874
    %v8789 = vunpack.c.l.bf16 %v7875
    %v8790 = vunpack.c.h.bf16 %v7875
    %v8791 = vunpack.c.l.bf16 %v7876
    %v8792 = vunpack.c.h.bf16 %v7876
    %v8793 = vunpack.c.l.bf16 %v7877
    %v8794 = vunpack.c.h.bf16 %v7877
    %v8795 = vunpack.c.l.bf16 %v7878
    %v8796 = vunpack.c.h.bf16 %v7878
    %v8797 = vunpack.c.l.bf16 %v7879
    %v8798 = vunpack.c.h.bf16 %v7879
    %v8799 = vunpack.c.l.bf16 %v7880
    %v8800 = vunpack.c.h.bf16 %v7880
    %v8801 = vunpack.c.l.bf16 %v7881
    %v8802 = vunpack.c.h.bf16 %v7881
    %v8803 = vunpack.c.l.bf16 %v7882
    %v8804 = vunpack.c.h.bf16 %v7882
    %v8805 = vunpack.c.l.bf16 %v7883
    %v8806 = vunpack.c.h.bf16 %v7883
    %v8807 = vunpack.c.l.bf16 %v7884
    %v8808 = vunpack.c.h.bf16 %v7884
    %v8809 = vunpack.c.l.bf16 %v7885
    %v8810 = vunpack.c.h.bf16 %v7885
    %v8811 = vunpack.c.l.bf16 %v7886
    %v8812 = vunpack.c.h.bf16 %v7886
    %v8813 = vunpack.c.l.bf16 %v7887
    %v8814 = vunpack.c.h.bf16 %v7887
    %v8815 = vunpack.c.l.bf16 %v7888
    %v8816 = vunpack.c.h.bf16 %v7888
    %v8817 = vunpack.c.l.bf16 %v7889
    %v8818 = vunpack.c.h.bf16 %v7889
    %v8819 = vunpack.c.l.bf16 %v7890
    %v8820 = vunpack.c.h.bf16 %v7890
    %v8821 = vunpack.c.l.bf16 %v7891
    %v8822 = vunpack.c.h.bf16 %v7891
    %v8823 = vunpack.c.l.bf16 %v7892
    %v8824 = vunpack.c.h.bf16 %v7892
    %v8825 = vunpack.c.l.bf16 %v7893
    %v8826 = vunpack.c.h.bf16 %v7893
    %v8827 = vunpack.c.l.bf16 %v7894
    %v8828 = vunpack.c.h.bf16 %v7894
    %v8829 = vunpack.c.l.bf16 %v7895
    %v8830 = vunpack.c.h.bf16 %v7895
    %v8831 = vunpack.c.l.bf16 %v7896
    %v8832 = vunpack.c.h.bf16 %v7896
    %v8833 = vunpack.c.l.bf16 %v7897
    %v8834 = vunpack.c.h.bf16 %v7897
    %v8835 = vunpack.c.l.bf16 %v7898
    %v8836 = vunpack.c.h.bf16 %v7898
    %v8837 = vunpack.c.l.bf16 %v7899
    %v8838 = vunpack.c.h.bf16 %v7899
    %v8839 = vunpack.c.l.bf16 %v7900
    %v8840 = vunpack.c.h.bf16 %v7900
    %v8841 = vunpack.c.l.bf16 %v7901
    %v8842 = vunpack.c.h.bf16 %v7901
    %v8843 = vunpack.c.l.bf16 %v7902
    %v8844 = vunpack.c.h.bf16 %v7902
    %v8845 = vunpack.c.l.bf16 %v7903
    %v8846 = vunpack.c.h.bf16 %v7903
    %v8847 = vunpack.c.l.bf16 %v7904
    %v8848 = vunpack.c.h.bf16 %v7904
    %v8849 = vunpack.c.l.bf16 %v7905
    %v8850 = vunpack.c.h.bf16 %v7905
    %v8851 = vunpack.c.l.bf16 %v7906
    %v8852 = vunpack.c.h.bf16 %v7906
    %v8853 = vunpack.c.l.bf16 %v7907
    %v8854 = vunpack.c.h.bf16 %v7907
    %v8855 = vunpack.c.l.bf16 %v7908
    %v8856 = vunpack.c.h.bf16 %v7908
    %v8857 = vunpack.c.l.bf16 %v7909
    %v8858 = vunpack.c.h.bf16 %v7909
    %v8859 = vunpack.c.l.bf16 %v7910
    %v8860 = vunpack.c.h.bf16 %v7910
    %v8861 = vunpack.c.l.bf16 %v7911
    %v8862 = vunpack.c.h.bf16 %v7911
    %v8863 = vunpack.c.l.bf16 %v7912
    %v8864 = vunpack.c.h.bf16 %v7912
    %v8865 = vunpack.c.l.bf16 %v7913
    %v8866 = vunpack.c.h.bf16 %v7913
    %v8867 = vunpack.c.l.bf16 %v7914
    %v8868 = vunpack.c.h.bf16 %v7914
    %v8869 = vunpack.c.l.bf16 %v7915
    %v8870 = vunpack.c.h.bf16 %v7915
    %v8871 = vunpack.c.l.bf16 %v7916
    %v8872 = vunpack.c.h.bf16 %v7916
    %v8873 = vunpack.c.l.bf16 %v7917
    %v8874 = vunpack.c.h.bf16 %v7917
    %v8875 = vunpack.c.l.bf16 %v7918
    %v8876 = vunpack.c.h.bf16 %v7918
    %v8877 = vunpack.c.l.bf16 %v7919
    %v8878 = vunpack.c.h.bf16 %v7919
    %v8879 = vunpack.c.l.bf16 %v7920
    %v8880 = vunpack.c.h.bf16 %v7920
    %v8881 = vunpack.c.l.bf16 %v7921
    %v8882 = vunpack.c.h.bf16 %v7921
    %v8883 = vunpack.c.l.bf16 %v7922
    %v8884 = vunpack.c.h.bf16 %v7922
    %v8885 = vunpack.c.l.bf16 %v7923
    %v8886 = vunpack.c.h.bf16 %v7923
    %v8887 = vunpack.c.l.bf16 %v7924
    %v8888 = vunpack.c.h.bf16 %v7924
    %v8889 = vunpack.c.l.bf16 %v7925
    %v8890 = vunpack.c.h.bf16 %v7925
    %v8891 = vunpack.c.l.bf16 %v7926
    %v8892 = vunpack.c.h.bf16 %v7926
    %v8893 = vunpack.c.l.bf16 %v7927
    %v8894 = vunpack.c.h.bf16 %v7927
    %v8895 = vunpack.c.l.bf16 %v7928
    %v8896 = vunpack.c.h.bf16 %v7928
    %v8897 = vunpack.c.l.bf16 %v7929
    %v8898 = vunpack.c.h.bf16 %v7929
    %v8899 = vunpack.c.l.bf16 %v7930
    %v8900 = vunpack.c.h.bf16 %v7930
    %v8901 = vunpack.c.l.bf16 %v7931
    %v8902 = vunpack.c.h.bf16 %v7931
    %v8903 = vunpack.c.l.bf16 %v7932
    %v8904 = vunpack.c.h.bf16 %v7932
    %v8905 = vunpack.c.l.bf16 %v7933
    %v8906 = vunpack.c.h.bf16 %v7933
    %v8907 = vunpack.c.l.bf16 %v7934
    %v8908 = vunpack.c.h.bf16 %v7934
    %v8909 = vunpack.c.l.bf16 %v7935
    %v8910 = vunpack.c.h.bf16 %v7935
    %v8911 = vunpack.c.l.bf16 %v7936
    %v8912 = vunpack.c.h.bf16 %v7936
    %v8913 = vunpack.c.l.bf16 %v7937
    %v8914 = vunpack.c.h.bf16 %v7937
    %v8915 = vunpack.c.l.bf16 %v7938
    %v8916 = vunpack.c.h.bf16 %v7938
    %v8917 = vunpack.c.l.bf16 %v7939
    %v8918 = vunpack.c.h.bf16 %v7939
    %v8919 = vunpack.c.l.bf16 %v7940
    %v8920 = vunpack.c.h.bf16 %v7940
    %v8921 = vunpack.c.l.bf16 %v7941
    %v8922 = vunpack.c.h.bf16 %v7941
    %v8923 = vunpack.c.l.bf16 %v7942
    %v8924 = vunpack.c.h.bf16 %v7942
    %v8925 = vunpack.c.l.bf16 %v7943
    %v8926 = vunpack.c.h.bf16 %v7943
    %v8927 = vunpack.c.l.bf16 %v7944
    %v8928 = vunpack.c.h.bf16 %v7944
    %v8929 = vunpack.c.l.bf16 %v7945
    %v8930 = vunpack.c.h.bf16 %v7945
    %v8931 = vunpack.c.l.bf16 %v7946
    %v8932 = vunpack.c.h.bf16 %v7946
    %v8933 = vunpack.c.l.bf16 %v7947
    %v8934 = vunpack.c.h.bf16 %v7947
    %v8935 = vunpack.c.l.bf16 %v7948
    %v8936 = vunpack.c.h.bf16 %v7948
    %v8937 = vunpack.c.l.bf16 %v7949
    %v8938 = vunpack.c.h.bf16 %v7949
    %v8939 = vunpack.c.l.bf16 %v7950
    %v8940 = vunpack.c.h.bf16 %v7950
    %v8941 = vunpack.c.l.bf16 %v7951
    %v8942 = vunpack.c.h.bf16 %v7951
    %v8943 = vunpack.c.l.bf16 %v7952
    %v8944 = vunpack.c.h.bf16 %v7952
    %v8945 = vunpack.c.l.bf16 %v7953
    %v8946 = vunpack.c.h.bf16 %v7953
    %v8947 = vunpack.c.l.bf16 %v7954
    %v8948 = vunpack.c.h.bf16 %v7954
    %v8949 = vunpack.c.l.bf16 %v7955
    %v8950 = vunpack.c.h.bf16 %v7955
    %v8951 = vunpack.c.l.bf16 %v7956
    %v8952 = vunpack.c.h.bf16 %v7956
    %v8953 = vunpack.c.l.bf16 %v7957
    %v8954 = vunpack.c.h.bf16 %v7957
    %v8955 = vunpack.c.l.bf16 %v7958
    %v8956 = vunpack.c.h.bf16 %v7958
    %v8957 = vunpack.c.l.bf16 %v7959
    %v8958 = vunpack.c.h.bf16 %v7959
    %v8959 = vunpack.c.l.bf16 %v7960
    %v8960 = vunpack.c.h.bf16 %v7960
    %v8961 = vunpack.c.l.bf16 %v7961
    %v8962 = vunpack.c.h.bf16 %v7961
    %v8963 = vunpack.c.l.bf16 %v7962
    %v8964 = vunpack.c.h.bf16 %v7962
    %v8965 = vunpack.c.l.bf16 %v7963
    %v8966 = vunpack.c.h.bf16 %v7963
    %v8967 = vunpack.c.l.bf16 %v7964
    %v8968 = vunpack.c.h.bf16 %v7964
    %v8969 = vunpack.c.l.bf16 %v7965
    %v8970 = vunpack.c.h.bf16 %v7965
    %v8971 = vunpack.c.l.bf16 %v7966
    %v8972 = vunpack.c.h.bf16 %v7966
    %v8973 = vunpack.c.l.bf16 %v7967
    %v8974 = vunpack.c.h.bf16 %v7967
    %v8975 = vunpack.c.l.bf16 %v7968
    %v8976 = vunpack.c.h.bf16 %v7968
    %v8977 = vunpack.c.l.bf16 %v7969
    %v8978 = vunpack.c.h.bf16 %v7969
    %v8979 = vunpack.c.l.bf16 %v7970
    %v8980 = vunpack.c.h.bf16 %v7970
    %v8981 = vunpack.c.l.bf16 %v7971
    %v8982 = vunpack.c.h.bf16 %v7971
    %v8983 = vunpack.c.l.bf16 %v7972
    %v8984 = vunpack.c.h.bf16 %v7972
    %v8985 = vunpack.c.l.bf16 %v7973
    %v8986 = vunpack.c.h.bf16 %v7973
    %v8987 = vunpack.c.l.bf16 %v7974
    %v8988 = vunpack.c.h.bf16 %v7974
    %v8989 = vunpack.c.l.bf16 %v7975
    %v8990 = vunpack.c.h.bf16 %v7975
    %v8991 = vunpack.c.l.bf16 %v7976
    %v8992 = vunpack.c.h.bf16 %v7976
    %v8993 = vunpack.c.l.bf16 %v7977
    %v8994 = vunpack.c.h.bf16 %v7977
    %v8995 = vunpack.c.l.bf16 %v7978
    %v8996 = vunpack.c.h.bf16 %v7978
    %v8997 = vunpack.c.l.bf16 %v7979
    %v8998 = vunpack.c.h.bf16 %v7979
    %v8999 = vunpack.c.l.bf16 %v7980
    %v9000 = vunpack.c.h.bf16 %v7980
    %v9001 = vunpack.c.l.bf16 %v7981
    %v9002 = vunpack.c.h.bf16 %v7981
    %v9003 = vunpack.c.l.bf16 %v7982
    %v9004 = vunpack.c.h.bf16 %v7982
    %v9005 = vunpack.c.l.bf16 %v7983
    %v9006 = vunpack.c.h.bf16 %v7983
    %v9007 = vunpack.c.l.bf16 %v7984
    %v9008 = vunpack.c.h.bf16 %v7984
    %v9009 = vld [vmem:[#allocation26] sm:$0xf]
    %v9011 = vlaneseq
    %v9012 = vshrl.u32 %v9011, 7
    %v9013 = vsub.s32 0, %v9012
    %v9014 = vrot.slane %v9009, %v9013
    %v9015 = vlaneseq
    %v9016 = vshrl.u32 %v9015, 7
    %v9017 = vsub.s32 1, %v9016
    %v9018 = vrot.slane %v9009, %v9017
    %v9019 = vlaneseq
    %v9020 = vshrl.u32 %v9019, 7
    %v9021 = vsub.s32 2, %v9020
    %v9022 = vrot.slane %v9009, %v9021
    %v9023 = vlaneseq
    %v9024 = vshrl.u32 %v9023, 7
    %v9025 = vsub.s32 3, %v9024
    %v9026 = vrot.slane %v9009, %v9025
    %9031 = vmatprep.subr.mxu0 %v7986
    %9032 = vmatpush1.msra.mxu0 %v7985
    %9033 = vmatprep.subr.mxu0 %v7990
    %9034 = vmatpush1.msra.mxu0 %v7989
    %9035 = vmatprep.subr.mxu0 %v7994
    %9036 = vmatpush1.msra.mxu0 %v7993
    %9037 = vmatprep.subr.mxu0 %v7998
    %9038 = vmatpush1.msra.mxu0 %v7997
    %9039 = vmatprep.subr.mxu0 %v8002
    %9040 = vmatpush1.msra.mxu0 %v8001
    %9041 = vmatprep.subr.mxu0 %v8006
    %9042 = vmatpush1.msra.mxu0 %v8005
    %9043 = vmatprep.subr.mxu0 %v8010
    %9044 = vmatpush1.msra.mxu0 %v8009
    %9045 = vmatprep.subr.mxu0 %v8014
    %9046 = vmatpush1.msra.mxu0 %v8013
    %9047 = vmatprep.subr.mxu0 %v8018
    %9048 = vmatpush1.msra.mxu0 %v8017
    %9049 = vmatprep.subr.mxu0 %v8022
    %9050 = vmatpush1.msra.mxu0 %v8021
    %9051 = vmatprep.subr.mxu0 %v8026
    %9052 = vmatpush1.msra.mxu0 %v8025
    %9053 = vmatprep.subr.mxu0 %v8030
    %9054 = vmatpush1.msra.mxu0 %v8029
    %9055 = vmatprep.subr.mxu0 %v8034
    %9056 = vmatpush1.msra.mxu0 %v8033
    %9057 = vmatprep.subr.mxu0 %v8038
    %9058 = vmatpush1.msra.mxu0 %v8037
    %9059 = vmatprep.subr.mxu0 %v8042
    %9060 = vmatpush1.msra.mxu0 %v8041
    %9061 = vmatprep.subr.mxu0 %v8046
    %9062 = vmatpush1.msra.mxu0 %v8045
    %9063 = vmatprep.subr.mxu0 %v8050
    %9064 = vmatpush1.msra.mxu0 %v8049
    %9065 = vmatprep.subr.mxu0 %v8054
    %9066 = vmatpush1.msra.mxu0 %v8053
    %9067 = vmatprep.subr.mxu0 %v8058
    %9068 = vmatpush1.msra.mxu0 %v8057
    %9069 = vmatprep.subr.mxu0 %v8062
    %9070 = vmatpush1.msra.mxu0 %v8061
    %9071 = vmatprep.subr.mxu0 %v8066
    %9072 = vmatpush1.msra.mxu0 %v8065
    %9073 = vmatprep.subr.mxu0 %v8070
    %9074 = vmatpush1.msra.mxu0 %v8069
    %9075 = vmatprep.subr.mxu0 %v8074
    %9076 = vmatpush1.msra.mxu0 %v8073
    %9077 = vmatprep.subr.mxu0 %v8078
    %9078 = vmatpush1.msra.mxu0 %v8077
    %9079 = vmatprep.subr.mxu0 %v8082
    %9080 = vmatpush1.msra.mxu0 %v8081
    %9081 = vmatprep.subr.mxu0 %v8086
    %9082 = vmatpush1.msra.mxu0 %v8085
    %9083 = vmatprep.subr.mxu0 %v8090
    %9084 = vmatpush1.msra.mxu0 %v8089
    %9085 = vmatprep.subr.mxu0 %v8094
    %9086 = vmatpush1.msra.mxu0 %v8093
    %9087 = vmatprep.subr.mxu0 %v8098
    %9088 = vmatpush1.msra.mxu0 %v8097
    %9089 = vmatprep.subr.mxu0 %v8102
    %9090 = vmatpush1.msra.mxu0 %v8101
    %9091 = vmatprep.subr.mxu0 %v8106
    %9092 = vmatpush1.msra.mxu0 %v8105
    %9093 = vmatprep.subr.mxu0 %v8110
    %9094 = vmatpush1.msra.mxu0 %v8109
    %9095 = vmatprep.mubr.f32.mxu0 %v7442
    %9096 = vmatmul.mubr.f32.gmra.mrb[0].mxu0 %v7441
    %v9097 = vpop.f32.mrb[0].mxu0
    %v9098 = vadd.f32 %v9014, %v9097
    %v9099 = vpop.f32.mrb[0].mxu0
    %v9100 = vadd.f32 %v9018, %v9099
    %9101 = vmatprep.mubr.f32.mxu0 %v7458
    %9102 = vmatmul.mubr.f32.gmra.mrb[0].mxu0 %v7457
    %v9103 = vpop.f32.mrb[0].mxu0
    %v9104 = vadd.f32 %v9014, %v9103
    %v9105 = vpop.f32.mrb[0].mxu0
    %v9106 = vadd.f32 %v9018, %v9105
    %9107 = vdwg.mxu0
    %9108 = vmatprep.subr.mxu0 %v8114
    %9109 = vmatpush1.msra.mxu0 %v8113
    %9110 = vmatprep.subr.mxu0 %v8118
    %9111 = vmatpush1.msra.mxu0 %v8117
    %9112 = vmatprep.subr.mxu0 %v8122
    %9113 = vmatpush1.msra.mxu0 %v8121
    %9114 = vmatprep.subr.mxu0 %v8126
    %9115 = vmatpush1.msra.mxu0 %v8125
    %9116 = vmatprep.subr.mxu0 %v8130
    %9117 = vmatpush1.msra.mxu0 %v8129
    %9118 = vmatprep.subr.mxu0 %v8134
    %9119 = vmatpush1.msra.mxu0 %v8133
    %9120 = vmatprep.subr.mxu0 %v8138
    %9121 = vmatpush1.msra.mxu0 %v8137
    %9122 = vmatprep.subr.mxu0 %v8142
    %9123 = vmatpush1.msra.mxu0 %v8141
    %9124 = vmatprep.subr.mxu0 %v8146
    %9125 = vmatpush1.msra.mxu0 %v8145
    %9126 = vmatprep.subr.mxu0 %v8150
    %9127 = vmatpush1.msra.mxu0 %v8149
    %9128 = vmatprep.subr.mxu0 %v8154
    %9129 = vmatpush1.msra.mxu0 %v8153
    %9130 = vmatprep.subr.mxu0 %v8158
    %9131 = vmatpush1.msra.mxu0 %v8157
    %9132 = vmatprep.subr.mxu0 %v8162
    %9133 = vmatpush1.msra.mxu0 %v8161
    %9134 = vmatprep.subr.mxu0 %v8166
    %9135 = vmatpush1.msra.mxu0 %v8165
    %9136 = vmatprep.subr.mxu0 %v8170
    %9137 = vmatpush1.msra.mxu0 %v8169
    %9138 = vmatprep.subr.mxu0 %v8174
    %9139 = vmatpush1.msra.mxu0 %v8173
    %9140 = vmatprep.subr.mxu0 %v8178
    %9141 = vmatpush1.msra.mxu0 %v8177
    %9142 = vmatprep.subr.mxu0 %v8182
    %9143 = vmatpush1.msra.mxu0 %v8181
    %9144 = vmatprep.subr.mxu0 %v8186
    %9145 = vmatpush1.msra.mxu0 %v8185
    %9146 = vmatprep.subr.mxu0 %v8190
    %9147 = vmatpush1.msra.mxu0 %v8189
    %9148 = vmatprep.subr.mxu0 %v8194
    %9149 = vmatpush1.msra.mxu0 %v8193
    %9150 = vmatprep.subr.mxu0 %v8198
    %9151 = vmatpush1.msra.mxu0 %v8197
    %9152 = vmatprep.subr.mxu0 %v8202
    %9153 = vmatpush1.msra.mxu0 %v8201
    %9154 = vmatprep.subr.mxu0 %v8206
    %9155 = vmatpush1.msra.mxu0 %v8205
    %9156 = vmatprep.subr.mxu0 %v8210
    %9157 = vmatpush1.msra.mxu0 %v8209
    %9158 = vmatprep.subr.mxu0 %v8214
    %9159 = vmatpush1.msra.mxu0 %v8213
    %9160 = vmatprep.subr.mxu0 %v8218
    %9161 = vmatpush1.msra.mxu0 %v8217
    %9162 = vmatprep.subr.mxu0 %v8222
    %9163 = vmatpush1.msra.mxu0 %v8221
    %9164 = vmatprep.subr.mxu0 %v8226
    %9165 = vmatpush1.msra.mxu0 %v8225
    %9166 = vmatprep.subr.mxu0 %v8230
    %9167 = vmatpush1.msra.mxu0 %v8229
    %9168 = vmatprep.subr.mxu0 %v8234
    %9169 = vmatpush1.msra.mxu0 %v8233
    %9170 = vmatprep.subr.mxu0 %v8238
    %9171 = vmatpush1.msra.mxu0 %v8237
    %9172 = vmatprep.mubr.f32.mxu0 %v7444
    %9173 = vmatmul.mubr.f32.gmra.mrb[0].mxu0 %v7443
    %v9174 = vpop.f32.mrb[0].mxu0
    %v9175 = vadd.f32 %v9098, %v9174
    %v9176 = vpop.f32.mrb[0].mxu0
    %v9177 = vadd.f32 %v9100, %v9176
    %9178 = vmatprep.mubr.f32.mxu0 %v7460
    %9179 = vmatmul.mubr.f32.gmra.mrb[0].mxu0 %v7459
    %v9180 = vpop.f32.mrb[0].mxu0
    %v9181 = vadd.f32 %v9104, %v9180
    %v9182 = vpop.f32.mrb[0].mxu0
    %v9183 = vadd.f32 %v9106, %v9182
    %9184 = vdwg.mxu0
    %9185 = vmatprep.subr.mxu0 %v8242
    %9186 = vmatpush1.msra.mxu0 %v8241
    %9187 = vmatprep.subr.mxu0 %v8246
    %9188 = vmatpush1.msra.mxu0 %v8245
    %9189 = vmatprep.subr.mxu0 %v8250
    %9190 = vmatpush1.msra.mxu0 %v8249
    %9191 = vmatprep.subr.mxu0 %v8254
    %9192 = vmatpush1.msra.mxu0 %v8253
    %9193 = vmatprep.subr.mxu0 %v8258
    %9194 = vmatpush1.msra.mxu0 %v8257
    %9195 = vmatprep.subr.mxu0 %v8262
    %9196 = vmatpush1.msra.mxu0 %v8261
    %9197 = vmatprep.subr.mxu0 %v8266
    %9198 = vmatpush1.msra.mxu0 %v8265
    %9199 = vmatprep.subr.mxu0 %v8270
    %9200 = vmatpush1.msra.mxu0 %v8269
    %9201 = vmatprep.subr.mxu0 %v8274
    %9202 = vmatpush1.msra.mxu0 %v8273
    %9203 = vmatprep.subr.mxu0 %v8278
    %9204 = vmatpush1.msra.mxu0 %v8277
    %9205 = vmatprep.subr.mxu0 %v8282
    %9206 = vmatpush1.msra.mxu0 %v8281
    %9207 = vmatprep.subr.mxu0 %v8286
    %9208 = vmatpush1.msra.mxu0 %v8285
    %9209 = vmatprep.subr.mxu0 %v8290
    %9210 = vmatpush1.msra.mxu0 %v8289
    %9211 = vmatprep.subr.mxu0 %v8294
    %9212 = vmatpush1.msra.mxu0 %v8293
    %9213 = vmatprep.subr.mxu0 %v8298
    %9214 = vmatpush1.msra.mxu0 %v8297
    %9215 = vmatprep.subr.mxu0 %v8302
    %9216 = vmatpush1.msra.mxu0 %v8301
    %9217 = vmatprep.subr.mxu0 %v8306
    %9218 = vmatpush1.msra.mxu0 %v8305
    %9219 = vmatprep.subr.mxu0 %v8310
    %9220 = vmatpush1.msra.mxu0 %v8309
    %9221 = vmatprep.subr.mxu0 %v8314
    %9222 = vmatpush1.msra.mxu0 %v8313
    %9223 = vmatprep.subr.mxu0 %v8318
    %9224 = vmatpush1.msra.mxu0 %v8317
    %9225 = vmatprep.subr.mxu0 %v8322
    %9226 = vmatpush1.msra.mxu0 %v8321
    %9227 = vmatprep.subr.mxu0 %v8326
    %9228 = vmatpush1.msra.mxu0 %v8325
    %9229 = vmatprep.subr.mxu0 %v8330
    %9230 = vmatpush1.msra.mxu0 %v8329
    %9231 = vmatprep.subr.mxu0 %v8334
    %9232 = vmatpush1.msra.mxu0 %v8333
    %9233 = vmatprep.subr.mxu0 %v8338
    %9234 = vmatpush1.msra.mxu0 %v8337
    %9235 = vmatprep.subr.mxu0 %v8342
    %9236 = vmatpush1.msra.mxu0 %v8341
    %9237 = vmatprep.subr.mxu0 %v8346
    %9238 = vmatpush1.msra.mxu0 %v8345
    %9239 = vmatprep.subr.mxu0 %v8350
    %9240 = vmatpush1.msra.mxu0 %v8349
    %9241 = vmatprep.subr.mxu0 %v8354
    %9242 = vmatpush1.msra.mxu0 %v8353
    %9243 = vmatprep.subr.mxu0 %v8358
    %9244 = vmatpush1.msra.mxu0 %v8357
    %9245 = vmatprep.subr.mxu0 %v8362
    %9246 = vmatpush1.msra.mxu0 %v8361
    %9247 = vmatprep.subr.mxu0 %v8366
    %9248 = vmatpush1.msra.mxu0 %v8365
    %9249 = vmatprep.mubr.f32.mxu0 %v7446
    %9250 = vmatmul.mubr.f32.gmra.mrb[0].mxu0 %v7445
    %v9251 = vpop.f32.mrb[0].mxu0
    %v9252 = vadd.f32 %v9175, %v9251
    %v9253 = vpop.f32.mrb[0].mxu0
    %v9254 = vadd.f32 %v9177, %v9253
    %9255 = vmatprep.mubr.f32.mxu0 %v7462
    %9256 = vmatmul.mubr.f32.gmra.mrb[0].mxu0 %v7461
    %v9257 = vpop.f32.mrb[0].mxu0
    %v9258 = vadd.f32 %v9181, %v9257
    %v9259 = vpop.f32.mrb[0].mxu0
    %v9260 = vadd.f32 %v9183, %v9259
    %9261 = vdwg.mxu0
    %9262 = vmatprep.subr.mxu0 %v8370
    %9263 = vmatpush1.msra.mxu0 %v8369
    %9264 = vmatprep.subr.mxu0 %v8374
    %9265 = vmatpush1.msra.mxu0 %v8373
    %9266 = vmatprep.subr.mxu0 %v8378
    %9267 = vmatpush1.msra.mxu0 %v8377
    %9268 = vmatprep.subr.mxu0 %v8382
    %9269 = vmatpush1.msra.mxu0 %v8381
    %9270 = vmatprep.subr.mxu0 %v8386
    %9271 = vmatpush1.msra.mxu0 %v8385
    %9272 = vmatprep.subr.mxu0 %v8390
    %9273 = vmatpush1.msra.mxu0 %v8389
    %9274 = vmatprep.subr.mxu0 %v8394
    %9275 = vmatpush1.msra.mxu0 %v8393
    %9276 = vmatprep.subr.mxu0 %v8398
    %9277 = vmatpush1.msra.mxu0 %v8397
    %9278 = vmatprep.subr.mxu0 %v8402
    %9279 = vmatpush1.msra.mxu0 %v8401
    %9280 = vmatprep.subr.mxu0 %v8406
    %9281 = vmatpush1.msra.mxu0 %v8405
    %9282 = vmatprep.subr.mxu0 %v8410
    %9283 = vmatpush1.msra.mxu0 %v8409
    %9284 = vmatprep.subr.mxu0 %v8414
    %9285 = vmatpush1.msra.mxu0 %v8413
    %9286 = vmatprep.subr.mxu0 %v8418
    %9287 = vmatpush1.msra.mxu0 %v8417
    %9288 = vmatprep.subr.mxu0 %v8422
    %9289 = vmatpush1.msra.mxu0 %v8421
    %9290 = vmatprep.subr.mxu0 %v8426
    %9291 = vmatpush1.msra.mxu0 %v8425
    %9292 = vmatprep.subr.mxu0 %v8430
    %9293 = vmatpush1.msra.mxu0 %v8429
    %9294 = vmatprep.subr.mxu0 %v8434
    %9295 = vmatpush1.msra.mxu0 %v8433
    %9296 = vmatprep.subr.mxu0 %v8438
    %9297 = vmatpush1.msra.mxu0 %v8437
    %9298 = vmatprep.subr.mxu0 %v8442
    %9299 = vmatpush1.msra.mxu0 %v8441
    %9300 = vmatprep.subr.mxu0 %v8446
    %9301 = vmatpush1.msra.mxu0 %v8445
    %9302 = vmatprep.subr.mxu0 %v8450
    %9303 = vmatpush1.msra.mxu0 %v8449
    %9304 = vmatprep.subr.mxu0 %v8454
    %9305 = vmatpush1.msra.mxu0 %v8453
    %9306 = vmatprep.subr.mxu0 %v8458
    %9307 = vmatpush1.msra.mxu0 %v8457
    %9308 = vmatprep.subr.mxu0 %v8462
    %9309 = vmatpush1.msra.mxu0 %v8461
    %9310 = vmatprep.subr.mxu0 %v8466
    %9311 = vmatpush1.msra.mxu0 %v8465
    %9312 = vmatprep.subr.mxu0 %v8470
    %9313 = vmatpush1.msra.mxu0 %v8469
    %9314 = vmatprep.subr.mxu0 %v8474
    %9315 = vmatpush1.msra.mxu0 %v8473
    %9316 = vmatprep.subr.mxu0 %v8478
    %9317 = vmatpush1.msra.mxu0 %v8477
    %9318 = vmatprep.subr.mxu0 %v8482
    %9319 = vmatpush1.msra.mxu0 %v8481
    %9320 = vmatprep.subr.mxu0 %v8486
    %9321 = vmatpush1.msra.mxu0 %v8485
    %9322 = vmatprep.subr.mxu0 %v8490
    %9323 = vmatpush1.msra.mxu0 %v8489
    %9324 = vmatprep.subr.mxu0 %v8494
    %9325 = vmatpush1.msra.mxu0 %v8493
    %9326 = vmatprep.mubr.f32.mxu0 %v7448
    %9327 = vmatmul.mubr.f32.gmra.mrb[0].mxu0 %v7447
    %v9328 = vpop.f32.mrb[0].mxu0
    %v9329 = vadd.f32 %v9252, %v9328
    %v9330 = vpop.f32.mrb[0].mxu0
    %v9331 = vadd.f32 %v9254, %v9330
    %9332 = vmatprep.mubr.f32.mxu0 %v7464
    %9333 = vmatmul.mubr.f32.gmra.mrb[0].mxu0 %v7463
    %v9334 = vpop.f32.mrb[0].mxu0
    %v9335 = vadd.f32 %v9258, %v9334
    %v9336 = vpop.f32.mrb[0].mxu0
    %v9337 = vadd.f32 %v9260, %v9336
    %9338 = vdwg.mxu0
    %9339 = vmatprep.subr.mxu0 %v8498
    %9340 = vmatpush1.msra.mxu0 %v8497
    %9341 = vmatprep.subr.mxu0 %v8502
    %9342 = vmatpush1.msra.mxu0 %v8501
    %9343 = vmatprep.subr.mxu0 %v8506
    %9344 = vmatpush1.msra.mxu0 %v8505
    %9345 = vmatprep.subr.mxu0 %v8510
    %9346 = vmatpush1.msra.mxu0 %v8509
    %9347 = vmatprep.subr.mxu0 %v8514
    %9348 = vmatpush1.msra.mxu0 %v8513
    %9349 = vmatprep.subr.mxu0 %v8518
    %9350 = vmatpush1.msra.mxu0 %v8517
    %9351 = vmatprep.subr.mxu0 %v8522
    %9352 = vmatpush1.msra.mxu0 %v8521
    %9353 = vmatprep.subr.mxu0 %v8526
    %9354 = vmatpush1.msra.mxu0 %v8525
    %9355 = vmatprep.subr.mxu0 %v8530
    %9356 = vmatpush1.msra.mxu0 %v8529
    %9357 = vmatprep.subr.mxu0 %v8534
    %9358 = vmatpush1.msra.mxu0 %v8533
    %9359 = vmatprep.subr.mxu0 %v8538
    %9360 = vmatpush1.msra.mxu0 %v8537
    %9361 = vmatprep.subr.mxu0 %v8542
    %9362 = vmatpush1.msra.mxu0 %v8541
    %9363 = vmatprep.subr.mxu0 %v8546
    %9364 = vmatpush1.msra.mxu0 %v8545
    %9365 = vmatprep.subr.mxu0 %v8550
    %9366 = vmatpush1.msra.mxu0 %v8549
    %9367 = vmatprep.subr.mxu0 %v8554
    %9368 = vmatpush1.msra.mxu0 %v8553
    %9369 = vmatprep.subr.mxu0 %v8558
    %9370 = vmatpush1.msra.mxu0 %v8557
    %9371 = vmatprep.subr.mxu0 %v8562
    %9372 = vmatpush1.msra.mxu0 %v8561
    %9373 = vmatprep.subr.mxu0 %v8566
    %9374 = vmatpush1.msra.mxu0 %v8565
    %9375 = vmatprep.subr.mxu0 %v8570
    %9376 = vmatpush1.msra.mxu0 %v8569
    %9377 = vmatprep.subr.mxu0 %v8574
    %9378 = vmatpush1.msra.mxu0 %v8573
    %9379 = vmatprep.subr.mxu0 %v8578
    %9380 = vmatpush1.msra.mxu0 %v8577
    %9381 = vmatprep.subr.mxu0 %v8582
    %9382 = vmatpush1.msra.mxu0 %v8581
    %9383 = vmatprep.subr.mxu0 %v8586
    %9384 = vmatpush1.msra.mxu0 %v8585
    %9385 = vmatprep.subr.mxu0 %v8590
    %9386 = vmatpush1.msra.mxu0 %v8589
    %9387 = vmatprep.subr.mxu0 %v8594
    %9388 = vmatpush1.msra.mxu0 %v8593
    %9389 = vmatprep.subr.mxu0 %v8598
    %9390 = vmatpush1.msra.mxu0 %v8597
    %9391 = vmatprep.subr.mxu0 %v8602
    %9392 = vmatpush1.msra.mxu0 %v8601
    %9393 = vmatprep.subr.mxu0 %v8606
    %9394 = vmatpush1.msra.mxu0 %v8605
    %9395 = vmatprep.subr.mxu0 %v8610
    %9396 = vmatpush1.msra.mxu0 %v8609
    %9397 = vmatprep.subr.mxu0 %v8614
    %9398 = vmatpush1.msra.mxu0 %v8613
    %9399 = vmatprep.subr.mxu0 %v8618
    %9400 = vmatpush1.msra.mxu0 %v8617
    %9401 = vmatprep.subr.mxu0 %v8622
    %9402 = vmatpush1.msra.mxu0 %v8621
    %9403 = vmatprep.mubr.f32.mxu0 %v7450
    %9404 = vmatmul.mubr.f32.gmra.mrb[0].mxu0 %v7449
    %v9405 = vpop.f32.mrb[0].mxu0
    %v9406 = vadd.f32 %v9329, %v9405
    %v9407 = vpop.f32.mrb[0].mxu0
    %v9408 = vadd.f32 %v9331, %v9407
    %9409 = vmatprep.mubr.f32.mxu0 %v7466
    %9410 = vmatmul.mubr.f32.gmra.mrb[0].mxu0 %v7465
    %v9411 = vpop.f32.mrb[0].mxu0
    %v9412 = vadd.f32 %v9335, %v9411
    %v9413 = vpop.f32.mrb[0].mxu0
    %v9414 = vadd.f32 %v9337, %v9413
    %9415 = vdwg.mxu0
    %9416 = vmatprep.subr.mxu0 %v8626
    %9417 = vmatpush1.msra.mxu0 %v8625
    %9418 = vmatprep.subr.mxu0 %v8630
    %9419 = vmatpush1.msra.mxu0 %v8629
    %9420 = vmatprep.subr.mxu0 %v8634
    %9421 = vmatpush1.msra.mxu0 %v8633
    %9422 = vmatprep.subr.mxu0 %v8638
    %9423 = vmatpush1.msra.mxu0 %v8637
    %9424 = vmatprep.subr.mxu0 %v8642
    %9425 = vmatpush1.msra.mxu0 %v8641
    %9426 = vmatprep.subr.mxu0 %v8646
    %9427 = vmatpush1.msra.mxu0 %v8645
    %9428 = vmatprep.subr.mxu0 %v8650
    %9429 = vmatpush1.msra.mxu0 %v8649
    %9430 = vmatprep.subr.mxu0 %v8654
    %9431 = vmatpush1.msra.mxu0 %v8653
    %9432 = vmatprep.subr.mxu0 %v8658
    %9433 = vmatpush1.msra.mxu0 %v8657
    %9434 = vmatprep.subr.mxu0 %v8662
    %9435 = vmatpush1.msra.mxu0 %v8661
    %9436 = vmatprep.subr.mxu0 %v8666
    %9437 = vmatpush1.msra.mxu0 %v8665
    %9438 = vmatprep.subr.mxu0 %v8670
    %9439 = vmatpush1.msra.mxu0 %v8669
    %9440 = vmatprep.subr.mxu0 %v8674
    %9441 = vmatpush1.msra.mxu0 %v8673
    %9442 = vmatprep.subr.mxu0 %v8678
    %9443 = vmatpush1.msra.mxu0 %v8677
    %9444 = vmatprep.subr.mxu0 %v8682
    %9445 = vmatpush1.msra.mxu0 %v8681
    %9446 = vmatprep.subr.mxu0 %v8686
    %9447 = vmatpush1.msra.mxu0 %v8685
    %9448 = vmatprep.subr.mxu0 %v8690
    %9449 = vmatpush1.msra.mxu0 %v8689
    %9450 = vmatprep.subr.mxu0 %v8694
    %9451 = vmatpush1.msra.mxu0 %v8693
    %9452 = vmatprep.subr.mxu0 %v8698
    %9453 = vmatpush1.msra.mxu0 %v8697
    %9454 = vmatprep.subr.mxu0 %v8702
    %9455 = vmatpush1.msra.mxu0 %v8701
    %9456 = vmatprep.subr.mxu0 %v8706
    %9457 = vmatpush1.msra.mxu0 %v8705
    %9458 = vmatprep.subr.mxu0 %v8710
    %9459 = vmatpush1.msra.mxu0 %v8709
    %9460 = vmatprep.subr.mxu0 %v8714
    %9461 = vmatpush1.msra.mxu0 %v8713
    %9462 = vmatprep.subr.mxu0 %v8718
    %9463 = vmatpush1.msra.mxu0 %v8717
    %9464 = vmatprep.subr.mxu0 %v8722
    %9465 = vmatpush1.msra.mxu0 %v8721
    %9466 = vmatprep.subr.mxu0 %v8726
    %9467 = vmatpush1.msra.mxu0 %v8725
    %9468 = vmatprep.subr.mxu0 %v8730
    %9469 = vmatpush1.msra.mxu0 %v8729
    %9470 = vmatprep.subr.mxu0 %v8734
    %9471 = vmatpush1.msra.mxu0 %v8733
    %9472 = vmatprep.subr.mxu0 %v8738
    %9473 = vmatpush1.msra.mxu0 %v8737
    %9474 = vmatprep.subr.mxu0 %v8742
    %9475 = vmatpush1.msra.mxu0 %v8741
    %9476 = vmatprep.subr.mxu0 %v8746
    %9477 = vmatpush1.msra.mxu0 %v8745
    %9478 = vmatprep.subr.mxu0 %v8750
    %9479 = vmatpush1.msra.mxu0 %v8749
    %9480 = vmatprep.mubr.f32.mxu0 %v7452
    %9481 = vmatmul.mubr.f32.gmra.mrb[0].mxu0 %v7451
    %v9482 = vpop.f32.mrb[0].mxu0
    %v9483 = vadd.f32 %v9406, %v9482
    %v9484 = vpop.f32.mrb[0].mxu0
    %v9485 = vadd.f32 %v9408, %v9484
    %9486 = vmatprep.mubr.f32.mxu0 %v7468
    %9487 = vmatmul.mubr.f32.gmra.mrb[0].mxu0 %v7467
    %v9488 = vpop.f32.mrb[0].mxu0
    %v9489 = vadd.f32 %v9412, %v9488
    %v9490 = vpop.f32.mrb[0].mxu0
    %v9491 = vadd.f32 %v9414, %v9490
    %9492 = vdwg.mxu0
    %9493 = vmatprep.subr.mxu0 %v8754
    %9494 = vmatpush1.msra.mxu0 %v8753
    %9495 = vmatprep.subr.mxu0 %v8758
    %9496 = vmatpush1.msra.mxu0 %v8757
    %9497 = vmatprep.subr.mxu0 %v8762
    %9498 = vmatpush1.msra.mxu0 %v8761
    %9499 = vmatprep.subr.mxu0 %v8766
    %9500 = vmatpush1.msra.mxu0 %v8765
    %9501 = vmatprep.subr.mxu0 %v8770
    %9502 = vmatpush1.msra.mxu0 %v8769
    %9503 = vmatprep.subr.mxu0 %v8774
    %9504 = vmatpush1.msra.mxu0 %v8773
    %9505 = vmatprep.subr.mxu0 %v8778
    %9506 = vmatpush1.msra.mxu0 %v8777
    %9507 = vmatprep.subr.mxu0 %v8782
    %9508 = vmatpush1.msra.mxu0 %v8781
    %9509 = vmatprep.subr.mxu0 %v8786
    %9510 = vmatpush1.msra.mxu0 %v8785
    %9511 = vmatprep.subr.mxu0 %v8790
    %9512 = vmatpush1.msra.mxu0 %v8789
    %9513 = vmatprep.subr.mxu0 %v8794
    %9514 = vmatpush1.msra.mxu0 %v8793
    %9515 = vmatprep.subr.mxu0 %v8798
    %9516 = vmatpush1.msra.mxu0 %v8797
    %9517 = vmatprep.subr.mxu0 %v8802
    %9518 = vmatpush1.msra.mxu0 %v8801
    %9519 = vmatprep.subr.mxu0 %v8806
    %9520 = vmatpush1.msra.mxu0 %v8805
    %9521 = vmatprep.subr.mxu0 %v8810
    %9522 = vmatpush1.msra.mxu0 %v8809
    %9523 = vmatprep.subr.mxu0 %v8814
    %9524 = vmatpush1.msra.mxu0 %v8813
    %9525 = vmatprep.subr.mxu0 %v8818
    %9526 = vmatpush1.msra.mxu0 %v8817
    %9527 = vmatprep.subr.mxu0 %v8822
    %9528 = vmatpush1.msra.mxu0 %v8821
    %9529 = vmatprep.subr.mxu0 %v8826
    %9530 = vmatpush1.msra.mxu0 %v8825
    %9531 = vmatprep.subr.mxu0 %v8830
    %9532 = vmatpush1.msra.mxu0 %v8829
    %9533 = vmatprep.subr.mxu0 %v8834
    %9534 = vmatpush1.msra.mxu0 %v8833
    %9535 = vmatprep.subr.mxu0 %v8838
    %9536 = vmatpush1.msra.mxu0 %v8837
    %9537 = vmatprep.subr.mxu0 %v8842
    %9538 = vmatpush1.msra.mxu0 %v8841
    %9539 = vmatprep.subr.mxu0 %v8846
    %9540 = vmatpush1.msra.mxu0 %v8845
    %9541 = vmatprep.subr.mxu0 %v8850
    %9542 = vmatpush1.msra.mxu0 %v8849
    %9543 = vmatprep.subr.mxu0 %v8854
    %9544 = vmatpush1.msra.mxu0 %v8853
    %9545 = vmatprep.subr.mxu0 %v8858
    %9546 = vmatpush1.msra.mxu0 %v8857
    %9547 = vmatprep.subr.mxu0 %v8862
    %9548 = vmatpush1.msra.mxu0 %v8861
    %9549 = vmatprep.subr.mxu0 %v8866
    %9550 = vmatpush1.msra.mxu0 %v8865
    %9551 = vmatprep.subr.mxu0 %v8870
    %9552 = vmatpush1.msra.mxu0 %v8869
    %9553 = vmatprep.subr.mxu0 %v8874
    %9554 = vmatpush1.msra.mxu0 %v8873
    %9555 = vmatprep.subr.mxu0 %v8878
    %9556 = vmatpush1.msra.mxu0 %v8877
    %9557 = vmatprep.mubr.f32.mxu0 %v7454
    %9558 = vmatmul.mubr.f32.gmra.mrb[0].mxu0 %v7453
    %v9559 = vpop.f32.mrb[0].mxu0
    %v9560 = vadd.f32 %v9483, %v9559
    %v9561 = vpop.f32.mrb[0].mxu0
    %v9562 = vadd.f32 %v9485, %v9561
    %9563 = vmatprep.mubr.f32.mxu0 %v7470
    %9564 = vmatmul.mubr.f32.gmra.mrb[0].mxu0 %v7469
    %v9565 = vpop.f32.mrb[0].mxu0
    %v9566 = vadd.f32 %v9489, %v9565
    %v9567 = vpop.f32.mrb[0].mxu0
    %v9568 = vadd.f32 %v9491, %v9567
    %9569 = vdwg.mxu0
    %9570 = vmatprep.subr.mxu0 %v8882
    %9571 = vmatpush1.msra.mxu0 %v8881
    %9572 = vmatprep.subr.mxu0 %v8886
    %9573 = vmatpush1.msra.mxu0 %v8885
    %9574 = vmatprep.subr.mxu0 %v8890
    %9575 = vmatpush1.msra.mxu0 %v8889
    %9576 = vmatprep.subr.mxu0 %v8894
    %9577 = vmatpush1.msra.mxu0 %v8893
    %9578 = vmatprep.subr.mxu0 %v8898
    %9579 = vmatpush1.msra.mxu0 %v8897
    %9580 = vmatprep.subr.mxu0 %v8902
    %9581 = vmatpush1.msra.mxu0 %v8901
    %9582 = vmatprep.subr.mxu0 %v8906
    %9583 = vmatpush1.msra.mxu0 %v8905
    %9584 = vmatprep.subr.mxu0 %v8910
    %9585 = vmatpush1.msra.mxu0 %v8909
    %9586 = vmatprep.subr.mxu0 %v8914
    %9587 = vmatpush1.msra.mxu0 %v8913
    %9588 = vmatprep.subr.mxu0 %v8918
    %9589 = vmatpush1.msra.mxu0 %v8917
    %9590 = vmatprep.subr.mxu0 %v8922
    %9591 = vmatpush1.msra.mxu0 %v8921
    %9592 = vmatprep.subr.mxu0 %v8926
    %9593 = vmatpush1.msra.mxu0 %v8925
    %9594 = vmatprep.subr.mxu0 %v8930
    %9595 = vmatpush1.msra.mxu0 %v8929
    %9596 = vmatprep.subr.mxu0 %v8934
    %9597 = vmatpush1.msra.mxu0 %v8933
    %9598 = vmatprep.subr.mxu0 %v8938
    %9599 = vmatpush1.msra.mxu0 %v8937
    %9600 = vmatprep.subr.mxu0 %v8942
    %9601 = vmatpush1.msra.mxu0 %v8941
    %9602 = vmatprep.subr.mxu0 %v8946
    %9603 = vmatpush1.msra.mxu0 %v8945
    %9604 = vmatprep.subr.mxu0 %v8950
    %9605 = vmatpush1.msra.mxu0 %v8949
    %9606 = vmatprep.subr.mxu0 %v8954
    %9607 = vmatpush1.msra.mxu0 %v8953
    %9608 = vmatprep.subr.mxu0 %v8958
    %9609 = vmatpush1.msra.mxu0 %v8957
    %9610 = vmatprep.subr.mxu0 %v8962
    %9611 = vmatpush1.msra.mxu0 %v8961
    %9612 = vmatprep.subr.mxu0 %v8966
    %9613 = vmatpush1.msra.mxu0 %v8965
    %9614 = vmatprep.subr.mxu0 %v8970
    %9615 = vmatpush1.msra.mxu0 %v8969
    %9616 = vmatprep.subr.mxu0 %v8974
    %9617 = vmatpush1.msra.mxu0 %v8973
    %9618 = vmatprep.subr.mxu0 %v8978
    %9619 = vmatpush1.msra.mxu0 %v8977
    %9620 = vmatprep.subr.mxu0 %v8982
    %9621 = vmatpush1.msra.mxu0 %v8981
    %9622 = vmatprep.subr.mxu0 %v8986
    %9623 = vmatpush1.msra.mxu0 %v8985
    %9624 = vmatprep.subr.mxu0 %v8990
    %9625 = vmatpush1.msra.mxu0 %v8989
    %9626 = vmatprep.subr.mxu0 %v8994
    %9627 = vmatpush1.msra.mxu0 %v8993
    %9628 = vmatprep.subr.mxu0 %v8998
    %9629 = vmatpush1.msra.mxu0 %v8997
    %9630 = vmatprep.subr.mxu0 %v9002
    %9631 = vmatpush1.msra.mxu0 %v9001
    %9632 = vmatprep.subr.mxu0 %v9006
    %9633 = vmatpush1.msra.mxu0 %v9005
    %9634 = vmatprep.mubr.f32.mxu0 %v7456
    %9635 = vmatmul.mubr.f32.gmra.mrb[0].mxu0 %v7455
    %v9636 = vpop.f32.mrb[0].mxu0
    %v9637 = vadd.f32 %v9560, %v9636
    %v9638 = vpop.f32.mrb[0].mxu0
    %v9639 = vadd.f32 %v9562, %v9638
    %9640 = vmatprep.mubr.f32.mxu0 %v7472
    %9641 = vmatmul.mubr.f32.gmra.mrb[0].mxu0 %v7471
    %v9642 = vpop.f32.mrb[0].mxu0
    %v9643 = vadd.f32 %v9566, %v9642
    %v9644 = vpop.f32.mrb[0].mxu0
    %v9645 = vadd.f32 %v9568, %v9644
    %9646 = vdwg.mxu0
    %9647 = vmatprep.subr.mxu0 %v7988
    %9648 = vmatpush1.msra.mxu0 %v7987
    %9649 = vmatprep.subr.mxu0 %v7992
    %9650 = vmatpush1.msra.mxu0 %v7991
    %9651 = vmatprep.subr.mxu0 %v7996
    %9652 = vmatpush1.msra.mxu0 %v7995
    %9653 = vmatprep.subr.mxu0 %v8000
    %9654 = vmatpush1.msra.mxu0 %v7999
    %9655 = vmatprep.subr.mxu0 %v8004
    %9656 = vmatpush1.msra.mxu0 %v8003
    %9657 = vmatprep.subr.mxu0 %v8008
    %9658 = vmatpush1.msra.mxu0 %v8007
    %9659 = vmatprep.subr.mxu0 %v8012
    %9660 = vmatpush1.msra.mxu0 %v8011
    %9661 = vmatprep.subr.mxu0 %v8016
    %9662 = vmatpush1.msra.mxu0 %v8015
    %9663 = vmatprep.subr.mxu0 %v8020
    %9664 = vmatpush1.msra.mxu0 %v8019
    %9665 = vmatprep.subr.mxu0 %v8024
    %9666 = vmatpush1.msra.mxu0 %v8023
    %9667 = vmatprep.subr.mxu0 %v8028
    %9668 = vmatpush1.msra.mxu0 %v8027
    %9669 = vmatprep.subr.mxu0 %v8032
    %9670 = vmatpush1.msra.mxu0 %v8031
    %9671 = vmatprep.subr.mxu0 %v8036
    %9672 = vmatpush1.msra.mxu0 %v8035
    %9673 = vmatprep.subr.mxu0 %v8040
    %9674 = vmatpush1.msra.mxu0 %v8039
    %9675 = vmatprep.subr.mxu0 %v8044
    %9676 = vmatpush1.msra.mxu0 %v8043
    %9677 = vmatprep.subr.mxu0 %v8048
    %9678 = vmatpush1.msra.mxu0 %v8047
    %9679 = vmatprep.subr.mxu0 %v8052
    %9680 = vmatpush1.msra.mxu0 %v8051
    %9681 = vmatprep.subr.mxu0 %v8056
    %9682 = vmatpush1.msra.mxu0 %v8055
    %9683 = vmatprep.subr.mxu0 %v8060
    %9684 = vmatpush1.msra.mxu0 %v8059
    %9685 = vmatprep.subr.mxu0 %v8064
    %9686 = vmatpush1.msra.mxu0 %v8063
    %9687 = vmatprep.subr.mxu0 %v8068
    %9688 = vmatpush1.msra.mxu0 %v8067
    %9689 = vmatprep.subr.mxu0 %v8072
    %9690 = vmatpush1.msra.mxu0 %v8071
    %9691 = vmatprep.subr.mxu0 %v8076
    %9692 = vmatpush1.msra.mxu0 %v8075
    %9693 = vmatprep.subr.mxu0 %v8080
    %9694 = vmatpush1.msra.mxu0 %v8079
    %9695 = vmatprep.subr.mxu0 %v8084
    %9696 = vmatpush1.msra.mxu0 %v8083
    %9697 = vmatprep.subr.mxu0 %v8088
    %9698 = vmatpush1.msra.mxu0 %v8087
    %9699 = vmatprep.subr.mxu0 %v8092
    %9700 = vmatpush1.msra.mxu0 %v8091
    %9701 = vmatprep.subr.mxu0 %v8096
    %9702 = vmatpush1.msra.mxu0 %v8095
    %9703 = vmatprep.subr.mxu0 %v8100
    %9704 = vmatpush1.msra.mxu0 %v8099
    %9705 = vmatprep.subr.mxu0 %v8104
    %9706 = vmatpush1.msra.mxu0 %v8103
    %9707 = vmatprep.subr.mxu0 %v8108
    %9708 = vmatpush1.msra.mxu0 %v8107
    %9709 = vmatprep.subr.mxu0 %v8112
    %9710 = vmatpush1.msra.mxu0 %v8111
    %9711 = vmatprep.mubr.f32.mxu0 %v7442
    %9712 = vmatmul.mubr.f32.gmra.mrb[0].mxu0 %v7441
    %v9713 = vpop.f32.mrb[0].mxu0
    %v9714 = vadd.f32 %v9022, %v9713
    %v9715 = vpop.f32.mrb[0].mxu0
    %v9716 = vadd.f32 %v9026, %v9715
    %9717 = vmatprep.mubr.f32.mxu0 %v7458
    %9718 = vmatmul.mubr.f32.gmra.mrb[0].mxu0 %v7457
    %v9719 = vpop.f32.mrb[0].mxu0
    %v9720 = vadd.f32 %v9022, %v9719
    %v9721 = vpop.f32.mrb[0].mxu0
    %v9722 = vadd.f32 %v9026, %v9721
    %9723 = vdwg.mxu0
    %9724 = vmatprep.subr.mxu0 %v8116
    %9725 = vmatpush1.msra.mxu0 %v8115
    %9726 = vmatprep.subr.mxu0 %v8120
    %9727 = vmatpush1.msra.mxu0 %v8119
    %9728 = vmatprep.subr.mxu0 %v8124
    %9729 = vmatpush1.msra.mxu0 %v8123
    %9730 = vmatprep.subr.mxu0 %v8128
    %9731 = vmatpush1.msra.mxu0 %v8127
    %9732 = vmatprep.subr.mxu0 %v8132
    %9733 = vmatpush1.msra.mxu0 %v8131
    %9734 = vmatprep.subr.mxu0 %v8136
    %9735 = vmatpush1.msra.mxu0 %v8135
    %9736 = vmatprep.subr.mxu0 %v8140
    %9737 = vmatpush1.msra.mxu0 %v8139
    %9738 = vmatprep.subr.mxu0 %v8144
    %9739 = vmatpush1.msra.mxu0 %v8143
    %9740 = vmatprep.subr.mxu0 %v8148
    %9741 = vmatpush1.msra.mxu0 %v8147
    %9742 = vmatprep.subr.mxu0 %v8152
    %9743 = vmatpush1.msra.mxu0 %v8151
    %9744 = vmatprep.subr.mxu0 %v8156
    %9745 = vmatpush1.msra.mxu0 %v8155
    %9746 = vmatprep.subr.mxu0 %v8160
    %9747 = vmatpush1.msra.mxu0 %v8159
    %9748 = vmatprep.subr.mxu0 %v8164
    %9749 = vmatpush1.msra.mxu0 %v8163
    %9750 = vmatprep.subr.mxu0 %v8168
    %9751 = vmatpush1.msra.mxu0 %v8167
    %9752 = vmatprep.subr.mxu0 %v8172
    %9753 = vmatpush1.msra.mxu0 %v8171
    %9754 = vmatprep.subr.mxu0 %v8176
    %9755 = vmatpush1.msra.mxu0 %v8175
    %9756 = vmatprep.subr.mxu0 %v8180
    %9757 = vmatpush1.msra.mxu0 %v8179
    %9758 = vmatprep.subr.mxu0 %v8184
    %9759 = vmatpush1.msra.mxu0 %v8183
    %9760 = vmatprep.subr.mxu0 %v8188
    %9761 = vmatpush1.msra.mxu0 %v8187
    %9762 = vmatprep.subr.mxu0 %v8192
    %9763 = vmatpush1.msra.mxu0 %v8191
    %9764 = vmatprep.subr.mxu0 %v8196
    %9765 = vmatpush1.msra.mxu0 %v8195
    %9766 = vmatprep.subr.mxu0 %v8200
    %9767 = vmatpush1.msra.mxu0 %v8199
    %9768 = vmatprep.subr.mxu0 %v8204
    %9769 = vmatpush1.msra.mxu0 %v8203
    %9770 = vmatprep.subr.mxu0 %v8208
    %9771 = vmatpush1.msra.mxu0 %v8207
    %9772 = vmatprep.subr.mxu0 %v8212
    %9773 = vmatpush1.msra.mxu0 %v8211
    %9774 = vmatprep.subr.mxu0 %v8216
    %9775 = vmatpush1.msra.mxu0 %v8215
    %9776 = vmatprep.subr.mxu0 %v8220
    %9777 = vmatpush1.msra.mxu0 %v8219
    %9778 = vmatprep.subr.mxu0 %v8224
    %9779 = vmatpush1.msra.mxu0 %v8223
    %9780 = vmatprep.subr.mxu0 %v8228
    %9781 = vmatpush1.msra.mxu0 %v8227
    %9782 = vmatprep.subr.mxu0 %v8232
    %9783 = vmatpush1.msra.mxu0 %v8231
    %9784 = vmatprep.subr.mxu0 %v8236
    %9785 = vmatpush1.msra.mxu0 %v8235
    %9786 = vmatprep.subr.mxu0 %v8240
    %9787 = vmatpush1.msra.mxu0 %v8239
    %9788 = vmatprep.mubr.f32.mxu0 %v7444
    %9789 = vmatmul.mubr.f32.gmra.mrb[0].mxu0 %v7443
    %v9790 = vpop.f32.mrb[0].mxu0
    %v9791 = vadd.f32 %v9714, %v9790
    %v9792 = vpop.f32.mrb[0].mxu0
    %v9793 = vadd.f32 %v9716, %v9792
    %9794 = vmatprep.mubr.f32.mxu0 %v7460
    %9795 = vmatmul.mubr.f32.gmra.mrb[0].mxu0 %v7459
    %v9796 = vpop.f32.mrb[0].mxu0
    %v9797 = vadd.f32 %v9720, %v9796
    %v9798 = vpop.f32.mrb[0].mxu0
    %v9799 = vadd.f32 %v9722, %v9798
    %9800 = vdwg.mxu0
    %9801 = vmatprep.subr.mxu0 %v8244
    %9802 = vmatpush1.msra.mxu0 %v8243
    %9803 = vmatprep.subr.mxu0 %v8248
    %9804 = vmatpush1.msra.mxu0 %v8247
    %9805 = vmatprep.subr.mxu0 %v8252
    %9806 = vmatpush1.msra.mxu0 %v8251
    %9807 = vmatprep.subr.mxu0 %v8256
    %9808 = vmatpush1.msra.mxu0 %v8255
    %9809 = vmatprep.subr.mxu0 %v8260
    %9810 = vmatpush1.msra.mxu0 %v8259
    %9811 = vmatprep.subr.mxu0 %v8264
    %9812 = vmatpush1.msra.mxu0 %v8263
    %9813 = vmatprep.subr.mxu0 %v8268
    %9814 = vmatpush1.msra.mxu0 %v8267
    %9815 = vmatprep.subr.mxu0 %v8272
    %9816 = vmatpush1.msra.mxu0 %v8271
    %9817 = vmatprep.subr.mxu0 %v8276
    %9818 = vmatpush1.msra.mxu0 %v8275
    %9819 = vmatprep.subr.mxu0 %v8280
    %9820 = vmatpush1.msra.mxu0 %v8279
    %9821 = vmatprep.subr.mxu0 %v8284
    %9822 = vmatpush1.msra.mxu0 %v8283
    %9823 = vmatprep.subr.mxu0 %v8288
    %9824 = vmatpush1.msra.mxu0 %v8287
    %9825 = vmatprep.subr.mxu0 %v8292
    %9826 = vmatpush1.msra.mxu0 %v8291
    %9827 = vmatprep.subr.mxu0 %v8296
    %9828 = vmatpush1.msra.mxu0 %v8295
    %9829 = vmatprep.subr.mxu0 %v8300
    %9830 = vmatpush1.msra.mxu0 %v8299
    %9831 = vmatprep.subr.mxu0 %v8304
    %9832 = vmatpush1.msra.mxu0 %v8303
    %9833 = vmatprep.subr.mxu0 %v8308
    %9834 = vmatpush1.msra.mxu0 %v8307
    %9835 = vmatprep.subr.mxu0 %v8312
    %9836 = vmatpush1.msra.mxu0 %v8311
    %9837 = vmatprep.subr.mxu0 %v8316
    %9838 = vmatpush1.msra.mxu0 %v8315
    %9839 = vmatprep.subr.mxu0 %v8320
    %9840 = vmatpush1.msra.mxu0 %v8319
    %9841 = vmatprep.subr.mxu0 %v8324
    %9842 = vmatpush1.msra.mxu0 %v8323
    %9843 = vmatprep.subr.mxu0 %v8328
    %9844 = vmatpush1.msra.mxu0 %v8327
    %9845 = vmatprep.subr.mxu0 %v8332
    %9846 = vmatpush1.msra.mxu0 %v8331
    %9847 = vmatprep.subr.mxu0 %v8336
    %9848 = vmatpush1.msra.mxu0 %v8335
    %9849 = vmatprep.subr.mxu0 %v8340
    %9850 = vmatpush1.msra.mxu0 %v8339
    %9851 = vmatprep.subr.mxu0 %v8344
    %9852 = vmatpush1.msra.mxu0 %v8343
    %9853 = vmatprep.subr.mxu0 %v8348
    %9854 = vmatpush1.msra.mxu0 %v8347
    %9855 = vmatprep.subr.mxu0 %v8352
    %9856 = vmatpush1.msra.mxu0 %v8351
    %9857 = vmatprep.subr.mxu0 %v8356
    %9858 = vmatpush1.msra.mxu0 %v8355
    %9859 = vmatprep.subr.mxu0 %v8360
    %9860 = vmatpush1.msra.mxu0 %v8359
    %9861 = vmatprep.subr.mxu0 %v8364
    %9862 = vmatpush1.msra.mxu0 %v8363
    %9863 = vmatprep.subr.mxu0 %v8368
    %9864 = vmatpush1.msra.mxu0 %v8367
    %9865 = vmatprep.mubr.f32.mxu0 %v7446
    %9866 = vmatmul.mubr.f32.gmra.mrb[0].mxu0 %v7445
    %v9867 = vpop.f32.mrb[0].mxu0
    %v9868 = vadd.f32 %v9791, %v9867
    %v9869 = vpop.f32.mrb[0].mxu0
    %v9870 = vadd.f32 %v9793, %v9869
    %9871 = vmatprep.mubr.f32.mxu0 %v7462
    %9872 = vmatmul.mubr.f32.gmra.mrb[0].mxu0 %v7461
    %v9873 = vpop.f32.mrb[0].mxu0
    %v9874 = vadd.f32 %v9797, %v9873
    %v9875 = vpop.f32.mrb[0].mxu0
    %v9876 = vadd.f32 %v9799, %v9875
    %9877 = vdwg.mxu0
    %9878 = vmatprep.subr.mxu0 %v8372
    %9879 = vmatpush1.msra.mxu0 %v8371
    %9880 = vmatprep.subr.mxu0 %v8376
    %9881 = vmatpush1.msra.mxu0 %v8375
    %9882 = vmatprep.subr.mxu0 %v8380
    %9883 = vmatpush1.msra.mxu0 %v8379
    %9884 = vmatprep.subr.mxu0 %v8384
    %9885 = vmatpush1.msra.mxu0 %v8383
    %9886 = vmatprep.subr.mxu0 %v8388
    %9887 = vmatpush1.msra.mxu0 %v8387
    %9888 = vmatprep.subr.mxu0 %v8392
    %9889 = vmatpush1.msra.mxu0 %v8391
    %9890 = vmatprep.subr.mxu0 %v8396
    %9891 = vmatpush1.msra.mxu0 %v8395
    %9892 = vmatprep.subr.mxu0 %v8400
    %9893 = vmatpush1.msra.mxu0 %v8399
    %9894 = vmatprep.subr.mxu0 %v8404
    %9895 = vmatpush1.msra.mxu0 %v8403
    %9896 = vmatprep.subr.mxu0 %v8408
    %9897 = vmatpush1.msra.mxu0 %v8407
    %9898 = vmatprep.subr.mxu0 %v8412
    %9899 = vmatpush1.msra.mxu0 %v8411
    %9900 = vmatprep.subr.mxu0 %v8416
    %9901 = vmatpush1.msra.mxu0 %v8415
    %9902 = vmatprep.subr.mxu0 %v8420
    %9903 = vmatpush1.msra.mxu0 %v8419
    %9904 = vmatprep.subr.mxu0 %v8424
    %9905 = vmatpush1.msra.mxu0 %v8423
    %9906 = vmatprep.subr.mxu0 %v8428
    %9907 = vmatpush1.msra.mxu0 %v8427
    %9908 = vmatprep.subr.mxu0 %v8432
    %9909 = vmatpush1.msra.mxu0 %v8431
    %9910 = vmatprep.subr.mxu0 %v8436
    %9911 = vmatpush1.msra.mxu0 %v8435
    %9912 = vmatprep.subr.mxu0 %v8440
    %9913 = vmatpush1.msra.mxu0 %v8439
    %9914 = vmatprep.subr.mxu0 %v8444
    %9915 = vmatpush1.msra.mxu0 %v8443
    %9916 = vmatprep.subr.mxu0 %v8448
    %9917 = vmatpush1.msra.mxu0 %v8447
    %9918 = vmatprep.subr.mxu0 %v8452
    %9919 = vmatpush1.msra.mxu0 %v8451
    %9920 = vmatprep.subr.mxu0 %v8456
    %9921 = vmatpush1.msra.mxu0 %v8455
    %9922 = vmatprep.subr.mxu0 %v8460
    %9923 = vmatpush1.msra.mxu0 %v8459
    %9924 = vmatprep.subr.mxu0 %v8464
    %9925 = vmatpush1.msra.mxu0 %v8463
    %9926 = vmatprep.subr.mxu0 %v8468
    %9927 = vmatpush1.msra.mxu0 %v8467
    %9928 = vmatprep.subr.mxu0 %v8472
    %9929 = vmatpush1.msra.mxu0 %v8471
    %9930 = vmatprep.subr.mxu0 %v8476
    %9931 = vmatpush1.msra.mxu0 %v8475
    %9932 = vmatprep.subr.mxu0 %v8480
    %9933 = vmatpush1.msra.mxu0 %v8479
    %9934 = vmatprep.subr.mxu0 %v8484
    %9935 = vmatpush1.msra.mxu0 %v8483
    %9936 = vmatprep.subr.mxu0 %v8488
    %9937 = vmatpush1.msra.mxu0 %v8487
    %9938 = vmatprep.subr.mxu0 %v8492
    %9939 = vmatpush1.msra.mxu0 %v8491
    %9940 = vmatprep.subr.mxu0 %v8496
    %9941 = vmatpush1.msra.mxu0 %v8495
    %9942 = vmatprep.mubr.f32.mxu0 %v7448
    %9943 = vmatmul.mubr.f32.gmra.mrb[0].mxu0 %v7447
    %v9944 = vpop.f32.mrb[0].mxu0
    %v9945 = vadd.f32 %v9868, %v9944
    %v9946 = vpop.f32.mrb[0].mxu0
    %v9947 = vadd.f32 %v9870, %v9946
    %9948 = vmatprep.mubr.f32.mxu0 %v7464
    %9949 = vmatmul.mubr.f32.gmra.mrb[0].mxu0 %v7463
    %v9950 = vpop.f32.mrb[0].mxu0
    %v9951 = vadd.f32 %v9874, %v9950
    %v9952 = vpop.f32.mrb[0].mxu0
    %v9953 = vadd.f32 %v9876, %v9952
    %9954 = vdwg.mxu0
    %9955 = vmatprep.subr.mxu0 %v8500
    %9956 = vmatpush1.msra.mxu0 %v8499
    %9957 = vmatprep.subr.mxu0 %v8504
    %9958 = vmatpush1.msra.mxu0 %v8503
    %9959 = vmatprep.subr.mxu0 %v8508
    %9960 = vmatpush1.msra.mxu0 %v8507
    %9961 = vmatprep.subr.mxu0 %v8512
    %9962 = vmatpush1.msra.mxu0 %v8511
    %9963 = vmatprep.subr.mxu0 %v8516
    %9964 = vmatpush1.msra.mxu0 %v8515
    %9965 = vmatprep.subr.mxu0 %v8520
    %9966 = vmatpush1.msra.mxu0 %v8519
    %9967 = vmatprep.subr.mxu0 %v8524
    %9968 = vmatpush1.msra.mxu0 %v8523
    %9969 = vmatprep.subr.mxu0 %v8528
    %9970 = vmatpush1.msra.mxu0 %v8527
    %9971 = vmatprep.subr.mxu0 %v8532
    %9972 = vmatpush1.msra.mxu0 %v8531
    %9973 = vmatprep.subr.mxu0 %v8536
    %9974 = vmatpush1.msra.mxu0 %v8535
    %9975 = vmatprep.subr.mxu0 %v8540
    %9976 = vmatpush1.msra.mxu0 %v8539
    %9977 = vmatprep.subr.mxu0 %v8544
    %9978 = vmatpush1.msra.mxu0 %v8543
    %9979 = vmatprep.subr.mxu0 %v8548
    %9980 = vmatpush1.msra.mxu0 %v8547
    %9981 = vmatprep.subr.mxu0 %v8552
    %9982 = vmatpush1.msra.mxu0 %v8551
    %9983 = vmatprep.subr.mxu0 %v8556
    %9984 = vmatpush1.msra.mxu0 %v8555
    %9985 = vmatprep.subr.mxu0 %v8560
    %9986 = vmatpush1.msra.mxu0 %v8559
    %9987 = vmatprep.subr.mxu0 %v8564
    %9988 = vmatpush1.msra.mxu0 %v8563
    %9989 = vmatprep.subr.mxu0 %v8568
    %9990 = vmatpush1.msra.mxu0 %v8567
    %9991 = vmatprep.subr.mxu0 %v8572
    %9992 = vmatpush1.msra.mxu0 %v8571
    %9993 = vmatprep.subr.mxu0 %v8576
    %9994 = vmatpush1.msra.mxu0 %v8575
    %9995 = vmatprep.subr.mxu0 %v8580
    %9996 = vmatpush1.msra.mxu0 %v8579
    %9997 = vmatprep.subr.mxu0 %v8584
    %9998 = vmatpush1.msra.mxu0 %v8583
    %9999 = vmatprep.subr.mxu0 %v8588
    %10000 = vmatpush1.msra.mxu0 %v8587
    %10001 = vmatprep.subr.mxu0 %v8592
    %10002 = vmatpush1.msra.mxu0 %v8591
    %10003 = vmatprep.subr.mxu0 %v8596
    %10004 = vmatpush1.msra.mxu0 %v8595
    %10005 = vmatprep.subr.mxu0 %v8600
    %10006 = vmatpush1.msra.mxu0 %v8599
    %10007 = vmatprep.subr.mxu0 %v8604
    %10008 = vmatpush1.msra.mxu0 %v8603
    %10009 = vmatprep.subr.mxu0 %v8608
    %10010 = vmatpush1.msra.mxu0 %v8607
    %10011 = vmatprep.subr.mxu0 %v8612
    %10012 = vmatpush1.msra.mxu0 %v8611
    %10013 = vmatprep.subr.mxu0 %v8616
    %10014 = vmatpush1.msra.mxu0 %v8615
    %10015 = vmatprep.subr.mxu0 %v8620
    %10016 = vmatpush1.msra.mxu0 %v8619
    %10017 = vmatprep.subr.mxu0 %v8624
    %10018 = vmatpush1.msra.mxu0 %v8623
    %10019 = vmatprep.mubr.f32.mxu0 %v7450
    %10020 = vmatmul.mubr.f32.gmra.mrb[0].mxu0 %v7449
    %v10021 = vpop.f32.mrb[0].mxu0
    %v10022 = vadd.f32 %v9945, %v10021
    %v10023 = vpop.f32.mrb[0].mxu0
    %v10024 = vadd.f32 %v9947, %v10023
    %10025 = vmatprep.mubr.f32.mxu0 %v7466
    %10026 = vmatmul.mubr.f32.gmra.mrb[0].mxu0 %v7465
    %v10027 = vpop.f32.mrb[0].mxu0
    %v10028 = vadd.f32 %v9951, %v10027
    %v10029 = vpop.f32.mrb[0].mxu0
    %v10030 = vadd.f32 %v9953, %v10029
    %10031 = vdwg.mxu0
    %10032 = vmatprep.subr.mxu0 %v8628
    %10033 = vmatpush1.msra.mxu0 %v8627
    %10034 = vmatprep.subr.mxu0 %v8632
    %10035 = vmatpush1.msra.mxu0 %v8631
    %10036 = vmatprep.subr.mxu0 %v8636
    %10037 = vmatpush1.msra.mxu0 %v8635
    %10038 = vmatprep.subr.mxu0 %v8640
    %10039 = vmatpush1.msra.mxu0 %v8639
    %10040 = vmatprep.subr.mxu0 %v8644
    %10041 = vmatpush1.msra.mxu0 %v8643
    %10042 = vmatprep.subr.mxu0 %v8648
    %10043 = vmatpush1.msra.mxu0 %v8647
    %10044 = vmatprep.subr.mxu0 %v8652
    %10045 = vmatpush1.msra.mxu0 %v8651
    %10046 = vmatprep.subr.mxu0 %v8656
    %10047 = vmatpush1.msra.mxu0 %v8655
    %10048 = vmatprep.subr.mxu0 %v8660
    %10049 = vmatpush1.msra.mxu0 %v8659
    %10050 = vmatprep.subr.mxu0 %v8664
    %10051 = vmatpush1.msra.mxu0 %v8663
    %10052 = vmatprep.subr.mxu0 %v8668
    %10053 = vmatpush1.msra.mxu0 %v8667
    %10054 = vmatprep.subr.mxu0 %v8672
    %10055 = vmatpush1.msra.mxu0 %v8671
    %10056 = vmatprep.subr.mxu0 %v8676
    %10057 = vmatpush1.msra.mxu0 %v8675
    %10058 = vmatprep.subr.mxu0 %v8680
    %10059 = vmatpush1.msra.mxu0 %v8679
    %10060 = vmatprep.subr.mxu0 %v8684
    %10061 = vmatpush1.msra.mxu0 %v8683
    %10062 = vmatprep.subr.mxu0 %v8688
    %10063 = vmatpush1.msra.mxu0 %v8687
    %10064 = vmatprep.subr.mxu0 %v8692
    %10065 = vmatpush1.msra.mxu0 %v8691
    %10066 = vmatprep.subr.mxu0 %v8696
    %10067 = vmatpush1.msra.mxu0 %v8695
    %10068 = vmatprep.subr.mxu0 %v8700
    %10069 = vmatpush1.msra.mxu0 %v8699
    %10070 = vmatprep.subr.mxu0 %v8704
    %10071 = vmatpush1.msra.mxu0 %v8703
    %10072 = vmatprep.subr.mxu0 %v8708
    %10073 = vmatpush1.msra.mxu0 %v8707
    %10074 = vmatprep.subr.mxu0 %v8712
    %10075 = vmatpush1.msra.mxu0 %v8711
    %10076 = vmatprep.subr.mxu0 %v8716
    %10077 = vmatpush1.msra.mxu0 %v8715
    %10078 = vmatprep.subr.mxu0 %v8720
    %10079 = vmatpush1.msra.mxu0 %v8719
    %10080 = vmatprep.subr.mxu0 %v8724
    %10081 = vmatpush1.msra.mxu0 %v8723
    %10082 = vmatprep.subr.mxu0 %v8728
    %10083 = vmatpush1.msra.mxu0 %v8727
    %10084 = vmatprep.subr.mxu0 %v8732
    %10085 = vmatpush1.msra.mxu0 %v8731
    %10086 = vmatprep.subr.mxu0 %v8736
    %10087 = vmatpush1.msra.mxu0 %v8735
    %10088 = vmatprep.subr.mxu0 %v8740
    %10089 = vmatpush1.msra.mxu0 %v8739
    %10090 = vmatprep.subr.mxu0 %v8744
    %10091 = vmatpush1.msra.mxu0 %v8743
    %10092 = vmatprep.subr.mxu0 %v8748
    %10093 = vmatpush1.msra.mxu0 %v8747
    %10094 = vmatprep.subr.mxu0 %v8752
    %10095 = vmatpush1.msra.mxu0 %v8751
    %10096 = vmatprep.mubr.f32.mxu0 %v7452
    %10097 = vmatmul.mubr.f32.gmra.mrb[0].mxu0 %v7451
    %v10098 = vpop.f32.mrb[0].mxu0
    %v10099 = vadd.f32 %v10022, %v10098
    %v10100 = vpop.f32.mrb[0].mxu0
    %v10101 = vadd.f32 %v10024, %v10100
    %10102 = vmatprep.mubr.f32.mxu0 %v7468
    %10103 = vmatmul.mubr.f32.gmra.mrb[0].mxu0 %v7467
    %v10104 = vpop.f32.mrb[0].mxu0
    %v10105 = vadd.f32 %v10028, %v10104
    %v10106 = vpop.f32.mrb[0].mxu0
    %v10107 = vadd.f32 %v10030, %v10106
    %10108 = vdwg.mxu0
    %10109 = vmatprep.subr.mxu0 %v8756
    %10110 = vmatpush1.msra.mxu0 %v8755
    %10111 = vmatprep.subr.mxu0 %v8760
    %10112 = vmatpush1.msra.mxu0 %v8759
    %10113 = vmatprep.subr.mxu0 %v8764
    %10114 = vmatpush1.msra.mxu0 %v8763
    %10115 = vmatprep.subr.mxu0 %v8768
    %10116 = vmatpush1.msra.mxu0 %v8767
    %10117 = vmatprep.subr.mxu0 %v8772
    %10118 = vmatpush1.msra.mxu0 %v8771
    %10119 = vmatprep.subr.mxu0 %v8776
    %10120 = vmatpush1.msra.mxu0 %v8775
    %10121 = vmatprep.subr.mxu0 %v8780
    %10122 = vmatpush1.msra.mxu0 %v8779
    %10123 = vmatprep.subr.mxu0 %v8784
    %10124 = vmatpush1.msra.mxu0 %v8783
    %10125 = vmatprep.subr.mxu0 %v8788
    %10126 = vmatpush1.msra.mxu0 %v8787
    %10127 = vmatprep.subr.mxu0 %v8792
    %10128 = vmatpush1.msra.mxu0 %v8791
    %10129 = vmatprep.subr.mxu0 %v8796
    %10130 = vmatpush1.msra.mxu0 %v8795
    %10131 = vmatprep.subr.mxu0 %v8800
    %10132 = vmatpush1.msra.mxu0 %v8799
    %10133 = vmatprep.subr.mxu0 %v8804
    %10134 = vmatpush1.msra.mxu0 %v8803
    %10135 = vmatprep.subr.mxu0 %v8808
    %10136 = vmatpush1.msra.mxu0 %v8807
    %10137 = vmatprep.subr.mxu0 %v8812
    %10138 = vmatpush1.msra.mxu0 %v8811
    %10139 = vmatprep.subr.mxu0 %v8816
    %10140 = vmatpush1.msra.mxu0 %v8815
    %10141 = vmatprep.subr.mxu0 %v8820
    %10142 = vmatpush1.msra.mxu0 %v8819
    %10143 = vmatprep.subr.mxu0 %v8824
    %10144 = vmatpush1.msra.mxu0 %v8823
    %10145 = vmatprep.subr.mxu0 %v8828
    %10146 = vmatpush1.msra.mxu0 %v8827
    %10147 = vmatprep.subr.mxu0 %v8832
    %10148 = vmatpush1.msra.mxu0 %v8831
    %10149 = vmatprep.subr.mxu0 %v8836
    %10150 = vmatpush1.msra.mxu0 %v8835
    %10151 = vmatprep.subr.mxu0 %v8840
    %10152 = vmatpush1.msra.mxu0 %v8839
    %10153 = vmatprep.subr.mxu0 %v8844
    %10154 = vmatpush1.msra.mxu0 %v8843
    %10155 = vmatprep.subr.mxu0 %v8848
    %10156 = vmatpush1.msra.mxu0 %v8847
    %10157 = vmatprep.subr.mxu0 %v8852
    %10158 = vmatpush1.msra.mxu0 %v8851
    %10159 = vmatprep.subr.mxu0 %v8856
    %10160 = vmatpush1.msra.mxu0 %v8855
    %10161 = vmatprep.subr.mxu0 %v8860
    %10162 = vmatpush1.msra.mxu0 %v8859
    %10163 = vmatprep.subr.mxu0 %v8864
    %10164 = vmatpush1.msra.mxu0 %v8863
    %10165 = vmatprep.subr.mxu0 %v8868
    %10166 = vmatpush1.msra.mxu0 %v8867
    %10167 = vmatprep.subr.mxu0 %v8872
    %10168 = vmatpush1.msra.mxu0 %v8871
    %10169 = vmatprep.subr.mxu0 %v8876
    %10170 = vmatpush1.msra.mxu0 %v8875
    %10171 = vmatprep.subr.mxu0 %v8880
    %10172 = vmatpush1.msra.mxu0 %v8879
    %10173 = vmatprep.mubr.f32.mxu0 %v7454
    %10174 = vmatmul.mubr.f32.gmra.mrb[0].mxu0 %v7453
    %v10175 = vpop.f32.mrb[0].mxu0
    %v10176 = vadd.f32 %v10099, %v10175
    %v10177 = vpop.f32.mrb[0].mxu0
    %v10178 = vadd.f32 %v10101, %v10177
    %10179 = vmatprep.mubr.f32.mxu0 %v7470
    %10180 = vmatmul.mubr.f32.gmra.mrb[0].mxu0 %v7469
    %v10181 = vpop.f32.mrb[0].mxu0
    %v10182 = vadd.f32 %v10105, %v10181
    %v10183 = vpop.f32.mrb[0].mxu0
    %v10184 = vadd.f32 %v10107, %v10183
    %10185 = vdwg.mxu0
    %10186 = vmatprep.subr.mxu0 %v8884
    %10187 = vmatpush1.msra.mxu0 %v8883
    %10188 = vmatprep.subr.mxu0 %v8888
    %10189 = vmatpush1.msra.mxu0 %v8887
    %10190 = vmatprep.subr.mxu0 %v8892
    %10191 = vmatpush1.msra.mxu0 %v8891
    %10192 = vmatprep.subr.mxu0 %v8896
    %10193 = vmatpush1.msra.mxu0 %v8895
    %10194 = vmatprep.subr.mxu0 %v8900
    %10195 = vmatpush1.msra.mxu0 %v8899
    %10196 = vmatprep.subr.mxu0 %v8904
    %10197 = vmatpush1.msra.mxu0 %v8903
    %10198 = vmatprep.subr.mxu0 %v8908
    %10199 = vmatpush1.msra.mxu0 %v8907
    %10200 = vmatprep.subr.mxu0 %v8912
    %10201 = vmatpush1.msra.mxu0 %v8911
    %10202 = vmatprep.subr.mxu0 %v8916
    %10203 = vmatpush1.msra.mxu0 %v8915
    %10204 = vmatprep.subr.mxu0 %v8920
    %10205 = vmatpush1.msra.mxu0 %v8919
    %10206 = vmatprep.subr.mxu0 %v8924
    %10207 = vmatpush1.msra.mxu0 %v8923
    %10208 = vmatprep.subr.mxu0 %v8928
    %10209 = vmatpush1.msra.mxu0 %v8927
    %10210 = vmatprep.subr.mxu0 %v8932
    %10211 = vmatpush1.msra.mxu0 %v8931
    %10212 = vmatprep.subr.mxu0 %v8936
    %10213 = vmatpush1.msra.mxu0 %v8935
    %10214 = vmatprep.subr.mxu0 %v8940
    %10215 = vmatpush1.msra.mxu0 %v8939
    %10216 = vmatprep.subr.mxu0 %v8944
    %10217 = vmatpush1.msra.mxu0 %v8943
    %10218 = vmatprep.subr.mxu0 %v8948
    %10219 = vmatpush1.msra.mxu0 %v8947
    %10220 = vmatprep.subr.mxu0 %v8952
    %10221 = vmatpush1.msra.mxu0 %v8951
    %10222 = vmatprep.subr.mxu0 %v8956
    %10223 = vmatpush1.msra.mxu0 %v8955
    %10224 = vmatprep.subr.mxu0 %v8960
    %10225 = vmatpush1.msra.mxu0 %v8959
    %10226 = vmatprep.subr.mxu0 %v8964
    %10227 = vmatpush1.msra.mxu0 %v8963
    %10228 = vmatprep.subr.mxu0 %v8968
    %10229 = vmatpush1.msra.mxu0 %v8967
    %10230 = vmatprep.subr.mxu0 %v8972
    %10231 = vmatpush1.msra.mxu0 %v8971
    %10232 = vmatprep.subr.mxu0 %v8976
    %10233 = vmatpush1.msra.mxu0 %v8975
    %10234 = vmatprep.subr.mxu0 %v8980
    %10235 = vmatpush1.msra.mxu0 %v8979
    %10236 = vmatprep.subr.mxu0 %v8984
    %10237 = vmatpush1.msra.mxu0 %v8983
    %10238 = vmatprep.subr.mxu0 %v8988
    %10239 = vmatpush1.msra.mxu0 %v8987
    %10240 = vmatprep.subr.mxu0 %v8992
    %10241 = vmatpush1.msra.mxu0 %v8991
    %10242 = vmatprep.subr.mxu0 %v8996
    %10243 = vmatpush1.msra.mxu0 %v8995
    %10244 = vmatprep.subr.mxu0 %v9000
    %10245 = vmatpush1.msra.mxu0 %v8999
    %10246 = vmatprep.subr.mxu0 %v9004
    %10247 = vmatpush1.msra.mxu0 %v9003
    %10248 = vmatprep.subr.mxu0 %v9008
    %10249 = vmatpush1.msra.mxu0 %v9007
    %10250 = vmatprep.mubr.f32.mxu0 %v7456
    %10251 = vmatmul.mubr.f32.gmra.mrb[0].mxu0 %v7455
    %v10252 = vpop.f32.mrb[0].mxu0
    %v10253 = vadd.f32 %v10176, %v10252
    %v10254 = vpop.f32.mrb[0].mxu0
    %v10255 = vadd.f32 %v10178, %v10254
    %10256 = vmatprep.mubr.f32.mxu0 %v7472
    %10257 = vmatmul.mubr.f32.gmra.mrb[0].mxu0 %v7471
    %v10258 = vpop.f32.mrb[0].mxu0
    %v10259 = vadd.f32 %v10182, %v10258
    %v10260 = vpop.f32.mrb[0].mxu0
    %v10261 = vadd.f32 %v10184, %v10260
    %10262 = vdwg.mxu0
    %v10263 = vadd.f32 %v9637, %v4581
    %v10264 = vadd.f32 %v9639, %v4582
    %v10265 = vadd.f32 %v10253, %v4583
    %v10266 = vadd.f32 %v10255, %v4584
    %v10267 = vadd.f32 %v9643, %v4585
    %v10268 = vadd.f32 %v9645, %v4586
    %v10269 = vadd.f32 %v10259, %v4587
    %v10270 = vadd.f32 %v10261, %v4588
    %v10271 = vld [vmem:[#allocation34] sm:$0xf]
    %v10272 = vld [vmem:[#allocation35] sm:$0xf]
    %v10273 = vadd.f32 %v10263, %v10264
    %v10274 = vadd.f32 %v10273, %v10265
    %v10275 = vadd.f32 %v10274, %v10266
    %10276 = vadd.xlane.f32.xlu0 %v10275
    %v10277 = vpop.xlane.xlu0 %10276
    %v10278 = vadd.f32 %v10267, %v10268
    %v10279 = vadd.f32 %v10278, %v10269
    %v10280 = vadd.f32 %v10279, %v10270
    %10281 = vadd.xlane.f32.xlu0 %v10280
    %v10282 = vpop.xlane.xlu0 %10281
    %v10283 = vmul.f32 %v10277, %v2026
    %v10284 = vmul.f32 %v10282, %v2026
    %v10285 = vsub.f32 %v10263, %v10283
    %v10286 = vsub.f32 %v10264, %v10283
    %v10287 = vsub.f32 %v10265, %v10283
    %v10288 = vsub.f32 %v10266, %v10283
    %v10289 = vsub.f32 %v10267, %v10284
    %v10290 = vsub.f32 %v10268, %v10284
    %v10291 = vsub.f32 %v10269, %v10284
    %v10292 = vsub.f32 %v10270, %v10284
    %v10293 = vmul.f32 %v10285, %v10285
    %v10294 = vmul.f32 %v10286, %v10286
    %v10295 = vmul.f32 %v10287, %v10287
    %v10296 = vmul.f32 %v10288, %v10288
    %v10297 = vmul.f32 %v10289, %v10289
    %v10298 = vmul.f32 %v10290, %v10290
    %v10299 = vmul.f32 %v10291, %v10291
    %v10300 = vmul.f32 %v10292, %v10292
    %v10301 = vadd.f32 %v10293, %v10294
    %v10302 = vadd.f32 %v10301, %v10295
    %v10303 = vadd.f32 %v10302, %v10296
    %10304 = vadd.xlane.f32.xlu0 %v10303
    %v10305 = vpop.xlane.xlu0 %10304
    %v10306 = vadd.f32 %v10297, %v10298
    %v10307 = vadd.f32 %v10306, %v10299
    %v10308 = vadd.f32 %v10307, %v10300
    %10309 = vadd.xlane.f32.xlu0 %v10308
    %v10310 = vpop.xlane.xlu0 %10309
    %v10311 = vmul.f32 %v10305, %v2026
    %v10312 = vmul.f32 %v10310, %v2026
    %v10313 = vadd.f32 %v10311, 1e-05
    %v10314 = vadd.f32 %v10312, 1e-05
    %v10315 = vrsqrt.pop %v10313
    %v10316 = vrsqrt.pop %v10314
    %v10317 = vmul.f32 %v10285, %v10315
    %v10318 = vmul.f32 %v10286, %v10315
    %v10319 = vmul.f32 %v10287, %v10315
    %v10320 = vmul.f32 %v10288, %v10315
    %v10321 = vmul.f32 %v10289, %v10316
    %v10322 = vmul.f32 %v10290, %v10316
    %v10323 = vmul.f32 %v10291, %v10316
    %v10324 = vmul.f32 %v10292, %v10316
    %v10326 = vlaneseq
    %v10327 = vshrl.u32 %v10326, 7
    %v10328 = vsub.s32 0, %v10327
    %v10329 = vrot.slane %v10271, %v10328
    %v10330 = vlaneseq
    %v10331 = vshrl.u32 %v10330, 7
    %v10332 = vsub.s32 1, %v10331
    %v10333 = vrot.slane %v10271, %v10332
    %v10334 = vlaneseq
    %v10335 = vshrl.u32 %v10334, 7
    %v10336 = vsub.s32 2, %v10335
    %v10337 = vrot.slane %v10271, %v10336
    %v10338 = vlaneseq
    %v10339 = vshrl.u32 %v10338, 7
    %v10340 = vsub.s32 3, %v10339
    %v10341 = vrot.slane %v10271, %v10340
    %v10346 = vmul.f32 %v10317, %v10329
    %v10347 = vmul.f32 %v10318, %v10333
    %v10348 = vmul.f32 %v10319, %v10337
    %v10349 = vmul.f32 %v10320, %v10341
    %v10350 = vmul.f32 %v10321, %v10329
    %v10351 = vmul.f32 %v10322, %v10333
    %v10352 = vmul.f32 %v10323, %v10337
    %v10353 = vmul.f32 %v10324, %v10341
    %v10355 = vlaneseq
    %v10356 = vshrl.u32 %v10355, 7
    %v10357 = vsub.s32 0, %v10356
    %v10358 = vrot.slane %v10272, %v10357
    %v10359 = vlaneseq
    %v10360 = vshrl.u32 %v10359, 7
    %v10361 = vsub.s32 1, %v10360
    %v10362 = vrot.slane %v10272, %v10361
    %v10363 = vlaneseq
    %v10364 = vshrl.u32 %v10363, 7
    %v10365 = vsub.s32 2, %v10364
    %v10366 = vrot.slane %v10272, %v10365
    %v10367 = vlaneseq
    %v10368 = vshrl.u32 %v10367, 7
    %v10369 = vsub.s32 3, %v10368
    %v10370 = vrot.slane %v10272, %v10369
    %v10375 = vadd.f32 %v10346, %v10358
    %v10376 = vadd.f32 %v10347, %v10362
    %v10377 = vadd.f32 %v10348, %v10366
    %v10378 = vadd.f32 %v10349, %v10370
    %v10379 = vadd.f32 %v10350, %v10358
    %v10380 = vadd.f32 %v10351, %v10362
    %v10381 = vadd.f32 %v10352, %v10366
    %v10382 = vadd.f32 %v10353, %v10370
    %10383 = vst [vmem:[#allocation37] sm:$0xff] %v10375
    %10384 = vst [vmem:[#allocation37 + $0x8] sm:$0xff] %v10376
    %10385 = vst [vmem:[#allocation37 + $0x10] sm:$0xff] %v10377
    %10386 = vst [vmem:[#allocation37 + $0x18] sm:$0xff] %v10378
    %10387 = vst [vmem:[#allocation37 + $0x20] sm:$0xff] %v10379
    %10388 = vst [vmem:[#allocation37 + $0x28] sm:$0xff] %v10380
    %10389 = vst [vmem:[#allocation37 + $0x30] sm:$0xff] %v10381
    %10390 = vst [vmem:[#allocation37 + $0x38] sm:$0xff] %v10382
    // Predicated region
    $region178: #{decoder_forward.1} parent=1 // pred_check
      _
    $region179: #{decoder_forward.1} parent=1 // pred_check_branch
      %10392 = sbr.rel (0) target = $region181
    $region180: #{decoder_forward.1} parent=1 // pred_region
      %s10394 = ssub.s32 1024, 1024
      %10395 = vsyncadd [#allocation4], %s10394
      %s10396 = sshll.u32 [#allocation37], 4
      %s10397 = int_to_ptr.vmem [resolvable:$true] %s10396
      %10402 = dma.vmem_to_hbm [thread:$0]  %s10397, 1024, %s22, [#allocation4], 512, 512, 32
    $region181: #{decoder_forward.1} parent=1 // pred_fallthru
      _
    // Predicated region
    $region182: #{decoder_forward.1} parent=1 // pred_check
      _
    $region183: #{decoder_forward.1} parent=1 // pred_check_branch
      %10404 = sbr.rel (0) target = $region185
    $region184: #{decoder_forward.1} parent=1 // pred_region
      %10405 = dma.done [#allocation4], 1024
    $region185: #{decoder_forward.1} parent=1 // pred_fallthru
      _
    %10406 = vsyncpa [#allocation3], 1
    %10407 = vsyncpa [#allocation6], 1
    %10408 = vsyncpa [#allocation9], 1
    %10409 = vsyncpa [#allocation12], 1
    %10410 = vsyncpa [#allocation15], 1
    %10411 = vsyncpa [#allocation18], 1
    %10412 = vsyncpa [#allocation21], 1
    %10413 = vsyncpa [#allocation24], 1
    %10414 = vsyncpa [#allocation27], 1
    %10415 = vsyncpa [#allocation30], 1
    %10416 = vsyncpa [#allocation33], 1
    %10417 = vsyncpa [#allocation36], 1
    %10418 = vsyncpa [#allocation4], 1

</llo_original>
